<compile_context>
chip_gen: v7x
topology: tpu7x:2x2x1
jax: 0.10.0
libtpu: 0.0.40
codegen_flags: <defaults>
</compile_context>

<pallas_src>
import functools

import jax
import jax.numpy as jnp
from jax.experimental import pallas as pl
from jax.experimental.pallas import tpu as pltpu

# ---- MIL head dims (match the PyTorch module) --------------------------------
FEAT_DIM = 1000   # output dim of feat_ext_part1 (linear_1 in_features)
FEAT_PAD = 1024   # lane-dense padding of FEAT_DIM (zero-padded)
M_DIM = 500       # self.M
M_PAD = 512       # lane-dense padding of M_DIM (zero-padded)
L_DIM = 128       # self.L
K_DIM = 1         # self.K
NUM_BAGS = 2      # self.num_bags (hard-coded by the module's m1/m2 cat)

# ---- stem (stand-in feature extractor) sizes ---------------------------------
C_IN = 3
KSIZE = 3
KDIM = C_IN * KSIZE * KSIZE   # 27
KPAD = 32                     # padded conv contraction dim
C_OUT = 128                   # lane-dense channel count
GROUPS = 8
CPG = C_OUT // GROUPS
GN_EPS = 1e-5


def _sigmoid(x):
    return 1.0 / (1.0 + jnp.exp(-x))


def _softmax_axis0(col):
    # softmax of a (k, 1) column over axis 0 (== softmax over dim 1 of A^T);
    # k <= 2*tiles scalars, so this sublane-layout reduce is negligible work.
    m = jnp.max(col, axis=0, keepdims=True)
    e = jnp.exp(col - m)
    return e / jnp.sum(e, axis=0, keepdims=True)


# =============================================================================
# Fused kernel: [conv(as matmul) + GroupNorm + ReLU + avg-pool + FC + linear_1]
# per instance block, accumulated into a persistent H scratch; MIL gated-
# attention head runs as an epilogue at the last grid step.
# =============================================================================
def fused_kernel(patches_ref, wconv_ref, bconv_ref, gamma_ref, beta_ref,
                 gavg_ref, wfc_ref, bfc_ref, w1_ref, b1_ref,
                 wv_ref, bv_ref, wu_ref, bu_ref, ww_ref, bw_ref,
                 wc_ref, bc_ref,
                 yprob_ref, yclass_ref, h_scratch,
                 *, nb, hw, tiles):
    i = pl.program_id(0)

    # ---- 3x3 conv as im2col matmul: (NB*HW, 32)bf16 @ (32, 128)bf16 -> f32 ----
    y = jnp.dot(patches_ref[...], wconv_ref[...],
                preferred_element_type=jnp.float32) + bconv_ref[...]      # (NB*HW, C)
    # TODO(synk): for production spatial sizes (hw ~ 3-12K) chunk hw here with a
    # two-pass GN (running s1/s2, then normalize+pool) so the f32 intermediates
    # stay bounded against v7x's 64 MiB VMEM.

    # --- GroupNorm (per instance) -------------------------------------------
    # Per-instance / per-channel spatial sums via reshape + sublane reduce.
    y3 = jnp.reshape(y, (nb, hw, C_OUT))                                  # (NB, HW, C)
    s1 = jnp.sum(y3, axis=1)                                              # (NB, C)
    s2 = jnp.sum(y3 * y3, axis=1)                                         # (NB, C)

    # Group mean / mean-of-squares broadcast back to channels via ONE resident
    # 128x128 block-diagonal averaging matrix (entries 1/(hw*CPG)).
    mean_c = jnp.dot(s1, gavg_ref[...], preferred_element_type=jnp.float32)  # (NB, C)
    msq_c = jnp.dot(s2, gavg_ref[...], preferred_element_type=jnp.float32)   # (NB, C)
    var_c = jnp.maximum(msq_c - mean_c * mean_c, 0.0)   # clamp: cancellation
    rstd_c = jax.lax.rsqrt(var_c + GN_EPS)                                # (NB, C)
    scale_c = rstd_c * gamma_ref[...]                                     # (NB, C)
    shift_c = beta_ref[...] - mean_c * scale_c                            # (NB, C)

    ya = jnp.maximum(y3 * jnp.reshape(scale_c, (nb, 1, C_OUT))
                     + jnp.reshape(shift_c, (nb, 1, C_OUT)), 0.0)         # GN + ReLU

    # global average pool over spatial positions -> (NB, C)
    pooled = jnp.sum(ya, axis=1) * (1.0 / hw)

    # FC to the (lane-padded) 1000-dim backbone feature
    feat = jnp.dot(pooled.astype(jnp.bfloat16), wfc_ref[...],
                   preferred_element_type=jnp.float32) + bfc_ref[...]     # (NB, 1024)

    # H = linear_1(features), accumulated into the persistent (N, 512) scratch
    h_blk = jnp.dot(feat.astype(jnp.bfloat16), w1_ref[...],
                    preferred_element_type=jnp.float32) + b1_ref[...]     # (NB, 512)
    row0 = pl.multiple_of(i * nb, nb)
    h_scratch[pl.ds(row0, nb), :] = h_blk

    # ---- MIL gated-attention head (epilogue, training branch) ---------------
    @pl.when(i == pl.num_programs(0) - 1)
    def _():
        H = h_scratch[...]                                                # (N, 512) f32
        Hb = H.astype(jnp.bfloat16)
        # A_V = tanh(att_V_1(H)), A_U = sigmoid(att_U_1(H))                (N, 128)
        A_V = jnp.tanh(jnp.dot(Hb, wv_ref[...],
                               preferred_element_type=jnp.float32) + bv_ref[...])
        A_U = _sigmoid(jnp.dot(Hb, wu_ref[...],
                               preferred_element_type=jnp.float32) + bu_ref[...])
        gated = A_V * A_U                                                 # (N, 128)

        # weig: 128 -> 1 as a VPU multiply + lane reduce (ww passed as (1,L) row)
        A = jnp.sum(gated * ww_ref[...], axis=1, keepdims=True) + bw_ref[...]  # (N, 1)

        # training branch: per-bag softmax (bag1 = first `tiles` rows, bag2 = rest)
        # TODO(synk): if the real `tiles` is not a multiple of 8, pad each bag's
        # rows and mask padded logits to -inf to keep sublane-aligned slices.
        a1 = _softmax_axis0(A[:tiles, :])                                 # (tiles, 1)
        a2 = _softmax_axis0(A[tiles:, :])                                 # (N-tiles, 1)

        # m_i = a_i^T @ h_i expressed as weighted row-sum (no tiny transposes)
        m1 = jnp.sum(a1 * H[:tiles, :], axis=0, keepdims=True)            # (1, 512)
        m2 = jnp.sum(a2 * H[tiles:, :], axis=0, keepdims=True)            # (1, 512)
        Mcat = jnp.concatenate([m1, m2], axis=0)                          # (2, 512)

        # class_1: 500(->512 padded) -> 1 as VPU multiply + lane reduce
        logit = jnp.sum(Mcat * wc_ref[...], axis=1, keepdims=True) + bc_ref[...]  # (2,1)
        y_prob = _sigmoid(logit)
        y_class = (y_prob >= 0.5).astype(jnp.float32)

        # lane-dense stores; the wrapper slices back to (2, 1) / (2,)
        yprob_ref[...] = jnp.broadcast_to(y_prob, yprob_ref.shape)
        yclass_ref[...] = jnp.broadcast_to(y_class, yclass_ref.shape)


# =============================================================================
# Glue: im2col, parameter construction, wrapper
# =============================================================================
def im2col(x, k=KSIZE, pad=1):
    # x: (N, Cin, S, S) NCHW -> (N*S*S, Cin*k*k), rows = instance-major spatial.
    # Cast to bf16 BEFORE this expansion (done by the caller) so the 9x blow-up
    # in HBM is half the bytes.
    n, cin, s, _ = x.shape
    xp = jnp.pad(x, ((0, 0), (0, 0), (pad, pad), (pad, pad)))
    cols = jnp.stack([xp[:, :, di:di + s, dj:dj + s]
                      for di in range(k) for dj in range(k)], axis=2)  # (N,Cin,k*k,S,S)
    cols = jnp.transpose(cols, (0, 3, 4, 1, 2))                        # (N,S,S,Cin,k*k)
    return cols.reshape(n * s * s, cin * k * k)
    # TODO(synk): the 3x3 conv could be done fully in-kernel as 9 shifted
    # matmuls on the raw input to avoid the im2col expansion in HBM entirely.


def _pad_cols(a, target):
    return jnp.pad(a, ((0, 0), (0, target - a.shape[1])))


def _pad_rows(a, target):
    return jnp.pad(a, ((0, target - a.shape[0]), (0, 0)))


def init_params(key):
    def dense(k, fan_in, fan_out, scale=0.05):
        kw, kb = jax.random.split(k)
        w = scale * jax.random.normal(kw, (fan_in, fan_out), jnp.float32)
        b = scale * jax.random.normal(kb, (1, fan_out), jnp.float32)
        return w, b

    keys = jax.random.split(key, 8)
    p = {}
    # stand-in backbone (contract: 3xSxS image -> 1000-d feature vector)
    p["wconv"], p["bconv"] = dense(keys[0], KDIM, C_OUT, 0.1)
    p["gamma"] = jnp.ones((1, C_OUT), jnp.float32)
    p["beta"] = jnp.zeros((1, C_OUT), jnp.float32)
    p["wfc"], p["bfc"] = dense(keys[1], C_OUT, FEAT_DIM, 0.1)
    # MIL head (shapes from the module __init__)
    p["w1"], p["b1"] = dense(keys[2], FEAT_DIM, M_DIM)       # linear_1: 1000 -> 500
    p["wv"], p["bv"] = dense(keys[3], M_DIM, L_DIM)          # att_V_1 : 500 -> 128
    p["wu"], p["bu"] = dense(keys[4], M_DIM, L_DIM)          # att_U_1 : 500 -> 128
    p["ww"], p["bw"] = dense(keys[5], L_DIM, K_DIM)          # weig    : 128 -> 1
    p["wc"], p["bc"] = dense(keys[6], M_DIM * K_DIM, 1)      # class_1 : 500 -> 1
    return p


def _pick_block(n):
    # largest divisor of n that is a multiple of 16 (pref) / 8 and <= 64
    for mult in (16, 8):
        best = 0
        for d in range(mult, min(64, n) + 1, mult):
            if n % d == 0:
                best = d
        if best:
            return best
    return n   # tiny / ragged n: single block


@functools.partial(jax.jit, static_argnames=("tiles",))
def forward(x, params, *, tiles):
    bag_size, tiles_amount, cin, s, _ = x.shape
    n = bag_size * tiles_amount
    hw = s * s
    if not (0 < tiles < n):
        raise ValueError("`tiles` must split the instances into two non-empty bags")

    nb = _pick_block(n)
    grid = (n // nb,)

    # im2col on bf16 input (halves the expansion bytes), pad contraction to 32.
    x = jnp.reshape(x, (n, cin, s, s)).astype(jnp.bfloat16)
    patches = _pad_cols(im2col(x), KPAD)                            # (N*HW, 32) bf16

    # bf16 matmul operands (f32 accumulation in-kernel); lane-dense padding.
    wconv = _pad_rows(params["wconv"], KPAD).astype(jnp.bfloat16)   # (32, 128)
    wfc = _pad_cols(params["wfc"], FEAT_PAD).astype(jnp.bfloat16)   # (128, 1024)
    bfc = _pad_cols(params["bfc"], FEAT_PAD)                        # (1, 1024) f32
    w1 = _pad_cols(_pad_rows(params["w1"], FEAT_PAD), M_PAD).astype(jnp.bfloat16)  # (1024, 512)
    b1 = _pad_cols(params["b1"], M_PAD)                             # (1, 512) f32
    wv = _pad_rows(params["wv"], M_PAD).astype(jnp.bfloat16)        # (512, 128)
    wu = _pad_rows(params["wu"], M_PAD).astype(jnp.bfloat16)        # (512, 128)
    ww_row = params["ww"].T                                         # (1, 128) f32
    wc_row = _pad_cols(params["wc"].T, M_PAD)                       # (1, 512) f32

    # block-diagonal group-averaging matrix (resident, folds 1/(hw*CPG) scale)
    grp = jnp.arange(C_OUT, dtype=jnp.int32) // CPG
    gavg = (grp[:, None] == grp[None, :]).astype(jnp.float32) * (1.0 / (hw * CPG))

    def res(shape):
        return pl.BlockSpec(shape, lambda i: (0, 0))

    y_prob_pad, y_class_pad = pl.pallas_call(
        functools.partial(fused_kernel, nb=nb, hw=hw, tiles=tiles),
        out_shape=(jax.ShapeDtypeStruct((NUM_BAGS, 128), jnp.float32),
                   jax.ShapeDtypeStruct((NUM_BAGS, 128), jnp.float32)),
        grid=grid,
        in_specs=[
            pl.BlockSpec((nb * hw, KPAD), lambda i: (i, 0)),   # patches (pipelined)
            res((KPAD, C_OUT)),                                # wconv (resident)
            res((1, C_OUT)),                                   # bconv
            res((1, C_OUT)),                                   # gamma
            res((1, C_OUT)),                                   # beta
            res((C_OUT, C_OUT)),                               # gavg
            res((C_OUT, FEAT_PAD)),                            # wfc
            res((1, FEAT_PAD)),                                # bfc
            res((FEAT_PAD, M_PAD)),                            # w1
            res((1, M_PAD)),                                   # b1
            res((M_PAD, L_DIM)),                               # wv
            res((1, L_DIM)),                                   # bv
            res((M_PAD, L_DIM)),                               # wu
            res((1, L_DIM)),                                   # bu
            res((1, L_DIM)),                                   # ww_row
            res((1, 1)),                                       # bw
            res((1, M_PAD)),                                   # wc_row
            res((1, 1)),                                       # bc
        ],
        out_specs=(res((NUM_BAGS, 128)), res((NUM_BAGS, 128))),
        scratch_shapes=[pltpu.VMEM((n, M_PAD), jnp.float32)],  # persistent H
        compiler_params=pltpu.CompilerParams(
            dimension_semantics=("arbitrary",),    # epilogue needs all blocks
            vmem_limit_bytes=48 * 1024 * 1024,     # <= v7x's 64 MiB physical
        ),
    )(patches, wconv, params["bconv"], params["gamma"], params["beta"], gavg,
      wfc, bfc, w1, b1, wv, params["bv"], wu, params["bu"],
      ww_row, params["bw"], wc_row, params["bc"])

    y_prob = y_prob_pad[:, :1]        # (2, 1)   == Y_prob
    y_class_1d = y_class_pad[:, 0]    # (2,)     == Y_class[:, 0]
    return y_prob, y_class_1d


if __name__ == "__main__":
    key = jax.random.PRNGKey(0)
    k_x, k_p = jax.random.split(key)

    # small shapes consistent with the forward: (bag_size, tiles_amount, 3, S, S)
    bag_size, tiles_amount, s = 2, 8, 16
    tiles = 8                          # constructor arg (scaled down from 50)

    x = jax.random.normal(k_x, (bag_size, tiles_amount, C_IN, s, s), jnp.float32)
    params = init_params(k_p)

    y_prob, y_class_1d = forward(x, params, tiles=tiles)
    jax.block_until_ready((y_prob, y_class_1d))

    assert y_prob.shape == (NUM_BAGS, 1) and y_class_1d.shape == (NUM_BAGS,)
    print("KERNEL_OK")
</pallas_src>

<mosaic_0001>
module attributes {stable_mosaic.version = 11 : i64} {
  func.func @fused_kernel(%arg0: i32, %arg1: memref<4096x32xbf16, #tpu.memory_space<vmem>>, %arg2: memref<32x128xbf16, #tpu.memory_space<vmem>>, %arg3: memref<1x128xf32, #tpu.memory_space<vmem>>, %arg4: memref<1x128xf32, #tpu.memory_space<vmem>>, %arg5: memref<1x128xf32, #tpu.memory_space<vmem>>, %arg6: memref<128x128xf32, #tpu.memory_space<vmem>>, %arg7: memref<128x1024xbf16, #tpu.memory_space<vmem>>, %arg8: memref<1x1024xf32, #tpu.memory_space<vmem>>, %arg9: memref<1024x512xbf16, #tpu.memory_space<vmem>>, %arg10: memref<1x512xf32, #tpu.memory_space<vmem>>, %arg11: memref<512x128xbf16, #tpu.memory_space<vmem>>, %arg12: memref<1x128xf32, #tpu.memory_space<vmem>>, %arg13: memref<512x128xbf16, #tpu.memory_space<vmem>>, %arg14: memref<1x128xf32, #tpu.memory_space<vmem>>, %arg15: memref<1x128xf32, #tpu.memory_space<vmem>>, %arg16: memref<1x1xf32, #tpu.memory_space<vmem>>, %arg17: memref<1x512xf32, #tpu.memory_space<vmem>>, %arg18: memref<1x1xf32, #tpu.memory_space<vmem>>, %arg19: memref<2x128xf32, #tpu.memory_space<vmem>>, %arg20: memref<2x128xf32, #tpu.memory_space<vmem>>, %arg21: memref<16x512xf32, #tpu.memory_space<vmem>>) attributes {dimension_semantics = [#tpu.dimension_semantics<arbitrary>], iteration_bounds = array<i64: 1>, scalar_prefetch = 0 : i64, scratch_operands = 1 : i64, tpu.core_type = #tpu.core_type<tc>, window_params = [{transform_indices = @transform_0, window_bounds = array<i64: 4096, 32>}, {pipeline_mode = #tpu.pipeline_mode<synchronous>, transform_indices = @transform_1, window_bounds = array<i64: 32, 128>}, {pipeline_mode = #tpu.pipeline_mode<synchronous>, transform_indices = @transform_2, window_bounds = array<i64: 1, 128>}, {pipeline_mode = #tpu.pipeline_mode<synchronous>, transform_indices = @transform_3, window_bounds = array<i64: 1, 128>}, {pipeline_mode = #tpu.pipeline_mode<synchronous>, transform_indices = @transform_4, window_bounds = array<i64: 1, 128>}, {pipeline_mode = #tpu.pipeline_mode<synchronous>, transform_indices = @transform_5, window_bounds = array<i64: 128, 128>}, {pipeline_mode = #tpu.pipeline_mode<synchronous>, transform_indices = @transform_6, window_bounds = array<i64: 128, 1024>}, {pipeline_mode = #tpu.pipeline_mode<synchronous>, transform_indices = @transform_7, window_bounds = array<i64: 1, 1024>}, {pipeline_mode = #tpu.pipeline_mode<synchronous>, transform_indices = @transform_8, window_bounds = array<i64: 1024, 512>}, {pipeline_mode = #tpu.pipeline_mode<synchronous>, transform_indices = @transform_9, window_bounds = array<i64: 1, 512>}, {pipeline_mode = #tpu.pipeline_mode<synchronous>, transform_indices = @transform_10, window_bounds = array<i64: 512, 128>}, {pipeline_mode = #tpu.pipeline_mode<synchronous>, transform_indices = @transform_11, window_bounds = array<i64: 1, 128>}, {pipeline_mode = #tpu.pipeline_mode<synchronous>, transform_indices = @transform_12, window_bounds = array<i64: 512, 128>}, {pipeline_mode = #tpu.pipeline_mode<synchronous>, transform_indices = @transform_13, window_bounds = array<i64: 1, 128>}, {pipeline_mode = #tpu.pipeline_mode<synchronous>, transform_indices = @transform_14, window_bounds = array<i64: 1, 128>}, {pipeline_mode = #tpu.pipeline_mode<synchronous>, transform_indices = @transform_15, window_bounds = array<i64: 1, 1>}, {pipeline_mode = #tpu.pipeline_mode<synchronous>, transform_indices = @transform_16, window_bounds = array<i64: 1, 512>}, {pipeline_mode = #tpu.pipeline_mode<synchronous>, transform_indices = @transform_17, window_bounds = array<i64: 1, 1>}, {pipeline_mode = #tpu.pipeline_mode<synchronous>, transform_indices = @transform_18, window_bounds = array<i64: 2, 128>}, {pipeline_mode = #tpu.pipeline_mode<synchronous>, transform_indices = @transform_19, window_bounds = array<i64: 2, 128>}]} {
    %c0 = arith.constant 0 : index
    %c0_0 = arith.constant 0 : index
    %0 = vector.load %arg1[%c0, %c0_0] : memref<4096x32xbf16, #tpu.memory_space<vmem>>, vector<4096x32xbf16>
    %c0_1 = arith.constant 0 : index
    %c0_2 = arith.constant 0 : index
    %1 = vector.load %arg2[%c0_1, %c0_2] : memref<32x128xbf16, #tpu.memory_space<vmem>>, vector<32x128xbf16>
    %cst = arith.constant dense<0.000000e+00> : vector<4096x128xf32>
    %2 = tpu.matmul %0, %1, %cst {dimension_numbers = #tpu.dot_dimension_numbers<[1], [0], [0], [1], [0, 0, 1, 1], [], []>} : vector<4096x32xbf16>, vector<32x128xbf16>, vector<4096x128xf32> -> vector<4096x128xf32>
    %c0_3 = arith.constant 0 : index
    %c0_4 = arith.constant 0 : index
    %3 = vector.load %arg3[%c0_3, %c0_4] : memref<1x128xf32, #tpu.memory_space<vmem>>, vector<1x128xf32>
    %4 = vector.broadcast %3 : vector<1x128xf32> to vector<4096x128xf32>
    %5 = arith.addf %2, %4 : vector<4096x128xf32>
    %6 = vector.shape_cast %5 : vector<4096x128xf32> to vector<16x256x128xf32>
    %cst_5 = arith.constant dense<0.000000e+00> : vector<16x128xf32>
    %7 = vector.multi_reduction <add>, %6, %cst_5 [1] : vector<16x256x128xf32> to vector<16x128xf32>
    %8 = arith.mulf %6, %6 : vector<16x256x128xf32>
    %cst_6 = arith.constant dense<0.000000e+00> : vector<16x128xf32>
    %9 = vector.multi_reduction <add>, %8, %cst_6 [1] : vector<16x256x128xf32> to vector<16x128xf32>
    %c0_7 = arith.constant 0 : index
    %c0_8 = arith.constant 0 : index
    %10 = vector.load %arg6[%c0_7, %c0_8] : memref<128x128xf32, #tpu.memory_space<vmem>>, vector<128x128xf32>
    %cst_9 = arith.constant dense<0.000000e+00> : vector<16x128xf32>
    %11 = tpu.matmul %7, %10, %cst_9 {dimension_numbers = #tpu.dot_dimension_numbers<[1], [0], [0], [1], [0, 0, 1, 1], [], []>} : vector<16x128xf32>, vector<128x128xf32>, vector<16x128xf32> -> vector<16x128xf32>
    %c0_10 = arith.constant 0 : index
    %c0_11 = arith.constant 0 : index
    %12 = vector.load %arg6[%c0_10, %c0_11] : memref<128x128xf32, #tpu.memory_space<vmem>>, vector<128x128xf32>
    %cst_12 = arith.constant dense<0.000000e+00> : vector<16x128xf32>
    %13 = tpu.matmul %9, %12, %cst_12 {dimension_numbers = #tpu.dot_dimension_numbers<[1], [0], [0], [1], [0, 0, 1, 1], [], []>} : vector<16x128xf32>, vector<128x128xf32>, vector<16x128xf32> -> vector<16x128xf32>
    %14 = arith.mulf %11, %11 : vector<16x128xf32>
    %15 = arith.subf %13, %14 : vector<16x128xf32>
    %cst_13 = arith.constant 0.000000e+00 : f32
    %16 = vector.broadcast %cst_13 : f32 to vector<16x128xf32>
    %17 = arith.maximumf %15, %16 : vector<16x128xf32>
    %cst_14 = arith.constant 9.99999974E-6 : f32
    %18 = vector.broadcast %cst_14 : f32 to vector<16x128xf32>
    %19 = arith.addf %17, %18 : vector<16x128xf32>
    %20 = math.rsqrt %19 : vector<16x128xf32>
    %c0_15 = arith.constant 0 : index
    %c0_16 = arith.constant 0 : index
    %21 = vector.load %arg4[%c0_15, %c0_16] : memref<1x128xf32, #tpu.memory_space<vmem>>, vector<1x128xf32>
    %22 = vector.broadcast %21 : vector<1x128xf32> to vector<16x128xf32>
    %23 = arith.mulf %20, %22 : vector<16x128xf32>
    %c0_17 = arith.constant 0 : index
    %c0_18 = arith.constant 0 : index
    %24 = vector.load %arg5[%c0_17, %c0_18] : memref<1x128xf32, #tpu.memory_space<vmem>>, vector<1x128xf32>
    %25 = arith.mulf %11, %23 : vector<16x128xf32>
    %26 = vector.broadcast %24 : vector<1x128xf32> to vector<16x128xf32>
    %27 = arith.subf %26, %25 : vector<16x128xf32>
    %28 = vector.shape_cast %23 : vector<16x128xf32> to vector<16x1x128xf32>
    %29 = vector.broadcast %28 : vector<16x1x128xf32> to vector<16x256x128xf32>
    %30 = arith.mulf %6, %29 : vector<16x256x128xf32>
    %31 = vector.shape_cast %27 : vector<16x128xf32> to vector<16x1x128xf32>
    %32 = vector.broadcast %31 : vector<16x1x128xf32> to vector<16x256x128xf32>
    %33 = arith.addf %30, %32 : vector<16x256x128xf32>
    %cst_19 = arith.constant 0.000000e+00 : f32
    %34 = vector.broadcast %cst_19 : f32 to vector<16x256x128xf32>
    %35 = arith.maximumf %33, %34 : vector<16x256x128xf32>
    %cst_20 = arith.constant dense<0.000000e+00> : vector<16x128xf32>
    %36 = vector.multi_reduction <add>, %35, %cst_20 [1] : vector<16x256x128xf32> to vector<16x128xf32>
    %cst_21 = arith.constant 3.906250e-03 : f32
    %37 = vector.broadcast %cst_21 : f32 to vector<16x128xf32>
    %38 = arith.mulf %36, %37 : vector<16x128xf32>
    %39 = arith.truncf %38 : vector<16x128xf32> to vector<16x128xbf16>
    %c0_22 = arith.constant 0 : index
    %c0_23 = arith.constant 0 : index
    %40 = vector.load %arg7[%c0_22, %c0_23] : memref<128x1024xbf16, #tpu.memory_space<vmem>>, vector<128x1024xbf16>
    %cst_24 = arith.constant dense<0.000000e+00> : vector<16x1024xf32>
    %41 = tpu.matmul %39, %40, %cst_24 {dimension_numbers = #tpu.dot_dimension_numbers<[1], [0], [0], [1], [0, 0, 1, 1], [], []>} : vector<16x128xbf16>, vector<128x1024xbf16>, vector<16x1024xf32> -> vector<16x1024xf32>
    %c0_25 = arith.constant 0 : index
    %c0_26 = arith.constant 0 : index
    %42 = vector.load %arg8[%c0_25, %c0_26] : memref<1x1024xf32, #tpu.memory_space<vmem>>, vector<1x1024xf32>
    %43 = vector.broadcast %42 : vector<1x1024xf32> to vector<16x1024xf32>
    %44 = arith.addf %41, %43 : vector<16x1024xf32>
    %45 = arith.truncf %44 : vector<16x1024xf32> to vector<16x1024xbf16>
    %c0_27 = arith.constant 0 : index
    %c0_28 = arith.constant 0 : index
    %46 = vector.load %arg9[%c0_27, %c0_28] : memref<1024x512xbf16, #tpu.memory_space<vmem>>, vector<1024x512xbf16>
    %cst_29 = arith.constant dense<0.000000e+00> : vector<16x512xf32>
    %47 = tpu.matmul %45, %46, %cst_29 {dimension_numbers = #tpu.dot_dimension_numbers<[1], [0], [0], [1], [0, 0, 1, 1], [], []>} : vector<16x1024xbf16>, vector<1024x512xbf16>, vector<16x512xf32> -> vector<16x512xf32>
    %c0_30 = arith.constant 0 : index
    %c0_31 = arith.constant 0 : index
    %48 = vector.load %arg10[%c0_30, %c0_31] : memref<1x512xf32, #tpu.memory_space<vmem>>, vector<1x512xf32>
    %49 = vector.broadcast %48 : vector<1x512xf32> to vector<16x512xf32>
    %50 = arith.addf %47, %49 : vector<16x512xf32>
    %c16_i32 = arith.constant 16 : i32
    %51 = arith.muli %arg0, %c16_i32 : i32
    %52 = tpu.assume_multiple %51, 16 : i32
    %53 = arith.index_cast %52 : i32 to index
    %c0_32 = arith.constant 0 : index
    %54 = vector.load %arg21[%53, %c0_32] : memref<16x512xf32, #tpu.memory_space<vmem>>, vector<16x512xf32>
    tpu.vector_store %arg21[%53, %c0_32], %50 {strides = array<i32>} : memref<16x512xf32, #tpu.memory_space<vmem>>, vector<16x512xf32>,
    %c0_i32 = arith.constant 0 : i32
    %55 = arith.cmpi eq, %arg0, %c0_i32 : i32
    %56 = arith.extui %55 : i1 to i32
    %c0_i32_33 = arith.constant 0 : i32
    %57 = arith.cmpi ne, %56, %c0_i32_33 : i32
    scf.if %57 {
      %c0_34 = arith.constant 0 : index
      %c0_35 = arith.constant 0 : index
      %58 = vector.load %arg21[%c0_34, %c0_35] : memref<16x512xf32, #tpu.memory_space<vmem>>, vector<16x512xf32>
      %59 = arith.truncf %58 : vector<16x512xf32> to vector<16x512xbf16>
      %c0_36 = arith.constant 0 : index
      %c0_37 = arith.constant 0 : index
      %60 = vector.load %arg11[%c0_36, %c0_37] : memref<512x128xbf16, #tpu.memory_space<vmem>>, vector<512x128xbf16>
      %cst_38 = arith.constant dense<0.000000e+00> : vector<16x128xf32>
      %61 = tpu.matmul %59, %60, %cst_38 {dimension_numbers = #tpu.dot_dimension_numbers<[1], [0], [0], [1], [0, 0, 1, 1], [], []>} : vector<16x512xbf16>, vector<512x128xbf16>, vector<16x128xf32> -> vector<16x128xf32>
      %c0_39 = arith.constant 0 : index
      %c0_40 = arith.constant 0 : index
      %62 = vector.load %arg12[%c0_39, %c0_40] : memref<1x128xf32, #tpu.memory_space<vmem>>, vector<1x128xf32>
      %63 = vector.broadcast %62 : vector<1x128xf32> to vector<16x128xf32>
      %64 = arith.addf %61, %63 : vector<16x128xf32>
      %65 = math.tanh %64 : vector<16x128xf32>
      %c0_41 = arith.constant 0 : index
      %c0_42 = arith.constant 0 : index
      %66 = vector.load %arg13[%c0_41, %c0_42] : memref<512x128xbf16, #tpu.memory_space<vmem>>, vector<512x128xbf16>
      %cst_43 = arith.constant dense<0.000000e+00> : vector<16x128xf32>
      %67 = tpu.matmul %59, %66, %cst_43 {dimension_numbers = #tpu.dot_dimension_numbers<[1], [0], [0], [1], [0, 0, 1, 1], [], []>} : vector<16x512xbf16>, vector<512x128xbf16>, vector<16x128xf32> -> vector<16x128xf32>
      %c0_44 = arith.constant 0 : index
      %c0_45 = arith.constant 0 : index
      %68 = vector.load %arg14[%c0_44, %c0_45] : memref<1x128xf32, #tpu.memory_space<vmem>>, vector<1x128xf32>
      %69 = vector.broadcast %68 : vector<1x128xf32> to vector<16x128xf32>
      %70 = arith.addf %67, %69 : vector<16x128xf32>
      %cst_46 = arith.constant 0.000000e+00 : f32
      %71 = vector.broadcast %cst_46 : f32 to vector<16x128xf32>
      %72 = arith.subf %71, %70 : vector<16x128xf32>
      %73 = math.exp %72 : vector<16x128xf32>
      %cst_47 = arith.constant 1.000000e+00 : f32
      %74 = vector.broadcast %cst_47 : f32 to vector<16x128xf32>
      %75 = arith.addf %74, %73 : vector<16x128xf32>
      %cst_48 = arith.constant 1.000000e+00 : f32
      %76 = vector.broadcast %cst_48 : f32 to vector<16x128xf32>
      %77 = arith.divf %76, %75 : vector<16x128xf32>
      %78 = arith.mulf %65, %77 : vector<16x128xf32>
      %c0_49 = arith.constant 0 : index
      %c0_50 = arith.constant 0 : index
      %79 = vector.load %arg15[%c0_49, %c0_50] : memref<1x128xf32, #tpu.memory_space<vmem>>, vector<1x128xf32>
      %80 = vector.broadcast %79 : vector<1x128xf32> to vector<16x128xf32>
      %81 = arith.mulf %78, %80 : vector<16x128xf32>
      %cst_51 = arith.constant dense<0.000000e+00> : vector<16xf32>
      %82 = vector.multi_reduction <add>, %81, %cst_51 [1] : vector<16x128xf32> to vector<16xf32>
      %83 = vector.shape_cast %82 : vector<16xf32> to vector<16x1xf32>
      %c0_52 = arith.constant 0 : index
      %c0_53 = arith.constant 0 : index
      %84 = vector.load %arg16[%c0_52, %c0_53] : memref<1x1xf32, #tpu.memory_space<vmem>>, vector<1x1xf32>
      %85 = vector.broadcast %84 : vector<1x1xf32> to vector<16x1xf32>
      %86 = arith.addf %83, %85 : vector<16x1xf32>
      %87 = vector.extract_strided_slice %86 {offsets = [0, 0], sizes = [8, 1], strides = [1, 1]} : vector<16x1xf32> to vector<8x1xf32>
      %cst_54 = arith.constant dense<0xFF800000> : vector<1xf32>
      %88 = vector.multi_reduction <maximumf>, %87, %cst_54 [0] : vector<8x1xf32> to vector<1xf32>
      %89 = vector.shape_cast %88 : vector<1xf32> to vector<1x1xf32>
      %90 = vector.broadcast %89 : vector<1x1xf32> to vector<8x1xf32>
      %91 = arith.subf %87, %90 : vector<8x1xf32>
      %92 = math.exp %91 : vector<8x1xf32>
      %cst_55 = arith.constant dense<0.000000e+00> : vector<1xf32>
      %93 = vector.multi_reduction <add>, %92, %cst_55 [0] : vector<8x1xf32> to vector<1xf32>
      %94 = vector.shape_cast %93 : vector<1xf32> to vector<1x1xf32>
      %95 = vector.broadcast %94 : vector<1x1xf32> to vector<8x1xf32>
      %96 = arith.divf %92, %95 : vector<8x1xf32>
      %97 = vector.extract_strided_slice %86 {offsets = [8, 0], sizes = [8, 1], strides = [1, 1]} : vector<16x1xf32> to vector<8x1xf32>
      %cst_56 = arith.constant dense<0xFF800000> : vector<1xf32>
      %98 = vector.multi_reduction <maximumf>, %97, %cst_56 [0] : vector<8x1xf32> to vector<1xf32>
      %99 = vector.shape_cast %98 : vector<1xf32> to vector<1x1xf32>
      %100 = vector.broadcast %99 : vector<1x1xf32> to vector<8x1xf32>
      %101 = arith.subf %97, %100 : vector<8x1xf32>
      %102 = math.exp %101 : vector<8x1xf32>
      %cst_57 = arith.constant dense<0.000000e+00> : vector<1xf32>
      %103 = vector.multi_reduction <add>, %102, %cst_57 [0] : vector<8x1xf32> to vector<1xf32>
      %104 = vector.shape_cast %103 : vector<1xf32> to vector<1x1xf32>
      %105 = vector.broadcast %104 : vector<1x1xf32> to vector<8x1xf32>
      %106 = arith.divf %102, %105 : vector<8x1xf32>
      %107 = vector.extract_strided_slice %58 {offsets = [0, 0], sizes = [8, 512], strides = [1, 1]} : vector<16x512xf32> to vector<8x512xf32>
      %108 = vector.broadcast %96 : vector<8x1xf32> to vector<8x512xf32>
      %109 = arith.mulf %108, %107 : vector<8x512xf32>
      %cst_58 = arith.constant dense<0.000000e+00> : vector<512xf32>
      %110 = vector.multi_reduction <add>, %109, %cst_58 [0] : vector<8x512xf32> to vector<512xf32>
      %111 = vector.shape_cast %110 : vector<512xf32> to vector<1x512xf32>
      %112 = vector.extract_strided_slice %58 {offsets = [8, 0], sizes = [8, 512], strides = [1, 1]} : vector<16x512xf32> to vector<8x512xf32>
      %113 = vector.broadcast %106 : vector<8x1xf32> to vector<8x512xf32>
      %114 = arith.mulf %113, %112 : vector<8x512xf32>
      %cst_59 = arith.constant dense<0.000000e+00> : vector<512xf32>
      %115 = vector.multi_reduction <add>, %114, %cst_59 [0] : vector<8x512xf32> to vector<512xf32>
      %116 = vector.shape_cast %115 : vector<512xf32> to vector<1x512xf32>
      %117 = tpu.concatenate %111, %116 in 0 : vector<1x512xf32>, vector<1x512xf32> -> vector<2x512xf32>
      %c0_60 = arith.constant 0 : index
      %c0_61 = arith.constant 0 : index
      %118 = vector.load %arg17[%c0_60, %c0_61] : memref<1x512xf32, #tpu.memory_space<vmem>>, vector<1x512xf32>
      %119 = vector.broadcast %118 : vector<1x512xf32> to vector<2x512xf32>
      %120 = arith.mulf %117, %119 : vector<2x512xf32>
      %cst_62 = arith.constant dense<0.000000e+00> : vector<2xf32>
      %121 = vector.multi_reduction <add>, %120, %cst_62 [1] : vector<2x512xf32> to vector<2xf32>
      %122 = vector.shape_cast %121 : vector<2xf32> to vector<2x1xf32>
      %c0_63 = arith.constant 0 : index
      %c0_64 = arith.constant 0 : index
      %123 = vector.load %arg18[%c0_63, %c0_64] : memref<1x1xf32, #tpu.memory_space<vmem>>, vector<1x1xf32>
      %124 = vector.broadcast %123 : vector<1x1xf32> to vector<2x1xf32>
      %125 = arith.addf %122, %124 : vector<2x1xf32>
      %cst_65 = arith.constant 0.000000e+00 : f32
      %126 = vector.broadcast %cst_65 : f32 to vector<2x1xf32>
      %127 = arith.subf %126, %125 : vector<2x1xf32>
      %128 = math.exp %127 : vector<2x1xf32>
      %cst_66 = arith.constant 1.000000e+00 : f32
      %129 = vector.broadcast %cst_66 : f32 to vector<2x1xf32>
      %130 = arith.addf %129, %128 : vector<2x1xf32>
      %cst_67 = arith.constant 1.000000e+00 : f32
      %131 = vector.broadcast %cst_67 : f32 to vector<2x1xf32>
      %132 = arith.divf %131, %130 : vector<2x1xf32>
      %cst_68 = arith.constant 5.000000e-01 : f32
      %133 = vector.broadcast %cst_68 : f32 to vector<2x1xf32>
      %134 = arith.cmpf oge, %132, %133 : vector<2x1xf32>
      %135 = arith.extui %134 : vector<2x1xi1> to vector<2x1xi32>
      %136 = arith.sitofp %135 : vector<2x1xi32> to vector<2x1xf32>
      %137 = vector.shape_cast %132 : vector<2x1xf32> to vector<2x1xf32>
      %138 = vector.broadcast %137 : vector<2x1xf32> to vector<2x128xf32>
      %c0_69 = arith.constant 0 : index
      %c0_70 = arith.constant 0 : index
      %139 = vector.load %arg19[%c0_69, %c0_70] : memref<2x128xf32, #tpu.memory_space<vmem>>, vector<2x128xf32>
      tpu.vector_store %arg19[%c0_69, %c0_70], %138 {strides = array<i32>} : memref<2x128xf32, #tpu.memory_space<vmem>>, vector<2x128xf32>,
      %140 = vector.shape_cast %136 : vector<2x1xf32> to vector<2x1xf32>
      %141 = vector.broadcast %140 : vector<2x1xf32> to vector<2x128xf32>
      %c0_71 = arith.constant 0 : index
      %c0_72 = arith.constant 0 : index
      %142 = vector.load %arg20[%c0_71, %c0_72] : memref<2x128xf32, #tpu.memory_space<vmem>>, vector<2x128xf32>
      tpu.vector_store %arg20[%c0_71, %c0_72], %141 {strides = array<i32>} : memref<2x128xf32, #tpu.memory_space<vmem>>, vector<2x128xf32>,
    } else {
    }
    return
  }
  func.func @transform_0(%arg0: i32) -> (i32, i32) {
    %c0_i32 = arith.constant 0 : i32
    %c0_i32_0 = arith.constant 0 : i32
    return %arg0, %c0_i32 : i32, i32
  }
  func.func @transform_1(%arg0: i32) -> (i32, i32) {
    %c0_i32 = arith.constant 0 : i32
    %c0_i32_0 = arith.constant 0 : i32
    %c0_i32_1 = arith.constant 0 : i32
    return %c0_i32, %c0_i32_0 : i32, i32
  }
  func.func @transform_2(%arg0: i32) -> (i32, i32) {
    %c0_i32 = arith.constant 0 : i32
    %c0_i32_0 = arith.constant 0 : i32
    %c0_i32_1 = arith.constant 0 : i32
    return %c0_i32, %c0_i32_0 : i32, i32
  }
  func.func @transform_3(%arg0: i32) -> (i32, i32) {
    %c0_i32 = arith.constant 0 : i32
    %c0_i32_0 = arith.constant 0 : i32
    %c0_i32_1 = arith.constant 0 : i32
    return %c0_i32, %c0_i32_0 : i32, i32
  }
  func.func @transform_4(%arg0: i32) -> (i32, i32) {
    %c0_i32 = arith.constant 0 : i32
    %c0_i32_0 = arith.constant 0 : i32
    %c0_i32_1 = arith.constant 0 : i32
    return %c0_i32, %c0_i32_0 : i32, i32
  }
  func.func @transform_5(%arg0: i32) -> (i32, i32) {
    %c0_i32 = arith.constant 0 : i32
    %c0_i32_0 = arith.constant 0 : i32
    %c0_i32_1 = arith.constant 0 : i32
    return %c0_i32, %c0_i32_0 : i32, i32
  }
  func.func @transform_6(%arg0: i32) -> (i32, i32) {
    %c0_i32 = arith.constant 0 : i32
    %c0_i32_0 = arith.constant 0 : i32
    %c0_i32_1 = arith.constant 0 : i32
    return %c0_i32, %c0_i32_0 : i32, i32
  }
  func.func @transform_7(%arg0: i32) -> (i32, i32) {
    %c0_i32 = arith.constant 0 : i32
    %c0_i32_0 = arith.constant 0 : i32
    %c0_i32_1 = arith.constant 0 : i32
    return %c0_i32, %c0_i32_0 : i32, i32
  }
  func.func @transform_8(%arg0: i32) -> (i32, i32) {
    %c0_i32 = arith.constant 0 : i32
    %c0_i32_0 = arith.constant 0 : i32
    %c0_i32_1 = arith.constant 0 : i32
    return %c0_i32, %c0_i32_0 : i32, i32
  }
  func.func @transform_9(%arg0: i32) -> (i32, i32) {
    %c0_i32 = arith.constant 0 : i32
    %c0_i32_0 = arith.constant 0 : i32
    %c0_i32_1 = arith.constant 0 : i32
    return %c0_i32, %c0_i32_0 : i32, i32
  }
  func.func @transform_10(%arg0: i32) -> (i32, i32) {
    %c0_i32 = arith.constant 0 : i32
    %c0_i32_0 = arith.constant 0 : i32
    %c0_i32_1 = arith.constant 0 : i32
    return %c0_i32, %c0_i32_0 : i32, i32
  }
  func.func @transform_11(%arg0: i32) -> (i32, i32) {
    %c0_i32 = arith.constant 0 : i32
    %c0_i32_0 = arith.constant 0 : i32
    %c0_i32_1 = arith.constant 0 : i32
    return %c0_i32, %c0_i32_0 : i32, i32
  }
  func.func @transform_12(%arg0: i32) -> (i32, i32) {
    %c0_i32 = arith.constant 0 : i32
    %c0_i32_0 = arith.constant 0 : i32
    %c0_i32_1 = arith.constant 0 : i32
    return %c0_i32, %c0_i32_0 : i32, i32
  }
  func.func @transform_13(%arg0: i32) -> (i32, i32) {
    %c0_i32 = arith.constant 0 : i32
    %c0_i32_0 = arith.constant 0 : i32
    %c0_i32_1 = arith.constant 0 : i32
    return %c0_i32, %c0_i32_0 : i32, i32
  }
  func.func @transform_14(%arg0: i32) -> (i32, i32) {
    %c0_i32 = arith.constant 0 : i32
    %c0_i32_0 = arith.constant 0 : i32
    %c0_i32_1 = arith.constant 0 : i32
    return %c0_i32, %c0_i32_0 : i32, i32
  }
  func.func @transform_15(%arg0: i32) -> (i32, i32) {
    %c0_i32 = arith.constant 0 : i32
    %c0_i32_0 = arith.constant 0 : i32
    %c0_i32_1 = arith.constant 0 : i32
    return %c0_i32, %c0_i32_0 : i32, i32
  }
  func.func @transform_16(%arg0: i32) -> (i32, i32) {
    %c0_i32 = arith.constant 0 : i32
    %c0_i32_0 = arith.constant 0 : i32
    %c0_i32_1 = arith.constant 0 : i32
    return %c0_i32, %c0_i32_0 : i32, i32
  }
  func.func @transform_17(%arg0: i32) -> (i32, i32) {
    %c0_i32 = arith.constant 0 : i32
    %c0_i32_0 = arith.constant 0 : i32
    %c0_i32_1 = arith.constant 0 : i32
    return %c0_i32, %c0_i32_0 : i32, i32
  }
  func.func @transform_18(%arg0: i32) -> (i32, i32) {
    %c0_i32 = arith.constant 0 : i32
    %c0_i32_0 = arith.constant 0 : i32
    %c0_i32_1 = arith.constant 0 : i32
    return %c0_i32, %c0_i32_0 : i32, i32
  }
  func.func @transform_19(%arg0: i32) -> (i32, i32) {
    %c0_i32 = arith.constant 0 : i32
    %c0_i32_0 = arith.constant 0 : i32
    %c0_i32_1 = arith.constant 0 : i32
    return %c0_i32, %c0_i32_0 : i32, i32
  }
}

</mosaic_0001>

<llo_original>
// kernel: forward.1
$region0: #{forward.1}
  #allocation0 [shape = 'u32[]', space=smem, size = 0x4, offset = 0x4, fixed_abs, tag = 'smem constant byte address 0x4 - core index']
  #allocation1 [shape = 'u32[144,128]{1,0:T(1,128)}', space=vmem, size = 0x12000, scoped, tag = 'internal scratch']
  #allocation2 [shape = 'f32[16,512]{1,0:T(8,128)}', space=vmem, size = 0x8000, scoped, tag = 'scratch operand']
  #allocation3 [shape = 'f32[1,1]{1,0:T(1,128)S(1)}', space=vmem, size = 0x200, scoped, tag = 'scoped memory for forward.1']
  #allocation4 [shape = 'f32[1,1]{1,0:T(1,128)S(1)}', space=vmem, size = 0x200, scoped, tag = 'scoped memory for forward.1']
  %s0 = inlined_call_operand.vmem [shape: bf16[4096,32], index: 0, kind: input, shape index: {}]
  %s1 = inlined_call_operand.vmem [shape: bf16[32,128], index: 1, kind: input, shape index: {}]
  %s2 = inlined_call_operand.vmem [shape: f32[1,128], index: 2, kind: input, shape index: {}]
  %s3 = inlined_call_operand.vmem [shape: f32[1,128], index: 3, kind: input, shape index: {}]
  %s4 = inlined_call_operand.vmem [shape: f32[1,128], index: 4, kind: input, shape index: {}]
  %s5 = inlined_call_operand.vmem [shape: f32[128,128], index: 5, kind: input, shape index: {}]
  %s6 = inlined_call_operand.vmem [shape: bf16[128,1024], index: 6, kind: input, shape index: {}]
  %s7 = inlined_call_operand.vmem [shape: f32[1,1024], index: 7, kind: input, shape index: {}]
  %s8 = inlined_call_operand.vmem [shape: bf16[1024,512], index: 8, kind: input, shape index: {}]
  %s9 = inlined_call_operand.vmem [shape: f32[1,512], index: 9, kind: input, shape index: {}]
  %s10 = inlined_call_operand.vmem [shape: bf16[512,128], index: 10, kind: input, shape index: {}]
  %s11 = inlined_call_operand.vmem [shape: f32[1,128], index: 11, kind: input, shape index: {}]
  %s12 = inlined_call_operand.vmem [shape: bf16[512,128], index: 12, kind: input, shape index: {}]
  %s13 = inlined_call_operand.vmem [shape: f32[1,128], index: 13, kind: input, shape index: {}]
  %s14 = inlined_call_operand.vmem [shape: f32[1,128], index: 14, kind: input, shape index: {}]
  %s15 = inlined_call_operand.<no memory space> [shape: f32[1,1], index: 15, kind: input, shape index: {}]
  %s16 = inlined_call_operand.vmem [shape: f32[1,512], index: 16, kind: input, shape index: {}]
  %s17 = inlined_call_operand.<no memory space> [shape: f32[1,1], index: 17, kind: input, shape index: {}]
  %s18 = inlined_call_operand.vmem [shape: f32[2,128], index: 18, kind: output, shape index: {0}]
  %s19 = inlined_call_operand.vmem [shape: f32[2,128], index: 19, kind: output, shape index: {1}]
  %20 = xla_tuple %s18, %s19
  %s21 = sld [smem:[#allocation0]]
  $region94: #{forward.1} parent=0
    _
  %s23 = ssub.s32 1, %s21
  %s24 = scalar_select 0, %s23, %s21
  %v25 = vstv %s15
  %26 = vst [vmem:[#allocation3] sm:$0x1] %v25
  %v27 = vstv %s17
  %28 = vst [vmem:[#allocation4] sm:$0x1] %v27
  // Predicated region
  $region2: #{forward.1} parent=0 // pred_check
    _
  $region3: #{forward.1} parent=0 // pred_check_branch
    %30 = sbr.rel (0) target = $region5
  $region4: #{forward.1} parent=0 // pred_region
    _
  $region5: #{forward.1} parent=0 // pred_fallthru
    _
  // Predicated region
  $region6: #{forward.1} parent=0 // pred_check
    _
  $region7: #{forward.1} parent=0 // pred_check_branch
    %32 = sbr.rel (0) target = $region9
  $region8: #{forward.1} parent=0 // pred_region
    _
  $region9: #{forward.1} parent=0 // pred_fallthru
    _
  // Predicated region
  $region10: #{forward.1} parent=0 // pred_check
    _
  $region11: #{forward.1} parent=0 // pred_check_branch
    %34 = sbr.rel (0) target = $region13
  $region12: #{forward.1} parent=0 // pred_region
    _
  $region13: #{forward.1} parent=0 // pred_fallthru
    _
  // Predicated region
  $region14: #{forward.1} parent=0 // pred_check
    _
  $region15: #{forward.1} parent=0 // pred_check_branch
    %36 = sbr.rel (0) target = $region17
  $region16: #{forward.1} parent=0 // pred_region
    _
  $region17: #{forward.1} parent=0 // pred_fallthru
    _
  // Predicated region
  $region18: #{forward.1} parent=0 // pred_check
    _
  $region19: #{forward.1} parent=0 // pred_check_branch
    %38 = sbr.rel (0) target = $region21
  $region20: #{forward.1} parent=0 // pred_region
    _
  $region21: #{forward.1} parent=0 // pred_fallthru
    _
  // Predicated region
  $region22: #{forward.1} parent=0 // pred_check
    _
  $region23: #{forward.1} parent=0 // pred_check_branch
    %40 = sbr.rel (0) target = $region25
  $region24: #{forward.1} parent=0 // pred_region
    _
  $region25: #{forward.1} parent=0 // pred_fallthru
    _
  // Predicated region
  $region26: #{forward.1} parent=0 // pred_check
    _
  $region27: #{forward.1} parent=0 // pred_check_branch
    %42 = sbr.rel (0) target = $region29
  $region28: #{forward.1} parent=0 // pred_region
    _
  $region29: #{forward.1} parent=0 // pred_fallthru
    _
  // Predicated region
  $region30: #{forward.1} parent=0 // pred_check
    _
  $region31: #{forward.1} parent=0 // pred_check_branch
    %44 = sbr.rel (0) target = $region33
  $region32: #{forward.1} parent=0 // pred_region
    _
  $region33: #{forward.1} parent=0 // pred_fallthru
    _
  // Predicated region
  $region34: #{forward.1} parent=0 // pred_check
    _
  $region35: #{forward.1} parent=0 // pred_check_branch
    %46 = sbr.rel (0) target = $region37
  $region36: #{forward.1} parent=0 // pred_region
    _
  $region37: #{forward.1} parent=0 // pred_fallthru
    _
  // Predicated region
  $region38: #{forward.1} parent=0 // pred_check
    _
  $region39: #{forward.1} parent=0 // pred_check_branch
    %48 = sbr.rel (0) target = $region41
  $region40: #{forward.1} parent=0 // pred_region
    _
  $region41: #{forward.1} parent=0 // pred_fallthru
    _
  // Predicated region
  $region42: #{forward.1} parent=0 // pred_check
    _
  $region43: #{forward.1} parent=0 // pred_check_branch
    %50 = sbr.rel (0) target = $region45
  $region44: #{forward.1} parent=0 // pred_region
    _
  $region45: #{forward.1} parent=0 // pred_fallthru
    _
  // Predicated region
  $region46: #{forward.1} parent=0 // pred_check
    _
  $region47: #{forward.1} parent=0 // pred_check_branch
    %52 = sbr.rel (0) target = $region49
  $region48: #{forward.1} parent=0 // pred_region
    _
  $region49: #{forward.1} parent=0 // pred_fallthru
    _
  // Predicated region
  $region50: #{forward.1} parent=0 // pred_check
    _
  $region51: #{forward.1} parent=0 // pred_check_branch
    %54 = sbr.rel (0) target = $region53
  $region52: #{forward.1} parent=0 // pred_region
    _
  $region53: #{forward.1} parent=0 // pred_fallthru
    _
  // Predicated region
  $region54: #{forward.1} parent=0 // pred_check
    _
  $region55: #{forward.1} parent=0 // pred_check_branch
    %56 = sbr.rel (0) target = $region57
  $region56: #{forward.1} parent=0 // pred_region
    _
  $region57: #{forward.1} parent=0 // pred_fallthru
    _
  // Predicated region
  $region58: #{forward.1} parent=0 // pred_check
    _
  $region59: #{forward.1} parent=0 // pred_check_branch
    %58 = sbr.rel (0) target = $region61
  $region60: #{forward.1} parent=0 // pred_region
    _
  $region61: #{forward.1} parent=0 // pred_fallthru
    _
  // Predicated region
  $region62: #{forward.1} parent=0 // pred_check
    _
  $region63: #{forward.1} parent=0 // pred_check_branch
    %60 = sbr.rel (0) target = $region65
  $region64: #{forward.1} parent=0 // pred_region
    _
  $region65: #{forward.1} parent=0 // pred_fallthru
    _
  // Predicated region
  $region66: #{forward.1} parent=0 // pred_check
    _
  $region67: #{forward.1} parent=0 // pred_check_branch
    %62 = sbr.rel (0) target = $region69
  $region68: #{forward.1} parent=0 // pred_region
    _
  $region69: #{forward.1} parent=0 // pred_fallthru
    _
  // Predicated region
  $region70: #{forward.1} parent=0 // pred_check
    _
  $region71: #{forward.1} parent=0 // pred_check_branch
    %64 = sbr.rel (0) target = $region73
  $region72: #{forward.1} parent=0 // pred_region
    _
  $region73: #{forward.1} parent=0 // pred_fallthru
    _
  %v66 = vld [vmem:[%s0] sm:$0xf]
  %v67 = vld [vmem:[%s0 + $0x4] sm:$0xf]
  %v68 = vld [vmem:[%s0 + $0x8] sm:$0xf]
  %v69 = vld [vmem:[%s0 + $0xc] sm:$0xf]
  %v70 = vld [vmem:[%s0 + $0x10] sm:$0xf]
  %v71 = vld [vmem:[%s0 + $0x14] sm:$0xf]
  %v72 = vld [vmem:[%s0 + $0x18] sm:$0xf]
  %v73 = vld [vmem:[%s0 + $0x1c] sm:$0xf]
  %v74 = vld [vmem:[%s0 + $0x20] sm:$0xf]
  %v75 = vld [vmem:[%s0 + $0x24] sm:$0xf]
  %v76 = vld [vmem:[%s0 + $0x28] sm:$0xf]
  %v77 = vld [vmem:[%s0 + $0x2c] sm:$0xf]
  %v78 = vld [vmem:[%s0 + $0x30] sm:$0xf]
  %v79 = vld [vmem:[%s0 + $0x34] sm:$0xf]
  %v80 = vld [vmem:[%s0 + $0x38] sm:$0xf]
  %v81 = vld [vmem:[%s0 + $0x3c] sm:$0xf]
  %v82 = vld [vmem:[%s0 + $0x40] sm:$0xf]
  %v83 = vld [vmem:[%s0 + $0x44] sm:$0xf]
  %v84 = vld [vmem:[%s0 + $0x48] sm:$0xf]
  %v85 = vld [vmem:[%s0 + $0x4c] sm:$0xf]
  %v86 = vld [vmem:[%s0 + $0x50] sm:$0xf]
  %v87 = vld [vmem:[%s0 + $0x54] sm:$0xf]
  %v88 = vld [vmem:[%s0 + $0x58] sm:$0xf]
  %v89 = vld [vmem:[%s0 + $0x5c] sm:$0xf]
  %v90 = vld [vmem:[%s0 + $0x60] sm:$0xf]
  %v91 = vld [vmem:[%s0 + $0x64] sm:$0xf]
  %v92 = vld [vmem:[%s0 + $0x68] sm:$0xf]
  %v93 = vld [vmem:[%s0 + $0x6c] sm:$0xf]
  %v94 = vld [vmem:[%s0 + $0x70] sm:$0xf]
  %v95 = vld [vmem:[%s0 + $0x74] sm:$0xf]
  %v96 = vld [vmem:[%s0 + $0x78] sm:$0xf]
  %v97 = vld [vmem:[%s0 + $0x7c] sm:$0xf]
  %v98 = vld [vmem:[%s0 + $0x80] sm:$0xf]
  %v99 = vld [vmem:[%s0 + $0x84] sm:$0xf]
  %v100 = vld [vmem:[%s0 + $0x88] sm:$0xf]
  %v101 = vld [vmem:[%s0 + $0x8c] sm:$0xf]
  %v102 = vld [vmem:[%s0 + $0x90] sm:$0xf]
  %v103 = vld [vmem:[%s0 + $0x94] sm:$0xf]
  %v104 = vld [vmem:[%s0 + $0x98] sm:$0xf]
  %v105 = vld [vmem:[%s0 + $0x9c] sm:$0xf]
  %v106 = vld [vmem:[%s0 + $0xa0] sm:$0xf]
  %v107 = vld [vmem:[%s0 + $0xa4] sm:$0xf]
  %v108 = vld [vmem:[%s0 + $0xa8] sm:$0xf]
  %v109 = vld [vmem:[%s0 + $0xac] sm:$0xf]
  %v110 = vld [vmem:[%s0 + $0xb0] sm:$0xf]
  %v111 = vld [vmem:[%s0 + $0xb4] sm:$0xf]
  %v112 = vld [vmem:[%s0 + $0xb8] sm:$0xf]
  %v113 = vld [vmem:[%s0 + $0xbc] sm:$0xf]
  %v114 = vld [vmem:[%s0 + $0xc0] sm:$0xf]
  %v115 = vld [vmem:[%s0 + $0xc4] sm:$0xf]
  %v116 = vld [vmem:[%s0 + $0xc8] sm:$0xf]
  %v117 = vld [vmem:[%s0 + $0xcc] sm:$0xf]
  %v118 = vld [vmem:[%s0 + $0xd0] sm:$0xf]
  %v119 = vld [vmem:[%s0 + $0xd4] sm:$0xf]
  %v120 = vld [vmem:[%s0 + $0xd8] sm:$0xf]
  %v121 = vld [vmem:[%s0 + $0xdc] sm:$0xf]
  %v122 = vld [vmem:[%s0 + $0xe0] sm:$0xf]
  %v123 = vld [vmem:[%s0 + $0xe4] sm:$0xf]
  %v124 = vld [vmem:[%s0 + $0xe8] sm:$0xf]
  %v125 = vld [vmem:[%s0 + $0xec] sm:$0xf]
  %v126 = vld [vmem:[%s0 + $0xf0] sm:$0xf]
  %v127 = vld [vmem:[%s0 + $0xf4] sm:$0xf]
  %v128 = vld [vmem:[%s0 + $0xf8] sm:$0xf]
  %v129 = vld [vmem:[%s0 + $0xfc] sm:$0xf]
  %v130 = vld [vmem:[%s0 + $0x100] sm:$0xf]
  %v131 = vld [vmem:[%s0 + $0x104] sm:$0xf]
  %v132 = vld [vmem:[%s0 + $0x108] sm:$0xf]
  %v133 = vld [vmem:[%s0 + $0x10c] sm:$0xf]
  %v134 = vld [vmem:[%s0 + $0x110] sm:$0xf]
  %v135 = vld [vmem:[%s0 + $0x114] sm:$0xf]
  %v136 = vld [vmem:[%s0 + $0x118] sm:$0xf]
  %v137 = vld [vmem:[%s0 + $0x11c] sm:$0xf]
  %v138 = vld [vmem:[%s0 + $0x120] sm:$0xf]
  %v139 = vld [vmem:[%s0 + $0x124] sm:$0xf]
  %v140 = vld [vmem:[%s0 + $0x128] sm:$0xf]
  %v141 = vld [vmem:[%s0 + $0x12c] sm:$0xf]
  %v142 = vld [vmem:[%s0 + $0x130] sm:$0xf]
  %v143 = vld [vmem:[%s0 + $0x134] sm:$0xf]
  %v144 = vld [vmem:[%s0 + $0x138] sm:$0xf]
  %v145 = vld [vmem:[%s0 + $0x13c] sm:$0xf]
  %v146 = vld [vmem:[%s0 + $0x140] sm:$0xf]
  %v147 = vld [vmem:[%s0 + $0x144] sm:$0xf]
  %v148 = vld [vmem:[%s0 + $0x148] sm:$0xf]
  %v149 = vld [vmem:[%s0 + $0x14c] sm:$0xf]
  %v150 = vld [vmem:[%s0 + $0x150] sm:$0xf]
  %v151 = vld [vmem:[%s0 + $0x154] sm:$0xf]
  %v152 = vld [vmem:[%s0 + $0x158] sm:$0xf]
  %v153 = vld [vmem:[%s0 + $0x15c] sm:$0xf]
  %v154 = vld [vmem:[%s0 + $0x160] sm:$0xf]
  %v155 = vld [vmem:[%s0 + $0x164] sm:$0xf]
  %v156 = vld [vmem:[%s0 + $0x168] sm:$0xf]
  %v157 = vld [vmem:[%s0 + $0x16c] sm:$0xf]
  %v158 = vld [vmem:[%s0 + $0x170] sm:$0xf]
  %v159 = vld [vmem:[%s0 + $0x174] sm:$0xf]
  %v160 = vld [vmem:[%s0 + $0x178] sm:$0xf]
  %v161 = vld [vmem:[%s0 + $0x17c] sm:$0xf]
  %v162 = vld [vmem:[%s0 + $0x180] sm:$0xf]
  %v163 = vld [vmem:[%s0 + $0x184] sm:$0xf]
  %v164 = vld [vmem:[%s0 + $0x188] sm:$0xf]
  %v165 = vld [vmem:[%s0 + $0x18c] sm:$0xf]
  %v166 = vld [vmem:[%s0 + $0x190] sm:$0xf]
  %v167 = vld [vmem:[%s0 + $0x194] sm:$0xf]
  %v168 = vld [vmem:[%s0 + $0x198] sm:$0xf]
  %v169 = vld [vmem:[%s0 + $0x19c] sm:$0xf]
  %v170 = vld [vmem:[%s0 + $0x1a0] sm:$0xf]
  %v171 = vld [vmem:[%s0 + $0x1a4] sm:$0xf]
  %v172 = vld [vmem:[%s0 + $0x1a8] sm:$0xf]
  %v173 = vld [vmem:[%s0 + $0x1ac] sm:$0xf]
  %v174 = vld [vmem:[%s0 + $0x1b0] sm:$0xf]
  %v175 = vld [vmem:[%s0 + $0x1b4] sm:$0xf]
  %v176 = vld [vmem:[%s0 + $0x1b8] sm:$0xf]
  %v177 = vld [vmem:[%s0 + $0x1bc] sm:$0xf]
  %v178 = vld [vmem:[%s0 + $0x1c0] sm:$0xf]
  %v179 = vld [vmem:[%s0 + $0x1c4] sm:$0xf]
  %v180 = vld [vmem:[%s0 + $0x1c8] sm:$0xf]
  %v181 = vld [vmem:[%s0 + $0x1cc] sm:$0xf]
  %v182 = vld [vmem:[%s0 + $0x1d0] sm:$0xf]
  %v183 = vld [vmem:[%s0 + $0x1d4] sm:$0xf]
  %v184 = vld [vmem:[%s0 + $0x1d8] sm:$0xf]
  %v185 = vld [vmem:[%s0 + $0x1dc] sm:$0xf]
  %v186 = vld [vmem:[%s0 + $0x1e0] sm:$0xf]
  %v187 = vld [vmem:[%s0 + $0x1e4] sm:$0xf]
  %v188 = vld [vmem:[%s0 + $0x1e8] sm:$0xf]
  %v189 = vld [vmem:[%s0 + $0x1ec] sm:$0xf]
  %v190 = vld [vmem:[%s0 + $0x1f0] sm:$0xf]
  %v191 = vld [vmem:[%s0 + $0x1f4] sm:$0xf]
  %v192 = vld [vmem:[%s0 + $0x1f8] sm:$0xf]
  %v193 = vld [vmem:[%s0 + $0x1fc] sm:$0xf]
  %v194 = vld [vmem:[%s0 + $0x200] sm:$0xf]
  %v195 = vld [vmem:[%s0 + $0x204] sm:$0xf]
  %v196 = vld [vmem:[%s0 + $0x208] sm:$0xf]
  %v197 = vld [vmem:[%s0 + $0x20c] sm:$0xf]
  %v198 = vld [vmem:[%s0 + $0x210] sm:$0xf]
  %v199 = vld [vmem:[%s0 + $0x214] sm:$0xf]
  %v200 = vld [vmem:[%s0 + $0x218] sm:$0xf]
  %v201 = vld [vmem:[%s0 + $0x21c] sm:$0xf]
  %v202 = vld [vmem:[%s0 + $0x220] sm:$0xf]
  %v203 = vld [vmem:[%s0 + $0x224] sm:$0xf]
  %v204 = vld [vmem:[%s0 + $0x228] sm:$0xf]
  %v205 = vld [vmem:[%s0 + $0x22c] sm:$0xf]
  %v206 = vld [vmem:[%s0 + $0x230] sm:$0xf]
  %v207 = vld [vmem:[%s0 + $0x234] sm:$0xf]
  %v208 = vld [vmem:[%s0 + $0x238] sm:$0xf]
  %v209 = vld [vmem:[%s0 + $0x23c] sm:$0xf]
  %v210 = vld [vmem:[%s0 + $0x240] sm:$0xf]
  %v211 = vld [vmem:[%s0 + $0x244] sm:$0xf]
  %v212 = vld [vmem:[%s0 + $0x248] sm:$0xf]
  %v213 = vld [vmem:[%s0 + $0x24c] sm:$0xf]
  %v214 = vld [vmem:[%s0 + $0x250] sm:$0xf]
  %v215 = vld [vmem:[%s0 + $0x254] sm:$0xf]
  %v216 = vld [vmem:[%s0 + $0x258] sm:$0xf]
  %v217 = vld [vmem:[%s0 + $0x25c] sm:$0xf]
  %v218 = vld [vmem:[%s0 + $0x260] sm:$0xf]
  %v219 = vld [vmem:[%s0 + $0x264] sm:$0xf]
  %v220 = vld [vmem:[%s0 + $0x268] sm:$0xf]
  %v221 = vld [vmem:[%s0 + $0x26c] sm:$0xf]
  %v222 = vld [vmem:[%s0 + $0x270] sm:$0xf]
  %v223 = vld [vmem:[%s0 + $0x274] sm:$0xf]
  %v224 = vld [vmem:[%s0 + $0x278] sm:$0xf]
  %v225 = vld [vmem:[%s0 + $0x27c] sm:$0xf]
  %v226 = vld [vmem:[%s0 + $0x280] sm:$0xf]
  %v227 = vld [vmem:[%s0 + $0x284] sm:$0xf]
  %v228 = vld [vmem:[%s0 + $0x288] sm:$0xf]
  %v229 = vld [vmem:[%s0 + $0x28c] sm:$0xf]
  %v230 = vld [vmem:[%s0 + $0x290] sm:$0xf]
  %v231 = vld [vmem:[%s0 + $0x294] sm:$0xf]
  %v232 = vld [vmem:[%s0 + $0x298] sm:$0xf]
  %v233 = vld [vmem:[%s0 + $0x29c] sm:$0xf]
  %v234 = vld [vmem:[%s0 + $0x2a0] sm:$0xf]
  %v235 = vld [vmem:[%s0 + $0x2a4] sm:$0xf]
  %v236 = vld [vmem:[%s0 + $0x2a8] sm:$0xf]
  %v237 = vld [vmem:[%s0 + $0x2ac] sm:$0xf]
  %v238 = vld [vmem:[%s0 + $0x2b0] sm:$0xf]
  %v239 = vld [vmem:[%s0 + $0x2b4] sm:$0xf]
  %v240 = vld [vmem:[%s0 + $0x2b8] sm:$0xf]
  %v241 = vld [vmem:[%s0 + $0x2bc] sm:$0xf]
  %v242 = vld [vmem:[%s0 + $0x2c0] sm:$0xf]
  %v243 = vld [vmem:[%s0 + $0x2c4] sm:$0xf]
  %v244 = vld [vmem:[%s0 + $0x2c8] sm:$0xf]
  %v245 = vld [vmem:[%s0 + $0x2cc] sm:$0xf]
  %v246 = vld [vmem:[%s0 + $0x2d0] sm:$0xf]
  %v247 = vld [vmem:[%s0 + $0x2d4] sm:$0xf]
  %v248 = vld [vmem:[%s0 + $0x2d8] sm:$0xf]
  %v249 = vld [vmem:[%s0 + $0x2dc] sm:$0xf]
  %v250 = vld [vmem:[%s0 + $0x2e0] sm:$0xf]
  %v251 = vld [vmem:[%s0 + $0x2e4] sm:$0xf]
  %v252 = vld [vmem:[%s0 + $0x2e8] sm:$0xf]
  %v253 = vld [vmem:[%s0 + $0x2ec] sm:$0xf]
  %v254 = vld [vmem:[%s0 + $0x2f0] sm:$0xf]
  %v255 = vld [vmem:[%s0 + $0x2f4] sm:$0xf]
  %v256 = vld [vmem:[%s0 + $0x2f8] sm:$0xf]
  %v257 = vld [vmem:[%s0 + $0x2fc] sm:$0xf]
  %v258 = vld [vmem:[%s0 + $0x300] sm:$0xf]
  %v259 = vld [vmem:[%s0 + $0x304] sm:$0xf]
  %v260 = vld [vmem:[%s0 + $0x308] sm:$0xf]
  %v261 = vld [vmem:[%s0 + $0x30c] sm:$0xf]
  %v262 = vld [vmem:[%s0 + $0x310] sm:$0xf]
  %v263 = vld [vmem:[%s0 + $0x314] sm:$0xf]
  %v264 = vld [vmem:[%s0 + $0x318] sm:$0xf]
  %v265 = vld [vmem:[%s0 + $0x31c] sm:$0xf]
  %v266 = vld [vmem:[%s0 + $0x320] sm:$0xf]
  %v267 = vld [vmem:[%s0 + $0x324] sm:$0xf]
  %v268 = vld [vmem:[%s0 + $0x328] sm:$0xf]
  %v269 = vld [vmem:[%s0 + $0x32c] sm:$0xf]
  %v270 = vld [vmem:[%s0 + $0x330] sm:$0xf]
  %v271 = vld [vmem:[%s0 + $0x334] sm:$0xf]
  %v272 = vld [vmem:[%s0 + $0x338] sm:$0xf]
  %v273 = vld [vmem:[%s0 + $0x33c] sm:$0xf]
  %v274 = vld [vmem:[%s0 + $0x340] sm:$0xf]
  %v275 = vld [vmem:[%s0 + $0x344] sm:$0xf]
  %v276 = vld [vmem:[%s0 + $0x348] sm:$0xf]
  %v277 = vld [vmem:[%s0 + $0x34c] sm:$0xf]
  %v278 = vld [vmem:[%s0 + $0x350] sm:$0xf]
  %v279 = vld [vmem:[%s0 + $0x354] sm:$0xf]
  %v280 = vld [vmem:[%s0 + $0x358] sm:$0xf]
  %v281 = vld [vmem:[%s0 + $0x35c] sm:$0xf]
  %v282 = vld [vmem:[%s0 + $0x360] sm:$0xf]
  %v283 = vld [vmem:[%s0 + $0x364] sm:$0xf]
  %v284 = vld [vmem:[%s0 + $0x368] sm:$0xf]
  %v285 = vld [vmem:[%s0 + $0x36c] sm:$0xf]
  %v286 = vld [vmem:[%s0 + $0x370] sm:$0xf]
  %v287 = vld [vmem:[%s0 + $0x374] sm:$0xf]
  %v288 = vld [vmem:[%s0 + $0x378] sm:$0xf]
  %v289 = vld [vmem:[%s0 + $0x37c] sm:$0xf]
  %v290 = vld [vmem:[%s0 + $0x380] sm:$0xf]
  %v291 = vld [vmem:[%s0 + $0x384] sm:$0xf]
  %v292 = vld [vmem:[%s0 + $0x388] sm:$0xf]
  %v293 = vld [vmem:[%s0 + $0x38c] sm:$0xf]
  %v294 = vld [vmem:[%s0 + $0x390] sm:$0xf]
  %v295 = vld [vmem:[%s0 + $0x394] sm:$0xf]
  %v296 = vld [vmem:[%s0 + $0x398] sm:$0xf]
  %v297 = vld [vmem:[%s0 + $0x39c] sm:$0xf]
  %v298 = vld [vmem:[%s0 + $0x3a0] sm:$0xf]
  %v299 = vld [vmem:[%s0 + $0x3a4] sm:$0xf]
  %v300 = vld [vmem:[%s0 + $0x3a8] sm:$0xf]
  %v301 = vld [vmem:[%s0 + $0x3ac] sm:$0xf]
  %v302 = vld [vmem:[%s0 + $0x3b0] sm:$0xf]
  %v303 = vld [vmem:[%s0 + $0x3b4] sm:$0xf]
  %v304 = vld [vmem:[%s0 + $0x3b8] sm:$0xf]
  %v305 = vld [vmem:[%s0 + $0x3bc] sm:$0xf]
  %v306 = vld [vmem:[%s0 + $0x3c0] sm:$0xf]
  %v307 = vld [vmem:[%s0 + $0x3c4] sm:$0xf]
  %v308 = vld [vmem:[%s0 + $0x3c8] sm:$0xf]
  %v309 = vld [vmem:[%s0 + $0x3cc] sm:$0xf]
  %v310 = vld [vmem:[%s0 + $0x3d0] sm:$0xf]
  %v311 = vld [vmem:[%s0 + $0x3d4] sm:$0xf]
  %v312 = vld [vmem:[%s0 + $0x3d8] sm:$0xf]
  %v313 = vld [vmem:[%s0 + $0x3dc] sm:$0xf]
  %v314 = vld [vmem:[%s0 + $0x3e0] sm:$0xf]
  %v315 = vld [vmem:[%s0 + $0x3e4] sm:$0xf]
  %v316 = vld [vmem:[%s0 + $0x3e8] sm:$0xf]
  %v317 = vld [vmem:[%s0 + $0x3ec] sm:$0xf]
  %v318 = vld [vmem:[%s0 + $0x3f0] sm:$0xf]
  %v319 = vld [vmem:[%s0 + $0x3f4] sm:$0xf]
  %v320 = vld [vmem:[%s0 + $0x3f8] sm:$0xf]
  %v321 = vld [vmem:[%s0 + $0x3fc] sm:$0xf]
  %v322 = vld [vmem:[%s0 + $0x400] sm:$0xf]
  %v323 = vld [vmem:[%s0 + $0x404] sm:$0xf]
  %v324 = vld [vmem:[%s0 + $0x408] sm:$0xf]
  %v325 = vld [vmem:[%s0 + $0x40c] sm:$0xf]
  %v326 = vld [vmem:[%s0 + $0x410] sm:$0xf]
  %v327 = vld [vmem:[%s0 + $0x414] sm:$0xf]
  %v328 = vld [vmem:[%s0 + $0x418] sm:$0xf]
  %v329 = vld [vmem:[%s0 + $0x41c] sm:$0xf]
  %v330 = vld [vmem:[%s0 + $0x420] sm:$0xf]
  %v331 = vld [vmem:[%s0 + $0x424] sm:$0xf]
  %v332 = vld [vmem:[%s0 + $0x428] sm:$0xf]
  %v333 = vld [vmem:[%s0 + $0x42c] sm:$0xf]
  %v334 = vld [vmem:[%s0 + $0x430] sm:$0xf]
  %v335 = vld [vmem:[%s0 + $0x434] sm:$0xf]
  %v336 = vld [vmem:[%s0 + $0x438] sm:$0xf]
  %v337 = vld [vmem:[%s0 + $0x43c] sm:$0xf]
  %v338 = vld [vmem:[%s0 + $0x440] sm:$0xf]
  %v339 = vld [vmem:[%s0 + $0x444] sm:$0xf]
  %v340 = vld [vmem:[%s0 + $0x448] sm:$0xf]
  %v341 = vld [vmem:[%s0 + $0x44c] sm:$0xf]
  %v342 = vld [vmem:[%s0 + $0x450] sm:$0xf]
  %v343 = vld [vmem:[%s0 + $0x454] sm:$0xf]
  %v344 = vld [vmem:[%s0 + $0x458] sm:$0xf]
  %v345 = vld [vmem:[%s0 + $0x45c] sm:$0xf]
  %v346 = vld [vmem:[%s0 + $0x460] sm:$0xf]
  %v347 = vld [vmem:[%s0 + $0x464] sm:$0xf]
  %v348 = vld [vmem:[%s0 + $0x468] sm:$0xf]
  %v349 = vld [vmem:[%s0 + $0x46c] sm:$0xf]
  %v350 = vld [vmem:[%s0 + $0x470] sm:$0xf]
  %v351 = vld [vmem:[%s0 + $0x474] sm:$0xf]
  %v352 = vld [vmem:[%s0 + $0x478] sm:$0xf]
  %v353 = vld [vmem:[%s0 + $0x47c] sm:$0xf]
  %v354 = vld [vmem:[%s0 + $0x480] sm:$0xf]
  %v355 = vld [vmem:[%s0 + $0x484] sm:$0xf]
  %v356 = vld [vmem:[%s0 + $0x488] sm:$0xf]
  %v357 = vld [vmem:[%s0 + $0x48c] sm:$0xf]
  %v358 = vld [vmem:[%s0 + $0x490] sm:$0xf]
  %v359 = vld [vmem:[%s0 + $0x494] sm:$0xf]
  %v360 = vld [vmem:[%s0 + $0x498] sm:$0xf]
  %v361 = vld [vmem:[%s0 + $0x49c] sm:$0xf]
  %v362 = vld [vmem:[%s0 + $0x4a0] sm:$0xf]
  %v363 = vld [vmem:[%s0 + $0x4a4] sm:$0xf]
  %v364 = vld [vmem:[%s0 + $0x4a8] sm:$0xf]
  %v365 = vld [vmem:[%s0 + $0x4ac] sm:$0xf]
  %v366 = vld [vmem:[%s0 + $0x4b0] sm:$0xf]
  %v367 = vld [vmem:[%s0 + $0x4b4] sm:$0xf]
  %v368 = vld [vmem:[%s0 + $0x4b8] sm:$0xf]
  %v369 = vld [vmem:[%s0 + $0x4bc] sm:$0xf]
  %v370 = vld [vmem:[%s0 + $0x4c0] sm:$0xf]
  %v371 = vld [vmem:[%s0 + $0x4c4] sm:$0xf]
  %v372 = vld [vmem:[%s0 + $0x4c8] sm:$0xf]
  %v373 = vld [vmem:[%s0 + $0x4cc] sm:$0xf]
  %v374 = vld [vmem:[%s0 + $0x4d0] sm:$0xf]
  %v375 = vld [vmem:[%s0 + $0x4d4] sm:$0xf]
  %v376 = vld [vmem:[%s0 + $0x4d8] sm:$0xf]
  %v377 = vld [vmem:[%s0 + $0x4dc] sm:$0xf]
  %v378 = vld [vmem:[%s0 + $0x4e0] sm:$0xf]
  %v379 = vld [vmem:[%s0 + $0x4e4] sm:$0xf]
  %v380 = vld [vmem:[%s0 + $0x4e8] sm:$0xf]
  %v381 = vld [vmem:[%s0 + $0x4ec] sm:$0xf]
  %v382 = vld [vmem:[%s0 + $0x4f0] sm:$0xf]
  %v383 = vld [vmem:[%s0 + $0x4f4] sm:$0xf]
  %v384 = vld [vmem:[%s0 + $0x4f8] sm:$0xf]
  %v385 = vld [vmem:[%s0 + $0x4fc] sm:$0xf]
  %v386 = vld [vmem:[%s0 + $0x500] sm:$0xf]
  %v387 = vld [vmem:[%s0 + $0x504] sm:$0xf]
  %v388 = vld [vmem:[%s0 + $0x508] sm:$0xf]
  %v389 = vld [vmem:[%s0 + $0x50c] sm:$0xf]
  %v390 = vld [vmem:[%s0 + $0x510] sm:$0xf]
  %v391 = vld [vmem:[%s0 + $0x514] sm:$0xf]
  %v392 = vld [vmem:[%s0 + $0x518] sm:$0xf]
  %v393 = vld [vmem:[%s0 + $0x51c] sm:$0xf]
  %v394 = vld [vmem:[%s0 + $0x520] sm:$0xf]
  %v395 = vld [vmem:[%s0 + $0x524] sm:$0xf]
  %v396 = vld [vmem:[%s0 + $0x528] sm:$0xf]
  %v397 = vld [vmem:[%s0 + $0x52c] sm:$0xf]
  %v398 = vld [vmem:[%s0 + $0x530] sm:$0xf]
  %v399 = vld [vmem:[%s0 + $0x534] sm:$0xf]
  %v400 = vld [vmem:[%s0 + $0x538] sm:$0xf]
  %v401 = vld [vmem:[%s0 + $0x53c] sm:$0xf]
  %v402 = vld [vmem:[%s0 + $0x540] sm:$0xf]
  %v403 = vld [vmem:[%s0 + $0x544] sm:$0xf]
  %v404 = vld [vmem:[%s0 + $0x548] sm:$0xf]
  %v405 = vld [vmem:[%s0 + $0x54c] sm:$0xf]
  %v406 = vld [vmem:[%s0 + $0x550] sm:$0xf]
  %v407 = vld [vmem:[%s0 + $0x554] sm:$0xf]
  %v408 = vld [vmem:[%s0 + $0x558] sm:$0xf]
  %v409 = vld [vmem:[%s0 + $0x55c] sm:$0xf]
  %v410 = vld [vmem:[%s0 + $0x560] sm:$0xf]
  %v411 = vld [vmem:[%s0 + $0x564] sm:$0xf]
  %v412 = vld [vmem:[%s0 + $0x568] sm:$0xf]
  %v413 = vld [vmem:[%s0 + $0x56c] sm:$0xf]
  %v414 = vld [vmem:[%s0 + $0x570] sm:$0xf]
  %v415 = vld [vmem:[%s0 + $0x574] sm:$0xf]
  %v416 = vld [vmem:[%s0 + $0x578] sm:$0xf]
  %v417 = vld [vmem:[%s0 + $0x57c] sm:$0xf]
  %v418 = vld [vmem:[%s0 + $0x580] sm:$0xf]
  %v419 = vld [vmem:[%s0 + $0x584] sm:$0xf]
  %v420 = vld [vmem:[%s0 + $0x588] sm:$0xf]
  %v421 = vld [vmem:[%s0 + $0x58c] sm:$0xf]
  %v422 = vld [vmem:[%s0 + $0x590] sm:$0xf]
  %v423 = vld [vmem:[%s0 + $0x594] sm:$0xf]
  %v424 = vld [vmem:[%s0 + $0x598] sm:$0xf]
  %v425 = vld [vmem:[%s0 + $0x59c] sm:$0xf]
  %v426 = vld [vmem:[%s0 + $0x5a0] sm:$0xf]
  %v427 = vld [vmem:[%s0 + $0x5a4] sm:$0xf]
  %v428 = vld [vmem:[%s0 + $0x5a8] sm:$0xf]
  %v429 = vld [vmem:[%s0 + $0x5ac] sm:$0xf]
  %v430 = vld [vmem:[%s0 + $0x5b0] sm:$0xf]
  %v431 = vld [vmem:[%s0 + $0x5b4] sm:$0xf]
  %v432 = vld [vmem:[%s0 + $0x5b8] sm:$0xf]
  %v433 = vld [vmem:[%s0 + $0x5bc] sm:$0xf]
  %v434 = vld [vmem:[%s0 + $0x5c0] sm:$0xf]
  %v435 = vld [vmem:[%s0 + $0x5c4] sm:$0xf]
  %v436 = vld [vmem:[%s0 + $0x5c8] sm:$0xf]
  %v437 = vld [vmem:[%s0 + $0x5cc] sm:$0xf]
  %v438 = vld [vmem:[%s0 + $0x5d0] sm:$0xf]
  %v439 = vld [vmem:[%s0 + $0x5d4] sm:$0xf]
  %v440 = vld [vmem:[%s0 + $0x5d8] sm:$0xf]
  %v441 = vld [vmem:[%s0 + $0x5dc] sm:$0xf]
  %v442 = vld [vmem:[%s0 + $0x5e0] sm:$0xf]
  %v443 = vld [vmem:[%s0 + $0x5e4] sm:$0xf]
  %v444 = vld [vmem:[%s0 + $0x5e8] sm:$0xf]
  %v445 = vld [vmem:[%s0 + $0x5ec] sm:$0xf]
  %v446 = vld [vmem:[%s0 + $0x5f0] sm:$0xf]
  %v447 = vld [vmem:[%s0 + $0x5f4] sm:$0xf]
  %v448 = vld [vmem:[%s0 + $0x5f8] sm:$0xf]
  %v449 = vld [vmem:[%s0 + $0x5fc] sm:$0xf]
  %v450 = vld [vmem:[%s0 + $0x600] sm:$0xf]
  %v451 = vld [vmem:[%s0 + $0x604] sm:$0xf]
  %v452 = vld [vmem:[%s0 + $0x608] sm:$0xf]
  %v453 = vld [vmem:[%s0 + $0x60c] sm:$0xf]
  %v454 = vld [vmem:[%s0 + $0x610] sm:$0xf]
  %v455 = vld [vmem:[%s0 + $0x614] sm:$0xf]
  %v456 = vld [vmem:[%s0 + $0x618] sm:$0xf]
  %v457 = vld [vmem:[%s0 + $0x61c] sm:$0xf]
  %v458 = vld [vmem:[%s0 + $0x620] sm:$0xf]
  %v459 = vld [vmem:[%s0 + $0x624] sm:$0xf]
  %v460 = vld [vmem:[%s0 + $0x628] sm:$0xf]
  %v461 = vld [vmem:[%s0 + $0x62c] sm:$0xf]
  %v462 = vld [vmem:[%s0 + $0x630] sm:$0xf]
  %v463 = vld [vmem:[%s0 + $0x634] sm:$0xf]
  %v464 = vld [vmem:[%s0 + $0x638] sm:$0xf]
  %v465 = vld [vmem:[%s0 + $0x63c] sm:$0xf]
  %v466 = vld [vmem:[%s0 + $0x640] sm:$0xf]
  %v467 = vld [vmem:[%s0 + $0x644] sm:$0xf]
  %v468 = vld [vmem:[%s0 + $0x648] sm:$0xf]
  %v469 = vld [vmem:[%s0 + $0x64c] sm:$0xf]
  %v470 = vld [vmem:[%s0 + $0x650] sm:$0xf]
  %v471 = vld [vmem:[%s0 + $0x654] sm:$0xf]
  %v472 = vld [vmem:[%s0 + $0x658] sm:$0xf]
  %v473 = vld [vmem:[%s0 + $0x65c] sm:$0xf]
  %v474 = vld [vmem:[%s0 + $0x660] sm:$0xf]
  %v475 = vld [vmem:[%s0 + $0x664] sm:$0xf]
  %v476 = vld [vmem:[%s0 + $0x668] sm:$0xf]
  %v477 = vld [vmem:[%s0 + $0x66c] sm:$0xf]
  %v478 = vld [vmem:[%s0 + $0x670] sm:$0xf]
  %v479 = vld [vmem:[%s0 + $0x674] sm:$0xf]
  %v480 = vld [vmem:[%s0 + $0x678] sm:$0xf]
  %v481 = vld [vmem:[%s0 + $0x67c] sm:$0xf]
  %v482 = vld [vmem:[%s0 + $0x680] sm:$0xf]
  %v483 = vld [vmem:[%s0 + $0x684] sm:$0xf]
  %v484 = vld [vmem:[%s0 + $0x688] sm:$0xf]
  %v485 = vld [vmem:[%s0 + $0x68c] sm:$0xf]
  %v486 = vld [vmem:[%s0 + $0x690] sm:$0xf]
  %v487 = vld [vmem:[%s0 + $0x694] sm:$0xf]
  %v488 = vld [vmem:[%s0 + $0x698] sm:$0xf]
  %v489 = vld [vmem:[%s0 + $0x69c] sm:$0xf]
  %v490 = vld [vmem:[%s0 + $0x6a0] sm:$0xf]
  %v491 = vld [vmem:[%s0 + $0x6a4] sm:$0xf]
  %v492 = vld [vmem:[%s0 + $0x6a8] sm:$0xf]
  %v493 = vld [vmem:[%s0 + $0x6ac] sm:$0xf]
  %v494 = vld [vmem:[%s0 + $0x6b0] sm:$0xf]
  %v495 = vld [vmem:[%s0 + $0x6b4] sm:$0xf]
  %v496 = vld [vmem:[%s0 + $0x6b8] sm:$0xf]
  %v497 = vld [vmem:[%s0 + $0x6bc] sm:$0xf]
  %v498 = vld [vmem:[%s0 + $0x6c0] sm:$0xf]
  %v499 = vld [vmem:[%s0 + $0x6c4] sm:$0xf]
  %v500 = vld [vmem:[%s0 + $0x6c8] sm:$0xf]
  %v501 = vld [vmem:[%s0 + $0x6cc] sm:$0xf]
  %v502 = vld [vmem:[%s0 + $0x6d0] sm:$0xf]
  %v503 = vld [vmem:[%s0 + $0x6d4] sm:$0xf]
  %v504 = vld [vmem:[%s0 + $0x6d8] sm:$0xf]
  %v505 = vld [vmem:[%s0 + $0x6dc] sm:$0xf]
  %v506 = vld [vmem:[%s0 + $0x6e0] sm:$0xf]
  %v507 = vld [vmem:[%s0 + $0x6e4] sm:$0xf]
  %v508 = vld [vmem:[%s0 + $0x6e8] sm:$0xf]
  %v509 = vld [vmem:[%s0 + $0x6ec] sm:$0xf]
  %v510 = vld [vmem:[%s0 + $0x6f0] sm:$0xf]
  %v511 = vld [vmem:[%s0 + $0x6f4] sm:$0xf]
  %v512 = vld [vmem:[%s0 + $0x6f8] sm:$0xf]
  %v513 = vld [vmem:[%s0 + $0x6fc] sm:$0xf]
  %v514 = vld [vmem:[%s0 + $0x700] sm:$0xf]
  %v515 = vld [vmem:[%s0 + $0x704] sm:$0xf]
  %v516 = vld [vmem:[%s0 + $0x708] sm:$0xf]
  %v517 = vld [vmem:[%s0 + $0x70c] sm:$0xf]
  %v518 = vld [vmem:[%s0 + $0x710] sm:$0xf]
  %v519 = vld [vmem:[%s0 + $0x714] sm:$0xf]
  %v520 = vld [vmem:[%s0 + $0x718] sm:$0xf]
  %v521 = vld [vmem:[%s0 + $0x71c] sm:$0xf]
  %v522 = vld [vmem:[%s0 + $0x720] sm:$0xf]
  %v523 = vld [vmem:[%s0 + $0x724] sm:$0xf]
  %v524 = vld [vmem:[%s0 + $0x728] sm:$0xf]
  %v525 = vld [vmem:[%s0 + $0x72c] sm:$0xf]
  %v526 = vld [vmem:[%s0 + $0x730] sm:$0xf]
  %v527 = vld [vmem:[%s0 + $0x734] sm:$0xf]
  %v528 = vld [vmem:[%s0 + $0x738] sm:$0xf]
  %v529 = vld [vmem:[%s0 + $0x73c] sm:$0xf]
  %v530 = vld [vmem:[%s0 + $0x740] sm:$0xf]
  %v531 = vld [vmem:[%s0 + $0x744] sm:$0xf]
  %v532 = vld [vmem:[%s0 + $0x748] sm:$0xf]
  %v533 = vld [vmem:[%s0 + $0x74c] sm:$0xf]
  %v534 = vld [vmem:[%s0 + $0x750] sm:$0xf]
  %v535 = vld [vmem:[%s0 + $0x754] sm:$0xf]
  %v536 = vld [vmem:[%s0 + $0x758] sm:$0xf]
  %v537 = vld [vmem:[%s0 + $0x75c] sm:$0xf]
  %v538 = vld [vmem:[%s0 + $0x760] sm:$0xf]
  %v539 = vld [vmem:[%s0 + $0x764] sm:$0xf]
  %v540 = vld [vmem:[%s0 + $0x768] sm:$0xf]
  %v541 = vld [vmem:[%s0 + $0x76c] sm:$0xf]
  %v542 = vld [vmem:[%s0 + $0x770] sm:$0xf]
  %v543 = vld [vmem:[%s0 + $0x774] sm:$0xf]
  %v544 = vld [vmem:[%s0 + $0x778] sm:$0xf]
  %v545 = vld [vmem:[%s0 + $0x77c] sm:$0xf]
  %v546 = vld [vmem:[%s0 + $0x780] sm:$0xf]
  %v547 = vld [vmem:[%s0 + $0x784] sm:$0xf]
  %v548 = vld [vmem:[%s0 + $0x788] sm:$0xf]
  %v549 = vld [vmem:[%s0 + $0x78c] sm:$0xf]
  %v550 = vld [vmem:[%s0 + $0x790] sm:$0xf]
  %v551 = vld [vmem:[%s0 + $0x794] sm:$0xf]
  %v552 = vld [vmem:[%s0 + $0x798] sm:$0xf]
  %v553 = vld [vmem:[%s0 + $0x79c] sm:$0xf]
  %v554 = vld [vmem:[%s0 + $0x7a0] sm:$0xf]
  %v555 = vld [vmem:[%s0 + $0x7a4] sm:$0xf]
  %v556 = vld [vmem:[%s0 + $0x7a8] sm:$0xf]
  %v557 = vld [vmem:[%s0 + $0x7ac] sm:$0xf]
  %v558 = vld [vmem:[%s0 + $0x7b0] sm:$0xf]
  %v559 = vld [vmem:[%s0 + $0x7b4] sm:$0xf]
  %v560 = vld [vmem:[%s0 + $0x7b8] sm:$0xf]
  %v561 = vld [vmem:[%s0 + $0x7bc] sm:$0xf]
  %v562 = vld [vmem:[%s0 + $0x7c0] sm:$0xf]
  %v563 = vld [vmem:[%s0 + $0x7c4] sm:$0xf]
  %v564 = vld [vmem:[%s0 + $0x7c8] sm:$0xf]
  %v565 = vld [vmem:[%s0 + $0x7cc] sm:$0xf]
  %v566 = vld [vmem:[%s0 + $0x7d0] sm:$0xf]
  %v567 = vld [vmem:[%s0 + $0x7d4] sm:$0xf]
  %v568 = vld [vmem:[%s0 + $0x7d8] sm:$0xf]
  %v569 = vld [vmem:[%s0 + $0x7dc] sm:$0xf]
  %v570 = vld [vmem:[%s0 + $0x7e0] sm:$0xf]
  %v571 = vld [vmem:[%s0 + $0x7e4] sm:$0xf]
  %v572 = vld [vmem:[%s0 + $0x7e8] sm:$0xf]
  %v573 = vld [vmem:[%s0 + $0x7ec] sm:$0xf]
  %v574 = vld [vmem:[%s0 + $0x7f0] sm:$0xf]
  %v575 = vld [vmem:[%s0 + $0x7f4] sm:$0xf]
  %v576 = vld [vmem:[%s0 + $0x7f8] sm:$0xf]
  %v577 = vld [vmem:[%s0 + $0x7fc] sm:$0xf]
  %v578 = vld [vmem:[%s1] sm:$0xf]
  %v579 = vld [vmem:[%s1 + $0x4] sm:$0xf]
  %v580 = vld [vmem:[%s1 + $0x8] sm:$0xf]
  %v581 = vld [vmem:[%s1 + $0xc] sm:$0xf]
  %v582 = vld [vmem:[%s2] sm:$0x1]
  %v584 = vlaneseq
  %v585 = vshrl.u32 %v584, 7
  %v586 = vsub.s32 0, %v585
  %v587 = vrot.slane %v582, %v586
  %v1101 = vunpack.c.l.b16 %v66
  %v1102 = vunpack.c.l.b16 %v67
  %v1103 = vunpack.c.l.b16 %v68
  %v1104 = vunpack.c.l.b16 %v69
  %v1105 = vunpack.c.l.b16 %v70
  %v1106 = vunpack.c.l.b16 %v71
  %v1107 = vunpack.c.l.b16 %v72
  %v1108 = vunpack.c.l.b16 %v73
  %v1109 = vunpack.c.l.b16 %v74
  %v1110 = vunpack.c.l.b16 %v75
  %v1111 = vunpack.c.l.b16 %v76
  %v1112 = vunpack.c.l.b16 %v77
  %v1113 = vunpack.c.l.b16 %v78
  %v1114 = vunpack.c.l.b16 %v79
  %v1115 = vunpack.c.l.b16 %v80
  %v1116 = vunpack.c.l.b16 %v81
  %v1117 = vunpack.c.l.b16 %v82
  %v1118 = vunpack.c.l.b16 %v83
  %v1119 = vunpack.c.l.b16 %v84
  %v1120 = vunpack.c.l.b16 %v85
  %v1121 = vunpack.c.l.b16 %v86
  %v1122 = vunpack.c.l.b16 %v87
  %v1123 = vunpack.c.l.b16 %v88
  %v1124 = vunpack.c.l.b16 %v89
  %v1125 = vunpack.c.l.b16 %v90
  %v1126 = vunpack.c.l.b16 %v91
  %v1127 = vunpack.c.l.b16 %v92
  %v1128 = vunpack.c.l.b16 %v93
  %v1129 = vunpack.c.l.b16 %v94
  %v1130 = vunpack.c.l.b16 %v95
  %v1131 = vunpack.c.l.b16 %v96
  %v1132 = vunpack.c.l.b16 %v97
  %v1133 = vunpack.c.l.b16 %v98
  %v1134 = vunpack.c.l.b16 %v99
  %v1135 = vunpack.c.l.b16 %v100
  %v1136 = vunpack.c.l.b16 %v101
  %v1137 = vunpack.c.l.b16 %v102
  %v1138 = vunpack.c.l.b16 %v103
  %v1139 = vunpack.c.l.b16 %v104
  %v1140 = vunpack.c.l.b16 %v105
  %v1141 = vunpack.c.l.b16 %v106
  %v1142 = vunpack.c.l.b16 %v107
  %v1143 = vunpack.c.l.b16 %v108
  %v1144 = vunpack.c.l.b16 %v109
  %v1145 = vunpack.c.l.b16 %v110
  %v1146 = vunpack.c.l.b16 %v111
  %v1147 = vunpack.c.l.b16 %v112
  %v1148 = vunpack.c.l.b16 %v113
  %v1149 = vunpack.c.l.b16 %v114
  %v1150 = vunpack.c.l.b16 %v115
  %v1151 = vunpack.c.l.b16 %v116
  %v1152 = vunpack.c.l.b16 %v117
  %v1153 = vunpack.c.l.b16 %v118
  %v1154 = vunpack.c.l.b16 %v119
  %v1155 = vunpack.c.l.b16 %v120
  %v1156 = vunpack.c.l.b16 %v121
  %v1157 = vunpack.c.l.b16 %v122
  %v1158 = vunpack.c.l.b16 %v123
  %v1159 = vunpack.c.l.b16 %v124
  %v1160 = vunpack.c.l.b16 %v125
  %v1161 = vunpack.c.l.b16 %v126
  %v1162 = vunpack.c.l.b16 %v127
  %v1163 = vunpack.c.l.b16 %v128
  %v1164 = vunpack.c.l.b16 %v129
  %v1165 = vunpack.c.l.b16 %v130
  %v1166 = vunpack.c.l.b16 %v131
  %v1167 = vunpack.c.l.b16 %v132
  %v1168 = vunpack.c.l.b16 %v133
  %v1169 = vunpack.c.l.b16 %v134
  %v1170 = vunpack.c.l.b16 %v135
  %v1171 = vunpack.c.l.b16 %v136
  %v1172 = vunpack.c.l.b16 %v137
  %v1173 = vunpack.c.l.b16 %v138
  %v1174 = vunpack.c.l.b16 %v139
  %v1175 = vunpack.c.l.b16 %v140
  %v1176 = vunpack.c.l.b16 %v141
  %v1177 = vunpack.c.l.b16 %v142
  %v1178 = vunpack.c.l.b16 %v143
  %v1179 = vunpack.c.l.b16 %v144
  %v1180 = vunpack.c.l.b16 %v145
  %v1181 = vunpack.c.l.b16 %v146
  %v1182 = vunpack.c.l.b16 %v147
  %v1183 = vunpack.c.l.b16 %v148
  %v1184 = vunpack.c.l.b16 %v149
  %v1185 = vunpack.c.l.b16 %v150
  %v1186 = vunpack.c.l.b16 %v151
  %v1187 = vunpack.c.l.b16 %v152
  %v1188 = vunpack.c.l.b16 %v153
  %v1189 = vunpack.c.l.b16 %v154
  %v1190 = vunpack.c.l.b16 %v155
  %v1191 = vunpack.c.l.b16 %v156
  %v1192 = vunpack.c.l.b16 %v157
  %v1193 = vunpack.c.l.b16 %v158
  %v1194 = vunpack.c.l.b16 %v159
  %v1195 = vunpack.c.l.b16 %v160
  %v1196 = vunpack.c.l.b16 %v161
  %v1197 = vunpack.c.l.b16 %v162
  %v1198 = vunpack.c.l.b16 %v163
  %v1199 = vunpack.c.l.b16 %v164
  %v1200 = vunpack.c.l.b16 %v165
  %v1201 = vunpack.c.l.b16 %v166
  %v1202 = vunpack.c.l.b16 %v167
  %v1203 = vunpack.c.l.b16 %v168
  %v1204 = vunpack.c.l.b16 %v169
  %v1205 = vunpack.c.l.b16 %v170
  %v1206 = vunpack.c.l.b16 %v171
  %v1207 = vunpack.c.l.b16 %v172
  %v1208 = vunpack.c.l.b16 %v173
  %v1209 = vunpack.c.l.b16 %v174
  %v1210 = vunpack.c.l.b16 %v175
  %v1211 = vunpack.c.l.b16 %v176
  %v1212 = vunpack.c.l.b16 %v177
  %v1213 = vunpack.c.l.b16 %v178
  %v1214 = vunpack.c.l.b16 %v179
  %v1215 = vunpack.c.l.b16 %v180
  %v1216 = vunpack.c.l.b16 %v181
  %v1217 = vunpack.c.l.b16 %v182
  %v1218 = vunpack.c.l.b16 %v183
  %v1219 = vunpack.c.l.b16 %v184
  %v1220 = vunpack.c.l.b16 %v185
  %v1221 = vunpack.c.l.b16 %v186
  %v1222 = vunpack.c.l.b16 %v187
  %v1223 = vunpack.c.l.b16 %v188
  %v1224 = vunpack.c.l.b16 %v189
  %v1225 = vunpack.c.l.b16 %v190
  %v1226 = vunpack.c.l.b16 %v191
  %v1227 = vunpack.c.l.b16 %v192
  %v1228 = vunpack.c.l.b16 %v193
  %v1229 = vunpack.c.l.b16 %v194
  %v1230 = vunpack.c.l.b16 %v195
  %v1231 = vunpack.c.l.b16 %v196
  %v1232 = vunpack.c.l.b16 %v197
  %v1233 = vunpack.c.l.b16 %v198
  %v1234 = vunpack.c.l.b16 %v199
  %v1235 = vunpack.c.l.b16 %v200
  %v1236 = vunpack.c.l.b16 %v201
  %v1237 = vunpack.c.l.b16 %v202
  %v1238 = vunpack.c.l.b16 %v203
  %v1239 = vunpack.c.l.b16 %v204
  %v1240 = vunpack.c.l.b16 %v205
  %v1241 = vunpack.c.l.b16 %v206
  %v1242 = vunpack.c.l.b16 %v207
  %v1243 = vunpack.c.l.b16 %v208
  %v1244 = vunpack.c.l.b16 %v209
  %v1245 = vunpack.c.l.b16 %v210
  %v1246 = vunpack.c.l.b16 %v211
  %v1247 = vunpack.c.l.b16 %v212
  %v1248 = vunpack.c.l.b16 %v213
  %v1249 = vunpack.c.l.b16 %v214
  %v1250 = vunpack.c.l.b16 %v215
  %v1251 = vunpack.c.l.b16 %v216
  %v1252 = vunpack.c.l.b16 %v217
  %v1253 = vunpack.c.l.b16 %v218
  %v1254 = vunpack.c.l.b16 %v219
  %v1255 = vunpack.c.l.b16 %v220
  %v1256 = vunpack.c.l.b16 %v221
  %v1257 = vunpack.c.l.b16 %v222
  %v1258 = vunpack.c.l.b16 %v223
  %v1259 = vunpack.c.l.b16 %v224
  %v1260 = vunpack.c.l.b16 %v225
  %v1261 = vunpack.c.l.b16 %v226
  %v1262 = vunpack.c.l.b16 %v227
  %v1263 = vunpack.c.l.b16 %v228
  %v1264 = vunpack.c.l.b16 %v229
  %v1265 = vunpack.c.l.b16 %v230
  %v1266 = vunpack.c.l.b16 %v231
  %v1267 = vunpack.c.l.b16 %v232
  %v1268 = vunpack.c.l.b16 %v233
  %v1269 = vunpack.c.l.b16 %v234
  %v1270 = vunpack.c.l.b16 %v235
  %v1271 = vunpack.c.l.b16 %v236
  %v1272 = vunpack.c.l.b16 %v237
  %v1273 = vunpack.c.l.b16 %v238
  %v1274 = vunpack.c.l.b16 %v239
  %v1275 = vunpack.c.l.b16 %v240
  %v1276 = vunpack.c.l.b16 %v241
  %v1277 = vunpack.c.l.b16 %v242
  %v1278 = vunpack.c.l.b16 %v243
  %v1279 = vunpack.c.l.b16 %v244
  %v1280 = vunpack.c.l.b16 %v245
  %v1281 = vunpack.c.l.b16 %v246
  %v1282 = vunpack.c.l.b16 %v247
  %v1283 = vunpack.c.l.b16 %v248
  %v1284 = vunpack.c.l.b16 %v249
  %v1285 = vunpack.c.l.b16 %v250
  %v1286 = vunpack.c.l.b16 %v251
  %v1287 = vunpack.c.l.b16 %v252
  %v1288 = vunpack.c.l.b16 %v253
  %v1289 = vunpack.c.l.b16 %v254
  %v1290 = vunpack.c.l.b16 %v255
  %v1291 = vunpack.c.l.b16 %v256
  %v1292 = vunpack.c.l.b16 %v257
  %v1293 = vunpack.c.l.b16 %v258
  %v1294 = vunpack.c.l.b16 %v259
  %v1295 = vunpack.c.l.b16 %v260
  %v1296 = vunpack.c.l.b16 %v261
  %v1297 = vunpack.c.l.b16 %v262
  %v1298 = vunpack.c.l.b16 %v263
  %v1299 = vunpack.c.l.b16 %v264
  %v1300 = vunpack.c.l.b16 %v265
  %v1301 = vunpack.c.l.b16 %v266
  %v1302 = vunpack.c.l.b16 %v267
  %v1303 = vunpack.c.l.b16 %v268
  %v1304 = vunpack.c.l.b16 %v269
  %v1305 = vunpack.c.l.b16 %v270
  %v1306 = vunpack.c.l.b16 %v271
  %v1307 = vunpack.c.l.b16 %v272
  %v1308 = vunpack.c.l.b16 %v273
  %v1309 = vunpack.c.l.b16 %v274
  %v1310 = vunpack.c.l.b16 %v275
  %v1311 = vunpack.c.l.b16 %v276
  %v1312 = vunpack.c.l.b16 %v277
  %v1313 = vunpack.c.l.b16 %v278
  %v1314 = vunpack.c.l.b16 %v279
  %v1315 = vunpack.c.l.b16 %v280
  %v1316 = vunpack.c.l.b16 %v281
  %v1317 = vunpack.c.l.b16 %v282
  %v1318 = vunpack.c.l.b16 %v283
  %v1319 = vunpack.c.l.b16 %v284
  %v1320 = vunpack.c.l.b16 %v285
  %v1321 = vunpack.c.l.b16 %v286
  %v1322 = vunpack.c.l.b16 %v287
  %v1323 = vunpack.c.l.b16 %v288
  %v1324 = vunpack.c.l.b16 %v289
  %v1325 = vunpack.c.l.b16 %v290
  %v1326 = vunpack.c.l.b16 %v291
  %v1327 = vunpack.c.l.b16 %v292
  %v1328 = vunpack.c.l.b16 %v293
  %v1329 = vunpack.c.l.b16 %v294
  %v1330 = vunpack.c.l.b16 %v295
  %v1331 = vunpack.c.l.b16 %v296
  %v1332 = vunpack.c.l.b16 %v297
  %v1333 = vunpack.c.l.b16 %v298
  %v1334 = vunpack.c.l.b16 %v299
  %v1335 = vunpack.c.l.b16 %v300
  %v1336 = vunpack.c.l.b16 %v301
  %v1337 = vunpack.c.l.b16 %v302
  %v1338 = vunpack.c.l.b16 %v303
  %v1339 = vunpack.c.l.b16 %v304
  %v1340 = vunpack.c.l.b16 %v305
  %v1341 = vunpack.c.l.b16 %v306
  %v1342 = vunpack.c.l.b16 %v307
  %v1343 = vunpack.c.l.b16 %v308
  %v1344 = vunpack.c.l.b16 %v309
  %v1345 = vunpack.c.l.b16 %v310
  %v1346 = vunpack.c.l.b16 %v311
  %v1347 = vunpack.c.l.b16 %v312
  %v1348 = vunpack.c.l.b16 %v313
  %v1349 = vunpack.c.l.b16 %v314
  %v1350 = vunpack.c.l.b16 %v315
  %v1351 = vunpack.c.l.b16 %v316
  %v1352 = vunpack.c.l.b16 %v317
  %v1353 = vunpack.c.l.b16 %v318
  %v1354 = vunpack.c.l.b16 %v319
  %v1355 = vunpack.c.l.b16 %v320
  %v1356 = vunpack.c.l.b16 %v321
  %v1357 = vunpack.c.l.b16 %v322
  %v1358 = vunpack.c.l.b16 %v323
  %v1359 = vunpack.c.l.b16 %v324
  %v1360 = vunpack.c.l.b16 %v325
  %v1361 = vunpack.c.l.b16 %v326
  %v1362 = vunpack.c.l.b16 %v327
  %v1363 = vunpack.c.l.b16 %v328
  %v1364 = vunpack.c.l.b16 %v329
  %v1365 = vunpack.c.l.b16 %v330
  %v1366 = vunpack.c.l.b16 %v331
  %v1367 = vunpack.c.l.b16 %v332
  %v1368 = vunpack.c.l.b16 %v333
  %v1369 = vunpack.c.l.b16 %v334
  %v1370 = vunpack.c.l.b16 %v335
  %v1371 = vunpack.c.l.b16 %v336
  %v1372 = vunpack.c.l.b16 %v337
  %v1373 = vunpack.c.l.b16 %v338
  %v1374 = vunpack.c.l.b16 %v339
  %v1375 = vunpack.c.l.b16 %v340
  %v1376 = vunpack.c.l.b16 %v341
  %v1377 = vunpack.c.l.b16 %v342
  %v1378 = vunpack.c.l.b16 %v343
  %v1379 = vunpack.c.l.b16 %v344
  %v1380 = vunpack.c.l.b16 %v345
  %v1381 = vunpack.c.l.b16 %v346
  %v1382 = vunpack.c.l.b16 %v347
  %v1383 = vunpack.c.l.b16 %v348
  %v1384 = vunpack.c.l.b16 %v349
  %v1385 = vunpack.c.l.b16 %v350
  %v1386 = vunpack.c.l.b16 %v351
  %v1387 = vunpack.c.l.b16 %v352
  %v1388 = vunpack.c.l.b16 %v353
  %v1389 = vunpack.c.l.b16 %v354
  %v1390 = vunpack.c.l.b16 %v355
  %v1391 = vunpack.c.l.b16 %v356
  %v1392 = vunpack.c.l.b16 %v357
  %v1393 = vunpack.c.l.b16 %v358
  %v1394 = vunpack.c.l.b16 %v359
  %v1395 = vunpack.c.l.b16 %v360
  %v1396 = vunpack.c.l.b16 %v361
  %v1397 = vunpack.c.l.b16 %v362
  %v1398 = vunpack.c.l.b16 %v363
  %v1399 = vunpack.c.l.b16 %v364
  %v1400 = vunpack.c.l.b16 %v365
  %v1401 = vunpack.c.l.b16 %v366
  %v1402 = vunpack.c.l.b16 %v367
  %v1403 = vunpack.c.l.b16 %v368
  %v1404 = vunpack.c.l.b16 %v369
  %v1405 = vunpack.c.l.b16 %v370
  %v1406 = vunpack.c.l.b16 %v371
  %v1407 = vunpack.c.l.b16 %v372
  %v1408 = vunpack.c.l.b16 %v373
  %v1409 = vunpack.c.l.b16 %v374
  %v1410 = vunpack.c.l.b16 %v375
  %v1411 = vunpack.c.l.b16 %v376
  %v1412 = vunpack.c.l.b16 %v377
  %v1413 = vunpack.c.l.b16 %v378
  %v1414 = vunpack.c.l.b16 %v379
  %v1415 = vunpack.c.l.b16 %v380
  %v1416 = vunpack.c.l.b16 %v381
  %v1417 = vunpack.c.l.b16 %v382
  %v1418 = vunpack.c.l.b16 %v383
  %v1419 = vunpack.c.l.b16 %v384
  %v1420 = vunpack.c.l.b16 %v385
  %v1421 = vunpack.c.l.b16 %v386
  %v1422 = vunpack.c.l.b16 %v387
  %v1423 = vunpack.c.l.b16 %v388
  %v1424 = vunpack.c.l.b16 %v389
  %v1425 = vunpack.c.l.b16 %v390
  %v1426 = vunpack.c.l.b16 %v391
  %v1427 = vunpack.c.l.b16 %v392
  %v1428 = vunpack.c.l.b16 %v393
  %v1429 = vunpack.c.l.b16 %v394
  %v1430 = vunpack.c.l.b16 %v395
  %v1431 = vunpack.c.l.b16 %v396
  %v1432 = vunpack.c.l.b16 %v397
  %v1433 = vunpack.c.l.b16 %v398
  %v1434 = vunpack.c.l.b16 %v399
  %v1435 = vunpack.c.l.b16 %v400
  %v1436 = vunpack.c.l.b16 %v401
  %v1437 = vunpack.c.l.b16 %v402
  %v1438 = vunpack.c.l.b16 %v403
  %v1439 = vunpack.c.l.b16 %v404
  %v1440 = vunpack.c.l.b16 %v405
  %v1441 = vunpack.c.l.b16 %v406
  %v1442 = vunpack.c.l.b16 %v407
  %v1443 = vunpack.c.l.b16 %v408
  %v1444 = vunpack.c.l.b16 %v409
  %v1445 = vunpack.c.l.b16 %v410
  %v1446 = vunpack.c.l.b16 %v411
  %v1447 = vunpack.c.l.b16 %v412
  %v1448 = vunpack.c.l.b16 %v413
  %v1449 = vunpack.c.l.b16 %v414
  %v1450 = vunpack.c.l.b16 %v415
  %v1451 = vunpack.c.l.b16 %v416
  %v1452 = vunpack.c.l.b16 %v417
  %v1453 = vunpack.c.l.b16 %v418
  %v1454 = vunpack.c.l.b16 %v419
  %v1455 = vunpack.c.l.b16 %v420
  %v1456 = vunpack.c.l.b16 %v421
  %v1457 = vunpack.c.l.b16 %v422
  %v1458 = vunpack.c.l.b16 %v423
  %v1459 = vunpack.c.l.b16 %v424
  %v1460 = vunpack.c.l.b16 %v425
  %v1461 = vunpack.c.l.b16 %v426
  %v1462 = vunpack.c.l.b16 %v427
  %v1463 = vunpack.c.l.b16 %v428
  %v1464 = vunpack.c.l.b16 %v429
  %v1465 = vunpack.c.l.b16 %v430
  %v1466 = vunpack.c.l.b16 %v431
  %v1467 = vunpack.c.l.b16 %v432
  %v1468 = vunpack.c.l.b16 %v433
  %v1469 = vunpack.c.l.b16 %v434
  %v1470 = vunpack.c.l.b16 %v435
  %v1471 = vunpack.c.l.b16 %v436
  %v1472 = vunpack.c.l.b16 %v437
  %v1473 = vunpack.c.l.b16 %v438
  %v1474 = vunpack.c.l.b16 %v439
  %v1475 = vunpack.c.l.b16 %v440
  %v1476 = vunpack.c.l.b16 %v441
  %v1477 = vunpack.c.l.b16 %v442
  %v1478 = vunpack.c.l.b16 %v443
  %v1479 = vunpack.c.l.b16 %v444
  %v1480 = vunpack.c.l.b16 %v445
  %v1481 = vunpack.c.l.b16 %v446
  %v1482 = vunpack.c.l.b16 %v447
  %v1483 = vunpack.c.l.b16 %v448
  %v1484 = vunpack.c.l.b16 %v449
  %v1485 = vunpack.c.l.b16 %v450
  %v1486 = vunpack.c.l.b16 %v451
  %v1487 = vunpack.c.l.b16 %v452
  %v1488 = vunpack.c.l.b16 %v453
  %v1489 = vunpack.c.l.b16 %v454
  %v1490 = vunpack.c.l.b16 %v455
  %v1491 = vunpack.c.l.b16 %v456
  %v1492 = vunpack.c.l.b16 %v457
  %v1493 = vunpack.c.l.b16 %v458
  %v1494 = vunpack.c.l.b16 %v459
  %v1495 = vunpack.c.l.b16 %v460
  %v1496 = vunpack.c.l.b16 %v461
  %v1497 = vunpack.c.l.b16 %v462
  %v1498 = vunpack.c.l.b16 %v463
  %v1499 = vunpack.c.l.b16 %v464
  %v1500 = vunpack.c.l.b16 %v465
  %v1501 = vunpack.c.l.b16 %v466
  %v1502 = vunpack.c.l.b16 %v467
  %v1503 = vunpack.c.l.b16 %v468
  %v1504 = vunpack.c.l.b16 %v469
  %v1505 = vunpack.c.l.b16 %v470
  %v1506 = vunpack.c.l.b16 %v471
  %v1507 = vunpack.c.l.b16 %v472
  %v1508 = vunpack.c.l.b16 %v473
  %v1509 = vunpack.c.l.b16 %v474
  %v1510 = vunpack.c.l.b16 %v475
  %v1511 = vunpack.c.l.b16 %v476
  %v1512 = vunpack.c.l.b16 %v477
  %v1513 = vunpack.c.l.b16 %v478
  %v1514 = vunpack.c.l.b16 %v479
  %v1515 = vunpack.c.l.b16 %v480
  %v1516 = vunpack.c.l.b16 %v481
  %v1517 = vunpack.c.l.b16 %v482
  %v1518 = vunpack.c.l.b16 %v483
  %v1519 = vunpack.c.l.b16 %v484
  %v1520 = vunpack.c.l.b16 %v485
  %v1521 = vunpack.c.l.b16 %v486
  %v1522 = vunpack.c.l.b16 %v487
  %v1523 = vunpack.c.l.b16 %v488
  %v1524 = vunpack.c.l.b16 %v489
  %v1525 = vunpack.c.l.b16 %v490
  %v1526 = vunpack.c.l.b16 %v491
  %v1527 = vunpack.c.l.b16 %v492
  %v1528 = vunpack.c.l.b16 %v493
  %v1529 = vunpack.c.l.b16 %v494
  %v1530 = vunpack.c.l.b16 %v495
  %v1531 = vunpack.c.l.b16 %v496
  %v1532 = vunpack.c.l.b16 %v497
  %v1533 = vunpack.c.l.b16 %v498
  %v1534 = vunpack.c.l.b16 %v499
  %v1535 = vunpack.c.l.b16 %v500
  %v1536 = vunpack.c.l.b16 %v501
  %v1537 = vunpack.c.l.b16 %v502
  %v1538 = vunpack.c.l.b16 %v503
  %v1539 = vunpack.c.l.b16 %v504
  %v1540 = vunpack.c.l.b16 %v505
  %v1541 = vunpack.c.l.b16 %v506
  %v1542 = vunpack.c.l.b16 %v507
  %v1543 = vunpack.c.l.b16 %v508
  %v1544 = vunpack.c.l.b16 %v509
  %v1545 = vunpack.c.l.b16 %v510
  %v1546 = vunpack.c.l.b16 %v511
  %v1547 = vunpack.c.l.b16 %v512
  %v1548 = vunpack.c.l.b16 %v513
  %v1549 = vunpack.c.l.b16 %v514
  %v1550 = vunpack.c.l.b16 %v515
  %v1551 = vunpack.c.l.b16 %v516
  %v1552 = vunpack.c.l.b16 %v517
  %v1553 = vunpack.c.l.b16 %v518
  %v1554 = vunpack.c.l.b16 %v519
  %v1555 = vunpack.c.l.b16 %v520
  %v1556 = vunpack.c.l.b16 %v521
  %v1557 = vunpack.c.l.b16 %v522
  %v1558 = vunpack.c.l.b16 %v523
  %v1559 = vunpack.c.l.b16 %v524
  %v1560 = vunpack.c.l.b16 %v525
  %v1561 = vunpack.c.l.b16 %v526
  %v1562 = vunpack.c.l.b16 %v527
  %v1563 = vunpack.c.l.b16 %v528
  %v1564 = vunpack.c.l.b16 %v529
  %v1565 = vunpack.c.l.b16 %v530
  %v1566 = vunpack.c.l.b16 %v531
  %v1567 = vunpack.c.l.b16 %v532
  %v1568 = vunpack.c.l.b16 %v533
  %v1569 = vunpack.c.l.b16 %v534
  %v1570 = vunpack.c.l.b16 %v535
  %v1571 = vunpack.c.l.b16 %v536
  %v1572 = vunpack.c.l.b16 %v537
  %v1573 = vunpack.c.l.b16 %v538
  %v1574 = vunpack.c.l.b16 %v539
  %v1575 = vunpack.c.l.b16 %v540
  %v1576 = vunpack.c.l.b16 %v541
  %v1577 = vunpack.c.l.b16 %v542
  %v1578 = vunpack.c.l.b16 %v543
  %v1579 = vunpack.c.l.b16 %v544
  %v1580 = vunpack.c.l.b16 %v545
  %v1581 = vunpack.c.l.b16 %v546
  %v1582 = vunpack.c.l.b16 %v547
  %v1583 = vunpack.c.l.b16 %v548
  %v1584 = vunpack.c.l.b16 %v549
  %v1585 = vunpack.c.l.b16 %v550
  %v1586 = vunpack.c.l.b16 %v551
  %v1587 = vunpack.c.l.b16 %v552
  %v1588 = vunpack.c.l.b16 %v553
  %v1589 = vunpack.c.l.b16 %v554
  %v1590 = vunpack.c.l.b16 %v555
  %v1591 = vunpack.c.l.b16 %v556
  %v1592 = vunpack.c.l.b16 %v557
  %v1593 = vunpack.c.l.b16 %v558
  %v1594 = vunpack.c.l.b16 %v559
  %v1595 = vunpack.c.l.b16 %v560
  %v1596 = vunpack.c.l.b16 %v561
  %v1597 = vunpack.c.l.b16 %v562
  %v1598 = vunpack.c.l.b16 %v563
  %v1599 = vunpack.c.l.b16 %v564
  %v1600 = vunpack.c.l.b16 %v565
  %v1601 = vunpack.c.l.b16 %v566
  %v1602 = vunpack.c.l.b16 %v567
  %v1603 = vunpack.c.l.b16 %v568
  %v1604 = vunpack.c.l.b16 %v569
  %v1605 = vunpack.c.l.b16 %v570
  %v1606 = vunpack.c.l.b16 %v571
  %v1607 = vunpack.c.l.b16 %v572
  %v1608 = vunpack.c.l.b16 %v573
  %v1609 = vunpack.c.l.b16 %v574
  %v1610 = vunpack.c.l.b16 %v575
  %v1611 = vunpack.c.l.b16 %v576
  %v1612 = vunpack.c.l.b16 %v577
  %v1613 = vpack.c.b16 %v1102, %v1101
  %v1614 = vpack.c.b16 %v1104, %v1103
  %v1615 = vpack.c.b16 %v1106, %v1105
  %v1616 = vpack.c.b16 %v1108, %v1107
  %v1617 = vpack.c.b16 %v1110, %v1109
  %v1618 = vpack.c.b16 %v1112, %v1111
  %v1619 = vpack.c.b16 %v1114, %v1113
  %v1620 = vpack.c.b16 %v1116, %v1115
  %v1621 = vpack.c.b16 %v1118, %v1117
  %v1622 = vpack.c.b16 %v1120, %v1119
  %v1623 = vpack.c.b16 %v1122, %v1121
  %v1624 = vpack.c.b16 %v1124, %v1123
  %v1625 = vpack.c.b16 %v1126, %v1125
  %v1626 = vpack.c.b16 %v1128, %v1127
  %v1627 = vpack.c.b16 %v1130, %v1129
  %v1628 = vpack.c.b16 %v1132, %v1131
  %v1629 = vpack.c.b16 %v1134, %v1133
  %v1630 = vpack.c.b16 %v1136, %v1135
  %v1631 = vpack.c.b16 %v1138, %v1137
  %v1632 = vpack.c.b16 %v1140, %v1139
  %v1633 = vpack.c.b16 %v1142, %v1141
  %v1634 = vpack.c.b16 %v1144, %v1143
  %v1635 = vpack.c.b16 %v1146, %v1145
  %v1636 = vpack.c.b16 %v1148, %v1147
  %v1637 = vpack.c.b16 %v1150, %v1149
  %v1638 = vpack.c.b16 %v1152, %v1151
  %v1639 = vpack.c.b16 %v1154, %v1153
  %v1640 = vpack.c.b16 %v1156, %v1155
  %v1641 = vpack.c.b16 %v1158, %v1157
  %v1642 = vpack.c.b16 %v1160, %v1159
  %v1643 = vpack.c.b16 %v1162, %v1161
  %v1644 = vpack.c.b16 %v1164, %v1163
  %v1645 = vpack.c.b16 %v1166, %v1165
  %v1646 = vpack.c.b16 %v1168, %v1167
  %v1647 = vpack.c.b16 %v1170, %v1169
  %v1648 = vpack.c.b16 %v1172, %v1171
  %v1649 = vpack.c.b16 %v1174, %v1173
  %v1650 = vpack.c.b16 %v1176, %v1175
  %v1651 = vpack.c.b16 %v1178, %v1177
  %v1652 = vpack.c.b16 %v1180, %v1179
  %v1653 = vpack.c.b16 %v1182, %v1181
  %v1654 = vpack.c.b16 %v1184, %v1183
  %v1655 = vpack.c.b16 %v1186, %v1185
  %v1656 = vpack.c.b16 %v1188, %v1187
  %v1657 = vpack.c.b16 %v1190, %v1189
  %v1658 = vpack.c.b16 %v1192, %v1191
  %v1659 = vpack.c.b16 %v1194, %v1193
  %v1660 = vpack.c.b16 %v1196, %v1195
  %v1661 = vpack.c.b16 %v1198, %v1197
  %v1662 = vpack.c.b16 %v1200, %v1199
  %v1663 = vpack.c.b16 %v1202, %v1201
  %v1664 = vpack.c.b16 %v1204, %v1203
  %v1665 = vpack.c.b16 %v1206, %v1205
  %v1666 = vpack.c.b16 %v1208, %v1207
  %v1667 = vpack.c.b16 %v1210, %v1209
  %v1668 = vpack.c.b16 %v1212, %v1211
  %v1669 = vpack.c.b16 %v1214, %v1213
  %v1670 = vpack.c.b16 %v1216, %v1215
  %v1671 = vpack.c.b16 %v1218, %v1217
  %v1672 = vpack.c.b16 %v1220, %v1219
  %v1673 = vpack.c.b16 %v1222, %v1221
  %v1674 = vpack.c.b16 %v1224, %v1223
  %v1675 = vpack.c.b16 %v1226, %v1225
  %v1676 = vpack.c.b16 %v1228, %v1227
  %v1677 = vpack.c.b16 %v1230, %v1229
  %v1678 = vpack.c.b16 %v1232, %v1231
  %v1679 = vpack.c.b16 %v1234, %v1233
  %v1680 = vpack.c.b16 %v1236, %v1235
  %v1681 = vpack.c.b16 %v1238, %v1237
  %v1682 = vpack.c.b16 %v1240, %v1239
  %v1683 = vpack.c.b16 %v1242, %v1241
  %v1684 = vpack.c.b16 %v1244, %v1243
  %v1685 = vpack.c.b16 %v1246, %v1245
  %v1686 = vpack.c.b16 %v1248, %v1247
  %v1687 = vpack.c.b16 %v1250, %v1249
  %v1688 = vpack.c.b16 %v1252, %v1251
  %v1689 = vpack.c.b16 %v1254, %v1253
  %v1690 = vpack.c.b16 %v1256, %v1255
  %v1691 = vpack.c.b16 %v1258, %v1257
  %v1692 = vpack.c.b16 %v1260, %v1259
  %v1693 = vpack.c.b16 %v1262, %v1261
  %v1694 = vpack.c.b16 %v1264, %v1263
  %v1695 = vpack.c.b16 %v1266, %v1265
  %v1696 = vpack.c.b16 %v1268, %v1267
  %v1697 = vpack.c.b16 %v1270, %v1269
  %v1698 = vpack.c.b16 %v1272, %v1271
  %v1699 = vpack.c.b16 %v1274, %v1273
  %v1700 = vpack.c.b16 %v1276, %v1275
  %v1701 = vpack.c.b16 %v1278, %v1277
  %v1702 = vpack.c.b16 %v1280, %v1279
  %v1703 = vpack.c.b16 %v1282, %v1281
  %v1704 = vpack.c.b16 %v1284, %v1283
  %v1705 = vpack.c.b16 %v1286, %v1285
  %v1706 = vpack.c.b16 %v1288, %v1287
  %v1707 = vpack.c.b16 %v1290, %v1289
  %v1708 = vpack.c.b16 %v1292, %v1291
  %v1709 = vpack.c.b16 %v1294, %v1293
  %v1710 = vpack.c.b16 %v1296, %v1295
  %v1711 = vpack.c.b16 %v1298, %v1297
  %v1712 = vpack.c.b16 %v1300, %v1299
  %v1713 = vpack.c.b16 %v1302, %v1301
  %v1714 = vpack.c.b16 %v1304, %v1303
  %v1715 = vpack.c.b16 %v1306, %v1305
  %v1716 = vpack.c.b16 %v1308, %v1307
  %v1717 = vpack.c.b16 %v1310, %v1309
  %v1718 = vpack.c.b16 %v1312, %v1311
  %v1719 = vpack.c.b16 %v1314, %v1313
  %v1720 = vpack.c.b16 %v1316, %v1315
  %v1721 = vpack.c.b16 %v1318, %v1317
  %v1722 = vpack.c.b16 %v1320, %v1319
  %v1723 = vpack.c.b16 %v1322, %v1321
  %v1724 = vpack.c.b16 %v1324, %v1323
  %v1725 = vpack.c.b16 %v1326, %v1325
  %v1726 = vpack.c.b16 %v1328, %v1327
  %v1727 = vpack.c.b16 %v1330, %v1329
  %v1728 = vpack.c.b16 %v1332, %v1331
  %v1729 = vpack.c.b16 %v1334, %v1333
  %v1730 = vpack.c.b16 %v1336, %v1335
  %v1731 = vpack.c.b16 %v1338, %v1337
  %v1732 = vpack.c.b16 %v1340, %v1339
  %v1733 = vpack.c.b16 %v1342, %v1341
  %v1734 = vpack.c.b16 %v1344, %v1343
  %v1735 = vpack.c.b16 %v1346, %v1345
  %v1736 = vpack.c.b16 %v1348, %v1347
  %v1737 = vpack.c.b16 %v1350, %v1349
  %v1738 = vpack.c.b16 %v1352, %v1351
  %v1739 = vpack.c.b16 %v1354, %v1353
  %v1740 = vpack.c.b16 %v1356, %v1355
  %v1741 = vpack.c.b16 %v1358, %v1357
  %v1742 = vpack.c.b16 %v1360, %v1359
  %v1743 = vpack.c.b16 %v1362, %v1361
  %v1744 = vpack.c.b16 %v1364, %v1363
  %v1745 = vpack.c.b16 %v1366, %v1365
  %v1746 = vpack.c.b16 %v1368, %v1367
  %v1747 = vpack.c.b16 %v1370, %v1369
  %v1748 = vpack.c.b16 %v1372, %v1371
  %v1749 = vpack.c.b16 %v1374, %v1373
  %v1750 = vpack.c.b16 %v1376, %v1375
  %v1751 = vpack.c.b16 %v1378, %v1377
  %v1752 = vpack.c.b16 %v1380, %v1379
  %v1753 = vpack.c.b16 %v1382, %v1381
  %v1754 = vpack.c.b16 %v1384, %v1383
  %v1755 = vpack.c.b16 %v1386, %v1385
  %v1756 = vpack.c.b16 %v1388, %v1387
  %v1757 = vpack.c.b16 %v1390, %v1389
  %v1758 = vpack.c.b16 %v1392, %v1391
  %v1759 = vpack.c.b16 %v1394, %v1393
  %v1760 = vpack.c.b16 %v1396, %v1395
  %v1761 = vpack.c.b16 %v1398, %v1397
  %v1762 = vpack.c.b16 %v1400, %v1399
  %v1763 = vpack.c.b16 %v1402, %v1401
  %v1764 = vpack.c.b16 %v1404, %v1403
  %v1765 = vpack.c.b16 %v1406, %v1405
  %v1766 = vpack.c.b16 %v1408, %v1407
  %v1767 = vpack.c.b16 %v1410, %v1409
  %v1768 = vpack.c.b16 %v1412, %v1411
  %v1769 = vpack.c.b16 %v1414, %v1413
  %v1770 = vpack.c.b16 %v1416, %v1415
  %v1771 = vpack.c.b16 %v1418, %v1417
  %v1772 = vpack.c.b16 %v1420, %v1419
  %v1773 = vpack.c.b16 %v1422, %v1421
  %v1774 = vpack.c.b16 %v1424, %v1423
  %v1775 = vpack.c.b16 %v1426, %v1425
  %v1776 = vpack.c.b16 %v1428, %v1427
  %v1777 = vpack.c.b16 %v1430, %v1429
  %v1778 = vpack.c.b16 %v1432, %v1431
  %v1779 = vpack.c.b16 %v1434, %v1433
  %v1780 = vpack.c.b16 %v1436, %v1435
  %v1781 = vpack.c.b16 %v1438, %v1437
  %v1782 = vpack.c.b16 %v1440, %v1439
  %v1783 = vpack.c.b16 %v1442, %v1441
  %v1784 = vpack.c.b16 %v1444, %v1443
  %v1785 = vpack.c.b16 %v1446, %v1445
  %v1786 = vpack.c.b16 %v1448, %v1447
  %v1787 = vpack.c.b16 %v1450, %v1449
  %v1788 = vpack.c.b16 %v1452, %v1451
  %v1789 = vpack.c.b16 %v1454, %v1453
  %v1790 = vpack.c.b16 %v1456, %v1455
  %v1791 = vpack.c.b16 %v1458, %v1457
  %v1792 = vpack.c.b16 %v1460, %v1459
  %v1793 = vpack.c.b16 %v1462, %v1461
  %v1794 = vpack.c.b16 %v1464, %v1463
  %v1795 = vpack.c.b16 %v1466, %v1465
  %v1796 = vpack.c.b16 %v1468, %v1467
  %v1797 = vpack.c.b16 %v1470, %v1469
  %v1798 = vpack.c.b16 %v1472, %v1471
  %v1799 = vpack.c.b16 %v1474, %v1473
  %v1800 = vpack.c.b16 %v1476, %v1475
  %v1801 = vpack.c.b16 %v1478, %v1477
  %v1802 = vpack.c.b16 %v1480, %v1479
  %v1803 = vpack.c.b16 %v1482, %v1481
  %v1804 = vpack.c.b16 %v1484, %v1483
  %v1805 = vpack.c.b16 %v1486, %v1485
  %v1806 = vpack.c.b16 %v1488, %v1487
  %v1807 = vpack.c.b16 %v1490, %v1489
  %v1808 = vpack.c.b16 %v1492, %v1491
  %v1809 = vpack.c.b16 %v1494, %v1493
  %v1810 = vpack.c.b16 %v1496, %v1495
  %v1811 = vpack.c.b16 %v1498, %v1497
  %v1812 = vpack.c.b16 %v1500, %v1499
  %v1813 = vpack.c.b16 %v1502, %v1501
  %v1814 = vpack.c.b16 %v1504, %v1503
  %v1815 = vpack.c.b16 %v1506, %v1505
  %v1816 = vpack.c.b16 %v1508, %v1507
  %v1817 = vpack.c.b16 %v1510, %v1509
  %v1818 = vpack.c.b16 %v1512, %v1511
  %v1819 = vpack.c.b16 %v1514, %v1513
  %v1820 = vpack.c.b16 %v1516, %v1515
  %v1821 = vpack.c.b16 %v1518, %v1517
  %v1822 = vpack.c.b16 %v1520, %v1519
  %v1823 = vpack.c.b16 %v1522, %v1521
  %v1824 = vpack.c.b16 %v1524, %v1523
  %v1825 = vpack.c.b16 %v1526, %v1525
  %v1826 = vpack.c.b16 %v1528, %v1527
  %v1827 = vpack.c.b16 %v1530, %v1529
  %v1828 = vpack.c.b16 %v1532, %v1531
  %v1829 = vpack.c.b16 %v1534, %v1533
  %v1830 = vpack.c.b16 %v1536, %v1535
  %v1831 = vpack.c.b16 %v1538, %v1537
  %v1832 = vpack.c.b16 %v1540, %v1539
  %v1833 = vpack.c.b16 %v1542, %v1541
  %v1834 = vpack.c.b16 %v1544, %v1543
  %v1835 = vpack.c.b16 %v1546, %v1545
  %v1836 = vpack.c.b16 %v1548, %v1547
  %v1837 = vpack.c.b16 %v1550, %v1549
  %v1838 = vpack.c.b16 %v1552, %v1551
  %v1839 = vpack.c.b16 %v1554, %v1553
  %v1840 = vpack.c.b16 %v1556, %v1555
  %v1841 = vpack.c.b16 %v1558, %v1557
  %v1842 = vpack.c.b16 %v1560, %v1559
  %v1843 = vpack.c.b16 %v1562, %v1561
  %v1844 = vpack.c.b16 %v1564, %v1563
  %v1845 = vpack.c.b16 %v1566, %v1565
  %v1846 = vpack.c.b16 %v1568, %v1567
  %v1847 = vpack.c.b16 %v1570, %v1569
  %v1848 = vpack.c.b16 %v1572, %v1571
  %v1849 = vpack.c.b16 %v1574, %v1573
  %v1850 = vpack.c.b16 %v1576, %v1575
  %v1851 = vpack.c.b16 %v1578, %v1577
  %v1852 = vpack.c.b16 %v1580, %v1579
  %v1853 = vpack.c.b16 %v1582, %v1581
  %v1854 = vpack.c.b16 %v1584, %v1583
  %v1855 = vpack.c.b16 %v1586, %v1585
  %v1856 = vpack.c.b16 %v1588, %v1587
  %v1857 = vpack.c.b16 %v1590, %v1589
  %v1858 = vpack.c.b16 %v1592, %v1591
  %v1859 = vpack.c.b16 %v1594, %v1593
  %v1860 = vpack.c.b16 %v1596, %v1595
  %v1861 = vpack.c.b16 %v1598, %v1597
  %v1862 = vpack.c.b16 %v1600, %v1599
  %v1863 = vpack.c.b16 %v1602, %v1601
  %v1864 = vpack.c.b16 %v1604, %v1603
  %v1865 = vpack.c.b16 %v1606, %v1605
  %v1866 = vpack.c.b16 %v1608, %v1607
  %v1867 = vpack.c.b16 %v1610, %v1609
  %v1868 = vpack.c.b16 %v1612, %v1611
  %v1873 = vunpack.c.l.b16 %v578
  %v1874 = vunpack.c.l.b16 %v579
  %v1875 = vunpack.c.l.b16 %v580
  %v1876 = vunpack.c.l.b16 %v581
  %v1877 = vpack.c.b16 %v1874, %v1873
  %v1878 = vpack.c.b16 %v1876, %v1875
  %vm1881 = vcmask 261120
  %v1883 = vsel %vm1881, %v1613, 0
  %v1886 = vsel %vm1881, %v1614, 0
  %v1889 = vsel %vm1881, %v1615, 0
  %v1892 = vsel %vm1881, %v1616, 0
  %v1895 = vsel %vm1881, %v1617, 0
  %v1898 = vsel %vm1881, %v1618, 0
  %v1901 = vsel %vm1881, %v1619, 0
  %v1904 = vsel %vm1881, %v1620, 0
  %v1907 = vsel %vm1881, %v1621, 0
  %v1910 = vsel %vm1881, %v1622, 0
  %v1913 = vsel %vm1881, %v1623, 0
  %v1916 = vsel %vm1881, %v1624, 0
  %v1919 = vsel %vm1881, %v1625, 0
  %v1922 = vsel %vm1881, %v1626, 0
  %v1925 = vsel %vm1881, %v1627, 0
  %v1928 = vsel %vm1881, %v1628, 0
  %v1931 = vsel %vm1881, %v1629, 0
  %v1934 = vsel %vm1881, %v1630, 0
  %v1937 = vsel %vm1881, %v1631, 0
  %v1940 = vsel %vm1881, %v1632, 0
  %v1943 = vsel %vm1881, %v1633, 0
  %v1946 = vsel %vm1881, %v1634, 0
  %v1949 = vsel %vm1881, %v1635, 0
  %v1952 = vsel %vm1881, %v1636, 0
  %v1955 = vsel %vm1881, %v1637, 0
  %v1958 = vsel %vm1881, %v1638, 0
  %v1961 = vsel %vm1881, %v1639, 0
  %v1964 = vsel %vm1881, %v1640, 0
  %v1967 = vsel %vm1881, %v1641, 0
  %v1970 = vsel %vm1881, %v1642, 0
  %v1973 = vsel %vm1881, %v1643, 0
  %v1976 = vsel %vm1881, %v1644, 0
  %v1979 = vsel %vm1881, %v1645, 0
  %v1982 = vsel %vm1881, %v1646, 0
  %v1985 = vsel %vm1881, %v1647, 0
  %v1988 = vsel %vm1881, %v1648, 0
  %v1991 = vsel %vm1881, %v1649, 0
  %v1994 = vsel %vm1881, %v1650, 0
  %v1997 = vsel %vm1881, %v1651, 0
  %v2000 = vsel %vm1881, %v1652, 0
  %v2003 = vsel %vm1881, %v1653, 0
  %v2006 = vsel %vm1881, %v1654, 0
  %v2009 = vsel %vm1881, %v1655, 0
  %v2012 = vsel %vm1881, %v1656, 0
  %v2015 = vsel %vm1881, %v1657, 0
  %v2018 = vsel %vm1881, %v1658, 0
  %v2021 = vsel %vm1881, %v1659, 0
  %v2024 = vsel %vm1881, %v1660, 0
  %v2027 = vsel %vm1881, %v1661, 0
  %v2030 = vsel %vm1881, %v1662, 0
  %v2033 = vsel %vm1881, %v1663, 0
  %v2036 = vsel %vm1881, %v1664, 0
  %v2039 = vsel %vm1881, %v1665, 0
  %v2042 = vsel %vm1881, %v1666, 0
  %v2045 = vsel %vm1881, %v1667, 0
  %v2048 = vsel %vm1881, %v1668, 0
  %v2051 = vsel %vm1881, %v1669, 0
  %v2054 = vsel %vm1881, %v1670, 0
  %v2057 = vsel %vm1881, %v1671, 0
  %v2060 = vsel %vm1881, %v1672, 0
  %v2063 = vsel %vm1881, %v1673, 0
  %v2066 = vsel %vm1881, %v1674, 0
  %v2069 = vsel %vm1881, %v1675, 0
  %v2072 = vsel %vm1881, %v1676, 0
  %v2075 = vsel %vm1881, %v1677, 0
  %v2078 = vsel %vm1881, %v1678, 0
  %v2081 = vsel %vm1881, %v1679, 0
  %v2084 = vsel %vm1881, %v1680, 0
  %v2087 = vsel %vm1881, %v1681, 0
  %v2090 = vsel %vm1881, %v1682, 0
  %v2093 = vsel %vm1881, %v1683, 0
  %v2096 = vsel %vm1881, %v1684, 0
  %v2099 = vsel %vm1881, %v1685, 0
  %v2102 = vsel %vm1881, %v1686, 0
  %v2105 = vsel %vm1881, %v1687, 0
  %v2108 = vsel %vm1881, %v1688, 0
  %v2111 = vsel %vm1881, %v1689, 0
  %v2114 = vsel %vm1881, %v1690, 0
  %v2117 = vsel %vm1881, %v1691, 0
  %v2120 = vsel %vm1881, %v1692, 0
  %v2123 = vsel %vm1881, %v1693, 0
  %v2126 = vsel %vm1881, %v1694, 0
  %v2129 = vsel %vm1881, %v1695, 0
  %v2132 = vsel %vm1881, %v1696, 0
  %v2135 = vsel %vm1881, %v1697, 0
  %v2138 = vsel %vm1881, %v1698, 0
  %v2141 = vsel %vm1881, %v1699, 0
  %v2144 = vsel %vm1881, %v1700, 0
  %v2147 = vsel %vm1881, %v1701, 0
  %v2150 = vsel %vm1881, %v1702, 0
  %v2153 = vsel %vm1881, %v1703, 0
  %v2156 = vsel %vm1881, %v1704, 0
  %v2159 = vsel %vm1881, %v1705, 0
  %v2162 = vsel %vm1881, %v1706, 0
  %v2165 = vsel %vm1881, %v1707, 0
  %v2168 = vsel %vm1881, %v1708, 0
  %v2171 = vsel %vm1881, %v1709, 0
  %v2174 = vsel %vm1881, %v1710, 0
  %v2177 = vsel %vm1881, %v1711, 0
  %v2180 = vsel %vm1881, %v1712, 0
  %v2183 = vsel %vm1881, %v1713, 0
  %v2186 = vsel %vm1881, %v1714, 0
  %v2189 = vsel %vm1881, %v1715, 0
  %v2192 = vsel %vm1881, %v1716, 0
  %v2195 = vsel %vm1881, %v1717, 0
  %v2198 = vsel %vm1881, %v1718, 0
  %v2201 = vsel %vm1881, %v1719, 0
  %v2204 = vsel %vm1881, %v1720, 0
  %v2207 = vsel %vm1881, %v1721, 0
  %v2210 = vsel %vm1881, %v1722, 0
  %v2213 = vsel %vm1881, %v1723, 0
  %v2216 = vsel %vm1881, %v1724, 0
  %v2219 = vsel %vm1881, %v1725, 0
  %v2222 = vsel %vm1881, %v1726, 0
  %v2225 = vsel %vm1881, %v1727, 0
  %v2228 = vsel %vm1881, %v1728, 0
  %v2231 = vsel %vm1881, %v1729, 0
  %v2234 = vsel %vm1881, %v1730, 0
  %v2237 = vsel %vm1881, %v1731, 0
  %v2240 = vsel %vm1881, %v1732, 0
  %v2243 = vsel %vm1881, %v1733, 0
  %v2246 = vsel %vm1881, %v1734, 0
  %v2249 = vsel %vm1881, %v1735, 0
  %v2252 = vsel %vm1881, %v1736, 0
  %v2255 = vsel %vm1881, %v1737, 0
  %v2258 = vsel %vm1881, %v1738, 0
  %v2261 = vsel %vm1881, %v1739, 0
  %v2264 = vsel %vm1881, %v1740, 0
  %v2267 = vsel %vm1881, %v1741, 0
  %v2270 = vsel %vm1881, %v1742, 0
  %v2273 = vsel %vm1881, %v1743, 0
  %v2276 = vsel %vm1881, %v1744, 0
  %v2279 = vsel %vm1881, %v1745, 0
  %v2282 = vsel %vm1881, %v1746, 0
  %v2285 = vsel %vm1881, %v1747, 0
  %v2288 = vsel %vm1881, %v1748, 0
  %v2291 = vsel %vm1881, %v1749, 0
  %v2294 = vsel %vm1881, %v1750, 0
  %v2297 = vsel %vm1881, %v1751, 0
  %v2300 = vsel %vm1881, %v1752, 0
  %v2303 = vsel %vm1881, %v1753, 0
  %v2306 = vsel %vm1881, %v1754, 0
  %v2309 = vsel %vm1881, %v1755, 0
  %v2312 = vsel %vm1881, %v1756, 0
  %v2315 = vsel %vm1881, %v1757, 0
  %v2318 = vsel %vm1881, %v1758, 0
  %v2321 = vsel %vm1881, %v1759, 0
  %v2324 = vsel %vm1881, %v1760, 0
  %v2327 = vsel %vm1881, %v1761, 0
  %v2330 = vsel %vm1881, %v1762, 0
  %v2333 = vsel %vm1881, %v1763, 0
  %v2336 = vsel %vm1881, %v1764, 0
  %v2339 = vsel %vm1881, %v1765, 0
  %v2342 = vsel %vm1881, %v1766, 0
  %v2345 = vsel %vm1881, %v1767, 0
  %v2348 = vsel %vm1881, %v1768, 0
  %v2351 = vsel %vm1881, %v1769, 0
  %v2354 = vsel %vm1881, %v1770, 0
  %v2357 = vsel %vm1881, %v1771, 0
  %v2360 = vsel %vm1881, %v1772, 0
  %v2363 = vsel %vm1881, %v1773, 0
  %v2366 = vsel %vm1881, %v1774, 0
  %v2369 = vsel %vm1881, %v1775, 0
  %v2372 = vsel %vm1881, %v1776, 0
  %v2375 = vsel %vm1881, %v1777, 0
  %v2378 = vsel %vm1881, %v1778, 0
  %v2381 = vsel %vm1881, %v1779, 0
  %v2384 = vsel %vm1881, %v1780, 0
  %v2387 = vsel %vm1881, %v1781, 0
  %v2390 = vsel %vm1881, %v1782, 0
  %v2393 = vsel %vm1881, %v1783, 0
  %v2396 = vsel %vm1881, %v1784, 0
  %v2399 = vsel %vm1881, %v1785, 0
  %v2402 = vsel %vm1881, %v1786, 0
  %v2405 = vsel %vm1881, %v1787, 0
  %v2408 = vsel %vm1881, %v1788, 0
  %v2411 = vsel %vm1881, %v1789, 0
  %v2414 = vsel %vm1881, %v1790, 0
  %v2417 = vsel %vm1881, %v1791, 0
  %v2420 = vsel %vm1881, %v1792, 0
  %v2423 = vsel %vm1881, %v1793, 0
  %v2426 = vsel %vm1881, %v1794, 0
  %v2429 = vsel %vm1881, %v1795, 0
  %v2432 = vsel %vm1881, %v1796, 0
  %v2435 = vsel %vm1881, %v1797, 0
  %v2438 = vsel %vm1881, %v1798, 0
  %v2441 = vsel %vm1881, %v1799, 0
  %v2444 = vsel %vm1881, %v1800, 0
  %v2447 = vsel %vm1881, %v1801, 0
  %v2450 = vsel %vm1881, %v1802, 0
  %v2453 = vsel %vm1881, %v1803, 0
  %v2456 = vsel %vm1881, %v1804, 0
  %v2459 = vsel %vm1881, %v1805, 0
  %v2462 = vsel %vm1881, %v1806, 0
  %v2465 = vsel %vm1881, %v1807, 0
  %v2468 = vsel %vm1881, %v1808, 0
  %v2471 = vsel %vm1881, %v1809, 0
  %v2474 = vsel %vm1881, %v1810, 0
  %v2477 = vsel %vm1881, %v1811, 0
  %v2480 = vsel %vm1881, %v1812, 0
  %v2483 = vsel %vm1881, %v1813, 0
  %v2486 = vsel %vm1881, %v1814, 0
  %v2489 = vsel %vm1881, %v1815, 0
  %v2492 = vsel %vm1881, %v1816, 0
  %v2495 = vsel %vm1881, %v1817, 0
  %v2498 = vsel %vm1881, %v1818, 0
  %v2501 = vsel %vm1881, %v1819, 0
  %v2504 = vsel %vm1881, %v1820, 0
  %v2507 = vsel %vm1881, %v1821, 0
  %v2510 = vsel %vm1881, %v1822, 0
  %v2513 = vsel %vm1881, %v1823, 0
  %v2516 = vsel %vm1881, %v1824, 0
  %v2519 = vsel %vm1881, %v1825, 0
  %v2522 = vsel %vm1881, %v1826, 0
  %v2525 = vsel %vm1881, %v1827, 0
  %v2528 = vsel %vm1881, %v1828, 0
  %v2531 = vsel %vm1881, %v1829, 0
  %v2534 = vsel %vm1881, %v1830, 0
  %v2537 = vsel %vm1881, %v1831, 0
  %v2540 = vsel %vm1881, %v1832, 0
  %v2543 = vsel %vm1881, %v1833, 0
  %v2546 = vsel %vm1881, %v1834, 0
  %v2549 = vsel %vm1881, %v1835, 0
  %v2552 = vsel %vm1881, %v1836, 0
  %v2555 = vsel %vm1881, %v1837, 0
  %v2558 = vsel %vm1881, %v1838, 0
  %v2561 = vsel %vm1881, %v1839, 0
  %v2564 = vsel %vm1881, %v1840, 0
  %v2567 = vsel %vm1881, %v1841, 0
  %v2570 = vsel %vm1881, %v1842, 0
  %v2573 = vsel %vm1881, %v1843, 0
  %v2576 = vsel %vm1881, %v1844, 0
  %v2579 = vsel %vm1881, %v1845, 0
  %v2582 = vsel %vm1881, %v1846, 0
  %v2585 = vsel %vm1881, %v1847, 0
  %v2588 = vsel %vm1881, %v1848, 0
  %v2591 = vsel %vm1881, %v1849, 0
  %v2594 = vsel %vm1881, %v1850, 0
  %v2597 = vsel %vm1881, %v1851, 0
  %v2600 = vsel %vm1881, %v1852, 0
  %v2603 = vsel %vm1881, %v1853, 0
  %v2606 = vsel %vm1881, %v1854, 0
  %v2609 = vsel %vm1881, %v1855, 0
  %v2612 = vsel %vm1881, %v1856, 0
  %v2615 = vsel %vm1881, %v1857, 0
  %v2618 = vsel %vm1881, %v1858, 0
  %v2621 = vsel %vm1881, %v1859, 0
  %v2624 = vsel %vm1881, %v1860, 0
  %v2627 = vsel %vm1881, %v1861, 0
  %v2630 = vsel %vm1881, %v1862, 0
  %v2633 = vsel %vm1881, %v1863, 0
  %v2636 = vsel %vm1881, %v1864, 0
  %v2639 = vsel %vm1881, %v1865, 0
  %v2642 = vsel %vm1881, %v1866, 0
  %v2645 = vsel %vm1881, %v1867, 0
  %v2648 = vsel %vm1881, %v1868, 0
  %2650 = vmatprep.subr.bf16.mxu0 0
  %2651 = vmatpush1.bf16.msra.mxu0 %v1877
  %2652 = vmatprep.subr.bf16.mxu0 0
  %2653 = vmatpush1.bf16.msra.mxu0 %v1878
  %2654 = vmatprep.subr.bf16.mxu0 0
  %2655 = vmatpush1.bf16.msra.mxu0 0
  %2656 = vmatprep.subr.bf16.mxu0 0
  %2657 = vmatpush1.bf16.msra.mxu0 0
  %2658 = vmatprep.subr.bf16.mxu0 0
  %2659 = vmatpush1.bf16.msra.mxu0 0
  %2660 = vmatprep.subr.bf16.mxu0 0
  %2661 = vmatpush1.bf16.msra.mxu0 0
  %2662 = vmatprep.subr.bf16.mxu0 0
  %2663 = vmatpush1.bf16.msra.mxu0 0
  %2664 = vmatprep.subr.bf16.mxu0 0
  %2665 = vmatpush1.bf16.msra.mxu0 0
  %2666 = vmatprep.subr.bf16.mxu0 0
  %2667 = vmatpush1.bf16.msra.mxu0 0
  %2668 = vmatprep.subr.bf16.mxu0 0
  %2669 = vmatpush1.bf16.msra.mxu0 0
  %2670 = vmatprep.subr.bf16.mxu0 0
  %2671 = vmatpush1.bf16.msra.mxu0 0
  %2672 = vmatprep.subr.bf16.mxu0 0
  %2673 = vmatpush1.bf16.msra.mxu0 0
  %2674 = vmatprep.subr.bf16.mxu0 0
  %2675 = vmatpush1.bf16.msra.mxu0 0
  %2676 = vmatprep.subr.bf16.mxu0 0
  %2677 = vmatpush1.bf16.msra.mxu0 0
  %2678 = vmatprep.subr.bf16.mxu0 0
  %2679 = vmatpush1.bf16.msra.mxu0 0
  %2680 = vmatprep.subr.bf16.mxu0 0
  %2681 = vmatpush1.bf16.msra.mxu0 0
  %2682 = vmatprep.mubr.bf16.mxu0 0
  %2683 = vmatmul.mubr.bf16.gmra.mrb[0].mxu0 %v1883
  %v2684 = vpop.f32.mrb[0].mxu0
  %v2685 = vadd.f32 %v587, %v2684
  %v2686 = vpop.f32.mrb[0].mxu0
  %v2687 = vpop.f32.mrb[0].mxu0
  %v2688 = vadd.f32 %v587, %v2687
  %v2689 = vpop.f32.mrb[0].mxu0
  %2690 = vmatprep.mubr.bf16.mxu0 0
  %2691 = vmatmul.mubr.bf16.gmra.mrb[0].mxu0 %v1886
  %v2692 = vpop.f32.mrb[0].mxu0
  %v2693 = vadd.f32 %v587, %v2692
  %v2694 = vpop.f32.mrb[0].mxu0
  %v2695 = vpop.f32.mrb[0].mxu0
  %v2696 = vadd.f32 %v587, %v2695
  %v2697 = vpop.f32.mrb[0].mxu0
  %2698 = vmatprep.mubr.bf16.mxu0 0
  %2699 = vmatmul.mubr.bf16.gmra.mrb[0].mxu0 %v1889
  %v2700 = vpop.f32.mrb[0].mxu0
  %v2701 = vadd.f32 %v587, %v2700
  %v2702 = vpop.f32.mrb[0].mxu0
  %v2703 = vpop.f32.mrb[0].mxu0
  %v2704 = vadd.f32 %v587, %v2703
  %v2705 = vpop.f32.mrb[0].mxu0
  %2706 = vmatprep.mubr.bf16.mxu0 0
  %2707 = vmatmul.mubr.bf16.gmra.mrb[0].mxu0 %v1892
  %v2708 = vpop.f32.mrb[0].mxu0
  %v2709 = vadd.f32 %v587, %v2708
  %v2710 = vpop.f32.mrb[0].mxu0
  %v2711 = vpop.f32.mrb[0].mxu0
  %v2712 = vadd.f32 %v587, %v2711
  %v2713 = vpop.f32.mrb[0].mxu0
  %2714 = vmatprep.mubr.bf16.mxu0 0
  %2715 = vmatmul.mubr.bf16.gmra.mrb[0].mxu0 %v1895
  %v2716 = vpop.f32.mrb[0].mxu0
  %v2717 = vadd.f32 %v587, %v2716
  %v2718 = vpop.f32.mrb[0].mxu0
  %v2719 = vpop.f32.mrb[0].mxu0
  %v2720 = vadd.f32 %v587, %v2719
  %v2721 = vpop.f32.mrb[0].mxu0
  %2722 = vmatprep.mubr.bf16.mxu0 0
  %2723 = vmatmul.mubr.bf16.gmra.mrb[0].mxu0 %v1898
  %v2724 = vpop.f32.mrb[0].mxu0
  %v2725 = vadd.f32 %v587, %v2724
  %v2726 = vpop.f32.mrb[0].mxu0
  %v2727 = vpop.f32.mrb[0].mxu0
  %v2728 = vadd.f32 %v587, %v2727
  %v2729 = vpop.f32.mrb[0].mxu0
  %2730 = vmatprep.mubr.bf16.mxu0 0
  %2731 = vmatmul.mubr.bf16.gmra.mrb[0].mxu0 %v1901
  %v2732 = vpop.f32.mrb[0].mxu0
  %v2733 = vadd.f32 %v587, %v2732
  %v2734 = vpop.f32.mrb[0].mxu0
  %v2735 = vpop.f32.mrb[0].mxu0
  %v2736 = vadd.f32 %v587, %v2735
  %v2737 = vpop.f32.mrb[0].mxu0
  %2738 = vmatprep.mubr.bf16.mxu0 0
  %2739 = vmatmul.mubr.bf16.gmra.mrb[0].mxu0 %v1904
  %v2740 = vpop.f32.mrb[0].mxu0
  %v2741 = vadd.f32 %v587, %v2740
  %v2742 = vpop.f32.mrb[0].mxu0
  %v2743 = vpop.f32.mrb[0].mxu0
  %v2744 = vadd.f32 %v587, %v2743
  %v2745 = vpop.f32.mrb[0].mxu0
  %2746 = vmatprep.mubr.bf16.mxu0 0
  %2747 = vmatmul.mubr.bf16.gmra.mrb[0].mxu0 %v1907
  %v2748 = vpop.f32.mrb[0].mxu0
  %v2749 = vadd.f32 %v587, %v2748
  %v2750 = vpop.f32.mrb[0].mxu0
  %v2751 = vpop.f32.mrb[0].mxu0
  %v2752 = vadd.f32 %v587, %v2751
  %v2753 = vpop.f32.mrb[0].mxu0
  %2754 = vmatprep.mubr.bf16.mxu0 0
  %2755 = vmatmul.mubr.bf16.gmra.mrb[0].mxu0 %v1910
  %v2756 = vpop.f32.mrb[0].mxu0
  %v2757 = vadd.f32 %v587, %v2756
  %v2758 = vpop.f32.mrb[0].mxu0
  %v2759 = vpop.f32.mrb[0].mxu0
  %v2760 = vadd.f32 %v587, %v2759
  %v2761 = vpop.f32.mrb[0].mxu0
  %2762 = vmatprep.mubr.bf16.mxu0 0
  %2763 = vmatmul.mubr.bf16.gmra.mrb[0].mxu0 %v1913
  %v2764 = vpop.f32.mrb[0].mxu0
  %v2765 = vadd.f32 %v587, %v2764
  %v2766 = vpop.f32.mrb[0].mxu0
  %v2767 = vpop.f32.mrb[0].mxu0
  %v2768 = vadd.f32 %v587, %v2767
  %v2769 = vpop.f32.mrb[0].mxu0
  %2770 = vmatprep.mubr.bf16.mxu0 0
  %2771 = vmatmul.mubr.bf16.gmra.mrb[0].mxu0 %v1916
  %v2772 = vpop.f32.mrb[0].mxu0
  %v2773 = vadd.f32 %v587, %v2772
  %v2774 = vpop.f32.mrb[0].mxu0
  %v2775 = vpop.f32.mrb[0].mxu0
  %v2776 = vadd.f32 %v587, %v2775
  %v2777 = vpop.f32.mrb[0].mxu0
  %2778 = vmatprep.mubr.bf16.mxu0 0
  %2779 = vmatmul.mubr.bf16.gmra.mrb[0].mxu0 %v1919
  %v2780 = vpop.f32.mrb[0].mxu0
  %v2781 = vadd.f32 %v587, %v2780
  %v2782 = vpop.f32.mrb[0].mxu0
  %v2783 = vpop.f32.mrb[0].mxu0
  %v2784 = vadd.f32 %v587, %v2783
  %v2785 = vpop.f32.mrb[0].mxu0
  %2786 = vmatprep.mubr.bf16.mxu0 0
  %2787 = vmatmul.mubr.bf16.gmra.mrb[0].mxu0 %v1922
  %v2788 = vpop.f32.mrb[0].mxu0
  %v2789 = vadd.f32 %v587, %v2788
  %v2790 = vpop.f32.mrb[0].mxu0
  %v2791 = vpop.f32.mrb[0].mxu0
  %v2792 = vadd.f32 %v587, %v2791
  %v2793 = vpop.f32.mrb[0].mxu0
  %2794 = vmatprep.mubr.bf16.mxu0 0
  %2795 = vmatmul.mubr.bf16.gmra.mrb[0].mxu0 %v1925
  %v2796 = vpop.f32.mrb[0].mxu0
  %v2797 = vadd.f32 %v587, %v2796
  %v2798 = vpop.f32.mrb[0].mxu0
  %v2799 = vpop.f32.mrb[0].mxu0
  %v2800 = vadd.f32 %v587, %v2799
  %v2801 = vpop.f32.mrb[0].mxu0
  %2802 = vmatprep.mubr.bf16.mxu0 0
  %2803 = vmatmul.mubr.bf16.gmra.mrb[0].mxu0 %v1928
  %v2804 = vpop.f32.mrb[0].mxu0
  %v2805 = vadd.f32 %v587, %v2804
  %v2806 = vpop.f32.mrb[0].mxu0
  %v2807 = vpop.f32.mrb[0].mxu0
  %v2808 = vadd.f32 %v587, %v2807
  %v2809 = vpop.f32.mrb[0].mxu0
  %2810 = vmatprep.mubr.bf16.mxu0 0
  %2811 = vmatmul.mubr.bf16.gmra.mrb[0].mxu0 %v1931
  %v2812 = vpop.f32.mrb[0].mxu0
  %v2813 = vadd.f32 %v587, %v2812
  %v2814 = vpop.f32.mrb[0].mxu0
  %v2815 = vpop.f32.mrb[0].mxu0
  %v2816 = vadd.f32 %v587, %v2815
  %v2817 = vpop.f32.mrb[0].mxu0
  %2818 = vmatprep.mubr.bf16.mxu0 0
  %2819 = vmatmul.mubr.bf16.gmra.mrb[0].mxu0 %v1934
  %v2820 = vpop.f32.mrb[0].mxu0
  %v2821 = vadd.f32 %v587, %v2820
  %v2822 = vpop.f32.mrb[0].mxu0
  %v2823 = vpop.f32.mrb[0].mxu0
  %v2824 = vadd.f32 %v587, %v2823
  %v2825 = vpop.f32.mrb[0].mxu0
  %2826 = vmatprep.mubr.bf16.mxu0 0
  %2827 = vmatmul.mubr.bf16.gmra.mrb[0].mxu0 %v1937
  %v2828 = vpop.f32.mrb[0].mxu0
  %v2829 = vadd.f32 %v587, %v2828
  %v2830 = vpop.f32.mrb[0].mxu0
  %v2831 = vpop.f32.mrb[0].mxu0
  %v2832 = vadd.f32 %v587, %v2831
  %v2833 = vpop.f32.mrb[0].mxu0
  %2834 = vmatprep.mubr.bf16.mxu0 0
  %2835 = vmatmul.mubr.bf16.gmra.mrb[0].mxu0 %v1940
  %v2836 = vpop.f32.mrb[0].mxu0
  %v2837 = vadd.f32 %v587, %v2836
  %v2838 = vpop.f32.mrb[0].mxu0
  %v2839 = vpop.f32.mrb[0].mxu0
  %v2840 = vadd.f32 %v587, %v2839
  %v2841 = vpop.f32.mrb[0].mxu0
  %2842 = vmatprep.mubr.bf16.mxu0 0
  %2843 = vmatmul.mubr.bf16.gmra.mrb[0].mxu0 %v1943
  %v2844 = vpop.f32.mrb[0].mxu0
  %v2845 = vadd.f32 %v587, %v2844
  %v2846 = vpop.f32.mrb[0].mxu0
  %v2847 = vpop.f32.mrb[0].mxu0
  %v2848 = vadd.f32 %v587, %v2847
  %v2849 = vpop.f32.mrb[0].mxu0
  %2850 = vmatprep.mubr.bf16.mxu0 0
  %2851 = vmatmul.mubr.bf16.gmra.mrb[0].mxu0 %v1946
  %v2852 = vpop.f32.mrb[0].mxu0
  %v2853 = vadd.f32 %v587, %v2852
  %v2854 = vpop.f32.mrb[0].mxu0
  %v2855 = vpop.f32.mrb[0].mxu0
  %v2856 = vadd.f32 %v587, %v2855
  %v2857 = vpop.f32.mrb[0].mxu0
  %2858 = vmatprep.mubr.bf16.mxu0 0
  %2859 = vmatmul.mubr.bf16.gmra.mrb[0].mxu0 %v1949
  %v2860 = vpop.f32.mrb[0].mxu0
  %v2861 = vadd.f32 %v587, %v2860
  %v2862 = vpop.f32.mrb[0].mxu0
  %v2863 = vpop.f32.mrb[0].mxu0
  %v2864 = vadd.f32 %v587, %v2863
  %v2865 = vpop.f32.mrb[0].mxu0
  %2866 = vmatprep.mubr.bf16.mxu0 0
  %2867 = vmatmul.mubr.bf16.gmra.mrb[0].mxu0 %v1952
  %v2868 = vpop.f32.mrb[0].mxu0
  %v2869 = vadd.f32 %v587, %v2868
  %v2870 = vpop.f32.mrb[0].mxu0
  %v2871 = vpop.f32.mrb[0].mxu0
  %v2872 = vadd.f32 %v587, %v2871
  %v2873 = vpop.f32.mrb[0].mxu0
  %2874 = vmatprep.mubr.bf16.mxu0 0
  %2875 = vmatmul.mubr.bf16.gmra.mrb[0].mxu0 %v1955
  %v2876 = vpop.f32.mrb[0].mxu0
  %v2877 = vadd.f32 %v587, %v2876
  %v2878 = vpop.f32.mrb[0].mxu0
  %v2879 = vpop.f32.mrb[0].mxu0
  %v2880 = vadd.f32 %v587, %v2879
  %v2881 = vpop.f32.mrb[0].mxu0
  %2882 = vmatprep.mubr.bf16.mxu0 0
  %2883 = vmatmul.mubr.bf16.gmra.mrb[0].mxu0 %v1958
  %v2884 = vpop.f32.mrb[0].mxu0
  %v2885 = vadd.f32 %v587, %v2884
  %v2886 = vpop.f32.mrb[0].mxu0
  %v2887 = vpop.f32.mrb[0].mxu0
  %v2888 = vadd.f32 %v587, %v2887
  %v2889 = vpop.f32.mrb[0].mxu0
  %2890 = vmatprep.mubr.bf16.mxu0 0
  %2891 = vmatmul.mubr.bf16.gmra.mrb[0].mxu0 %v1961
  %v2892 = vpop.f32.mrb[0].mxu0
  %v2893 = vadd.f32 %v587, %v2892
  %v2894 = vpop.f32.mrb[0].mxu0
  %v2895 = vpop.f32.mrb[0].mxu0
  %v2896 = vadd.f32 %v587, %v2895
  %v2897 = vpop.f32.mrb[0].mxu0
  %2898 = vmatprep.mubr.bf16.mxu0 0
  %2899 = vmatmul.mubr.bf16.gmra.mrb[0].mxu0 %v1964
  %v2900 = vpop.f32.mrb[0].mxu0
  %v2901 = vadd.f32 %v587, %v2900
  %v2902 = vpop.f32.mrb[0].mxu0
  %v2903 = vpop.f32.mrb[0].mxu0
  %v2904 = vadd.f32 %v587, %v2903
  %v2905 = vpop.f32.mrb[0].mxu0
  %2906 = vmatprep.mubr.bf16.mxu0 0
  %2907 = vmatmul.mubr.bf16.gmra.mrb[0].mxu0 %v1967
  %v2908 = vpop.f32.mrb[0].mxu0
  %v2909 = vadd.f32 %v587, %v2908
  %v2910 = vpop.f32.mrb[0].mxu0
  %v2911 = vpop.f32.mrb[0].mxu0
  %v2912 = vadd.f32 %v587, %v2911
  %v2913 = vpop.f32.mrb[0].mxu0
  %2914 = vmatprep.mubr.bf16.mxu0 0
  %2915 = vmatmul.mubr.bf16.gmra.mrb[0].mxu0 %v1970
  %v2916 = vpop.f32.mrb[0].mxu0
  %v2917 = vadd.f32 %v587, %v2916
  %v2918 = vpop.f32.mrb[0].mxu0
  %v2919 = vpop.f32.mrb[0].mxu0
  %v2920 = vadd.f32 %v587, %v2919
  %v2921 = vpop.f32.mrb[0].mxu0
  %2922 = vmatprep.mubr.bf16.mxu0 0
  %2923 = vmatmul.mubr.bf16.gmra.mrb[0].mxu0 %v1973
  %v2924 = vpop.f32.mrb[0].mxu0
  %v2925 = vadd.f32 %v587, %v2924
  %v2926 = vpop.f32.mrb[0].mxu0
  %v2927 = vpop.f32.mrb[0].mxu0
  %v2928 = vadd.f32 %v587, %v2927
  %v2929 = vpop.f32.mrb[0].mxu0
  %2930 = vmatprep.mubr.bf16.mxu0 0
  %2931 = vmatmul.mubr.bf16.gmra.mrb[0].mxu0 %v1976
  %v2932 = vpop.f32.mrb[0].mxu0
  %v2933 = vadd.f32 %v587, %v2932
  %v2934 = vpop.f32.mrb[0].mxu0
  %v2935 = vpop.f32.mrb[0].mxu0
  %v2936 = vadd.f32 %v587, %v2935
  %v2937 = vpop.f32.mrb[0].mxu0
  %2938 = vmatprep.mubr.bf16.mxu0 0
  %2939 = vmatmul.mubr.bf16.gmra.mrb[0].mxu0 %v1979
  %v2940 = vpop.f32.mrb[0].mxu0
  %v2941 = vadd.f32 %v587, %v2940
  %v2942 = vpop.f32.mrb[0].mxu0
  %v2943 = vpop.f32.mrb[0].mxu0
  %v2944 = vadd.f32 %v587, %v2943
  %v2945 = vpop.f32.mrb[0].mxu0
  %2946 = vmatprep.mubr.bf16.mxu0 0
  %2947 = vmatmul.mubr.bf16.gmra.mrb[0].mxu0 %v1982
  %v2948 = vpop.f32.mrb[0].mxu0
  %v2949 = vadd.f32 %v587, %v2948
  %v2950 = vpop.f32.mrb[0].mxu0
  %v2951 = vpop.f32.mrb[0].mxu0
  %v2952 = vadd.f32 %v587, %v2951
  %v2953 = vpop.f32.mrb[0].mxu0
  %2954 = vmatprep.mubr.bf16.mxu0 0
  %2955 = vmatmul.mubr.bf16.gmra.mrb[0].mxu0 %v1985
  %v2956 = vpop.f32.mrb[0].mxu0
  %v2957 = vadd.f32 %v587, %v2956
  %v2958 = vpop.f32.mrb[0].mxu0
  %v2959 = vpop.f32.mrb[0].mxu0
  %v2960 = vadd.f32 %v587, %v2959
  %v2961 = vpop.f32.mrb[0].mxu0
  %2962 = vmatprep.mubr.bf16.mxu0 0
  %2963 = vmatmul.mubr.bf16.gmra.mrb[0].mxu0 %v1988
  %v2964 = vpop.f32.mrb[0].mxu0
  %v2965 = vadd.f32 %v587, %v2964
  %v2966 = vpop.f32.mrb[0].mxu0
  %v2967 = vpop.f32.mrb[0].mxu0
  %v2968 = vadd.f32 %v587, %v2967
  %v2969 = vpop.f32.mrb[0].mxu0
  %2970 = vmatprep.mubr.bf16.mxu0 0
  %2971 = vmatmul.mubr.bf16.gmra.mrb[0].mxu0 %v1991
  %v2972 = vpop.f32.mrb[0].mxu0
  %v2973 = vadd.f32 %v587, %v2972
  %v2974 = vpop.f32.mrb[0].mxu0
  %v2975 = vpop.f32.mrb[0].mxu0
  %v2976 = vadd.f32 %v587, %v2975
  %v2977 = vpop.f32.mrb[0].mxu0
  %2978 = vmatprep.mubr.bf16.mxu0 0
  %2979 = vmatmul.mubr.bf16.gmra.mrb[0].mxu0 %v1994
  %v2980 = vpop.f32.mrb[0].mxu0
  %v2981 = vadd.f32 %v587, %v2980
  %v2982 = vpop.f32.mrb[0].mxu0
  %v2983 = vpop.f32.mrb[0].mxu0
  %v2984 = vadd.f32 %v587, %v2983
  %v2985 = vpop.f32.mrb[0].mxu0
  %2986 = vmatprep.mubr.bf16.mxu0 0
  %2987 = vmatmul.mubr.bf16.gmra.mrb[0].mxu0 %v1997
  %v2988 = vpop.f32.mrb[0].mxu0
  %v2989 = vadd.f32 %v587, %v2988
  %v2990 = vpop.f32.mrb[0].mxu0
  %v2991 = vpop.f32.mrb[0].mxu0
  %v2992 = vadd.f32 %v587, %v2991
  %v2993 = vpop.f32.mrb[0].mxu0
  %2994 = vmatprep.mubr.bf16.mxu0 0
  %2995 = vmatmul.mubr.bf16.gmra.mrb[0].mxu0 %v2000
  %v2996 = vpop.f32.mrb[0].mxu0
  %v2997 = vadd.f32 %v587, %v2996
  %v2998 = vpop.f32.mrb[0].mxu0
  %v2999 = vpop.f32.mrb[0].mxu0
  %v3000 = vadd.f32 %v587, %v2999
  %v3001 = vpop.f32.mrb[0].mxu0
  %3002 = vmatprep.mubr.bf16.mxu0 0
  %3003 = vmatmul.mubr.bf16.gmra.mrb[0].mxu0 %v2003
  %v3004 = vpop.f32.mrb[0].mxu0
  %v3005 = vadd.f32 %v587, %v3004
  %v3006 = vpop.f32.mrb[0].mxu0
  %v3007 = vpop.f32.mrb[0].mxu0
  %v3008 = vadd.f32 %v587, %v3007
  %v3009 = vpop.f32.mrb[0].mxu0
  %3010 = vmatprep.mubr.bf16.mxu0 0
  %3011 = vmatmul.mubr.bf16.gmra.mrb[0].mxu0 %v2006
  %v3012 = vpop.f32.mrb[0].mxu0
  %v3013 = vadd.f32 %v587, %v3012
  %v3014 = vpop.f32.mrb[0].mxu0
  %v3015 = vpop.f32.mrb[0].mxu0
  %v3016 = vadd.f32 %v587, %v3015
  %v3017 = vpop.f32.mrb[0].mxu0
  %3018 = vmatprep.mubr.bf16.mxu0 0
  %3019 = vmatmul.mubr.bf16.gmra.mrb[0].mxu0 %v2009
  %v3020 = vpop.f32.mrb[0].mxu0
  %v3021 = vadd.f32 %v587, %v3020
  %v3022 = vpop.f32.mrb[0].mxu0
  %v3023 = vpop.f32.mrb[0].mxu0
  %v3024 = vadd.f32 %v587, %v3023
  %v3025 = vpop.f32.mrb[0].mxu0
  %3026 = vmatprep.mubr.bf16.mxu0 0
  %3027 = vmatmul.mubr.bf16.gmra.mrb[0].mxu0 %v2012
  %v3028 = vpop.f32.mrb[0].mxu0
  %v3029 = vadd.f32 %v587, %v3028
  %v3030 = vpop.f32.mrb[0].mxu0
  %v3031 = vpop.f32.mrb[0].mxu0
  %v3032 = vadd.f32 %v587, %v3031
  %v3033 = vpop.f32.mrb[0].mxu0
  %3034 = vmatprep.mubr.bf16.mxu0 0
  %3035 = vmatmul.mubr.bf16.gmra.mrb[0].mxu0 %v2015
  %v3036 = vpop.f32.mrb[0].mxu0
  %v3037 = vadd.f32 %v587, %v3036
  %v3038 = vpop.f32.mrb[0].mxu0
  %v3039 = vpop.f32.mrb[0].mxu0
  %v3040 = vadd.f32 %v587, %v3039
  %v3041 = vpop.f32.mrb[0].mxu0
  %3042 = vmatprep.mubr.bf16.mxu0 0
  %3043 = vmatmul.mubr.bf16.gmra.mrb[0].mxu0 %v2018
  %v3044 = vpop.f32.mrb[0].mxu0
  %v3045 = vadd.f32 %v587, %v3044
  %v3046 = vpop.f32.mrb[0].mxu0
  %v3047 = vpop.f32.mrb[0].mxu0
  %v3048 = vadd.f32 %v587, %v3047
  %v3049 = vpop.f32.mrb[0].mxu0
  %3050 = vmatprep.mubr.bf16.mxu0 0
  %3051 = vmatmul.mubr.bf16.gmra.mrb[0].mxu0 %v2021
  %v3052 = vpop.f32.mrb[0].mxu0
  %v3053 = vadd.f32 %v587, %v3052
  %v3054 = vpop.f32.mrb[0].mxu0
  %v3055 = vpop.f32.mrb[0].mxu0
  %v3056 = vadd.f32 %v587, %v3055
  %v3057 = vpop.f32.mrb[0].mxu0
  %3058 = vmatprep.mubr.bf16.mxu0 0
  %3059 = vmatmul.mubr.bf16.gmra.mrb[0].mxu0 %v2024
  %v3060 = vpop.f32.mrb[0].mxu0
  %v3061 = vadd.f32 %v587, %v3060
  %v3062 = vpop.f32.mrb[0].mxu0
  %v3063 = vpop.f32.mrb[0].mxu0
  %v3064 = vadd.f32 %v587, %v3063
  %v3065 = vpop.f32.mrb[0].mxu0
  %3066 = vmatprep.mubr.bf16.mxu0 0
  %3067 = vmatmul.mubr.bf16.gmra.mrb[0].mxu0 %v2027
  %v3068 = vpop.f32.mrb[0].mxu0
  %v3069 = vadd.f32 %v587, %v3068
  %v3070 = vpop.f32.mrb[0].mxu0
  %v3071 = vpop.f32.mrb[0].mxu0
  %v3072 = vadd.f32 %v587, %v3071
  %v3073 = vpop.f32.mrb[0].mxu0
  %3074 = vmatprep.mubr.bf16.mxu0 0
  %3075 = vmatmul.mubr.bf16.gmra.mrb[0].mxu0 %v2030
  %v3076 = vpop.f32.mrb[0].mxu0
  %v3077 = vadd.f32 %v587, %v3076
  %v3078 = vpop.f32.mrb[0].mxu0
  %v3079 = vpop.f32.mrb[0].mxu0
  %v3080 = vadd.f32 %v587, %v3079
  %v3081 = vpop.f32.mrb[0].mxu0
  %3082 = vmatprep.mubr.bf16.mxu0 0
  %3083 = vmatmul.mubr.bf16.gmra.mrb[0].mxu0 %v2033
  %v3084 = vpop.f32.mrb[0].mxu0
  %v3085 = vadd.f32 %v587, %v3084
  %v3086 = vpop.f32.mrb[0].mxu0
  %v3087 = vpop.f32.mrb[0].mxu0
  %v3088 = vadd.f32 %v587, %v3087
  %v3089 = vpop.f32.mrb[0].mxu0
  %3090 = vmatprep.mubr.bf16.mxu0 0
  %3091 = vmatmul.mubr.bf16.gmra.mrb[0].mxu0 %v2036
  %v3092 = vpop.f32.mrb[0].mxu0
  %v3093 = vadd.f32 %v587, %v3092
  %v3094 = vpop.f32.mrb[0].mxu0
  %v3095 = vpop.f32.mrb[0].mxu0
  %v3096 = vadd.f32 %v587, %v3095
  %v3097 = vpop.f32.mrb[0].mxu0
  %3098 = vmatprep.mubr.bf16.mxu0 0
  %3099 = vmatmul.mubr.bf16.gmra.mrb[0].mxu0 %v2039
  %v3100 = vpop.f32.mrb[0].mxu0
  %v3101 = vadd.f32 %v587, %v3100
  %v3102 = vpop.f32.mrb[0].mxu0
  %v3103 = vpop.f32.mrb[0].mxu0
  %v3104 = vadd.f32 %v587, %v3103
  %v3105 = vpop.f32.mrb[0].mxu0
  %3106 = vmatprep.mubr.bf16.mxu0 0
  %3107 = vmatmul.mubr.bf16.gmra.mrb[0].mxu0 %v2042
  %v3108 = vpop.f32.mrb[0].mxu0
  %v3109 = vadd.f32 %v587, %v3108
  %v3110 = vpop.f32.mrb[0].mxu0
  %v3111 = vpop.f32.mrb[0].mxu0
  %v3112 = vadd.f32 %v587, %v3111
  %v3113 = vpop.f32.mrb[0].mxu0
  %3114 = vmatprep.mubr.bf16.mxu0 0
  %3115 = vmatmul.mubr.bf16.gmra.mrb[0].mxu0 %v2045
  %v3116 = vpop.f32.mrb[0].mxu0
  %v3117 = vadd.f32 %v587, %v3116
  %v3118 = vpop.f32.mrb[0].mxu0
  %v3119 = vpop.f32.mrb[0].mxu0
  %v3120 = vadd.f32 %v587, %v3119
  %v3121 = vpop.f32.mrb[0].mxu0
  %3122 = vmatprep.mubr.bf16.mxu0 0
  %3123 = vmatmul.mubr.bf16.gmra.mrb[0].mxu0 %v2048
  %v3124 = vpop.f32.mrb[0].mxu0
  %v3125 = vadd.f32 %v587, %v3124
  %v3126 = vpop.f32.mrb[0].mxu0
  %v3127 = vpop.f32.mrb[0].mxu0
  %v3128 = vadd.f32 %v587, %v3127
  %v3129 = vpop.f32.mrb[0].mxu0
  %3130 = vmatprep.mubr.bf16.mxu0 0
  %3131 = vmatmul.mubr.bf16.gmra.mrb[0].mxu0 %v2051
  %v3132 = vpop.f32.mrb[0].mxu0
  %v3133 = vadd.f32 %v587, %v3132
  %v3134 = vpop.f32.mrb[0].mxu0
  %v3135 = vpop.f32.mrb[0].mxu0
  %v3136 = vadd.f32 %v587, %v3135
  %v3137 = vpop.f32.mrb[0].mxu0
  %3138 = vmatprep.mubr.bf16.mxu0 0
  %3139 = vmatmul.mubr.bf16.gmra.mrb[0].mxu0 %v2054
  %v3140 = vpop.f32.mrb[0].mxu0
  %v3141 = vadd.f32 %v587, %v3140
  %v3142 = vpop.f32.mrb[0].mxu0
  %v3143 = vpop.f32.mrb[0].mxu0
  %v3144 = vadd.f32 %v587, %v3143
  %v3145 = vpop.f32.mrb[0].mxu0
  %3146 = vmatprep.mubr.bf16.mxu0 0
  %3147 = vmatmul.mubr.bf16.gmra.mrb[0].mxu0 %v2057
  %v3148 = vpop.f32.mrb[0].mxu0
  %v3149 = vadd.f32 %v587, %v3148
  %v3150 = vpop.f32.mrb[0].mxu0
  %v3151 = vpop.f32.mrb[0].mxu0
  %v3152 = vadd.f32 %v587, %v3151
  %v3153 = vpop.f32.mrb[0].mxu0
  %3154 = vmatprep.mubr.bf16.mxu0 0
  %3155 = vmatmul.mubr.bf16.gmra.mrb[0].mxu0 %v2060
  %v3156 = vpop.f32.mrb[0].mxu0
  %v3157 = vadd.f32 %v587, %v3156
  %v3158 = vpop.f32.mrb[0].mxu0
  %v3159 = vpop.f32.mrb[0].mxu0
  %v3160 = vadd.f32 %v587, %v3159
  %v3161 = vpop.f32.mrb[0].mxu0
  %3162 = vmatprep.mubr.bf16.mxu0 0
  %3163 = vmatmul.mubr.bf16.gmra.mrb[0].mxu0 %v2063
  %v3164 = vpop.f32.mrb[0].mxu0
  %v3165 = vadd.f32 %v587, %v3164
  %v3166 = vpop.f32.mrb[0].mxu0
  %v3167 = vpop.f32.mrb[0].mxu0
  %v3168 = vadd.f32 %v587, %v3167
  %v3169 = vpop.f32.mrb[0].mxu0
  %3170 = vmatprep.mubr.bf16.mxu0 0
  %3171 = vmatmul.mubr.bf16.gmra.mrb[0].mxu0 %v2066
  %v3172 = vpop.f32.mrb[0].mxu0
  %v3173 = vadd.f32 %v587, %v3172
  %v3174 = vpop.f32.mrb[0].mxu0
  %v3175 = vpop.f32.mrb[0].mxu0
  %v3176 = vadd.f32 %v587, %v3175
  %v3177 = vpop.f32.mrb[0].mxu0
  %3178 = vmatprep.mubr.bf16.mxu0 0
  %3179 = vmatmul.mubr.bf16.gmra.mrb[0].mxu0 %v2069
  %v3180 = vpop.f32.mrb[0].mxu0
  %v3181 = vadd.f32 %v587, %v3180
  %v3182 = vpop.f32.mrb[0].mxu0
  %v3183 = vpop.f32.mrb[0].mxu0
  %v3184 = vadd.f32 %v587, %v3183
  %v3185 = vpop.f32.mrb[0].mxu0
  %3186 = vmatprep.mubr.bf16.mxu0 0
  %3187 = vmatmul.mubr.bf16.gmra.mrb[0].mxu0 %v2072
  %v3188 = vpop.f32.mrb[0].mxu0
  %v3189 = vadd.f32 %v587, %v3188
  %v3190 = vpop.f32.mrb[0].mxu0
  %v3191 = vpop.f32.mrb[0].mxu0
  %v3192 = vadd.f32 %v587, %v3191
  %v3193 = vpop.f32.mrb[0].mxu0
  %3194 = vmatprep.mubr.bf16.mxu0 0
  %3195 = vmatmul.mubr.bf16.gmra.mrb[0].mxu0 %v2075
  %v3196 = vpop.f32.mrb[0].mxu0
  %v3197 = vadd.f32 %v587, %v3196
  %v3198 = vpop.f32.mrb[0].mxu0
  %v3199 = vpop.f32.mrb[0].mxu0
  %v3200 = vadd.f32 %v587, %v3199
  %v3201 = vpop.f32.mrb[0].mxu0
  %3202 = vmatprep.mubr.bf16.mxu0 0
  %3203 = vmatmul.mubr.bf16.gmra.mrb[0].mxu0 %v2078
  %v3204 = vpop.f32.mrb[0].mxu0
  %v3205 = vadd.f32 %v587, %v3204
  %v3206 = vpop.f32.mrb[0].mxu0
  %v3207 = vpop.f32.mrb[0].mxu0
  %v3208 = vadd.f32 %v587, %v3207
  %v3209 = vpop.f32.mrb[0].mxu0
  %3210 = vmatprep.mubr.bf16.mxu0 0
  %3211 = vmatmul.mubr.bf16.gmra.mrb[0].mxu0 %v2081
  %v3212 = vpop.f32.mrb[0].mxu0
  %v3213 = vadd.f32 %v587, %v3212
  %v3214 = vpop.f32.mrb[0].mxu0
  %v3215 = vpop.f32.mrb[0].mxu0
  %v3216 = vadd.f32 %v587, %v3215
  %v3217 = vpop.f32.mrb[0].mxu0
  %3218 = vmatprep.mubr.bf16.mxu0 0
  %3219 = vmatmul.mubr.bf16.gmra.mrb[0].mxu0 %v2084
  %v3220 = vpop.f32.mrb[0].mxu0
  %v3221 = vadd.f32 %v587, %v3220
  %v3222 = vpop.f32.mrb[0].mxu0
  %v3223 = vpop.f32.mrb[0].mxu0
  %v3224 = vadd.f32 %v587, %v3223
  %v3225 = vpop.f32.mrb[0].mxu0
  %3226 = vmatprep.mubr.bf16.mxu0 0
  %3227 = vmatmul.mubr.bf16.gmra.mrb[0].mxu0 %v2087
  %v3228 = vpop.f32.mrb[0].mxu0
  %v3229 = vadd.f32 %v587, %v3228
  %v3230 = vpop.f32.mrb[0].mxu0
  %v3231 = vpop.f32.mrb[0].mxu0
  %v3232 = vadd.f32 %v587, %v3231
  %v3233 = vpop.f32.mrb[0].mxu0
  %3234 = vmatprep.mubr.bf16.mxu0 0
  %3235 = vmatmul.mubr.bf16.gmra.mrb[0].mxu0 %v2090
  %v3236 = vpop.f32.mrb[0].mxu0
  %v3237 = vadd.f32 %v587, %v3236
  %v3238 = vpop.f32.mrb[0].mxu0
  %v3239 = vpop.f32.mrb[0].mxu0
  %v3240 = vadd.f32 %v587, %v3239
  %v3241 = vpop.f32.mrb[0].mxu0
  %3242 = vmatprep.mubr.bf16.mxu0 0
  %3243 = vmatmul.mubr.bf16.gmra.mrb[0].mxu0 %v2093
  %v3244 = vpop.f32.mrb[0].mxu0
  %v3245 = vadd.f32 %v587, %v3244
  %v3246 = vpop.f32.mrb[0].mxu0
  %v3247 = vpop.f32.mrb[0].mxu0
  %v3248 = vadd.f32 %v587, %v3247
  %v3249 = vpop.f32.mrb[0].mxu0
  %3250 = vmatprep.mubr.bf16.mxu0 0
  %3251 = vmatmul.mubr.bf16.gmra.mrb[0].mxu0 %v2096
  %v3252 = vpop.f32.mrb[0].mxu0
  %v3253 = vadd.f32 %v587, %v3252
  %v3254 = vpop.f32.mrb[0].mxu0
  %v3255 = vpop.f32.mrb[0].mxu0
  %v3256 = vadd.f32 %v587, %v3255
  %v3257 = vpop.f32.mrb[0].mxu0
  %3258 = vmatprep.mubr.bf16.mxu0 0
  %3259 = vmatmul.mubr.bf16.gmra.mrb[0].mxu0 %v2099
  %v3260 = vpop.f32.mrb[0].mxu0
  %v3261 = vadd.f32 %v587, %v3260
  %v3262 = vpop.f32.mrb[0].mxu0
  %v3263 = vpop.f32.mrb[0].mxu0
  %v3264 = vadd.f32 %v587, %v3263
  %v3265 = vpop.f32.mrb[0].mxu0
  %3266 = vmatprep.mubr.bf16.mxu0 0
  %3267 = vmatmul.mubr.bf16.gmra.mrb[0].mxu0 %v2102
  %v3268 = vpop.f32.mrb[0].mxu0
  %v3269 = vadd.f32 %v587, %v3268
  %v3270 = vpop.f32.mrb[0].mxu0
  %v3271 = vpop.f32.mrb[0].mxu0
  %v3272 = vadd.f32 %v587, %v3271
  %v3273 = vpop.f32.mrb[0].mxu0
  %3274 = vmatprep.mubr.bf16.mxu0 0
  %3275 = vmatmul.mubr.bf16.gmra.mrb[0].mxu0 %v2105
  %v3276 = vpop.f32.mrb[0].mxu0
  %v3277 = vadd.f32 %v587, %v3276
  %v3278 = vpop.f32.mrb[0].mxu0
  %v3279 = vpop.f32.mrb[0].mxu0
  %v3280 = vadd.f32 %v587, %v3279
  %v3281 = vpop.f32.mrb[0].mxu0
  %3282 = vmatprep.mubr.bf16.mxu0 0
  %3283 = vmatmul.mubr.bf16.gmra.mrb[0].mxu0 %v2108
  %v3284 = vpop.f32.mrb[0].mxu0
  %v3285 = vadd.f32 %v587, %v3284
  %v3286 = vpop.f32.mrb[0].mxu0
  %v3287 = vpop.f32.mrb[0].mxu0
  %v3288 = vadd.f32 %v587, %v3287
  %v3289 = vpop.f32.mrb[0].mxu0
  %3290 = vmatprep.mubr.bf16.mxu0 0
  %3291 = vmatmul.mubr.bf16.gmra.mrb[0].mxu0 %v2111
  %v3292 = vpop.f32.mrb[0].mxu0
  %v3293 = vadd.f32 %v587, %v3292
  %v3294 = vpop.f32.mrb[0].mxu0
  %v3295 = vpop.f32.mrb[0].mxu0
  %v3296 = vadd.f32 %v587, %v3295
  %v3297 = vpop.f32.mrb[0].mxu0
  %3298 = vmatprep.mubr.bf16.mxu0 0
  %3299 = vmatmul.mubr.bf16.gmra.mrb[0].mxu0 %v2114
  %v3300 = vpop.f32.mrb[0].mxu0
  %v3301 = vadd.f32 %v587, %v3300
  %v3302 = vpop.f32.mrb[0].mxu0
  %v3303 = vpop.f32.mrb[0].mxu0
  %v3304 = vadd.f32 %v587, %v3303
  %v3305 = vpop.f32.mrb[0].mxu0
  %3306 = vmatprep.mubr.bf16.mxu0 0
  %3307 = vmatmul.mubr.bf16.gmra.mrb[0].mxu0 %v2117
  %v3308 = vpop.f32.mrb[0].mxu0
  %v3309 = vadd.f32 %v587, %v3308
  %v3310 = vpop.f32.mrb[0].mxu0
  %v3311 = vpop.f32.mrb[0].mxu0
  %v3312 = vadd.f32 %v587, %v3311
  %v3313 = vpop.f32.mrb[0].mxu0
  %3314 = vmatprep.mubr.bf16.mxu0 0
  %3315 = vmatmul.mubr.bf16.gmra.mrb[0].mxu0 %v2120
  %v3316 = vpop.f32.mrb[0].mxu0
  %v3317 = vadd.f32 %v587, %v3316
  %v3318 = vpop.f32.mrb[0].mxu0
  %v3319 = vpop.f32.mrb[0].mxu0
  %v3320 = vadd.f32 %v587, %v3319
  %v3321 = vpop.f32.mrb[0].mxu0
  %3322 = vmatprep.mubr.bf16.mxu0 0
  %3323 = vmatmul.mubr.bf16.gmra.mrb[0].mxu0 %v2123
  %v3324 = vpop.f32.mrb[0].mxu0
  %v3325 = vadd.f32 %v587, %v3324
  %v3326 = vpop.f32.mrb[0].mxu0
  %v3327 = vpop.f32.mrb[0].mxu0
  %v3328 = vadd.f32 %v587, %v3327
  %v3329 = vpop.f32.mrb[0].mxu0
  %3330 = vmatprep.mubr.bf16.mxu0 0
  %3331 = vmatmul.mubr.bf16.gmra.mrb[0].mxu0 %v2126
  %v3332 = vpop.f32.mrb[0].mxu0
  %v3333 = vadd.f32 %v587, %v3332
  %v3334 = vpop.f32.mrb[0].mxu0
  %v3335 = vpop.f32.mrb[0].mxu0
  %v3336 = vadd.f32 %v587, %v3335
  %v3337 = vpop.f32.mrb[0].mxu0
  %3338 = vmatprep.mubr.bf16.mxu0 0
  %3339 = vmatmul.mubr.bf16.gmra.mrb[0].mxu0 %v2129
  %v3340 = vpop.f32.mrb[0].mxu0
  %v3341 = vadd.f32 %v587, %v3340
  %v3342 = vpop.f32.mrb[0].mxu0
  %v3343 = vpop.f32.mrb[0].mxu0
  %v3344 = vadd.f32 %v587, %v3343
  %v3345 = vpop.f32.mrb[0].mxu0
  %3346 = vmatprep.mubr.bf16.mxu0 0
  %3347 = vmatmul.mubr.bf16.gmra.mrb[0].mxu0 %v2132
  %v3348 = vpop.f32.mrb[0].mxu0
  %v3349 = vadd.f32 %v587, %v3348
  %v3350 = vpop.f32.mrb[0].mxu0
  %v3351 = vpop.f32.mrb[0].mxu0
  %v3352 = vadd.f32 %v587, %v3351
  %v3353 = vpop.f32.mrb[0].mxu0
  %3354 = vmatprep.mubr.bf16.mxu0 0
  %3355 = vmatmul.mubr.bf16.gmra.mrb[0].mxu0 %v2135
  %v3356 = vpop.f32.mrb[0].mxu0
  %v3357 = vadd.f32 %v587, %v3356
  %v3358 = vpop.f32.mrb[0].mxu0
  %v3359 = vpop.f32.mrb[0].mxu0
  %v3360 = vadd.f32 %v587, %v3359
  %v3361 = vpop.f32.mrb[0].mxu0
  %3362 = vmatprep.mubr.bf16.mxu0 0
  %3363 = vmatmul.mubr.bf16.gmra.mrb[0].mxu0 %v2138
  %v3364 = vpop.f32.mrb[0].mxu0
  %v3365 = vadd.f32 %v587, %v3364
  %v3366 = vpop.f32.mrb[0].mxu0
  %v3367 = vpop.f32.mrb[0].mxu0
  %v3368 = vadd.f32 %v587, %v3367
  %v3369 = vpop.f32.mrb[0].mxu0
  %3370 = vmatprep.mubr.bf16.mxu0 0
  %3371 = vmatmul.mubr.bf16.gmra.mrb[0].mxu0 %v2141
  %v3372 = vpop.f32.mrb[0].mxu0
  %v3373 = vadd.f32 %v587, %v3372
  %v3374 = vpop.f32.mrb[0].mxu0
  %v3375 = vpop.f32.mrb[0].mxu0
  %v3376 = vadd.f32 %v587, %v3375
  %v3377 = vpop.f32.mrb[0].mxu0
  %3378 = vmatprep.mubr.bf16.mxu0 0
  %3379 = vmatmul.mubr.bf16.gmra.mrb[0].mxu0 %v2144
  %v3380 = vpop.f32.mrb[0].mxu0
  %v3381 = vadd.f32 %v587, %v3380
  %v3382 = vpop.f32.mrb[0].mxu0
  %v3383 = vpop.f32.mrb[0].mxu0
  %v3384 = vadd.f32 %v587, %v3383
  %v3385 = vpop.f32.mrb[0].mxu0
  %3386 = vmatprep.mubr.bf16.mxu0 0
  %3387 = vmatmul.mubr.bf16.gmra.mrb[0].mxu0 %v2147
  %v3388 = vpop.f32.mrb[0].mxu0
  %v3389 = vadd.f32 %v587, %v3388
  %v3390 = vpop.f32.mrb[0].mxu0
  %v3391 = vpop.f32.mrb[0].mxu0
  %v3392 = vadd.f32 %v587, %v3391
  %v3393 = vpop.f32.mrb[0].mxu0
  %3394 = vmatprep.mubr.bf16.mxu0 0
  %3395 = vmatmul.mubr.bf16.gmra.mrb[0].mxu0 %v2150
  %v3396 = vpop.f32.mrb[0].mxu0
  %v3397 = vadd.f32 %v587, %v3396
  %v3398 = vpop.f32.mrb[0].mxu0
  %v3399 = vpop.f32.mrb[0].mxu0
  %v3400 = vadd.f32 %v587, %v3399
  %v3401 = vpop.f32.mrb[0].mxu0
  %3402 = vmatprep.mubr.bf16.mxu0 0
  %3403 = vmatmul.mubr.bf16.gmra.mrb[0].mxu0 %v2153
  %v3404 = vpop.f32.mrb[0].mxu0
  %v3405 = vadd.f32 %v587, %v3404
  %v3406 = vpop.f32.mrb[0].mxu0
  %v3407 = vpop.f32.mrb[0].mxu0
  %v3408 = vadd.f32 %v587, %v3407
  %v3409 = vpop.f32.mrb[0].mxu0
  %3410 = vmatprep.mubr.bf16.mxu0 0
  %3411 = vmatmul.mubr.bf16.gmra.mrb[0].mxu0 %v2156
  %v3412 = vpop.f32.mrb[0].mxu0
  %v3413 = vadd.f32 %v587, %v3412
  %v3414 = vpop.f32.mrb[0].mxu0
  %v3415 = vpop.f32.mrb[0].mxu0
  %v3416 = vadd.f32 %v587, %v3415
  %v3417 = vpop.f32.mrb[0].mxu0
  %3418 = vmatprep.mubr.bf16.mxu0 0
  %3419 = vmatmul.mubr.bf16.gmra.mrb[0].mxu0 %v2159
  %v3420 = vpop.f32.mrb[0].mxu0
  %v3421 = vadd.f32 %v587, %v3420
  %v3422 = vpop.f32.mrb[0].mxu0
  %v3423 = vpop.f32.mrb[0].mxu0
  %v3424 = vadd.f32 %v587, %v3423
  %v3425 = vpop.f32.mrb[0].mxu0
  %3426 = vmatprep.mubr.bf16.mxu0 0
  %3427 = vmatmul.mubr.bf16.gmra.mrb[0].mxu0 %v2162
  %v3428 = vpop.f32.mrb[0].mxu0
  %v3429 = vadd.f32 %v587, %v3428
  %v3430 = vpop.f32.mrb[0].mxu0
  %v3431 = vpop.f32.mrb[0].mxu0
  %v3432 = vadd.f32 %v587, %v3431
  %v3433 = vpop.f32.mrb[0].mxu0
  %3434 = vmatprep.mubr.bf16.mxu0 0
  %3435 = vmatmul.mubr.bf16.gmra.mrb[0].mxu0 %v2165
  %v3436 = vpop.f32.mrb[0].mxu0
  %v3437 = vadd.f32 %v587, %v3436
  %v3438 = vpop.f32.mrb[0].mxu0
  %v3439 = vpop.f32.mrb[0].mxu0
  %v3440 = vadd.f32 %v587, %v3439
  %v3441 = vpop.f32.mrb[0].mxu0
  %3442 = vmatprep.mubr.bf16.mxu0 0
  %3443 = vmatmul.mubr.bf16.gmra.mrb[0].mxu0 %v2168
  %v3444 = vpop.f32.mrb[0].mxu0
  %v3445 = vadd.f32 %v587, %v3444
  %v3446 = vpop.f32.mrb[0].mxu0
  %v3447 = vpop.f32.mrb[0].mxu0
  %v3448 = vadd.f32 %v587, %v3447
  %v3449 = vpop.f32.mrb[0].mxu0
  %3450 = vmatprep.mubr.bf16.mxu0 0
  %3451 = vmatmul.mubr.bf16.gmra.mrb[0].mxu0 %v2171
  %v3452 = vpop.f32.mrb[0].mxu0
  %v3453 = vadd.f32 %v587, %v3452
  %v3454 = vpop.f32.mrb[0].mxu0
  %v3455 = vpop.f32.mrb[0].mxu0
  %v3456 = vadd.f32 %v587, %v3455
  %v3457 = vpop.f32.mrb[0].mxu0
  %3458 = vmatprep.mubr.bf16.mxu0 0
  %3459 = vmatmul.mubr.bf16.gmra.mrb[0].mxu0 %v2174
  %v3460 = vpop.f32.mrb[0].mxu0
  %v3461 = vadd.f32 %v587, %v3460
  %v3462 = vpop.f32.mrb[0].mxu0
  %v3463 = vpop.f32.mrb[0].mxu0
  %v3464 = vadd.f32 %v587, %v3463
  %v3465 = vpop.f32.mrb[0].mxu0
  %3466 = vmatprep.mubr.bf16.mxu0 0
  %3467 = vmatmul.mubr.bf16.gmra.mrb[0].mxu0 %v2177
  %v3468 = vpop.f32.mrb[0].mxu0
  %v3469 = vadd.f32 %v587, %v3468
  %v3470 = vpop.f32.mrb[0].mxu0
  %v3471 = vpop.f32.mrb[0].mxu0
  %v3472 = vadd.f32 %v587, %v3471
  %v3473 = vpop.f32.mrb[0].mxu0
  %3474 = vmatprep.mubr.bf16.mxu0 0
  %3475 = vmatmul.mubr.bf16.gmra.mrb[0].mxu0 %v2180
  %v3476 = vpop.f32.mrb[0].mxu0
  %v3477 = vadd.f32 %v587, %v3476
  %v3478 = vpop.f32.mrb[0].mxu0
  %v3479 = vpop.f32.mrb[0].mxu0
  %v3480 = vadd.f32 %v587, %v3479
  %v3481 = vpop.f32.mrb[0].mxu0
  %3482 = vmatprep.mubr.bf16.mxu0 0
  %3483 = vmatmul.mubr.bf16.gmra.mrb[0].mxu0 %v2183
  %v3484 = vpop.f32.mrb[0].mxu0
  %v3485 = vadd.f32 %v587, %v3484
  %v3486 = vpop.f32.mrb[0].mxu0
  %v3487 = vpop.f32.mrb[0].mxu0
  %v3488 = vadd.f32 %v587, %v3487
  %v3489 = vpop.f32.mrb[0].mxu0
  %3490 = vmatprep.mubr.bf16.mxu0 0
  %3491 = vmatmul.mubr.bf16.gmra.mrb[0].mxu0 %v2186
  %v3492 = vpop.f32.mrb[0].mxu0
  %v3493 = vadd.f32 %v587, %v3492
  %v3494 = vpop.f32.mrb[0].mxu0
  %v3495 = vpop.f32.mrb[0].mxu0
  %v3496 = vadd.f32 %v587, %v3495
  %v3497 = vpop.f32.mrb[0].mxu0
  %3498 = vmatprep.mubr.bf16.mxu0 0
  %3499 = vmatmul.mubr.bf16.gmra.mrb[0].mxu0 %v2189
  %v3500 = vpop.f32.mrb[0].mxu0
  %v3501 = vadd.f32 %v587, %v3500
  %v3502 = vpop.f32.mrb[0].mxu0
  %v3503 = vpop.f32.mrb[0].mxu0
  %v3504 = vadd.f32 %v587, %v3503
  %v3505 = vpop.f32.mrb[0].mxu0
  %3506 = vmatprep.mubr.bf16.mxu0 0
  %3507 = vmatmul.mubr.bf16.gmra.mrb[0].mxu0 %v2192
  %v3508 = vpop.f32.mrb[0].mxu0
  %v3509 = vadd.f32 %v587, %v3508
  %v3510 = vpop.f32.mrb[0].mxu0
  %v3511 = vpop.f32.mrb[0].mxu0
  %v3512 = vadd.f32 %v587, %v3511
  %v3513 = vpop.f32.mrb[0].mxu0
  %3514 = vmatprep.mubr.bf16.mxu0 0
  %3515 = vmatmul.mubr.bf16.gmra.mrb[0].mxu0 %v2195
  %v3516 = vpop.f32.mrb[0].mxu0
  %v3517 = vadd.f32 %v587, %v3516
  %v3518 = vpop.f32.mrb[0].mxu0
  %v3519 = vpop.f32.mrb[0].mxu0
  %v3520 = vadd.f32 %v587, %v3519
  %v3521 = vpop.f32.mrb[0].mxu0
  %3522 = vmatprep.mubr.bf16.mxu0 0
  %3523 = vmatmul.mubr.bf16.gmra.mrb[0].mxu0 %v2198
  %v3524 = vpop.f32.mrb[0].mxu0
  %v3525 = vadd.f32 %v587, %v3524
  %v3526 = vpop.f32.mrb[0].mxu0
  %v3527 = vpop.f32.mrb[0].mxu0
  %v3528 = vadd.f32 %v587, %v3527
  %v3529 = vpop.f32.mrb[0].mxu0
  %3530 = vmatprep.mubr.bf16.mxu0 0
  %3531 = vmatmul.mubr.bf16.gmra.mrb[0].mxu0 %v2201
  %v3532 = vpop.f32.mrb[0].mxu0
  %v3533 = vadd.f32 %v587, %v3532
  %v3534 = vpop.f32.mrb[0].mxu0
  %v3535 = vpop.f32.mrb[0].mxu0
  %v3536 = vadd.f32 %v587, %v3535
  %v3537 = vpop.f32.mrb[0].mxu0
  %3538 = vmatprep.mubr.bf16.mxu0 0
  %3539 = vmatmul.mubr.bf16.gmra.mrb[0].mxu0 %v2204
  %v3540 = vpop.f32.mrb[0].mxu0
  %v3541 = vadd.f32 %v587, %v3540
  %v3542 = vpop.f32.mrb[0].mxu0
  %v3543 = vpop.f32.mrb[0].mxu0
  %v3544 = vadd.f32 %v587, %v3543
  %v3545 = vpop.f32.mrb[0].mxu0
  %3546 = vmatprep.mubr.bf16.mxu0 0
  %3547 = vmatmul.mubr.bf16.gmra.mrb[0].mxu0 %v2207
  %v3548 = vpop.f32.mrb[0].mxu0
  %v3549 = vadd.f32 %v587, %v3548
  %v3550 = vpop.f32.mrb[0].mxu0
  %v3551 = vpop.f32.mrb[0].mxu0
  %v3552 = vadd.f32 %v587, %v3551
  %v3553 = vpop.f32.mrb[0].mxu0
  %3554 = vmatprep.mubr.bf16.mxu0 0
  %3555 = vmatmul.mubr.bf16.gmra.mrb[0].mxu0 %v2210
  %v3556 = vpop.f32.mrb[0].mxu0
  %v3557 = vadd.f32 %v587, %v3556
  %v3558 = vpop.f32.mrb[0].mxu0
  %v3559 = vpop.f32.mrb[0].mxu0
  %v3560 = vadd.f32 %v587, %v3559
  %v3561 = vpop.f32.mrb[0].mxu0
  %3562 = vmatprep.mubr.bf16.mxu0 0
  %3563 = vmatmul.mubr.bf16.gmra.mrb[0].mxu0 %v2213
  %v3564 = vpop.f32.mrb[0].mxu0
  %v3565 = vadd.f32 %v587, %v3564
  %v3566 = vpop.f32.mrb[0].mxu0
  %v3567 = vpop.f32.mrb[0].mxu0
  %v3568 = vadd.f32 %v587, %v3567
  %v3569 = vpop.f32.mrb[0].mxu0
  %3570 = vmatprep.mubr.bf16.mxu0 0
  %3571 = vmatmul.mubr.bf16.gmra.mrb[0].mxu0 %v2216
  %v3572 = vpop.f32.mrb[0].mxu0
  %v3573 = vadd.f32 %v587, %v3572
  %v3574 = vpop.f32.mrb[0].mxu0
  %v3575 = vpop.f32.mrb[0].mxu0
  %v3576 = vadd.f32 %v587, %v3575
  %v3577 = vpop.f32.mrb[0].mxu0
  %3578 = vmatprep.mubr.bf16.mxu0 0
  %3579 = vmatmul.mubr.bf16.gmra.mrb[0].mxu0 %v2219
  %v3580 = vpop.f32.mrb[0].mxu0
  %v3581 = vadd.f32 %v587, %v3580
  %v3582 = vpop.f32.mrb[0].mxu0
  %v3583 = vpop.f32.mrb[0].mxu0
  %v3584 = vadd.f32 %v587, %v3583
  %v3585 = vpop.f32.mrb[0].mxu0
  %3586 = vmatprep.mubr.bf16.mxu0 0
  %3587 = vmatmul.mubr.bf16.gmra.mrb[0].mxu0 %v2222
  %v3588 = vpop.f32.mrb[0].mxu0
  %v3589 = vadd.f32 %v587, %v3588
  %v3590 = vpop.f32.mrb[0].mxu0
  %v3591 = vpop.f32.mrb[0].mxu0
  %v3592 = vadd.f32 %v587, %v3591
  %v3593 = vpop.f32.mrb[0].mxu0
  %3594 = vmatprep.mubr.bf16.mxu0 0
  %3595 = vmatmul.mubr.bf16.gmra.mrb[0].mxu0 %v2225
  %v3596 = vpop.f32.mrb[0].mxu0
  %v3597 = vadd.f32 %v587, %v3596
  %v3598 = vpop.f32.mrb[0].mxu0
  %v3599 = vpop.f32.mrb[0].mxu0
  %v3600 = vadd.f32 %v587, %v3599
  %v3601 = vpop.f32.mrb[0].mxu0
  %3602 = vmatprep.mubr.bf16.mxu0 0
  %3603 = vmatmul.mubr.bf16.gmra.mrb[0].mxu0 %v2228
  %v3604 = vpop.f32.mrb[0].mxu0
  %v3605 = vadd.f32 %v587, %v3604
  %v3606 = vpop.f32.mrb[0].mxu0
  %v3607 = vpop.f32.mrb[0].mxu0
  %v3608 = vadd.f32 %v587, %v3607
  %v3609 = vpop.f32.mrb[0].mxu0
  %3610 = vmatprep.mubr.bf16.mxu0 0
  %3611 = vmatmul.mubr.bf16.gmra.mrb[0].mxu0 %v2231
  %v3612 = vpop.f32.mrb[0].mxu0
  %v3613 = vadd.f32 %v587, %v3612
  %v3614 = vpop.f32.mrb[0].mxu0
  %v3615 = vpop.f32.mrb[0].mxu0
  %v3616 = vadd.f32 %v587, %v3615
  %v3617 = vpop.f32.mrb[0].mxu0
  %3618 = vmatprep.mubr.bf16.mxu0 0
  %3619 = vmatmul.mubr.bf16.gmra.mrb[0].mxu0 %v2234
  %v3620 = vpop.f32.mrb[0].mxu0
  %v3621 = vadd.f32 %v587, %v3620
  %v3622 = vpop.f32.mrb[0].mxu0
  %v3623 = vpop.f32.mrb[0].mxu0
  %v3624 = vadd.f32 %v587, %v3623
  %v3625 = vpop.f32.mrb[0].mxu0
  %3626 = vmatprep.mubr.bf16.mxu0 0
  %3627 = vmatmul.mubr.bf16.gmra.mrb[0].mxu0 %v2237
  %v3628 = vpop.f32.mrb[0].mxu0
  %v3629 = vadd.f32 %v587, %v3628
  %v3630 = vpop.f32.mrb[0].mxu0
  %v3631 = vpop.f32.mrb[0].mxu0
  %v3632 = vadd.f32 %v587, %v3631
  %v3633 = vpop.f32.mrb[0].mxu0
  %3634 = vmatprep.mubr.bf16.mxu0 0
  %3635 = vmatmul.mubr.bf16.gmra.mrb[0].mxu0 %v2240
  %v3636 = vpop.f32.mrb[0].mxu0
  %v3637 = vadd.f32 %v587, %v3636
  %v3638 = vpop.f32.mrb[0].mxu0
  %v3639 = vpop.f32.mrb[0].mxu0
  %v3640 = vadd.f32 %v587, %v3639
  %v3641 = vpop.f32.mrb[0].mxu0
  %3642 = vmatprep.mubr.bf16.mxu0 0
  %3643 = vmatmul.mubr.bf16.gmra.mrb[0].mxu0 %v2243
  %v3644 = vpop.f32.mrb[0].mxu0
  %v3645 = vadd.f32 %v587, %v3644
  %v3646 = vpop.f32.mrb[0].mxu0
  %v3647 = vpop.f32.mrb[0].mxu0
  %v3648 = vadd.f32 %v587, %v3647
  %v3649 = vpop.f32.mrb[0].mxu0
  %3650 = vmatprep.mubr.bf16.mxu0 0
  %3651 = vmatmul.mubr.bf16.gmra.mrb[0].mxu0 %v2246
  %v3652 = vpop.f32.mrb[0].mxu0
  %v3653 = vadd.f32 %v587, %v3652
  %v3654 = vpop.f32.mrb[0].mxu0
  %v3655 = vpop.f32.mrb[0].mxu0
  %v3656 = vadd.f32 %v587, %v3655
  %v3657 = vpop.f32.mrb[0].mxu0
  %3658 = vmatprep.mubr.bf16.mxu0 0
  %3659 = vmatmul.mubr.bf16.gmra.mrb[0].mxu0 %v2249
  %v3660 = vpop.f32.mrb[0].mxu0
  %v3661 = vadd.f32 %v587, %v3660
  %v3662 = vpop.f32.mrb[0].mxu0
  %v3663 = vpop.f32.mrb[0].mxu0
  %v3664 = vadd.f32 %v587, %v3663
  %v3665 = vpop.f32.mrb[0].mxu0
  %3666 = vmatprep.mubr.bf16.mxu0 0
  %3667 = vmatmul.mubr.bf16.gmra.mrb[0].mxu0 %v2252
  %v3668 = vpop.f32.mrb[0].mxu0
  %v3669 = vadd.f32 %v587, %v3668
  %v3670 = vpop.f32.mrb[0].mxu0
  %v3671 = vpop.f32.mrb[0].mxu0
  %v3672 = vadd.f32 %v587, %v3671
  %v3673 = vpop.f32.mrb[0].mxu0
  %3674 = vmatprep.mubr.bf16.mxu0 0
  %3675 = vmatmul.mubr.bf16.gmra.mrb[0].mxu0 %v2255
  %v3676 = vpop.f32.mrb[0].mxu0
  %v3677 = vadd.f32 %v587, %v3676
  %v3678 = vpop.f32.mrb[0].mxu0
  %v3679 = vpop.f32.mrb[0].mxu0
  %v3680 = vadd.f32 %v587, %v3679
  %v3681 = vpop.f32.mrb[0].mxu0
  %3682 = vmatprep.mubr.bf16.mxu0 0
  %3683 = vmatmul.mubr.bf16.gmra.mrb[0].mxu0 %v2258
  %v3684 = vpop.f32.mrb[0].mxu0
  %v3685 = vadd.f32 %v587, %v3684
  %v3686 = vpop.f32.mrb[0].mxu0
  %v3687 = vpop.f32.mrb[0].mxu0
  %v3688 = vadd.f32 %v587, %v3687
  %v3689 = vpop.f32.mrb[0].mxu0
  %3690 = vmatprep.mubr.bf16.mxu0 0
  %3691 = vmatmul.mubr.bf16.gmra.mrb[0].mxu0 %v2261
  %v3692 = vpop.f32.mrb[0].mxu0
  %v3693 = vadd.f32 %v587, %v3692
  %v3694 = vpop.f32.mrb[0].mxu0
  %v3695 = vpop.f32.mrb[0].mxu0
  %v3696 = vadd.f32 %v587, %v3695
  %v3697 = vpop.f32.mrb[0].mxu0
  %3698 = vmatprep.mubr.bf16.mxu0 0
  %3699 = vmatmul.mubr.bf16.gmra.mrb[0].mxu0 %v2264
  %v3700 = vpop.f32.mrb[0].mxu0
  %v3701 = vadd.f32 %v587, %v3700
  %v3702 = vpop.f32.mrb[0].mxu0
  %v3703 = vpop.f32.mrb[0].mxu0
  %v3704 = vadd.f32 %v587, %v3703
  %v3705 = vpop.f32.mrb[0].mxu0
  %3706 = vmatprep.mubr.bf16.mxu0 0
  %3707 = vmatmul.mubr.bf16.gmra.mrb[0].mxu0 %v2267
  %v3708 = vpop.f32.mrb[0].mxu0
  %v3709 = vadd.f32 %v587, %v3708
  %v3710 = vpop.f32.mrb[0].mxu0
  %v3711 = vpop.f32.mrb[0].mxu0
  %v3712 = vadd.f32 %v587, %v3711
  %v3713 = vpop.f32.mrb[0].mxu0
  %3714 = vmatprep.mubr.bf16.mxu0 0
  %3715 = vmatmul.mubr.bf16.gmra.mrb[0].mxu0 %v2270
  %v3716 = vpop.f32.mrb[0].mxu0
  %v3717 = vadd.f32 %v587, %v3716
  %v3718 = vpop.f32.mrb[0].mxu0
  %v3719 = vpop.f32.mrb[0].mxu0
  %v3720 = vadd.f32 %v587, %v3719
  %v3721 = vpop.f32.mrb[0].mxu0
  %3722 = vmatprep.mubr.bf16.mxu0 0
  %3723 = vmatmul.mubr.bf16.gmra.mrb[0].mxu0 %v2273
  %v3724 = vpop.f32.mrb[0].mxu0
  %v3725 = vadd.f32 %v587, %v3724
  %v3726 = vpop.f32.mrb[0].mxu0
  %v3727 = vpop.f32.mrb[0].mxu0
  %v3728 = vadd.f32 %v587, %v3727
  %v3729 = vpop.f32.mrb[0].mxu0
  %3730 = vmatprep.mubr.bf16.mxu0 0
  %3731 = vmatmul.mubr.bf16.gmra.mrb[0].mxu0 %v2276
  %v3732 = vpop.f32.mrb[0].mxu0
  %v3733 = vadd.f32 %v587, %v3732
  %v3734 = vpop.f32.mrb[0].mxu0
  %v3735 = vpop.f32.mrb[0].mxu0
  %v3736 = vadd.f32 %v587, %v3735
  %v3737 = vpop.f32.mrb[0].mxu0
  %3738 = vmatprep.mubr.bf16.mxu0 0
  %3739 = vmatmul.mubr.bf16.gmra.mrb[0].mxu0 %v2279
  %v3740 = vpop.f32.mrb[0].mxu0
  %v3741 = vadd.f32 %v587, %v3740
  %v3742 = vpop.f32.mrb[0].mxu0
  %v3743 = vpop.f32.mrb[0].mxu0
  %v3744 = vadd.f32 %v587, %v3743
  %v3745 = vpop.f32.mrb[0].mxu0
  %3746 = vmatprep.mubr.bf16.mxu0 0
  %3747 = vmatmul.mubr.bf16.gmra.mrb[0].mxu0 %v2282
  %v3748 = vpop.f32.mrb[0].mxu0
  %v3749 = vadd.f32 %v587, %v3748
  %v3750 = vpop.f32.mrb[0].mxu0
  %v3751 = vpop.f32.mrb[0].mxu0
  %v3752 = vadd.f32 %v587, %v3751
  %v3753 = vpop.f32.mrb[0].mxu0
  %3754 = vmatprep.mubr.bf16.mxu0 0
  %3755 = vmatmul.mubr.bf16.gmra.mrb[0].mxu0 %v2285
  %v3756 = vpop.f32.mrb[0].mxu0
  %v3757 = vadd.f32 %v587, %v3756
  %v3758 = vpop.f32.mrb[0].mxu0
  %v3759 = vpop.f32.mrb[0].mxu0
  %v3760 = vadd.f32 %v587, %v3759
  %v3761 = vpop.f32.mrb[0].mxu0
  %3762 = vmatprep.mubr.bf16.mxu0 0
  %3763 = vmatmul.mubr.bf16.gmra.mrb[0].mxu0 %v2288
  %v3764 = vpop.f32.mrb[0].mxu0
  %v3765 = vadd.f32 %v587, %v3764
  %v3766 = vpop.f32.mrb[0].mxu0
  %v3767 = vpop.f32.mrb[0].mxu0
  %v3768 = vadd.f32 %v587, %v3767
  %v3769 = vpop.f32.mrb[0].mxu0
  %3770 = vmatprep.mubr.bf16.mxu0 0
  %3771 = vmatmul.mubr.bf16.gmra.mrb[0].mxu0 %v2291
  %v3772 = vpop.f32.mrb[0].mxu0
  %v3773 = vadd.f32 %v587, %v3772
  %v3774 = vpop.f32.mrb[0].mxu0
  %v3775 = vpop.f32.mrb[0].mxu0
  %v3776 = vadd.f32 %v587, %v3775
  %v3777 = vpop.f32.mrb[0].mxu0
  %3778 = vmatprep.mubr.bf16.mxu0 0
  %3779 = vmatmul.mubr.bf16.gmra.mrb[0].mxu0 %v2294
  %v3780 = vpop.f32.mrb[0].mxu0
  %v3781 = vadd.f32 %v587, %v3780
  %v3782 = vpop.f32.mrb[0].mxu0
  %v3783 = vpop.f32.mrb[0].mxu0
  %v3784 = vadd.f32 %v587, %v3783
  %v3785 = vpop.f32.mrb[0].mxu0
  %3786 = vmatprep.mubr.bf16.mxu0 0
  %3787 = vmatmul.mubr.bf16.gmra.mrb[0].mxu0 %v2297
  %v3788 = vpop.f32.mrb[0].mxu0
  %v3789 = vadd.f32 %v587, %v3788
  %v3790 = vpop.f32.mrb[0].mxu0
  %v3791 = vpop.f32.mrb[0].mxu0
  %v3792 = vadd.f32 %v587, %v3791
  %v3793 = vpop.f32.mrb[0].mxu0
  %3794 = vmatprep.mubr.bf16.mxu0 0
  %3795 = vmatmul.mubr.bf16.gmra.mrb[0].mxu0 %v2300
  %v3796 = vpop.f32.mrb[0].mxu0
  %v3797 = vadd.f32 %v587, %v3796
  %v3798 = vpop.f32.mrb[0].mxu0
  %v3799 = vpop.f32.mrb[0].mxu0
  %v3800 = vadd.f32 %v587, %v3799
  %v3801 = vpop.f32.mrb[0].mxu0
  %3802 = vmatprep.mubr.bf16.mxu0 0
  %3803 = vmatmul.mubr.bf16.gmra.mrb[0].mxu0 %v2303
  %v3804 = vpop.f32.mrb[0].mxu0
  %v3805 = vadd.f32 %v587, %v3804
  %v3806 = vpop.f32.mrb[0].mxu0
  %v3807 = vpop.f32.mrb[0].mxu0
  %v3808 = vadd.f32 %v587, %v3807
  %v3809 = vpop.f32.mrb[0].mxu0
  %3810 = vmatprep.mubr.bf16.mxu0 0
  %3811 = vmatmul.mubr.bf16.gmra.mrb[0].mxu0 %v2306
  %v3812 = vpop.f32.mrb[0].mxu0
  %v3813 = vadd.f32 %v587, %v3812
  %v3814 = vpop.f32.mrb[0].mxu0
  %v3815 = vpop.f32.mrb[0].mxu0
  %v3816 = vadd.f32 %v587, %v3815
  %v3817 = vpop.f32.mrb[0].mxu0
  %3818 = vmatprep.mubr.bf16.mxu0 0
  %3819 = vmatmul.mubr.bf16.gmra.mrb[0].mxu0 %v2309
  %v3820 = vpop.f32.mrb[0].mxu0
  %v3821 = vadd.f32 %v587, %v3820
  %v3822 = vpop.f32.mrb[0].mxu0
  %v3823 = vpop.f32.mrb[0].mxu0
  %v3824 = vadd.f32 %v587, %v3823
  %v3825 = vpop.f32.mrb[0].mxu0
  %3826 = vmatprep.mubr.bf16.mxu0 0
  %3827 = vmatmul.mubr.bf16.gmra.mrb[0].mxu0 %v2312
  %v3828 = vpop.f32.mrb[0].mxu0
  %v3829 = vadd.f32 %v587, %v3828
  %v3830 = vpop.f32.mrb[0].mxu0
  %v3831 = vpop.f32.mrb[0].mxu0
  %v3832 = vadd.f32 %v587, %v3831
  %v3833 = vpop.f32.mrb[0].mxu0
  %3834 = vmatprep.mubr.bf16.mxu0 0
  %3835 = vmatmul.mubr.bf16.gmra.mrb[0].mxu0 %v2315
  %v3836 = vpop.f32.mrb[0].mxu0
  %v3837 = vadd.f32 %v587, %v3836
  %v3838 = vpop.f32.mrb[0].mxu0
  %v3839 = vpop.f32.mrb[0].mxu0
  %v3840 = vadd.f32 %v587, %v3839
  %v3841 = vpop.f32.mrb[0].mxu0
  %3842 = vmatprep.mubr.bf16.mxu0 0
  %3843 = vmatmul.mubr.bf16.gmra.mrb[0].mxu0 %v2318
  %v3844 = vpop.f32.mrb[0].mxu0
  %v3845 = vadd.f32 %v587, %v3844
  %v3846 = vpop.f32.mrb[0].mxu0
  %v3847 = vpop.f32.mrb[0].mxu0
  %v3848 = vadd.f32 %v587, %v3847
  %v3849 = vpop.f32.mrb[0].mxu0
  %3850 = vmatprep.mubr.bf16.mxu0 0
  %3851 = vmatmul.mubr.bf16.gmra.mrb[0].mxu0 %v2321
  %v3852 = vpop.f32.mrb[0].mxu0
  %v3853 = vadd.f32 %v587, %v3852
  %v3854 = vpop.f32.mrb[0].mxu0
  %v3855 = vpop.f32.mrb[0].mxu0
  %v3856 = vadd.f32 %v587, %v3855
  %v3857 = vpop.f32.mrb[0].mxu0
  %3858 = vmatprep.mubr.bf16.mxu0 0
  %3859 = vmatmul.mubr.bf16.gmra.mrb[0].mxu0 %v2324
  %v3860 = vpop.f32.mrb[0].mxu0
  %v3861 = vadd.f32 %v587, %v3860
  %v3862 = vpop.f32.mrb[0].mxu0
  %v3863 = vpop.f32.mrb[0].mxu0
  %v3864 = vadd.f32 %v587, %v3863
  %v3865 = vpop.f32.mrb[0].mxu0
  %3866 = vmatprep.mubr.bf16.mxu0 0
  %3867 = vmatmul.mubr.bf16.gmra.mrb[0].mxu0 %v2327
  %v3868 = vpop.f32.mrb[0].mxu0
  %v3869 = vadd.f32 %v587, %v3868
  %v3870 = vpop.f32.mrb[0].mxu0
  %v3871 = vpop.f32.mrb[0].mxu0
  %v3872 = vadd.f32 %v587, %v3871
  %v3873 = vpop.f32.mrb[0].mxu0
  %3874 = vmatprep.mubr.bf16.mxu0 0
  %3875 = vmatmul.mubr.bf16.gmra.mrb[0].mxu0 %v2330
  %v3876 = vpop.f32.mrb[0].mxu0
  %v3877 = vadd.f32 %v587, %v3876
  %v3878 = vpop.f32.mrb[0].mxu0
  %v3879 = vpop.f32.mrb[0].mxu0
  %v3880 = vadd.f32 %v587, %v3879
  %v3881 = vpop.f32.mrb[0].mxu0
  %3882 = vmatprep.mubr.bf16.mxu0 0
  %3883 = vmatmul.mubr.bf16.gmra.mrb[0].mxu0 %v2333
  %v3884 = vpop.f32.mrb[0].mxu0
  %v3885 = vadd.f32 %v587, %v3884
  %v3886 = vpop.f32.mrb[0].mxu0
  %v3887 = vpop.f32.mrb[0].mxu0
  %v3888 = vadd.f32 %v587, %v3887
  %v3889 = vpop.f32.mrb[0].mxu0
  %3890 = vmatprep.mubr.bf16.mxu0 0
  %3891 = vmatmul.mubr.bf16.gmra.mrb[0].mxu0 %v2336
  %v3892 = vpop.f32.mrb[0].mxu0
  %v3893 = vadd.f32 %v587, %v3892
  %v3894 = vpop.f32.mrb[0].mxu0
  %v3895 = vpop.f32.mrb[0].mxu0
  %v3896 = vadd.f32 %v587, %v3895
  %v3897 = vpop.f32.mrb[0].mxu0
  %3898 = vmatprep.mubr.bf16.mxu0 0
  %3899 = vmatmul.mubr.bf16.gmra.mrb[0].mxu0 %v2339
  %v3900 = vpop.f32.mrb[0].mxu0
  %v3901 = vadd.f32 %v587, %v3900
  %v3902 = vpop.f32.mrb[0].mxu0
  %v3903 = vpop.f32.mrb[0].mxu0
  %v3904 = vadd.f32 %v587, %v3903
  %v3905 = vpop.f32.mrb[0].mxu0
  %3906 = vmatprep.mubr.bf16.mxu0 0
  %3907 = vmatmul.mubr.bf16.gmra.mrb[0].mxu0 %v2342
  %v3908 = vpop.f32.mrb[0].mxu0
  %v3909 = vadd.f32 %v587, %v3908
  %v3910 = vpop.f32.mrb[0].mxu0
  %v3911 = vpop.f32.mrb[0].mxu0
  %v3912 = vadd.f32 %v587, %v3911
  %v3913 = vpop.f32.mrb[0].mxu0
  %3914 = vmatprep.mubr.bf16.mxu0 0
  %3915 = vmatmul.mubr.bf16.gmra.mrb[0].mxu0 %v2345
  %v3916 = vpop.f32.mrb[0].mxu0
  %v3917 = vadd.f32 %v587, %v3916
  %v3918 = vpop.f32.mrb[0].mxu0
  %v3919 = vpop.f32.mrb[0].mxu0
  %v3920 = vadd.f32 %v587, %v3919
  %v3921 = vpop.f32.mrb[0].mxu0
  %3922 = vmatprep.mubr.bf16.mxu0 0
  %3923 = vmatmul.mubr.bf16.gmra.mrb[0].mxu0 %v2348
  %v3924 = vpop.f32.mrb[0].mxu0
  %v3925 = vadd.f32 %v587, %v3924
  %v3926 = vpop.f32.mrb[0].mxu0
  %v3927 = vpop.f32.mrb[0].mxu0
  %v3928 = vadd.f32 %v587, %v3927
  %v3929 = vpop.f32.mrb[0].mxu0
  %3930 = vmatprep.mubr.bf16.mxu0 0
  %3931 = vmatmul.mubr.bf16.gmra.mrb[0].mxu0 %v2351
  %v3932 = vpop.f32.mrb[0].mxu0
  %v3933 = vadd.f32 %v587, %v3932
  %v3934 = vpop.f32.mrb[0].mxu0
  %v3935 = vpop.f32.mrb[0].mxu0
  %v3936 = vadd.f32 %v587, %v3935
  %v3937 = vpop.f32.mrb[0].mxu0
  %3938 = vmatprep.mubr.bf16.mxu0 0
  %3939 = vmatmul.mubr.bf16.gmra.mrb[0].mxu0 %v2354
  %v3940 = vpop.f32.mrb[0].mxu0
  %v3941 = vadd.f32 %v587, %v3940
  %v3942 = vpop.f32.mrb[0].mxu0
  %v3943 = vpop.f32.mrb[0].mxu0
  %v3944 = vadd.f32 %v587, %v3943
  %v3945 = vpop.f32.mrb[0].mxu0
  %3946 = vmatprep.mubr.bf16.mxu0 0
  %3947 = vmatmul.mubr.bf16.gmra.mrb[0].mxu0 %v2357
  %v3948 = vpop.f32.mrb[0].mxu0
  %v3949 = vadd.f32 %v587, %v3948
  %v3950 = vpop.f32.mrb[0].mxu0
  %v3951 = vpop.f32.mrb[0].mxu0
  %v3952 = vadd.f32 %v587, %v3951
  %v3953 = vpop.f32.mrb[0].mxu0
  %3954 = vmatprep.mubr.bf16.mxu0 0
  %3955 = vmatmul.mubr.bf16.gmra.mrb[0].mxu0 %v2360
  %v3956 = vpop.f32.mrb[0].mxu0
  %v3957 = vadd.f32 %v587, %v3956
  %v3958 = vpop.f32.mrb[0].mxu0
  %v3959 = vpop.f32.mrb[0].mxu0
  %v3960 = vadd.f32 %v587, %v3959
  %v3961 = vpop.f32.mrb[0].mxu0
  %3962 = vmatprep.mubr.bf16.mxu0 0
  %3963 = vmatmul.mubr.bf16.gmra.mrb[0].mxu0 %v2363
  %v3964 = vpop.f32.mrb[0].mxu0
  %v3965 = vadd.f32 %v587, %v3964
  %v3966 = vpop.f32.mrb[0].mxu0
  %v3967 = vpop.f32.mrb[0].mxu0
  %v3968 = vadd.f32 %v587, %v3967
  %v3969 = vpop.f32.mrb[0].mxu0
  %3970 = vmatprep.mubr.bf16.mxu0 0
  %3971 = vmatmul.mubr.bf16.gmra.mrb[0].mxu0 %v2366
  %v3972 = vpop.f32.mrb[0].mxu0
  %v3973 = vadd.f32 %v587, %v3972
  %v3974 = vpop.f32.mrb[0].mxu0
  %v3975 = vpop.f32.mrb[0].mxu0
  %v3976 = vadd.f32 %v587, %v3975
  %v3977 = vpop.f32.mrb[0].mxu0
  %3978 = vmatprep.mubr.bf16.mxu0 0
  %3979 = vmatmul.mubr.bf16.gmra.mrb[0].mxu0 %v2369
  %v3980 = vpop.f32.mrb[0].mxu0
  %v3981 = vadd.f32 %v587, %v3980
  %v3982 = vpop.f32.mrb[0].mxu0
  %v3983 = vpop.f32.mrb[0].mxu0
  %v3984 = vadd.f32 %v587, %v3983
  %v3985 = vpop.f32.mrb[0].mxu0
  %3986 = vmatprep.mubr.bf16.mxu0 0
  %3987 = vmatmul.mubr.bf16.gmra.mrb[0].mxu0 %v2372
  %v3988 = vpop.f32.mrb[0].mxu0
  %v3989 = vadd.f32 %v587, %v3988
  %v3990 = vpop.f32.mrb[0].mxu0
  %v3991 = vpop.f32.mrb[0].mxu0
  %v3992 = vadd.f32 %v587, %v3991
  %v3993 = vpop.f32.mrb[0].mxu0
  %3994 = vmatprep.mubr.bf16.mxu0 0
  %3995 = vmatmul.mubr.bf16.gmra.mrb[0].mxu0 %v2375
  %v3996 = vpop.f32.mrb[0].mxu0
  %v3997 = vadd.f32 %v587, %v3996
  %v3998 = vpop.f32.mrb[0].mxu0
  %v3999 = vpop.f32.mrb[0].mxu0
  %v4000 = vadd.f32 %v587, %v3999
  %v4001 = vpop.f32.mrb[0].mxu0
  %4002 = vmatprep.mubr.bf16.mxu0 0
  %4003 = vmatmul.mubr.bf16.gmra.mrb[0].mxu0 %v2378
  %v4004 = vpop.f32.mrb[0].mxu0
  %v4005 = vadd.f32 %v587, %v4004
  %v4006 = vpop.f32.mrb[0].mxu0
  %v4007 = vpop.f32.mrb[0].mxu0
  %v4008 = vadd.f32 %v587, %v4007
  %v4009 = vpop.f32.mrb[0].mxu0
  %4010 = vmatprep.mubr.bf16.mxu0 0
  %4011 = vmatmul.mubr.bf16.gmra.mrb[0].mxu0 %v2381
  %v4012 = vpop.f32.mrb[0].mxu0
  %v4013 = vadd.f32 %v587, %v4012
  %v4014 = vpop.f32.mrb[0].mxu0
  %v4015 = vpop.f32.mrb[0].mxu0
  %v4016 = vadd.f32 %v587, %v4015
  %v4017 = vpop.f32.mrb[0].mxu0
  %4018 = vmatprep.mubr.bf16.mxu0 0
  %4019 = vmatmul.mubr.bf16.gmra.mrb[0].mxu0 %v2384
  %v4020 = vpop.f32.mrb[0].mxu0
  %v4021 = vadd.f32 %v587, %v4020
  %v4022 = vpop.f32.mrb[0].mxu0
  %v4023 = vpop.f32.mrb[0].mxu0
  %v4024 = vadd.f32 %v587, %v4023
  %v4025 = vpop.f32.mrb[0].mxu0
  %4026 = vmatprep.mubr.bf16.mxu0 0
  %4027 = vmatmul.mubr.bf16.gmra.mrb[0].mxu0 %v2387
  %v4028 = vpop.f32.mrb[0].mxu0
  %v4029 = vadd.f32 %v587, %v4028
  %v4030 = vpop.f32.mrb[0].mxu0
  %v4031 = vpop.f32.mrb[0].mxu0
  %v4032 = vadd.f32 %v587, %v4031
  %v4033 = vpop.f32.mrb[0].mxu0
  %4034 = vmatprep.mubr.bf16.mxu0 0
  %4035 = vmatmul.mubr.bf16.gmra.mrb[0].mxu0 %v2390
  %v4036 = vpop.f32.mrb[0].mxu0
  %v4037 = vadd.f32 %v587, %v4036
  %v4038 = vpop.f32.mrb[0].mxu0
  %v4039 = vpop.f32.mrb[0].mxu0
  %v4040 = vadd.f32 %v587, %v4039
  %v4041 = vpop.f32.mrb[0].mxu0
  %4042 = vmatprep.mubr.bf16.mxu0 0
  %4043 = vmatmul.mubr.bf16.gmra.mrb[0].mxu0 %v2393
  %v4044 = vpop.f32.mrb[0].mxu0
  %v4045 = vadd.f32 %v587, %v4044
  %v4046 = vpop.f32.mrb[0].mxu0
  %v4047 = vpop.f32.mrb[0].mxu0
  %v4048 = vadd.f32 %v587, %v4047
  %v4049 = vpop.f32.mrb[0].mxu0
  %4050 = vmatprep.mubr.bf16.mxu0 0
  %4051 = vmatmul.mubr.bf16.gmra.mrb[0].mxu0 %v2396
  %v4052 = vpop.f32.mrb[0].mxu0
  %v4053 = vadd.f32 %v587, %v4052
  %v4054 = vpop.f32.mrb[0].mxu0
  %v4055 = vpop.f32.mrb[0].mxu0
  %v4056 = vadd.f32 %v587, %v4055
  %v4057 = vpop.f32.mrb[0].mxu0
  %4058 = vmatprep.mubr.bf16.mxu0 0
  %4059 = vmatmul.mubr.bf16.gmra.mrb[0].mxu0 %v2399
  %v4060 = vpop.f32.mrb[0].mxu0
  %v4061 = vadd.f32 %v587, %v4060
  %v4062 = vpop.f32.mrb[0].mxu0
  %v4063 = vpop.f32.mrb[0].mxu0
  %v4064 = vadd.f32 %v587, %v4063
  %v4065 = vpop.f32.mrb[0].mxu0
  %4066 = vmatprep.mubr.bf16.mxu0 0
  %4067 = vmatmul.mubr.bf16.gmra.mrb[0].mxu0 %v2402
  %v4068 = vpop.f32.mrb[0].mxu0
  %v4069 = vadd.f32 %v587, %v4068
  %v4070 = vpop.f32.mrb[0].mxu0
  %v4071 = vpop.f32.mrb[0].mxu0
  %v4072 = vadd.f32 %v587, %v4071
  %v4073 = vpop.f32.mrb[0].mxu0
  %4074 = vmatprep.mubr.bf16.mxu0 0
  %4075 = vmatmul.mubr.bf16.gmra.mrb[0].mxu0 %v2405
  %v4076 = vpop.f32.mrb[0].mxu0
  %v4077 = vadd.f32 %v587, %v4076
  %v4078 = vpop.f32.mrb[0].mxu0
  %v4079 = vpop.f32.mrb[0].mxu0
  %v4080 = vadd.f32 %v587, %v4079
  %v4081 = vpop.f32.mrb[0].mxu0
  %4082 = vmatprep.mubr.bf16.mxu0 0
  %4083 = vmatmul.mubr.bf16.gmra.mrb[0].mxu0 %v2408
  %v4084 = vpop.f32.mrb[0].mxu0
  %v4085 = vadd.f32 %v587, %v4084
  %v4086 = vpop.f32.mrb[0].mxu0
  %v4087 = vpop.f32.mrb[0].mxu0
  %v4088 = vadd.f32 %v587, %v4087
  %v4089 = vpop.f32.mrb[0].mxu0
  %4090 = vmatprep.mubr.bf16.mxu0 0
  %4091 = vmatmul.mubr.bf16.gmra.mrb[0].mxu0 %v2411
  %v4092 = vpop.f32.mrb[0].mxu0
  %v4093 = vadd.f32 %v587, %v4092
  %v4094 = vpop.f32.mrb[0].mxu0
  %v4095 = vpop.f32.mrb[0].mxu0
  %v4096 = vadd.f32 %v587, %v4095
  %v4097 = vpop.f32.mrb[0].mxu0
  %4098 = vmatprep.mubr.bf16.mxu0 0
  %4099 = vmatmul.mubr.bf16.gmra.mrb[0].mxu0 %v2414
  %v4100 = vpop.f32.mrb[0].mxu0
  %v4101 = vadd.f32 %v587, %v4100
  %v4102 = vpop.f32.mrb[0].mxu0
  %v4103 = vpop.f32.mrb[0].mxu0
  %v4104 = vadd.f32 %v587, %v4103
  %v4105 = vpop.f32.mrb[0].mxu0
  %4106 = vmatprep.mubr.bf16.mxu0 0
  %4107 = vmatmul.mubr.bf16.gmra.mrb[0].mxu0 %v2417
  %v4108 = vpop.f32.mrb[0].mxu0
  %v4109 = vadd.f32 %v587, %v4108
  %v4110 = vpop.f32.mrb[0].mxu0
  %v4111 = vpop.f32.mrb[0].mxu0
  %v4112 = vadd.f32 %v587, %v4111
  %v4113 = vpop.f32.mrb[0].mxu0
  %4114 = vmatprep.mubr.bf16.mxu0 0
  %4115 = vmatmul.mubr.bf16.gmra.mrb[0].mxu0 %v2420
  %v4116 = vpop.f32.mrb[0].mxu0
  %v4117 = vadd.f32 %v587, %v4116
  %v4118 = vpop.f32.mrb[0].mxu0
  %v4119 = vpop.f32.mrb[0].mxu0
  %v4120 = vadd.f32 %v587, %v4119
  %v4121 = vpop.f32.mrb[0].mxu0
  %4122 = vmatprep.mubr.bf16.mxu0 0
  %4123 = vmatmul.mubr.bf16.gmra.mrb[0].mxu0 %v2423
  %v4124 = vpop.f32.mrb[0].mxu0
  %v4125 = vadd.f32 %v587, %v4124
  %v4126 = vpop.f32.mrb[0].mxu0
  %v4127 = vpop.f32.mrb[0].mxu0
  %v4128 = vadd.f32 %v587, %v4127
  %v4129 = vpop.f32.mrb[0].mxu0
  %4130 = vmatprep.mubr.bf16.mxu0 0
  %4131 = vmatmul.mubr.bf16.gmra.mrb[0].mxu0 %v2426
  %v4132 = vpop.f32.mrb[0].mxu0
  %v4133 = vadd.f32 %v587, %v4132
  %v4134 = vpop.f32.mrb[0].mxu0
  %v4135 = vpop.f32.mrb[0].mxu0
  %v4136 = vadd.f32 %v587, %v4135
  %v4137 = vpop.f32.mrb[0].mxu0
  %4138 = vmatprep.mubr.bf16.mxu0 0
  %4139 = vmatmul.mubr.bf16.gmra.mrb[0].mxu0 %v2429
  %v4140 = vpop.f32.mrb[0].mxu0
  %v4141 = vadd.f32 %v587, %v4140
  %v4142 = vpop.f32.mrb[0].mxu0
  %v4143 = vpop.f32.mrb[0].mxu0
  %v4144 = vadd.f32 %v587, %v4143
  %v4145 = vpop.f32.mrb[0].mxu0
  %4146 = vmatprep.mubr.bf16.mxu0 0
  %4147 = vmatmul.mubr.bf16.gmra.mrb[0].mxu0 %v2432
  %v4148 = vpop.f32.mrb[0].mxu0
  %v4149 = vadd.f32 %v587, %v4148
  %v4150 = vpop.f32.mrb[0].mxu0
  %v4151 = vpop.f32.mrb[0].mxu0
  %v4152 = vadd.f32 %v587, %v4151
  %v4153 = vpop.f32.mrb[0].mxu0
  %4154 = vmatprep.mubr.bf16.mxu0 0
  %4155 = vmatmul.mubr.bf16.gmra.mrb[0].mxu0 %v2435
  %v4156 = vpop.f32.mrb[0].mxu0
  %v4157 = vadd.f32 %v587, %v4156
  %v4158 = vpop.f32.mrb[0].mxu0
  %v4159 = vpop.f32.mrb[0].mxu0
  %v4160 = vadd.f32 %v587, %v4159
  %v4161 = vpop.f32.mrb[0].mxu0
  %4162 = vmatprep.mubr.bf16.mxu0 0
  %4163 = vmatmul.mubr.bf16.gmra.mrb[0].mxu0 %v2438
  %v4164 = vpop.f32.mrb[0].mxu0
  %v4165 = vadd.f32 %v587, %v4164
  %v4166 = vpop.f32.mrb[0].mxu0
  %v4167 = vpop.f32.mrb[0].mxu0
  %v4168 = vadd.f32 %v587, %v4167
  %v4169 = vpop.f32.mrb[0].mxu0
  %4170 = vmatprep.mubr.bf16.mxu0 0
  %4171 = vmatmul.mubr.bf16.gmra.mrb[0].mxu0 %v2441
  %v4172 = vpop.f32.mrb[0].mxu0
  %v4173 = vadd.f32 %v587, %v4172
  %v4174 = vpop.f32.mrb[0].mxu0
  %v4175 = vpop.f32.mrb[0].mxu0
  %v4176 = vadd.f32 %v587, %v4175
  %v4177 = vpop.f32.mrb[0].mxu0
  %4178 = vmatprep.mubr.bf16.mxu0 0
  %4179 = vmatmul.mubr.bf16.gmra.mrb[0].mxu0 %v2444
  %v4180 = vpop.f32.mrb[0].mxu0
  %v4181 = vadd.f32 %v587, %v4180
  %v4182 = vpop.f32.mrb[0].mxu0
  %v4183 = vpop.f32.mrb[0].mxu0
  %v4184 = vadd.f32 %v587, %v4183
  %v4185 = vpop.f32.mrb[0].mxu0
  %4186 = vmatprep.mubr.bf16.mxu0 0
  %4187 = vmatmul.mubr.bf16.gmra.mrb[0].mxu0 %v2447
  %v4188 = vpop.f32.mrb[0].mxu0
  %v4189 = vadd.f32 %v587, %v4188
  %v4190 = vpop.f32.mrb[0].mxu0
  %v4191 = vpop.f32.mrb[0].mxu0
  %v4192 = vadd.f32 %v587, %v4191
  %v4193 = vpop.f32.mrb[0].mxu0
  %4194 = vmatprep.mubr.bf16.mxu0 0
  %4195 = vmatmul.mubr.bf16.gmra.mrb[0].mxu0 %v2450
  %v4196 = vpop.f32.mrb[0].mxu0
  %v4197 = vadd.f32 %v587, %v4196
  %v4198 = vpop.f32.mrb[0].mxu0
  %v4199 = vpop.f32.mrb[0].mxu0
  %v4200 = vadd.f32 %v587, %v4199
  %v4201 = vpop.f32.mrb[0].mxu0
  %4202 = vmatprep.mubr.bf16.mxu0 0
  %4203 = vmatmul.mubr.bf16.gmra.mrb[0].mxu0 %v2453
  %v4204 = vpop.f32.mrb[0].mxu0
  %v4205 = vadd.f32 %v587, %v4204
  %v4206 = vpop.f32.mrb[0].mxu0
  %v4207 = vpop.f32.mrb[0].mxu0
  %v4208 = vadd.f32 %v587, %v4207
  %v4209 = vpop.f32.mrb[0].mxu0
  %4210 = vmatprep.mubr.bf16.mxu0 0
  %4211 = vmatmul.mubr.bf16.gmra.mrb[0].mxu0 %v2456
  %v4212 = vpop.f32.mrb[0].mxu0
  %v4213 = vadd.f32 %v587, %v4212
  %v4214 = vpop.f32.mrb[0].mxu0
  %v4215 = vpop.f32.mrb[0].mxu0
  %v4216 = vadd.f32 %v587, %v4215
  %v4217 = vpop.f32.mrb[0].mxu0
  %4218 = vmatprep.mubr.bf16.mxu0 0
  %4219 = vmatmul.mubr.bf16.gmra.mrb[0].mxu0 %v2459
  %v4220 = vpop.f32.mrb[0].mxu0
  %v4221 = vadd.f32 %v587, %v4220
  %v4222 = vpop.f32.mrb[0].mxu0
  %v4223 = vpop.f32.mrb[0].mxu0
  %v4224 = vadd.f32 %v587, %v4223
  %v4225 = vpop.f32.mrb[0].mxu0
  %4226 = vmatprep.mubr.bf16.mxu0 0
  %4227 = vmatmul.mubr.bf16.gmra.mrb[0].mxu0 %v2462
  %v4228 = vpop.f32.mrb[0].mxu0
  %v4229 = vadd.f32 %v587, %v4228
  %v4230 = vpop.f32.mrb[0].mxu0
  %v4231 = vpop.f32.mrb[0].mxu0
  %v4232 = vadd.f32 %v587, %v4231
  %v4233 = vpop.f32.mrb[0].mxu0
  %4234 = vmatprep.mubr.bf16.mxu0 0
  %4235 = vmatmul.mubr.bf16.gmra.mrb[0].mxu0 %v2465
  %v4236 = vpop.f32.mrb[0].mxu0
  %v4237 = vadd.f32 %v587, %v4236
  %v4238 = vpop.f32.mrb[0].mxu0
  %v4239 = vpop.f32.mrb[0].mxu0
  %v4240 = vadd.f32 %v587, %v4239
  %v4241 = vpop.f32.mrb[0].mxu0
  %4242 = vmatprep.mubr.bf16.mxu0 0
  %4243 = vmatmul.mubr.bf16.gmra.mrb[0].mxu0 %v2468
  %v4244 = vpop.f32.mrb[0].mxu0
  %v4245 = vadd.f32 %v587, %v4244
  %v4246 = vpop.f32.mrb[0].mxu0
  %v4247 = vpop.f32.mrb[0].mxu0
  %v4248 = vadd.f32 %v587, %v4247
  %v4249 = vpop.f32.mrb[0].mxu0
  %4250 = vmatprep.mubr.bf16.mxu0 0
  %4251 = vmatmul.mubr.bf16.gmra.mrb[0].mxu0 %v2471
  %v4252 = vpop.f32.mrb[0].mxu0
  %v4253 = vadd.f32 %v587, %v4252
  %v4254 = vpop.f32.mrb[0].mxu0
  %v4255 = vpop.f32.mrb[0].mxu0
  %v4256 = vadd.f32 %v587, %v4255
  %v4257 = vpop.f32.mrb[0].mxu0
  %4258 = vmatprep.mubr.bf16.mxu0 0
  %4259 = vmatmul.mubr.bf16.gmra.mrb[0].mxu0 %v2474
  %v4260 = vpop.f32.mrb[0].mxu0
  %v4261 = vadd.f32 %v587, %v4260
  %v4262 = vpop.f32.mrb[0].mxu0
  %v4263 = vpop.f32.mrb[0].mxu0
  %v4264 = vadd.f32 %v587, %v4263
  %v4265 = vpop.f32.mrb[0].mxu0
  %4266 = vmatprep.mubr.bf16.mxu0 0
  %4267 = vmatmul.mubr.bf16.gmra.mrb[0].mxu0 %v2477
  %v4268 = vpop.f32.mrb[0].mxu0
  %v4269 = vadd.f32 %v587, %v4268
  %v4270 = vpop.f32.mrb[0].mxu0
  %v4271 = vpop.f32.mrb[0].mxu0
  %v4272 = vadd.f32 %v587, %v4271
  %v4273 = vpop.f32.mrb[0].mxu0
  %4274 = vmatprep.mubr.bf16.mxu0 0
  %4275 = vmatmul.mubr.bf16.gmra.mrb[0].mxu0 %v2480
  %v4276 = vpop.f32.mrb[0].mxu0
  %v4277 = vadd.f32 %v587, %v4276
  %v4278 = vpop.f32.mrb[0].mxu0
  %v4279 = vpop.f32.mrb[0].mxu0
  %v4280 = vadd.f32 %v587, %v4279
  %v4281 = vpop.f32.mrb[0].mxu0
  %4282 = vmatprep.mubr.bf16.mxu0 0
  %4283 = vmatmul.mubr.bf16.gmra.mrb[0].mxu0 %v2483
  %v4284 = vpop.f32.mrb[0].mxu0
  %v4285 = vadd.f32 %v587, %v4284
  %v4286 = vpop.f32.mrb[0].mxu0
  %v4287 = vpop.f32.mrb[0].mxu0
  %v4288 = vadd.f32 %v587, %v4287
  %v4289 = vpop.f32.mrb[0].mxu0
  %4290 = vmatprep.mubr.bf16.mxu0 0
  %4291 = vmatmul.mubr.bf16.gmra.mrb[0].mxu0 %v2486
  %v4292 = vpop.f32.mrb[0].mxu0
  %v4293 = vadd.f32 %v587, %v4292
  %v4294 = vpop.f32.mrb[0].mxu0
  %v4295 = vpop.f32.mrb[0].mxu0
  %v4296 = vadd.f32 %v587, %v4295
  %v4297 = vpop.f32.mrb[0].mxu0
  %4298 = vmatprep.mubr.bf16.mxu0 0
  %4299 = vmatmul.mubr.bf16.gmra.mrb[0].mxu0 %v2489
  %v4300 = vpop.f32.mrb[0].mxu0
  %v4301 = vadd.f32 %v587, %v4300
  %v4302 = vpop.f32.mrb[0].mxu0
  %v4303 = vpop.f32.mrb[0].mxu0
  %v4304 = vadd.f32 %v587, %v4303
  %v4305 = vpop.f32.mrb[0].mxu0
  %4306 = vmatprep.mubr.bf16.mxu0 0
  %4307 = vmatmul.mubr.bf16.gmra.mrb[0].mxu0 %v2492
  %v4308 = vpop.f32.mrb[0].mxu0
  %v4309 = vadd.f32 %v587, %v4308
  %v4310 = vpop.f32.mrb[0].mxu0
  %v4311 = vpop.f32.mrb[0].mxu0
  %v4312 = vadd.f32 %v587, %v4311
  %v4313 = vpop.f32.mrb[0].mxu0
  %4314 = vmatprep.mubr.bf16.mxu0 0
  %4315 = vmatmul.mubr.bf16.gmra.mrb[0].mxu0 %v2495
  %v4316 = vpop.f32.mrb[0].mxu0
  %v4317 = vadd.f32 %v587, %v4316
  %v4318 = vpop.f32.mrb[0].mxu0
  %v4319 = vpop.f32.mrb[0].mxu0
  %v4320 = vadd.f32 %v587, %v4319
  %v4321 = vpop.f32.mrb[0].mxu0
  %4322 = vmatprep.mubr.bf16.mxu0 0
  %4323 = vmatmul.mubr.bf16.gmra.mrb[0].mxu0 %v2498
  %v4324 = vpop.f32.mrb[0].mxu0
  %v4325 = vadd.f32 %v587, %v4324
  %v4326 = vpop.f32.mrb[0].mxu0
  %v4327 = vpop.f32.mrb[0].mxu0
  %v4328 = vadd.f32 %v587, %v4327
  %v4329 = vpop.f32.mrb[0].mxu0
  %4330 = vmatprep.mubr.bf16.mxu0 0
  %4331 = vmatmul.mubr.bf16.gmra.mrb[0].mxu0 %v2501
  %v4332 = vpop.f32.mrb[0].mxu0
  %v4333 = vadd.f32 %v587, %v4332
  %v4334 = vpop.f32.mrb[0].mxu0
  %v4335 = vpop.f32.mrb[0].mxu0
  %v4336 = vadd.f32 %v587, %v4335
  %v4337 = vpop.f32.mrb[0].mxu0
  %4338 = vmatprep.mubr.bf16.mxu0 0
  %4339 = vmatmul.mubr.bf16.gmra.mrb[0].mxu0 %v2504
  %v4340 = vpop.f32.mrb[0].mxu0
  %v4341 = vadd.f32 %v587, %v4340
  %v4342 = vpop.f32.mrb[0].mxu0
  %v4343 = vpop.f32.mrb[0].mxu0
  %v4344 = vadd.f32 %v587, %v4343
  %v4345 = vpop.f32.mrb[0].mxu0
  %4346 = vmatprep.mubr.bf16.mxu0 0
  %4347 = vmatmul.mubr.bf16.gmra.mrb[0].mxu0 %v2507
  %v4348 = vpop.f32.mrb[0].mxu0
  %v4349 = vadd.f32 %v587, %v4348
  %v4350 = vpop.f32.mrb[0].mxu0
  %v4351 = vpop.f32.mrb[0].mxu0
  %v4352 = vadd.f32 %v587, %v4351
  %v4353 = vpop.f32.mrb[0].mxu0
  %4354 = vmatprep.mubr.bf16.mxu0 0
  %4355 = vmatmul.mubr.bf16.gmra.mrb[0].mxu0 %v2510
  %v4356 = vpop.f32.mrb[0].mxu0
  %v4357 = vadd.f32 %v587, %v4356
  %v4358 = vpop.f32.mrb[0].mxu0
  %v4359 = vpop.f32.mrb[0].mxu0
  %v4360 = vadd.f32 %v587, %v4359
  %v4361 = vpop.f32.mrb[0].mxu0
  %4362 = vmatprep.mubr.bf16.mxu0 0
  %4363 = vmatmul.mubr.bf16.gmra.mrb[0].mxu0 %v2513
  %v4364 = vpop.f32.mrb[0].mxu0
  %v4365 = vadd.f32 %v587, %v4364
  %v4366 = vpop.f32.mrb[0].mxu0
  %v4367 = vpop.f32.mrb[0].mxu0
  %v4368 = vadd.f32 %v587, %v4367
  %v4369 = vpop.f32.mrb[0].mxu0
  %4370 = vmatprep.mubr.bf16.mxu0 0
  %4371 = vmatmul.mubr.bf16.gmra.mrb[0].mxu0 %v2516
  %v4372 = vpop.f32.mrb[0].mxu0
  %v4373 = vadd.f32 %v587, %v4372
  %v4374 = vpop.f32.mrb[0].mxu0
  %v4375 = vpop.f32.mrb[0].mxu0
  %v4376 = vadd.f32 %v587, %v4375
  %v4377 = vpop.f32.mrb[0].mxu0
  %4378 = vmatprep.mubr.bf16.mxu0 0
  %4379 = vmatmul.mubr.bf16.gmra.mrb[0].mxu0 %v2519
  %v4380 = vpop.f32.mrb[0].mxu0
  %v4381 = vadd.f32 %v587, %v4380
  %v4382 = vpop.f32.mrb[0].mxu0
  %v4383 = vpop.f32.mrb[0].mxu0
  %v4384 = vadd.f32 %v587, %v4383
  %v4385 = vpop.f32.mrb[0].mxu0
  %4386 = vmatprep.mubr.bf16.mxu0 0
  %4387 = vmatmul.mubr.bf16.gmra.mrb[0].mxu0 %v2522
  %v4388 = vpop.f32.mrb[0].mxu0
  %v4389 = vadd.f32 %v587, %v4388
  %v4390 = vpop.f32.mrb[0].mxu0
  %v4391 = vpop.f32.mrb[0].mxu0
  %v4392 = vadd.f32 %v587, %v4391
  %v4393 = vpop.f32.mrb[0].mxu0
  %4394 = vmatprep.mubr.bf16.mxu0 0
  %4395 = vmatmul.mubr.bf16.gmra.mrb[0].mxu0 %v2525
  %v4396 = vpop.f32.mrb[0].mxu0
  %v4397 = vadd.f32 %v587, %v4396
  %v4398 = vpop.f32.mrb[0].mxu0
  %v4399 = vpop.f32.mrb[0].mxu0
  %v4400 = vadd.f32 %v587, %v4399
  %v4401 = vpop.f32.mrb[0].mxu0
  %4402 = vmatprep.mubr.bf16.mxu0 0
  %4403 = vmatmul.mubr.bf16.gmra.mrb[0].mxu0 %v2528
  %v4404 = vpop.f32.mrb[0].mxu0
  %v4405 = vadd.f32 %v587, %v4404
  %v4406 = vpop.f32.mrb[0].mxu0
  %v4407 = vpop.f32.mrb[0].mxu0
  %v4408 = vadd.f32 %v587, %v4407
  %v4409 = vpop.f32.mrb[0].mxu0
  %4410 = vmatprep.mubr.bf16.mxu0 0
  %4411 = vmatmul.mubr.bf16.gmra.mrb[0].mxu0 %v2531
  %v4412 = vpop.f32.mrb[0].mxu0
  %v4413 = vadd.f32 %v587, %v4412
  %v4414 = vpop.f32.mrb[0].mxu0
  %v4415 = vpop.f32.mrb[0].mxu0
  %v4416 = vadd.f32 %v587, %v4415
  %v4417 = vpop.f32.mrb[0].mxu0
  %4418 = vmatprep.mubr.bf16.mxu0 0
  %4419 = vmatmul.mubr.bf16.gmra.mrb[0].mxu0 %v2534
  %v4420 = vpop.f32.mrb[0].mxu0
  %v4421 = vadd.f32 %v587, %v4420
  %v4422 = vpop.f32.mrb[0].mxu0
  %v4423 = vpop.f32.mrb[0].mxu0
  %v4424 = vadd.f32 %v587, %v4423
  %v4425 = vpop.f32.mrb[0].mxu0
  %4426 = vmatprep.mubr.bf16.mxu0 0
  %4427 = vmatmul.mubr.bf16.gmra.mrb[0].mxu0 %v2537
  %v4428 = vpop.f32.mrb[0].mxu0
  %v4429 = vadd.f32 %v587, %v4428
  %v4430 = vpop.f32.mrb[0].mxu0
  %v4431 = vpop.f32.mrb[0].mxu0
  %v4432 = vadd.f32 %v587, %v4431
  %v4433 = vpop.f32.mrb[0].mxu0
  %4434 = vmatprep.mubr.bf16.mxu0 0
  %4435 = vmatmul.mubr.bf16.gmra.mrb[0].mxu0 %v2540
  %v4436 = vpop.f32.mrb[0].mxu0
  %v4437 = vadd.f32 %v587, %v4436
  %v4438 = vpop.f32.mrb[0].mxu0
  %v4439 = vpop.f32.mrb[0].mxu0
  %v4440 = vadd.f32 %v587, %v4439
  %v4441 = vpop.f32.mrb[0].mxu0
  %4442 = vmatprep.mubr.bf16.mxu0 0
  %4443 = vmatmul.mubr.bf16.gmra.mrb[0].mxu0 %v2543
  %v4444 = vpop.f32.mrb[0].mxu0
  %v4445 = vadd.f32 %v587, %v4444
  %v4446 = vpop.f32.mrb[0].mxu0
  %v4447 = vpop.f32.mrb[0].mxu0
  %v4448 = vadd.f32 %v587, %v4447
  %v4449 = vpop.f32.mrb[0].mxu0
  %4450 = vmatprep.mubr.bf16.mxu0 0
  %4451 = vmatmul.mubr.bf16.gmra.mrb[0].mxu0 %v2546
  %v4452 = vpop.f32.mrb[0].mxu0
  %v4453 = vadd.f32 %v587, %v4452
  %v4454 = vpop.f32.mrb[0].mxu0
  %v4455 = vpop.f32.mrb[0].mxu0
  %v4456 = vadd.f32 %v587, %v4455
  %v4457 = vpop.f32.mrb[0].mxu0
  %4458 = vmatprep.mubr.bf16.mxu0 0
  %4459 = vmatmul.mubr.bf16.gmra.mrb[0].mxu0 %v2549
  %v4460 = vpop.f32.mrb[0].mxu0
  %v4461 = vadd.f32 %v587, %v4460
  %v4462 = vpop.f32.mrb[0].mxu0
  %v4463 = vpop.f32.mrb[0].mxu0
  %v4464 = vadd.f32 %v587, %v4463
  %v4465 = vpop.f32.mrb[0].mxu0
  %4466 = vmatprep.mubr.bf16.mxu0 0
  %4467 = vmatmul.mubr.bf16.gmra.mrb[0].mxu0 %v2552
  %v4468 = vpop.f32.mrb[0].mxu0
  %v4469 = vadd.f32 %v587, %v4468
  %v4470 = vpop.f32.mrb[0].mxu0
  %v4471 = vpop.f32.mrb[0].mxu0
  %v4472 = vadd.f32 %v587, %v4471
  %v4473 = vpop.f32.mrb[0].mxu0
  %4474 = vmatprep.mubr.bf16.mxu0 0
  %4475 = vmatmul.mubr.bf16.gmra.mrb[0].mxu0 %v2555
  %v4476 = vpop.f32.mrb[0].mxu0
  %v4477 = vadd.f32 %v587, %v4476
  %v4478 = vpop.f32.mrb[0].mxu0
  %v4479 = vpop.f32.mrb[0].mxu0
  %v4480 = vadd.f32 %v587, %v4479
  %v4481 = vpop.f32.mrb[0].mxu0
  %4482 = vmatprep.mubr.bf16.mxu0 0
  %4483 = vmatmul.mubr.bf16.gmra.mrb[0].mxu0 %v2558
  %v4484 = vpop.f32.mrb[0].mxu0
  %v4485 = vadd.f32 %v587, %v4484
  %v4486 = vpop.f32.mrb[0].mxu0
  %v4487 = vpop.f32.mrb[0].mxu0
  %v4488 = vadd.f32 %v587, %v4487
  %v4489 = vpop.f32.mrb[0].mxu0
  %4490 = vmatprep.mubr.bf16.mxu0 0
  %4491 = vmatmul.mubr.bf16.gmra.mrb[0].mxu0 %v2561
  %v4492 = vpop.f32.mrb[0].mxu0
  %v4493 = vadd.f32 %v587, %v4492
  %v4494 = vpop.f32.mrb[0].mxu0
  %v4495 = vpop.f32.mrb[0].mxu0
  %v4496 = vadd.f32 %v587, %v4495
  %v4497 = vpop.f32.mrb[0].mxu0
  %4498 = vmatprep.mubr.bf16.mxu0 0
  %4499 = vmatmul.mubr.bf16.gmra.mrb[0].mxu0 %v2564
  %v4500 = vpop.f32.mrb[0].mxu0
  %v4501 = vadd.f32 %v587, %v4500
  %v4502 = vpop.f32.mrb[0].mxu0
  %v4503 = vpop.f32.mrb[0].mxu0
  %v4504 = vadd.f32 %v587, %v4503
  %v4505 = vpop.f32.mrb[0].mxu0
  %4506 = vmatprep.mubr.bf16.mxu0 0
  %4507 = vmatmul.mubr.bf16.gmra.mrb[0].mxu0 %v2567
  %v4508 = vpop.f32.mrb[0].mxu0
  %v4509 = vadd.f32 %v587, %v4508
  %v4510 = vpop.f32.mrb[0].mxu0
  %v4511 = vpop.f32.mrb[0].mxu0
  %v4512 = vadd.f32 %v587, %v4511
  %v4513 = vpop.f32.mrb[0].mxu0
  %4514 = vmatprep.mubr.bf16.mxu0 0
  %4515 = vmatmul.mubr.bf16.gmra.mrb[0].mxu0 %v2570
  %v4516 = vpop.f32.mrb[0].mxu0
  %v4517 = vadd.f32 %v587, %v4516
  %v4518 = vpop.f32.mrb[0].mxu0
  %v4519 = vpop.f32.mrb[0].mxu0
  %v4520 = vadd.f32 %v587, %v4519
  %v4521 = vpop.f32.mrb[0].mxu0
  %4522 = vmatprep.mubr.bf16.mxu0 0
  %4523 = vmatmul.mubr.bf16.gmra.mrb[0].mxu0 %v2573
  %v4524 = vpop.f32.mrb[0].mxu0
  %v4525 = vadd.f32 %v587, %v4524
  %v4526 = vpop.f32.mrb[0].mxu0
  %v4527 = vpop.f32.mrb[0].mxu0
  %v4528 = vadd.f32 %v587, %v4527
  %v4529 = vpop.f32.mrb[0].mxu0
  %4530 = vmatprep.mubr.bf16.mxu0 0
  %4531 = vmatmul.mubr.bf16.gmra.mrb[0].mxu0 %v2576
  %v4532 = vpop.f32.mrb[0].mxu0
  %v4533 = vadd.f32 %v587, %v4532
  %v4534 = vpop.f32.mrb[0].mxu0
  %v4535 = vpop.f32.mrb[0].mxu0
  %v4536 = vadd.f32 %v587, %v4535
  %v4537 = vpop.f32.mrb[0].mxu0
  %4538 = vmatprep.mubr.bf16.mxu0 0
  %4539 = vmatmul.mubr.bf16.gmra.mrb[0].mxu0 %v2579
  %v4540 = vpop.f32.mrb[0].mxu0
  %v4541 = vadd.f32 %v587, %v4540
  %v4542 = vpop.f32.mrb[0].mxu0
  %v4543 = vpop.f32.mrb[0].mxu0
  %v4544 = vadd.f32 %v587, %v4543
  %v4545 = vpop.f32.mrb[0].mxu0
  %4546 = vmatprep.mubr.bf16.mxu0 0
  %4547 = vmatmul.mubr.bf16.gmra.mrb[0].mxu0 %v2582
  %v4548 = vpop.f32.mrb[0].mxu0
  %v4549 = vadd.f32 %v587, %v4548
  %v4550 = vpop.f32.mrb[0].mxu0
  %v4551 = vpop.f32.mrb[0].mxu0
  %v4552 = vadd.f32 %v587, %v4551
  %v4553 = vpop.f32.mrb[0].mxu0
  %4554 = vmatprep.mubr.bf16.mxu0 0
  %4555 = vmatmul.mubr.bf16.gmra.mrb[0].mxu0 %v2585
  %v4556 = vpop.f32.mrb[0].mxu0
  %v4557 = vadd.f32 %v587, %v4556
  %v4558 = vpop.f32.mrb[0].mxu0
  %v4559 = vpop.f32.mrb[0].mxu0
  %v4560 = vadd.f32 %v587, %v4559
  %v4561 = vpop.f32.mrb[0].mxu0
  %4562 = vmatprep.mubr.bf16.mxu0 0
  %4563 = vmatmul.mubr.bf16.gmra.mrb[0].mxu0 %v2588
  %v4564 = vpop.f32.mrb[0].mxu0
  %v4565 = vadd.f32 %v587, %v4564
  %v4566 = vpop.f32.mrb[0].mxu0
  %v4567 = vpop.f32.mrb[0].mxu0
  %v4568 = vadd.f32 %v587, %v4567
  %v4569 = vpop.f32.mrb[0].mxu0
  %4570 = vmatprep.mubr.bf16.mxu0 0
  %4571 = vmatmul.mubr.bf16.gmra.mrb[0].mxu0 %v2591
  %v4572 = vpop.f32.mrb[0].mxu0
  %v4573 = vadd.f32 %v587, %v4572
  %v4574 = vpop.f32.mrb[0].mxu0
  %v4575 = vpop.f32.mrb[0].mxu0
  %v4576 = vadd.f32 %v587, %v4575
  %v4577 = vpop.f32.mrb[0].mxu0
  %4578 = vmatprep.mubr.bf16.mxu0 0
  %4579 = vmatmul.mubr.bf16.gmra.mrb[0].mxu0 %v2594
  %v4580 = vpop.f32.mrb[0].mxu0
  %v4581 = vadd.f32 %v587, %v4580
  %v4582 = vpop.f32.mrb[0].mxu0
  %v4583 = vpop.f32.mrb[0].mxu0
  %v4584 = vadd.f32 %v587, %v4583
  %v4585 = vpop.f32.mrb[0].mxu0
  %4586 = vmatprep.mubr.bf16.mxu0 0
  %4587 = vmatmul.mubr.bf16.gmra.mrb[0].mxu0 %v2597
  %v4588 = vpop.f32.mrb[0].mxu0
  %v4589 = vadd.f32 %v587, %v4588
  %v4590 = vpop.f32.mrb[0].mxu0
  %v4591 = vpop.f32.mrb[0].mxu0
  %v4592 = vadd.f32 %v587, %v4591
  %v4593 = vpop.f32.mrb[0].mxu0
  %4594 = vmatprep.mubr.bf16.mxu0 0
  %4595 = vmatmul.mubr.bf16.gmra.mrb[0].mxu0 %v2600
  %v4596 = vpop.f32.mrb[0].mxu0
  %v4597 = vadd.f32 %v587, %v4596
  %v4598 = vpop.f32.mrb[0].mxu0
  %v4599 = vpop.f32.mrb[0].mxu0
  %v4600 = vadd.f32 %v587, %v4599
  %v4601 = vpop.f32.mrb[0].mxu0
  %4602 = vmatprep.mubr.bf16.mxu0 0
  %4603 = vmatmul.mubr.bf16.gmra.mrb[0].mxu0 %v2603
  %v4604 = vpop.f32.mrb[0].mxu0
  %v4605 = vadd.f32 %v587, %v4604
  %v4606 = vpop.f32.mrb[0].mxu0
  %v4607 = vpop.f32.mrb[0].mxu0
  %v4608 = vadd.f32 %v587, %v4607
  %v4609 = vpop.f32.mrb[0].mxu0
  %4610 = vmatprep.mubr.bf16.mxu0 0
  %4611 = vmatmul.mubr.bf16.gmra.mrb[0].mxu0 %v2606
  %v4612 = vpop.f32.mrb[0].mxu0
  %v4613 = vadd.f32 %v587, %v4612
  %v4614 = vpop.f32.mrb[0].mxu0
  %v4615 = vpop.f32.mrb[0].mxu0
  %v4616 = vadd.f32 %v587, %v4615
  %v4617 = vpop.f32.mrb[0].mxu0
  %4618 = vmatprep.mubr.bf16.mxu0 0
  %4619 = vmatmul.mubr.bf16.gmra.mrb[0].mxu0 %v2609
  %v4620 = vpop.f32.mrb[0].mxu0
  %v4621 = vadd.f32 %v587, %v4620
  %v4622 = vpop.f32.mrb[0].mxu0
  %v4623 = vpop.f32.mrb[0].mxu0
  %v4624 = vadd.f32 %v587, %v4623
  %v4625 = vpop.f32.mrb[0].mxu0
  %4626 = vmatprep.mubr.bf16.mxu0 0
  %4627 = vmatmul.mubr.bf16.gmra.mrb[0].mxu0 %v2612
  %v4628 = vpop.f32.mrb[0].mxu0
  %v4629 = vadd.f32 %v587, %v4628
  %v4630 = vpop.f32.mrb[0].mxu0
  %v4631 = vpop.f32.mrb[0].mxu0
  %v4632 = vadd.f32 %v587, %v4631
  %v4633 = vpop.f32.mrb[0].mxu0
  %4634 = vmatprep.mubr.bf16.mxu0 0
  %4635 = vmatmul.mubr.bf16.gmra.mrb[0].mxu0 %v2615
  %v4636 = vpop.f32.mrb[0].mxu0
  %v4637 = vadd.f32 %v587, %v4636
  %v4638 = vpop.f32.mrb[0].mxu0
  %v4639 = vpop.f32.mrb[0].mxu0
  %v4640 = vadd.f32 %v587, %v4639
  %v4641 = vpop.f32.mrb[0].mxu0
  %4642 = vmatprep.mubr.bf16.mxu0 0
  %4643 = vmatmul.mubr.bf16.gmra.mrb[0].mxu0 %v2618
  %v4644 = vpop.f32.mrb[0].mxu0
  %v4645 = vadd.f32 %v587, %v4644
  %v4646 = vpop.f32.mrb[0].mxu0
  %v4647 = vpop.f32.mrb[0].mxu0
  %v4648 = vadd.f32 %v587, %v4647
  %v4649 = vpop.f32.mrb[0].mxu0
  %4650 = vmatprep.mubr.bf16.mxu0 0
  %4651 = vmatmul.mubr.bf16.gmra.mrb[0].mxu0 %v2621
  %v4652 = vpop.f32.mrb[0].mxu0
  %v4653 = vadd.f32 %v587, %v4652
  %v4654 = vpop.f32.mrb[0].mxu0
  %v4655 = vpop.f32.mrb[0].mxu0
  %v4656 = vadd.f32 %v587, %v4655
  %v4657 = vpop.f32.mrb[0].mxu0
  %4658 = vmatprep.mubr.bf16.mxu0 0
  %4659 = vmatmul.mubr.bf16.gmra.mrb[0].mxu0 %v2624
  %v4660 = vpop.f32.mrb[0].mxu0
  %v4661 = vadd.f32 %v587, %v4660
  %v4662 = vpop.f32.mrb[0].mxu0
  %v4663 = vpop.f32.mrb[0].mxu0
  %v4664 = vadd.f32 %v587, %v4663
  %v4665 = vpop.f32.mrb[0].mxu0
  %4666 = vmatprep.mubr.bf16.mxu0 0
  %4667 = vmatmul.mubr.bf16.gmra.mrb[0].mxu0 %v2627
  %v4668 = vpop.f32.mrb[0].mxu0
  %v4669 = vadd.f32 %v587, %v4668
  %v4670 = vpop.f32.mrb[0].mxu0
  %v4671 = vpop.f32.mrb[0].mxu0
  %v4672 = vadd.f32 %v587, %v4671
  %v4673 = vpop.f32.mrb[0].mxu0
  %4674 = vmatprep.mubr.bf16.mxu0 0
  %4675 = vmatmul.mubr.bf16.gmra.mrb[0].mxu0 %v2630
  %v4676 = vpop.f32.mrb[0].mxu0
  %v4677 = vadd.f32 %v587, %v4676
  %v4678 = vpop.f32.mrb[0].mxu0
  %v4679 = vpop.f32.mrb[0].mxu0
  %v4680 = vadd.f32 %v587, %v4679
  %v4681 = vpop.f32.mrb[0].mxu0
  %4682 = vmatprep.mubr.bf16.mxu0 0
  %4683 = vmatmul.mubr.bf16.gmra.mrb[0].mxu0 %v2633
  %v4684 = vpop.f32.mrb[0].mxu0
  %v4685 = vadd.f32 %v587, %v4684
  %v4686 = vpop.f32.mrb[0].mxu0
  %v4687 = vpop.f32.mrb[0].mxu0
  %v4688 = vadd.f32 %v587, %v4687
  %v4689 = vpop.f32.mrb[0].mxu0
  %4690 = vmatprep.mubr.bf16.mxu0 0
  %4691 = vmatmul.mubr.bf16.gmra.mrb[0].mxu0 %v2636
  %v4692 = vpop.f32.mrb[0].mxu0
  %v4693 = vadd.f32 %v587, %v4692
  %v4694 = vpop.f32.mrb[0].mxu0
  %v4695 = vpop.f32.mrb[0].mxu0
  %v4696 = vadd.f32 %v587, %v4695
  %v4697 = vpop.f32.mrb[0].mxu0
  %4698 = vmatprep.mubr.bf16.mxu0 0
  %4699 = vmatmul.mubr.bf16.gmra.mrb[0].mxu0 %v2639
  %v4700 = vpop.f32.mrb[0].mxu0
  %v4701 = vadd.f32 %v587, %v4700
  %v4702 = vpop.f32.mrb[0].mxu0
  %v4703 = vpop.f32.mrb[0].mxu0
  %v4704 = vadd.f32 %v587, %v4703
  %v4705 = vpop.f32.mrb[0].mxu0
  %4706 = vmatprep.mubr.bf16.mxu0 0
  %4707 = vmatmul.mubr.bf16.gmra.mrb[0].mxu0 %v2642
  %v4708 = vpop.f32.mrb[0].mxu0
  %v4709 = vadd.f32 %v587, %v4708
  %v4710 = vpop.f32.mrb[0].mxu0
  %v4711 = vpop.f32.mrb[0].mxu0
  %v4712 = vadd.f32 %v587, %v4711
  %v4713 = vpop.f32.mrb[0].mxu0
  %4714 = vmatprep.mubr.bf16.mxu0 0
  %4715 = vmatmul.mubr.bf16.gmra.mrb[0].mxu0 %v2645
  %v4716 = vpop.f32.mrb[0].mxu0
  %v4717 = vadd.f32 %v587, %v4716
  %v4718 = vpop.f32.mrb[0].mxu0
  %v4719 = vpop.f32.mrb[0].mxu0
  %v4720 = vadd.f32 %v587, %v4719
  %v4721 = vpop.f32.mrb[0].mxu0
  %4722 = vmatprep.mubr.bf16.mxu0 0
  %4723 = vmatmul.mubr.bf16.gmra.mrb[0].mxu0 %v2648
  %v4724 = vpop.f32.mrb[0].mxu0
  %v4725 = vadd.f32 %v587, %v4724
  %v4726 = vpop.f32.mrb[0].mxu0
  %v4727 = vpop.f32.mrb[0].mxu0
  %v4728 = vadd.f32 %v587, %v4727
  %v4729 = vpop.f32.mrb[0].mxu0
  %4730 = vdwg.mxu0
  %v4731 = vadd.f32 %v2685, %v2688
  %v4732 = vadd.f32 %v4731, %v2693
  %v4733 = vadd.f32 %v4732, %v2696
  %v4734 = vadd.f32 %v4733, %v2701
  %v4735 = vadd.f32 %v4734, %v2704
  %v4736 = vadd.f32 %v4735, %v2709
  %v4737 = vadd.f32 %v4736, %v2712
  %v4738 = vadd.f32 %v4737, %v2717
  %v4739 = vadd.f32 %v4738, %v2720
  %v4740 = vadd.f32 %v4739, %v2725
  %v4741 = vadd.f32 %v4740, %v2728
  %v4742 = vadd.f32 %v4741, %v2733
  %v4743 = vadd.f32 %v4742, %v2736
  %v4744 = vadd.f32 %v4743, %v2741
  %v4745 = vadd.f32 %v4744, %v2744
  %v4746 = vadd.f32 %v4745, %v2749
  %v4747 = vadd.f32 %v4746, %v2752
  %v4748 = vadd.f32 %v4747, %v2757
  %v4749 = vadd.f32 %v4748, %v2760
  %v4750 = vadd.f32 %v4749, %v2765
  %v4751 = vadd.f32 %v4750, %v2768
  %v4752 = vadd.f32 %v4751, %v2773
  %v4753 = vadd.f32 %v4752, %v2776
  %v4754 = vadd.f32 %v4753, %v2781
  %v4755 = vadd.f32 %v4754, %v2784
  %v4756 = vadd.f32 %v4755, %v2789
  %v4757 = vadd.f32 %v4756, %v2792
  %v4758 = vadd.f32 %v4757, %v2797
  %v4759 = vadd.f32 %v4758, %v2800
  %v4760 = vadd.f32 %v4759, %v2805
  %v4761 = vadd.f32 %v4760, %v2808
  %v4762 = vrot.slane %v4761, 4
  %v4763 = vadd.f32 %v4761, %v4762
  %v4764 = vrot.slane %v4763, 2
  %v4765 = vadd.f32 %v4763, %v4764
  %v4766 = vrot.slane %v4765, 1
  %v4767 = vadd.f32 %v4765, %v4766
  %v4768 = vadd.f32 %v2813, %v2816
  %v4769 = vadd.f32 %v4768, %v2821
  %v4770 = vadd.f32 %v4769, %v2824
  %v4771 = vadd.f32 %v4770, %v2829
  %v4772 = vadd.f32 %v4771, %v2832
  %v4773 = vadd.f32 %v4772, %v2837
  %v4774 = vadd.f32 %v4773, %v2840
  %v4775 = vadd.f32 %v4774, %v2845
  %v4776 = vadd.f32 %v4775, %v2848
  %v4777 = vadd.f32 %v4776, %v2853
  %v4778 = vadd.f32 %v4777, %v2856
  %v4779 = vadd.f32 %v4778, %v2861
  %v4780 = vadd.f32 %v4779, %v2864
  %v4781 = vadd.f32 %v4780, %v2869
  %v4782 = vadd.f32 %v4781, %v2872
  %v4783 = vadd.f32 %v4782, %v2877
  %v4784 = vadd.f32 %v4783, %v2880
  %v4785 = vadd.f32 %v4784, %v2885
  %v4786 = vadd.f32 %v4785, %v2888
  %v4787 = vadd.f32 %v4786, %v2893
  %v4788 = vadd.f32 %v4787, %v2896
  %v4789 = vadd.f32 %v4788, %v2901
  %v4790 = vadd.f32 %v4789, %v2904
  %v4791 = vadd.f32 %v4790, %v2909
  %v4792 = vadd.f32 %v4791, %v2912
  %v4793 = vadd.f32 %v4792, %v2917
  %v4794 = vadd.f32 %v4793, %v2920
  %v4795 = vadd.f32 %v4794, %v2925
  %v4796 = vadd.f32 %v4795, %v2928
  %v4797 = vadd.f32 %v4796, %v2933
  %v4798 = vadd.f32 %v4797, %v2936
  %v4799 = vrot.slane %v4798, 4
  %v4800 = vadd.f32 %v4798, %v4799
  %v4801 = vrot.slane %v4800, 2
  %v4802 = vadd.f32 %v4800, %v4801
  %v4803 = vrot.slane %v4802, 1
  %v4804 = vadd.f32 %v4802, %v4803
  %v4805 = vadd.f32 %v2941, %v2944
  %v4806 = vadd.f32 %v4805, %v2949
  %v4807 = vadd.f32 %v4806, %v2952
  %v4808 = vadd.f32 %v4807, %v2957
  %v4809 = vadd.f32 %v4808, %v2960
  %v4810 = vadd.f32 %v4809, %v2965
  %v4811 = vadd.f32 %v4810, %v2968
  %v4812 = vadd.f32 %v4811, %v2973
  %v4813 = vadd.f32 %v4812, %v2976
  %v4814 = vadd.f32 %v4813, %v2981
  %v4815 = vadd.f32 %v4814, %v2984
  %v4816 = vadd.f32 %v4815, %v2989
  %v4817 = vadd.f32 %v4816, %v2992
  %v4818 = vadd.f32 %v4817, %v2997
  %v4819 = vadd.f32 %v4818, %v3000
  %v4820 = vadd.f32 %v4819, %v3005
  %v4821 = vadd.f32 %v4820, %v3008
  %v4822 = vadd.f32 %v4821, %v3013
  %v4823 = vadd.f32 %v4822, %v3016
  %v4824 = vadd.f32 %v4823, %v3021
  %v4825 = vadd.f32 %v4824, %v3024
  %v4826 = vadd.f32 %v4825, %v3029
  %v4827 = vadd.f32 %v4826, %v3032
  %v4828 = vadd.f32 %v4827, %v3037
  %v4829 = vadd.f32 %v4828, %v3040
  %v4830 = vadd.f32 %v4829, %v3045
  %v4831 = vadd.f32 %v4830, %v3048
  %v4832 = vadd.f32 %v4831, %v3053
  %v4833 = vadd.f32 %v4832, %v3056
  %v4834 = vadd.f32 %v4833, %v3061
  %v4835 = vadd.f32 %v4834, %v3064
  %v4836 = vrot.slane %v4835, 4
  %v4837 = vadd.f32 %v4835, %v4836
  %v4838 = vrot.slane %v4837, 2
  %v4839 = vadd.f32 %v4837, %v4838
  %v4840 = vrot.slane %v4839, 1
  %v4841 = vadd.f32 %v4839, %v4840
  %v4842 = vadd.f32 %v3069, %v3072
  %v4843 = vadd.f32 %v4842, %v3077
  %v4844 = vadd.f32 %v4843, %v3080
  %v4845 = vadd.f32 %v4844, %v3085
  %v4846 = vadd.f32 %v4845, %v3088
  %v4847 = vadd.f32 %v4846, %v3093
  %v4848 = vadd.f32 %v4847, %v3096
  %v4849 = vadd.f32 %v4848, %v3101
  %v4850 = vadd.f32 %v4849, %v3104
  %v4851 = vadd.f32 %v4850, %v3109
  %v4852 = vadd.f32 %v4851, %v3112
  %v4853 = vadd.f32 %v4852, %v3117
  %v4854 = vadd.f32 %v4853, %v3120
  %v4855 = vadd.f32 %v4854, %v3125
  %v4856 = vadd.f32 %v4855, %v3128
  %v4857 = vadd.f32 %v4856, %v3133
  %v4858 = vadd.f32 %v4857, %v3136
  %v4859 = vadd.f32 %v4858, %v3141
  %v4860 = vadd.f32 %v4859, %v3144
  %v4861 = vadd.f32 %v4860, %v3149
  %v4862 = vadd.f32 %v4861, %v3152
  %v4863 = vadd.f32 %v4862, %v3157
  %v4864 = vadd.f32 %v4863, %v3160
  %v4865 = vadd.f32 %v4864, %v3165
  %v4866 = vadd.f32 %v4865, %v3168
  %v4867 = vadd.f32 %v4866, %v3173
  %v4868 = vadd.f32 %v4867, %v3176
  %v4869 = vadd.f32 %v4868, %v3181
  %v4870 = vadd.f32 %v4869, %v3184
  %v4871 = vadd.f32 %v4870, %v3189
  %v4872 = vadd.f32 %v4871, %v3192
  %v4873 = vrot.slane %v4872, 4
  %v4874 = vadd.f32 %v4872, %v4873
  %v4875 = vrot.slane %v4874, 2
  %v4876 = vadd.f32 %v4874, %v4875
  %v4877 = vrot.slane %v4876, 1
  %v4878 = vadd.f32 %v4876, %v4877
  %v4879 = vadd.f32 %v3197, %v3200
  %v4880 = vadd.f32 %v4879, %v3205
  %v4881 = vadd.f32 %v4880, %v3208
  %v4882 = vadd.f32 %v4881, %v3213
  %v4883 = vadd.f32 %v4882, %v3216
  %v4884 = vadd.f32 %v4883, %v3221
  %v4885 = vadd.f32 %v4884, %v3224
  %v4886 = vadd.f32 %v4885, %v3229
  %v4887 = vadd.f32 %v4886, %v3232
  %v4888 = vadd.f32 %v4887, %v3237
  %v4889 = vadd.f32 %v4888, %v3240
  %v4890 = vadd.f32 %v4889, %v3245
  %v4891 = vadd.f32 %v4890, %v3248
  %v4892 = vadd.f32 %v4891, %v3253
  %v4893 = vadd.f32 %v4892, %v3256
  %v4894 = vadd.f32 %v4893, %v3261
  %v4895 = vadd.f32 %v4894, %v3264
  %v4896 = vadd.f32 %v4895, %v3269
  %v4897 = vadd.f32 %v4896, %v3272
  %v4898 = vadd.f32 %v4897, %v3277
  %v4899 = vadd.f32 %v4898, %v3280
  %v4900 = vadd.f32 %v4899, %v3285
  %v4901 = vadd.f32 %v4900, %v3288
  %v4902 = vadd.f32 %v4901, %v3293
  %v4903 = vadd.f32 %v4902, %v3296
  %v4904 = vadd.f32 %v4903, %v3301
  %v4905 = vadd.f32 %v4904, %v3304
  %v4906 = vadd.f32 %v4905, %v3309
  %v4907 = vadd.f32 %v4906, %v3312
  %v4908 = vadd.f32 %v4907, %v3317
  %v4909 = vadd.f32 %v4908, %v3320
  %v4910 = vrot.slane %v4909, 4
  %v4911 = vadd.f32 %v4909, %v4910
  %v4912 = vrot.slane %v4911, 2
  %v4913 = vadd.f32 %v4911, %v4912
  %v4914 = vrot.slane %v4913, 1
  %v4915 = vadd.f32 %v4913, %v4914
  %v4916 = vadd.f32 %v3325, %v3328
  %v4917 = vadd.f32 %v4916, %v3333
  %v4918 = vadd.f32 %v4917, %v3336
  %v4919 = vadd.f32 %v4918, %v3341
  %v4920 = vadd.f32 %v4919, %v3344
  %v4921 = vadd.f32 %v4920, %v3349
  %v4922 = vadd.f32 %v4921, %v3352
  %v4923 = vadd.f32 %v4922, %v3357
  %v4924 = vadd.f32 %v4923, %v3360
  %v4925 = vadd.f32 %v4924, %v3365
  %v4926 = vadd.f32 %v4925, %v3368
  %v4927 = vadd.f32 %v4926, %v3373
  %v4928 = vadd.f32 %v4927, %v3376
  %v4929 = vadd.f32 %v4928, %v3381
  %v4930 = vadd.f32 %v4929, %v3384
  %v4931 = vadd.f32 %v4930, %v3389
  %v4932 = vadd.f32 %v4931, %v3392
  %v4933 = vadd.f32 %v4932, %v3397
  %v4934 = vadd.f32 %v4933, %v3400
  %v4935 = vadd.f32 %v4934, %v3405
  %v4936 = vadd.f32 %v4935, %v3408
  %v4937 = vadd.f32 %v4936, %v3413
  %v4938 = vadd.f32 %v4937, %v3416
  %v4939 = vadd.f32 %v4938, %v3421
  %v4940 = vadd.f32 %v4939, %v3424
  %v4941 = vadd.f32 %v4940, %v3429
  %v4942 = vadd.f32 %v4941, %v3432
  %v4943 = vadd.f32 %v4942, %v3437
  %v4944 = vadd.f32 %v4943, %v3440
  %v4945 = vadd.f32 %v4944, %v3445
  %v4946 = vadd.f32 %v4945, %v3448
  %v4947 = vrot.slane %v4946, 4
  %v4948 = vadd.f32 %v4946, %v4947
  %v4949 = vrot.slane %v4948, 2
  %v4950 = vadd.f32 %v4948, %v4949
  %v4951 = vrot.slane %v4950, 1
  %v4952 = vadd.f32 %v4950, %v4951
  %v4953 = vadd.f32 %v3453, %v3456
  %v4954 = vadd.f32 %v4953, %v3461
  %v4955 = vadd.f32 %v4954, %v3464
  %v4956 = vadd.f32 %v4955, %v3469
  %v4957 = vadd.f32 %v4956, %v3472
  %v4958 = vadd.f32 %v4957, %v3477
  %v4959 = vadd.f32 %v4958, %v3480
  %v4960 = vadd.f32 %v4959, %v3485
  %v4961 = vadd.f32 %v4960, %v3488
  %v4962 = vadd.f32 %v4961, %v3493
  %v4963 = vadd.f32 %v4962, %v3496
  %v4964 = vadd.f32 %v4963, %v3501
  %v4965 = vadd.f32 %v4964, %v3504
  %v4966 = vadd.f32 %v4965, %v3509
  %v4967 = vadd.f32 %v4966, %v3512
  %v4968 = vadd.f32 %v4967, %v3517
  %v4969 = vadd.f32 %v4968, %v3520
  %v4970 = vadd.f32 %v4969, %v3525
  %v4971 = vadd.f32 %v4970, %v3528
  %v4972 = vadd.f32 %v4971, %v3533
  %v4973 = vadd.f32 %v4972, %v3536
  %v4974 = vadd.f32 %v4973, %v3541
  %v4975 = vadd.f32 %v4974, %v3544
  %v4976 = vadd.f32 %v4975, %v3549
  %v4977 = vadd.f32 %v4976, %v3552
  %v4978 = vadd.f32 %v4977, %v3557
  %v4979 = vadd.f32 %v4978, %v3560
  %v4980 = vadd.f32 %v4979, %v3565
  %v4981 = vadd.f32 %v4980, %v3568
  %v4982 = vadd.f32 %v4981, %v3573
  %v4983 = vadd.f32 %v4982, %v3576
  %v4984 = vrot.slane %v4983, 4
  %v4985 = vadd.f32 %v4983, %v4984
  %v4986 = vrot.slane %v4985, 2
  %v4987 = vadd.f32 %v4985, %v4986
  %v4988 = vrot.slane %v4987, 1
  %v4989 = vadd.f32 %v4987, %v4988
  %v4990 = vadd.f32 %v3581, %v3584
  %v4991 = vadd.f32 %v4990, %v3589
  %v4992 = vadd.f32 %v4991, %v3592
  %v4993 = vadd.f32 %v4992, %v3597
  %v4994 = vadd.f32 %v4993, %v3600
  %v4995 = vadd.f32 %v4994, %v3605
  %v4996 = vadd.f32 %v4995, %v3608
  %v4997 = vadd.f32 %v4996, %v3613
  %v4998 = vadd.f32 %v4997, %v3616
  %v4999 = vadd.f32 %v4998, %v3621
  %v5000 = vadd.f32 %v4999, %v3624
  %v5001 = vadd.f32 %v5000, %v3629
  %v5002 = vadd.f32 %v5001, %v3632
  %v5003 = vadd.f32 %v5002, %v3637
  %v5004 = vadd.f32 %v5003, %v3640
  %v5005 = vadd.f32 %v5004, %v3645
  %v5006 = vadd.f32 %v5005, %v3648
  %v5007 = vadd.f32 %v5006, %v3653
  %v5008 = vadd.f32 %v5007, %v3656
  %v5009 = vadd.f32 %v5008, %v3661
  %v5010 = vadd.f32 %v5009, %v3664
  %v5011 = vadd.f32 %v5010, %v3669
  %v5012 = vadd.f32 %v5011, %v3672
  %v5013 = vadd.f32 %v5012, %v3677
  %v5014 = vadd.f32 %v5013, %v3680
  %v5015 = vadd.f32 %v5014, %v3685
  %v5016 = vadd.f32 %v5015, %v3688
  %v5017 = vadd.f32 %v5016, %v3693
  %v5018 = vadd.f32 %v5017, %v3696
  %v5019 = vadd.f32 %v5018, %v3701
  %v5020 = vadd.f32 %v5019, %v3704
  %v5021 = vrot.slane %v5020, 4
  %v5022 = vadd.f32 %v5020, %v5021
  %v5023 = vrot.slane %v5022, 2
  %v5024 = vadd.f32 %v5022, %v5023
  %v5025 = vrot.slane %v5024, 1
  %v5026 = vadd.f32 %v5024, %v5025
  %v5027 = vadd.f32 %v3709, %v3712
  %v5028 = vadd.f32 %v5027, %v3717
  %v5029 = vadd.f32 %v5028, %v3720
  %v5030 = vadd.f32 %v5029, %v3725
  %v5031 = vadd.f32 %v5030, %v3728
  %v5032 = vadd.f32 %v5031, %v3733
  %v5033 = vadd.f32 %v5032, %v3736
  %v5034 = vadd.f32 %v5033, %v3741
  %v5035 = vadd.f32 %v5034, %v3744
  %v5036 = vadd.f32 %v5035, %v3749
  %v5037 = vadd.f32 %v5036, %v3752
  %v5038 = vadd.f32 %v5037, %v3757
  %v5039 = vadd.f32 %v5038, %v3760
  %v5040 = vadd.f32 %v5039, %v3765
  %v5041 = vadd.f32 %v5040, %v3768
  %v5042 = vadd.f32 %v5041, %v3773
  %v5043 = vadd.f32 %v5042, %v3776
  %v5044 = vadd.f32 %v5043, %v3781
  %v5045 = vadd.f32 %v5044, %v3784
  %v5046 = vadd.f32 %v5045, %v3789
  %v5047 = vadd.f32 %v5046, %v3792
  %v5048 = vadd.f32 %v5047, %v3797
  %v5049 = vadd.f32 %v5048, %v3800
  %v5050 = vadd.f32 %v5049, %v3805
  %v5051 = vadd.f32 %v5050, %v3808
  %v5052 = vadd.f32 %v5051, %v3813
  %v5053 = vadd.f32 %v5052, %v3816
  %v5054 = vadd.f32 %v5053, %v3821
  %v5055 = vadd.f32 %v5054, %v3824
  %v5056 = vadd.f32 %v5055, %v3829
  %v5057 = vadd.f32 %v5056, %v3832
  %v5058 = vrot.slane %v5057, 4
  %v5059 = vadd.f32 %v5057, %v5058
  %v5060 = vrot.slane %v5059, 2
  %v5061 = vadd.f32 %v5059, %v5060
  %v5062 = vrot.slane %v5061, 1
  %v5063 = vadd.f32 %v5061, %v5062
  %v5064 = vadd.f32 %v3837, %v3840
  %v5065 = vadd.f32 %v5064, %v3845
  %v5066 = vadd.f32 %v5065, %v3848
  %v5067 = vadd.f32 %v5066, %v3853
  %v5068 = vadd.f32 %v5067, %v3856
  %v5069 = vadd.f32 %v5068, %v3861
  %v5070 = vadd.f32 %v5069, %v3864
  %v5071 = vadd.f32 %v5070, %v3869
  %v5072 = vadd.f32 %v5071, %v3872
  %v5073 = vadd.f32 %v5072, %v3877
  %v5074 = vadd.f32 %v5073, %v3880
  %v5075 = vadd.f32 %v5074, %v3885
  %v5076 = vadd.f32 %v5075, %v3888
  %v5077 = vadd.f32 %v5076, %v3893
  %v5078 = vadd.f32 %v5077, %v3896
  %v5079 = vadd.f32 %v5078, %v3901
  %v5080 = vadd.f32 %v5079, %v3904
  %v5081 = vadd.f32 %v5080, %v3909
  %v5082 = vadd.f32 %v5081, %v3912
  %v5083 = vadd.f32 %v5082, %v3917
  %v5084 = vadd.f32 %v5083, %v3920
  %v5085 = vadd.f32 %v5084, %v3925
  %v5086 = vadd.f32 %v5085, %v3928
  %v5087 = vadd.f32 %v5086, %v3933
  %v5088 = vadd.f32 %v5087, %v3936
  %v5089 = vadd.f32 %v5088, %v3941
  %v5090 = vadd.f32 %v5089, %v3944
  %v5091 = vadd.f32 %v5090, %v3949
  %v5092 = vadd.f32 %v5091, %v3952
  %v5093 = vadd.f32 %v5092, %v3957
  %v5094 = vadd.f32 %v5093, %v3960
  %v5095 = vrot.slane %v5094, 4
  %v5096 = vadd.f32 %v5094, %v5095
  %v5097 = vrot.slane %v5096, 2
  %v5098 = vadd.f32 %v5096, %v5097
  %v5099 = vrot.slane %v5098, 1
  %v5100 = vadd.f32 %v5098, %v5099
  %v5101 = vadd.f32 %v3965, %v3968
  %v5102 = vadd.f32 %v5101, %v3973
  %v5103 = vadd.f32 %v5102, %v3976
  %v5104 = vadd.f32 %v5103, %v3981
  %v5105 = vadd.f32 %v5104, %v3984
  %v5106 = vadd.f32 %v5105, %v3989
  %v5107 = vadd.f32 %v5106, %v3992
  %v5108 = vadd.f32 %v5107, %v3997
  %v5109 = vadd.f32 %v5108, %v4000
  %v5110 = vadd.f32 %v5109, %v4005
  %v5111 = vadd.f32 %v5110, %v4008
  %v5112 = vadd.f32 %v5111, %v4013
  %v5113 = vadd.f32 %v5112, %v4016
  %v5114 = vadd.f32 %v5113, %v4021
  %v5115 = vadd.f32 %v5114, %v4024
  %v5116 = vadd.f32 %v5115, %v4029
  %v5117 = vadd.f32 %v5116, %v4032
  %v5118 = vadd.f32 %v5117, %v4037
  %v5119 = vadd.f32 %v5118, %v4040
  %v5120 = vadd.f32 %v5119, %v4045
  %v5121 = vadd.f32 %v5120, %v4048
  %v5122 = vadd.f32 %v5121, %v4053
  %v5123 = vadd.f32 %v5122, %v4056
  %v5124 = vadd.f32 %v5123, %v4061
  %v5125 = vadd.f32 %v5124, %v4064
  %v5126 = vadd.f32 %v5125, %v4069
  %v5127 = vadd.f32 %v5126, %v4072
  %v5128 = vadd.f32 %v5127, %v4077
  %v5129 = vadd.f32 %v5128, %v4080
  %v5130 = vadd.f32 %v5129, %v4085
  %v5131 = vadd.f32 %v5130, %v4088
  %v5132 = vrot.slane %v5131, 4
  %v5133 = vadd.f32 %v5131, %v5132
  %v5134 = vrot.slane %v5133, 2
  %v5135 = vadd.f32 %v5133, %v5134
  %v5136 = vrot.slane %v5135, 1
  %v5137 = vadd.f32 %v5135, %v5136
  %v5138 = vadd.f32 %v4093, %v4096
  %v5139 = vadd.f32 %v5138, %v4101
  %v5140 = vadd.f32 %v5139, %v4104
  %v5141 = vadd.f32 %v5140, %v4109
  %v5142 = vadd.f32 %v5141, %v4112
  %v5143 = vadd.f32 %v5142, %v4117
  %v5144 = vadd.f32 %v5143, %v4120
  %v5145 = vadd.f32 %v5144, %v4125
  %v5146 = vadd.f32 %v5145, %v4128
  %v5147 = vadd.f32 %v5146, %v4133
  %v5148 = vadd.f32 %v5147, %v4136
  %v5149 = vadd.f32 %v5148, %v4141
  %v5150 = vadd.f32 %v5149, %v4144
  %v5151 = vadd.f32 %v5150, %v4149
  %v5152 = vadd.f32 %v5151, %v4152
  %v5153 = vadd.f32 %v5152, %v4157
  %v5154 = vadd.f32 %v5153, %v4160
  %v5155 = vadd.f32 %v5154, %v4165
  %v5156 = vadd.f32 %v5155, %v4168
  %v5157 = vadd.f32 %v5156, %v4173
  %v5158 = vadd.f32 %v5157, %v4176
  %v5159 = vadd.f32 %v5158, %v4181
  %v5160 = vadd.f32 %v5159, %v4184
  %v5161 = vadd.f32 %v5160, %v4189
  %v5162 = vadd.f32 %v5161, %v4192
  %v5163 = vadd.f32 %v5162, %v4197
  %v5164 = vadd.f32 %v5163, %v4200
  %v5165 = vadd.f32 %v5164, %v4205
  %v5166 = vadd.f32 %v5165, %v4208
  %v5167 = vadd.f32 %v5166, %v4213
  %v5168 = vadd.f32 %v5167, %v4216
  %v5169 = vrot.slane %v5168, 4
  %v5170 = vadd.f32 %v5168, %v5169
  %v5171 = vrot.slane %v5170, 2
  %v5172 = vadd.f32 %v5170, %v5171
  %v5173 = vrot.slane %v5172, 1
  %v5174 = vadd.f32 %v5172, %v5173
  %v5175 = vadd.f32 %v4221, %v4224
  %v5176 = vadd.f32 %v5175, %v4229
  %v5177 = vadd.f32 %v5176, %v4232
  %v5178 = vadd.f32 %v5177, %v4237
  %v5179 = vadd.f32 %v5178, %v4240
  %v5180 = vadd.f32 %v5179, %v4245
  %v5181 = vadd.f32 %v5180, %v4248
  %v5182 = vadd.f32 %v5181, %v4253
  %v5183 = vadd.f32 %v5182, %v4256
  %v5184 = vadd.f32 %v5183, %v4261
  %v5185 = vadd.f32 %v5184, %v4264
  %v5186 = vadd.f32 %v5185, %v4269
  %v5187 = vadd.f32 %v5186, %v4272
  %v5188 = vadd.f32 %v5187, %v4277
  %v5189 = vadd.f32 %v5188, %v4280
  %v5190 = vadd.f32 %v5189, %v4285
  %v5191 = vadd.f32 %v5190, %v4288
  %v5192 = vadd.f32 %v5191, %v4293
  %v5193 = vadd.f32 %v5192, %v4296
  %v5194 = vadd.f32 %v5193, %v4301
  %v5195 = vadd.f32 %v5194, %v4304
  %v5196 = vadd.f32 %v5195, %v4309
  %v5197 = vadd.f32 %v5196, %v4312
  %v5198 = vadd.f32 %v5197, %v4317
  %v5199 = vadd.f32 %v5198, %v4320
  %v5200 = vadd.f32 %v5199, %v4325
  %v5201 = vadd.f32 %v5200, %v4328
  %v5202 = vadd.f32 %v5201, %v4333
  %v5203 = vadd.f32 %v5202, %v4336
  %v5204 = vadd.f32 %v5203, %v4341
  %v5205 = vadd.f32 %v5204, %v4344
  %v5206 = vrot.slane %v5205, 4
  %v5207 = vadd.f32 %v5205, %v5206
  %v5208 = vrot.slane %v5207, 2
  %v5209 = vadd.f32 %v5207, %v5208
  %v5210 = vrot.slane %v5209, 1
  %v5211 = vadd.f32 %v5209, %v5210
  %v5212 = vadd.f32 %v4349, %v4352
  %v5213 = vadd.f32 %v5212, %v4357
  %v5214 = vadd.f32 %v5213, %v4360
  %v5215 = vadd.f32 %v5214, %v4365
  %v5216 = vadd.f32 %v5215, %v4368
  %v5217 = vadd.f32 %v5216, %v4373
  %v5218 = vadd.f32 %v5217, %v4376
  %v5219 = vadd.f32 %v5218, %v4381
  %v5220 = vadd.f32 %v5219, %v4384
  %v5221 = vadd.f32 %v5220, %v4389
  %v5222 = vadd.f32 %v5221, %v4392
  %v5223 = vadd.f32 %v5222, %v4397
  %v5224 = vadd.f32 %v5223, %v4400
  %v5225 = vadd.f32 %v5224, %v4405
  %v5226 = vadd.f32 %v5225, %v4408
  %v5227 = vadd.f32 %v5226, %v4413
  %v5228 = vadd.f32 %v5227, %v4416
  %v5229 = vadd.f32 %v5228, %v4421
  %v5230 = vadd.f32 %v5229, %v4424
  %v5231 = vadd.f32 %v5230, %v4429
  %v5232 = vadd.f32 %v5231, %v4432
  %v5233 = vadd.f32 %v5232, %v4437
  %v5234 = vadd.f32 %v5233, %v4440
  %v5235 = vadd.f32 %v5234, %v4445
  %v5236 = vadd.f32 %v5235, %v4448
  %v5237 = vadd.f32 %v5236, %v4453
  %v5238 = vadd.f32 %v5237, %v4456
  %v5239 = vadd.f32 %v5238, %v4461
  %v5240 = vadd.f32 %v5239, %v4464
  %v5241 = vadd.f32 %v5240, %v4469
  %v5242 = vadd.f32 %v5241, %v4472
  %v5243 = vrot.slane %v5242, 4
  %v5244 = vadd.f32 %v5242, %v5243
  %v5245 = vrot.slane %v5244, 2
  %v5246 = vadd.f32 %v5244, %v5245
  %v5247 = vrot.slane %v5246, 1
  %v5248 = vadd.f32 %v5246, %v5247
  %v5249 = vadd.f32 %v4477, %v4480
  %v5250 = vadd.f32 %v5249, %v4485
  %v5251 = vadd.f32 %v5250, %v4488
  %v5252 = vadd.f32 %v5251, %v4493
  %v5253 = vadd.f32 %v5252, %v4496
  %v5254 = vadd.f32 %v5253, %v4501
  %v5255 = vadd.f32 %v5254, %v4504
  %v5256 = vadd.f32 %v5255, %v4509
  %v5257 = vadd.f32 %v5256, %v4512
  %v5258 = vadd.f32 %v5257, %v4517
  %v5259 = vadd.f32 %v5258, %v4520
  %v5260 = vadd.f32 %v5259, %v4525
  %v5261 = vadd.f32 %v5260, %v4528
  %v5262 = vadd.f32 %v5261, %v4533
  %v5263 = vadd.f32 %v5262, %v4536
  %v5264 = vadd.f32 %v5263, %v4541
  %v5265 = vadd.f32 %v5264, %v4544
  %v5266 = vadd.f32 %v5265, %v4549
  %v5267 = vadd.f32 %v5266, %v4552
  %v5268 = vadd.f32 %v5267, %v4557
  %v5269 = vadd.f32 %v5268, %v4560
  %v5270 = vadd.f32 %v5269, %v4565
  %v5271 = vadd.f32 %v5270, %v4568
  %v5272 = vadd.f32 %v5271, %v4573
  %v5273 = vadd.f32 %v5272, %v4576
  %v5274 = vadd.f32 %v5273, %v4581
  %v5275 = vadd.f32 %v5274, %v4584
  %v5276 = vadd.f32 %v5275, %v4589
  %v5277 = vadd.f32 %v5276, %v4592
  %v5278 = vadd.f32 %v5277, %v4597
  %v5279 = vadd.f32 %v5278, %v4600
  %v5280 = vrot.slane %v5279, 4
  %v5281 = vadd.f32 %v5279, %v5280
  %v5282 = vrot.slane %v5281, 2
  %v5283 = vadd.f32 %v5281, %v5282
  %v5284 = vrot.slane %v5283, 1
  %v5285 = vadd.f32 %v5283, %v5284
  %v5286 = vadd.f32 %v4605, %v4608
  %v5287 = vadd.f32 %v5286, %v4613
  %v5288 = vadd.f32 %v5287, %v4616
  %v5289 = vadd.f32 %v5288, %v4621
  %v5290 = vadd.f32 %v5289, %v4624
  %v5291 = vadd.f32 %v5290, %v4629
  %v5292 = vadd.f32 %v5291, %v4632
  %v5293 = vadd.f32 %v5292, %v4637
  %v5294 = vadd.f32 %v5293, %v4640
  %v5295 = vadd.f32 %v5294, %v4645
  %v5296 = vadd.f32 %v5295, %v4648
  %v5297 = vadd.f32 %v5296, %v4653
  %v5298 = vadd.f32 %v5297, %v4656
  %v5299 = vadd.f32 %v5298, %v4661
  %v5300 = vadd.f32 %v5299, %v4664
  %v5301 = vadd.f32 %v5300, %v4669
  %v5302 = vadd.f32 %v5301, %v4672
  %v5303 = vadd.f32 %v5302, %v4677
  %v5304 = vadd.f32 %v5303, %v4680
  %v5305 = vadd.f32 %v5304, %v4685
  %v5306 = vadd.f32 %v5305, %v4688
  %v5307 = vadd.f32 %v5306, %v4693
  %v5308 = vadd.f32 %v5307, %v4696
  %v5309 = vadd.f32 %v5308, %v4701
  %v5310 = vadd.f32 %v5309, %v4704
  %v5311 = vadd.f32 %v5310, %v4709
  %v5312 = vadd.f32 %v5311, %v4712
  %v5313 = vadd.f32 %v5312, %v4717
  %v5314 = vadd.f32 %v5313, %v4720
  %v5315 = vadd.f32 %v5314, %v4725
  %v5316 = vadd.f32 %v5315, %v4728
  %v5317 = vrot.slane %v5316, 4
  %v5318 = vadd.f32 %v5316, %v5317
  %v5319 = vrot.slane %v5318, 2
  %v5320 = vadd.f32 %v5318, %v5319
  %v5321 = vrot.slane %v5320, 1
  %v5322 = vadd.f32 %v5320, %v5321
  %v5323 = vmul.f32 %v2685, %v2685
  %v5324 = vmul.f32 %v2688, %v2688
  %v5325 = vmul.f32 %v2693, %v2693
  %v5326 = vmul.f32 %v2696, %v2696
  %v5327 = vmul.f32 %v2701, %v2701
  %v5328 = vmul.f32 %v2704, %v2704
  %v5329 = vmul.f32 %v2709, %v2709
  %v5330 = vmul.f32 %v2712, %v2712
  %v5331 = vmul.f32 %v2717, %v2717
  %v5332 = vmul.f32 %v2720, %v2720
  %v5333 = vmul.f32 %v2725, %v2725
  %v5334 = vmul.f32 %v2728, %v2728
  %v5335 = vmul.f32 %v2733, %v2733
  %v5336 = vmul.f32 %v2736, %v2736
  %v5337 = vmul.f32 %v2741, %v2741
  %v5338 = vmul.f32 %v2744, %v2744
  %v5339 = vmul.f32 %v2749, %v2749
  %v5340 = vmul.f32 %v2752, %v2752
  %v5341 = vmul.f32 %v2757, %v2757
  %v5342 = vmul.f32 %v2760, %v2760
  %v5343 = vmul.f32 %v2765, %v2765
  %v5344 = vmul.f32 %v2768, %v2768
  %v5345 = vmul.f32 %v2773, %v2773
  %v5346 = vmul.f32 %v2776, %v2776
  %v5347 = vmul.f32 %v2781, %v2781
  %v5348 = vmul.f32 %v2784, %v2784
  %v5349 = vmul.f32 %v2789, %v2789
  %v5350 = vmul.f32 %v2792, %v2792
  %v5351 = vmul.f32 %v2797, %v2797
  %v5352 = vmul.f32 %v2800, %v2800
  %v5353 = vmul.f32 %v2805, %v2805
  %v5354 = vmul.f32 %v2808, %v2808
  %v5355 = vmul.f32 %v2813, %v2813
  %v5356 = vmul.f32 %v2816, %v2816
  %v5357 = vmul.f32 %v2821, %v2821
  %v5358 = vmul.f32 %v2824, %v2824
  %v5359 = vmul.f32 %v2829, %v2829
  %v5360 = vmul.f32 %v2832, %v2832
  %v5361 = vmul.f32 %v2837, %v2837
  %v5362 = vmul.f32 %v2840, %v2840
  %v5363 = vmul.f32 %v2845, %v2845
  %v5364 = vmul.f32 %v2848, %v2848
  %v5365 = vmul.f32 %v2853, %v2853
  %v5366 = vmul.f32 %v2856, %v2856
  %v5367 = vmul.f32 %v2861, %v2861
  %v5368 = vmul.f32 %v2864, %v2864
  %v5369 = vmul.f32 %v2869, %v2869
  %v5370 = vmul.f32 %v2872, %v2872
  %v5371 = vmul.f32 %v2877, %v2877
  %v5372 = vmul.f32 %v2880, %v2880
  %v5373 = vmul.f32 %v2885, %v2885
  %v5374 = vmul.f32 %v2888, %v2888
  %v5375 = vmul.f32 %v2893, %v2893
  %v5376 = vmul.f32 %v2896, %v2896
  %v5377 = vmul.f32 %v2901, %v2901
  %v5378 = vmul.f32 %v2904, %v2904
  %v5379 = vmul.f32 %v2909, %v2909
  %v5380 = vmul.f32 %v2912, %v2912
  %v5381 = vmul.f32 %v2917, %v2917
  %v5382 = vmul.f32 %v2920, %v2920
  %v5383 = vmul.f32 %v2925, %v2925
  %v5384 = vmul.f32 %v2928, %v2928
  %v5385 = vmul.f32 %v2933, %v2933
  %v5386 = vmul.f32 %v2936, %v2936
  %v5387 = vmul.f32 %v2941, %v2941
  %v5388 = vmul.f32 %v2944, %v2944
  %v5389 = vmul.f32 %v2949, %v2949
  %v5390 = vmul.f32 %v2952, %v2952
  %v5391 = vmul.f32 %v2957, %v2957
  %v5392 = vmul.f32 %v2960, %v2960
  %v5393 = vmul.f32 %v2965, %v2965
  %v5394 = vmul.f32 %v2968, %v2968
  %v5395 = vmul.f32 %v2973, %v2973
  %v5396 = vmul.f32 %v2976, %v2976
  %v5397 = vmul.f32 %v2981, %v2981
  %v5398 = vmul.f32 %v2984, %v2984
  %v5399 = vmul.f32 %v2989, %v2989
  %v5400 = vmul.f32 %v2992, %v2992
  %v5401 = vmul.f32 %v2997, %v2997
  %v5402 = vmul.f32 %v3000, %v3000
  %v5403 = vmul.f32 %v3005, %v3005
  %v5404 = vmul.f32 %v3008, %v3008
  %v5405 = vmul.f32 %v3013, %v3013
  %v5406 = vmul.f32 %v3016, %v3016
  %v5407 = vmul.f32 %v3021, %v3021
  %v5408 = vmul.f32 %v3024, %v3024
  %v5409 = vmul.f32 %v3029, %v3029
  %v5410 = vmul.f32 %v3032, %v3032
  %v5411 = vmul.f32 %v3037, %v3037
  %v5412 = vmul.f32 %v3040, %v3040
  %v5413 = vmul.f32 %v3045, %v3045
  %v5414 = vmul.f32 %v3048, %v3048
  %v5415 = vmul.f32 %v3053, %v3053
  %v5416 = vmul.f32 %v3056, %v3056
  %v5417 = vmul.f32 %v3061, %v3061
  %v5418 = vmul.f32 %v3064, %v3064
  %v5419 = vmul.f32 %v3069, %v3069
  %v5420 = vmul.f32 %v3072, %v3072
  %v5421 = vmul.f32 %v3077, %v3077
  %v5422 = vmul.f32 %v3080, %v3080
  %v5423 = vmul.f32 %v3085, %v3085
  %v5424 = vmul.f32 %v3088, %v3088
  %v5425 = vmul.f32 %v3093, %v3093
  %v5426 = vmul.f32 %v3096, %v3096
  %v5427 = vmul.f32 %v3101, %v3101
  %v5428 = vmul.f32 %v3104, %v3104
  %v5429 = vmul.f32 %v3109, %v3109
  %v5430 = vmul.f32 %v3112, %v3112
  %v5431 = vmul.f32 %v3117, %v3117
  %v5432 = vmul.f32 %v3120, %v3120
  %v5433 = vmul.f32 %v3125, %v3125
  %v5434 = vmul.f32 %v3128, %v3128
  %v5435 = vmul.f32 %v3133, %v3133
  %v5436 = vmul.f32 %v3136, %v3136
  %v5437 = vmul.f32 %v3141, %v3141
  %v5438 = vmul.f32 %v3144, %v3144
  %v5439 = vmul.f32 %v3149, %v3149
  %v5440 = vmul.f32 %v3152, %v3152
  %v5441 = vmul.f32 %v3157, %v3157
  %v5442 = vmul.f32 %v3160, %v3160
  %v5443 = vmul.f32 %v3165, %v3165
  %v5444 = vmul.f32 %v3168, %v3168
  %v5445 = vmul.f32 %v3173, %v3173
  %v5446 = vmul.f32 %v3176, %v3176
  %v5447 = vmul.f32 %v3181, %v3181
  %v5448 = vmul.f32 %v3184, %v3184
  %v5449 = vmul.f32 %v3189, %v3189
  %v5450 = vmul.f32 %v3192, %v3192
  %v5451 = vmul.f32 %v3197, %v3197
  %v5452 = vmul.f32 %v3200, %v3200
  %v5453 = vmul.f32 %v3205, %v3205
  %v5454 = vmul.f32 %v3208, %v3208
  %v5455 = vmul.f32 %v3213, %v3213
  %v5456 = vmul.f32 %v3216, %v3216
  %v5457 = vmul.f32 %v3221, %v3221
  %v5458 = vmul.f32 %v3224, %v3224
  %v5459 = vmul.f32 %v3229, %v3229
  %v5460 = vmul.f32 %v3232, %v3232
  %v5461 = vmul.f32 %v3237, %v3237
  %v5462 = vmul.f32 %v3240, %v3240
  %v5463 = vmul.f32 %v3245, %v3245
  %v5464 = vmul.f32 %v3248, %v3248
  %v5465 = vmul.f32 %v3253, %v3253
  %v5466 = vmul.f32 %v3256, %v3256
  %v5467 = vmul.f32 %v3261, %v3261
  %v5468 = vmul.f32 %v3264, %v3264
  %v5469 = vmul.f32 %v3269, %v3269
  %v5470 = vmul.f32 %v3272, %v3272
  %v5471 = vmul.f32 %v3277, %v3277
  %v5472 = vmul.f32 %v3280, %v3280
  %v5473 = vmul.f32 %v3285, %v3285
  %v5474 = vmul.f32 %v3288, %v3288
  %v5475 = vmul.f32 %v3293, %v3293
  %v5476 = vmul.f32 %v3296, %v3296
  %v5477 = vmul.f32 %v3301, %v3301
  %v5478 = vmul.f32 %v3304, %v3304
  %v5479 = vmul.f32 %v3309, %v3309
  %v5480 = vmul.f32 %v3312, %v3312
  %v5481 = vmul.f32 %v3317, %v3317
  %v5482 = vmul.f32 %v3320, %v3320
  %v5483 = vmul.f32 %v3325, %v3325
  %v5484 = vmul.f32 %v3328, %v3328
  %v5485 = vmul.f32 %v3333, %v3333
  %v5486 = vmul.f32 %v3336, %v3336
  %v5487 = vmul.f32 %v3341, %v3341
  %v5488 = vmul.f32 %v3344, %v3344
  %v5489 = vmul.f32 %v3349, %v3349
  %v5490 = vmul.f32 %v3352, %v3352
  %v5491 = vmul.f32 %v3357, %v3357
  %v5492 = vmul.f32 %v3360, %v3360
  %v5493 = vmul.f32 %v3365, %v3365
  %v5494 = vmul.f32 %v3368, %v3368
  %v5495 = vmul.f32 %v3373, %v3373
  %v5496 = vmul.f32 %v3376, %v3376
  %v5497 = vmul.f32 %v3381, %v3381
  %v5498 = vmul.f32 %v3384, %v3384
  %v5499 = vmul.f32 %v3389, %v3389
  %v5500 = vmul.f32 %v3392, %v3392
  %v5501 = vmul.f32 %v3397, %v3397
  %v5502 = vmul.f32 %v3400, %v3400
  %v5503 = vmul.f32 %v3405, %v3405
  %v5504 = vmul.f32 %v3408, %v3408
  %v5505 = vmul.f32 %v3413, %v3413
  %v5506 = vmul.f32 %v3416, %v3416
  %v5507 = vmul.f32 %v3421, %v3421
  %v5508 = vmul.f32 %v3424, %v3424
  %v5509 = vmul.f32 %v3429, %v3429
  %v5510 = vmul.f32 %v3432, %v3432
  %v5511 = vmul.f32 %v3437, %v3437
  %v5512 = vmul.f32 %v3440, %v3440
  %v5513 = vmul.f32 %v3445, %v3445
  %v5514 = vmul.f32 %v3448, %v3448
  %v5515 = vmul.f32 %v3453, %v3453
  %v5516 = vmul.f32 %v3456, %v3456
  %v5517 = vmul.f32 %v3461, %v3461
  %v5518 = vmul.f32 %v3464, %v3464
  %v5519 = vmul.f32 %v3469, %v3469
  %v5520 = vmul.f32 %v3472, %v3472
  %v5521 = vmul.f32 %v3477, %v3477
  %v5522 = vmul.f32 %v3480, %v3480
  %v5523 = vmul.f32 %v3485, %v3485
  %v5524 = vmul.f32 %v3488, %v3488
  %v5525 = vmul.f32 %v3493, %v3493
  %v5526 = vmul.f32 %v3496, %v3496
  %v5527 = vmul.f32 %v3501, %v3501
  %v5528 = vmul.f32 %v3504, %v3504
  %v5529 = vmul.f32 %v3509, %v3509
  %v5530 = vmul.f32 %v3512, %v3512
  %v5531 = vmul.f32 %v3517, %v3517
  %v5532 = vmul.f32 %v3520, %v3520
  %v5533 = vmul.f32 %v3525, %v3525
  %v5534 = vmul.f32 %v3528, %v3528
  %v5535 = vmul.f32 %v3533, %v3533
  %v5536 = vmul.f32 %v3536, %v3536
  %v5537 = vmul.f32 %v3541, %v3541
  %v5538 = vmul.f32 %v3544, %v3544
  %v5539 = vmul.f32 %v3549, %v3549
  %v5540 = vmul.f32 %v3552, %v3552
  %v5541 = vmul.f32 %v3557, %v3557
  %v5542 = vmul.f32 %v3560, %v3560
  %v5543 = vmul.f32 %v3565, %v3565
  %v5544 = vmul.f32 %v3568, %v3568
  %v5545 = vmul.f32 %v3573, %v3573
  %v5546 = vmul.f32 %v3576, %v3576
  %v5547 = vmul.f32 %v3581, %v3581
  %v5548 = vmul.f32 %v3584, %v3584
  %v5549 = vmul.f32 %v3589, %v3589
  %v5550 = vmul.f32 %v3592, %v3592
  %v5551 = vmul.f32 %v3597, %v3597
  %v5552 = vmul.f32 %v3600, %v3600
  %v5553 = vmul.f32 %v3605, %v3605
  %v5554 = vmul.f32 %v3608, %v3608
  %v5555 = vmul.f32 %v3613, %v3613
  %v5556 = vmul.f32 %v3616, %v3616
  %v5557 = vmul.f32 %v3621, %v3621
  %v5558 = vmul.f32 %v3624, %v3624
  %v5559 = vmul.f32 %v3629, %v3629
  %v5560 = vmul.f32 %v3632, %v3632
  %v5561 = vmul.f32 %v3637, %v3637
  %v5562 = vmul.f32 %v3640, %v3640
  %v5563 = vmul.f32 %v3645, %v3645
  %v5564 = vmul.f32 %v3648, %v3648
  %v5565 = vmul.f32 %v3653, %v3653
  %v5566 = vmul.f32 %v3656, %v3656
  %v5567 = vmul.f32 %v3661, %v3661
  %v5568 = vmul.f32 %v3664, %v3664
  %v5569 = vmul.f32 %v3669, %v3669
  %v5570 = vmul.f32 %v3672, %v3672
  %v5571 = vmul.f32 %v3677, %v3677
  %v5572 = vmul.f32 %v3680, %v3680
  %v5573 = vmul.f32 %v3685, %v3685
  %v5574 = vmul.f32 %v3688, %v3688
  %v5575 = vmul.f32 %v3693, %v3693
  %v5576 = vmul.f32 %v3696, %v3696
  %v5577 = vmul.f32 %v3701, %v3701
  %v5578 = vmul.f32 %v3704, %v3704
  %v5579 = vmul.f32 %v3709, %v3709
  %v5580 = vmul.f32 %v3712, %v3712
  %v5581 = vmul.f32 %v3717, %v3717
  %v5582 = vmul.f32 %v3720, %v3720
  %v5583 = vmul.f32 %v3725, %v3725
  %v5584 = vmul.f32 %v3728, %v3728
  %v5585 = vmul.f32 %v3733, %v3733
  %v5586 = vmul.f32 %v3736, %v3736
  %v5587 = vmul.f32 %v3741, %v3741
  %v5588 = vmul.f32 %v3744, %v3744
  %v5589 = vmul.f32 %v3749, %v3749
  %v5590 = vmul.f32 %v3752, %v3752
  %v5591 = vmul.f32 %v3757, %v3757
  %v5592 = vmul.f32 %v3760, %v3760
  %v5593 = vmul.f32 %v3765, %v3765
  %v5594 = vmul.f32 %v3768, %v3768
  %v5595 = vmul.f32 %v3773, %v3773
  %v5596 = vmul.f32 %v3776, %v3776
  %v5597 = vmul.f32 %v3781, %v3781
  %v5598 = vmul.f32 %v3784, %v3784
  %v5599 = vmul.f32 %v3789, %v3789
  %v5600 = vmul.f32 %v3792, %v3792
  %v5601 = vmul.f32 %v3797, %v3797
  %v5602 = vmul.f32 %v3800, %v3800
  %v5603 = vmul.f32 %v3805, %v3805
  %v5604 = vmul.f32 %v3808, %v3808
  %v5605 = vmul.f32 %v3813, %v3813
  %v5606 = vmul.f32 %v3816, %v3816
  %v5607 = vmul.f32 %v3821, %v3821
  %v5608 = vmul.f32 %v3824, %v3824
  %v5609 = vmul.f32 %v3829, %v3829
  %v5610 = vmul.f32 %v3832, %v3832
  %v5611 = vmul.f32 %v3837, %v3837
  %v5612 = vmul.f32 %v3840, %v3840
  %v5613 = vmul.f32 %v3845, %v3845
  %v5614 = vmul.f32 %v3848, %v3848
  %v5615 = vmul.f32 %v3853, %v3853
  %v5616 = vmul.f32 %v3856, %v3856
  %v5617 = vmul.f32 %v3861, %v3861
  %v5618 = vmul.f32 %v3864, %v3864
  %v5619 = vmul.f32 %v3869, %v3869
  %v5620 = vmul.f32 %v3872, %v3872
  %v5621 = vmul.f32 %v3877, %v3877
  %v5622 = vmul.f32 %v3880, %v3880
  %v5623 = vmul.f32 %v3885, %v3885
  %v5624 = vmul.f32 %v3888, %v3888
  %v5625 = vmul.f32 %v3893, %v3893
  %v5626 = vmul.f32 %v3896, %v3896
  %v5627 = vmul.f32 %v3901, %v3901
  %v5628 = vmul.f32 %v3904, %v3904
  %v5629 = vmul.f32 %v3909, %v3909
  %v5630 = vmul.f32 %v3912, %v3912
  %v5631 = vmul.f32 %v3917, %v3917
  %v5632 = vmul.f32 %v3920, %v3920
  %v5633 = vmul.f32 %v3925, %v3925
  %v5634 = vmul.f32 %v3928, %v3928
  %v5635 = vmul.f32 %v3933, %v3933
  %v5636 = vmul.f32 %v3936, %v3936
  %v5637 = vmul.f32 %v3941, %v3941
  %v5638 = vmul.f32 %v3944, %v3944
  %v5639 = vmul.f32 %v3949, %v3949
  %v5640 = vmul.f32 %v3952, %v3952
  %v5641 = vmul.f32 %v3957, %v3957
  %v5642 = vmul.f32 %v3960, %v3960
  %v5643 = vmul.f32 %v3965, %v3965
  %v5644 = vmul.f32 %v3968, %v3968
  %v5645 = vmul.f32 %v3973, %v3973
  %v5646 = vmul.f32 %v3976, %v3976
  %v5647 = vmul.f32 %v3981, %v3981
  %v5648 = vmul.f32 %v3984, %v3984
  %v5649 = vmul.f32 %v3989, %v3989
  %v5650 = vmul.f32 %v3992, %v3992
  %v5651 = vmul.f32 %v3997, %v3997
  %v5652 = vmul.f32 %v4000, %v4000
  %v5653 = vmul.f32 %v4005, %v4005
  %v5654 = vmul.f32 %v4008, %v4008
  %v5655 = vmul.f32 %v4013, %v4013
  %v5656 = vmul.f32 %v4016, %v4016
  %v5657 = vmul.f32 %v4021, %v4021
  %v5658 = vmul.f32 %v4024, %v4024
  %v5659 = vmul.f32 %v4029, %v4029
  %v5660 = vmul.f32 %v4032, %v4032
  %v5661 = vmul.f32 %v4037, %v4037
  %v5662 = vmul.f32 %v4040, %v4040
  %v5663 = vmul.f32 %v4045, %v4045
  %v5664 = vmul.f32 %v4048, %v4048
  %v5665 = vmul.f32 %v4053, %v4053
  %v5666 = vmul.f32 %v4056, %v4056
  %v5667 = vmul.f32 %v4061, %v4061
  %v5668 = vmul.f32 %v4064, %v4064
  %v5669 = vmul.f32 %v4069, %v4069
  %v5670 = vmul.f32 %v4072, %v4072
  %v5671 = vmul.f32 %v4077, %v4077
  %v5672 = vmul.f32 %v4080, %v4080
  %v5673 = vmul.f32 %v4085, %v4085
  %v5674 = vmul.f32 %v4088, %v4088
  %v5675 = vmul.f32 %v4093, %v4093
  %v5676 = vmul.f32 %v4096, %v4096
  %v5677 = vmul.f32 %v4101, %v4101
  %v5678 = vmul.f32 %v4104, %v4104
  %v5679 = vmul.f32 %v4109, %v4109
  %v5680 = vmul.f32 %v4112, %v4112
  %v5681 = vmul.f32 %v4117, %v4117
  %v5682 = vmul.f32 %v4120, %v4120
  %v5683 = vmul.f32 %v4125, %v4125
  %v5684 = vmul.f32 %v4128, %v4128
  %v5685 = vmul.f32 %v4133, %v4133
  %v5686 = vmul.f32 %v4136, %v4136
  %v5687 = vmul.f32 %v4141, %v4141
  %v5688 = vmul.f32 %v4144, %v4144
  %v5689 = vmul.f32 %v4149, %v4149
  %v5690 = vmul.f32 %v4152, %v4152
  %v5691 = vmul.f32 %v4157, %v4157
  %v5692 = vmul.f32 %v4160, %v4160
  %v5693 = vmul.f32 %v4165, %v4165
  %v5694 = vmul.f32 %v4168, %v4168
  %v5695 = vmul.f32 %v4173, %v4173
  %v5696 = vmul.f32 %v4176, %v4176
  %v5697 = vmul.f32 %v4181, %v4181
  %v5698 = vmul.f32 %v4184, %v4184
  %v5699 = vmul.f32 %v4189, %v4189
  %v5700 = vmul.f32 %v4192, %v4192
  %v5701 = vmul.f32 %v4197, %v4197
  %v5702 = vmul.f32 %v4200, %v4200
  %v5703 = vmul.f32 %v4205, %v4205
  %v5704 = vmul.f32 %v4208, %v4208
  %v5705 = vmul.f32 %v4213, %v4213
  %v5706 = vmul.f32 %v4216, %v4216
  %v5707 = vmul.f32 %v4221, %v4221
  %v5708 = vmul.f32 %v4224, %v4224
  %v5709 = vmul.f32 %v4229, %v4229
  %v5710 = vmul.f32 %v4232, %v4232
  %v5711 = vmul.f32 %v4237, %v4237
  %v5712 = vmul.f32 %v4240, %v4240
  %v5713 = vmul.f32 %v4245, %v4245
  %v5714 = vmul.f32 %v4248, %v4248
  %v5715 = vmul.f32 %v4253, %v4253
  %v5716 = vmul.f32 %v4256, %v4256
  %v5717 = vmul.f32 %v4261, %v4261
  %v5718 = vmul.f32 %v4264, %v4264
  %v5719 = vmul.f32 %v4269, %v4269
  %v5720 = vmul.f32 %v4272, %v4272
  %v5721 = vmul.f32 %v4277, %v4277
  %v5722 = vmul.f32 %v4280, %v4280
  %v5723 = vmul.f32 %v4285, %v4285
  %v5724 = vmul.f32 %v4288, %v4288
  %v5725 = vmul.f32 %v4293, %v4293
  %v5726 = vmul.f32 %v4296, %v4296
  %v5727 = vmul.f32 %v4301, %v4301
  %v5728 = vmul.f32 %v4304, %v4304
  %v5729 = vmul.f32 %v4309, %v4309
  %v5730 = vmul.f32 %v4312, %v4312
  %v5731 = vmul.f32 %v4317, %v4317
  %v5732 = vmul.f32 %v4320, %v4320
  %v5733 = vmul.f32 %v4325, %v4325
  %v5734 = vmul.f32 %v4328, %v4328
  %v5735 = vmul.f32 %v4333, %v4333
  %v5736 = vmul.f32 %v4336, %v4336
  %v5737 = vmul.f32 %v4341, %v4341
  %v5738 = vmul.f32 %v4344, %v4344
  %v5739 = vmul.f32 %v4349, %v4349
  %v5740 = vmul.f32 %v4352, %v4352
  %v5741 = vmul.f32 %v4357, %v4357
  %v5742 = vmul.f32 %v4360, %v4360
  %v5743 = vmul.f32 %v4365, %v4365
  %v5744 = vmul.f32 %v4368, %v4368
  %v5745 = vmul.f32 %v4373, %v4373
  %v5746 = vmul.f32 %v4376, %v4376
  %v5747 = vmul.f32 %v4381, %v4381
  %v5748 = vmul.f32 %v4384, %v4384
  %v5749 = vmul.f32 %v4389, %v4389
  %v5750 = vmul.f32 %v4392, %v4392
  %v5751 = vmul.f32 %v4397, %v4397
  %v5752 = vmul.f32 %v4400, %v4400
  %v5753 = vmul.f32 %v4405, %v4405
  %v5754 = vmul.f32 %v4408, %v4408
  %v5755 = vmul.f32 %v4413, %v4413
  %v5756 = vmul.f32 %v4416, %v4416
  %v5757 = vmul.f32 %v4421, %v4421
  %v5758 = vmul.f32 %v4424, %v4424
  %v5759 = vmul.f32 %v4429, %v4429
  %v5760 = vmul.f32 %v4432, %v4432
  %v5761 = vmul.f32 %v4437, %v4437
  %v5762 = vmul.f32 %v4440, %v4440
  %v5763 = vmul.f32 %v4445, %v4445
  %v5764 = vmul.f32 %v4448, %v4448
  %v5765 = vmul.f32 %v4453, %v4453
  %v5766 = vmul.f32 %v4456, %v4456
  %v5767 = vmul.f32 %v4461, %v4461
  %v5768 = vmul.f32 %v4464, %v4464
  %v5769 = vmul.f32 %v4469, %v4469
  %v5770 = vmul.f32 %v4472, %v4472
  %v5771 = vmul.f32 %v4477, %v4477
  %v5772 = vmul.f32 %v4480, %v4480
  %v5773 = vmul.f32 %v4485, %v4485
  %v5774 = vmul.f32 %v4488, %v4488
  %v5775 = vmul.f32 %v4493, %v4493
  %v5776 = vmul.f32 %v4496, %v4496
  %v5777 = vmul.f32 %v4501, %v4501
  %v5778 = vmul.f32 %v4504, %v4504
  %v5779 = vmul.f32 %v4509, %v4509
  %v5780 = vmul.f32 %v4512, %v4512
  %v5781 = vmul.f32 %v4517, %v4517
  %v5782 = vmul.f32 %v4520, %v4520
  %v5783 = vmul.f32 %v4525, %v4525
  %v5784 = vmul.f32 %v4528, %v4528
  %v5785 = vmul.f32 %v4533, %v4533
  %v5786 = vmul.f32 %v4536, %v4536
  %v5787 = vmul.f32 %v4541, %v4541
  %v5788 = vmul.f32 %v4544, %v4544
  %v5789 = vmul.f32 %v4549, %v4549
  %v5790 = vmul.f32 %v4552, %v4552
  %v5791 = vmul.f32 %v4557, %v4557
  %v5792 = vmul.f32 %v4560, %v4560
  %v5793 = vmul.f32 %v4565, %v4565
  %v5794 = vmul.f32 %v4568, %v4568
  %v5795 = vmul.f32 %v4573, %v4573
  %v5796 = vmul.f32 %v4576, %v4576
  %v5797 = vmul.f32 %v4581, %v4581
  %v5798 = vmul.f32 %v4584, %v4584
  %v5799 = vmul.f32 %v4589, %v4589
  %v5800 = vmul.f32 %v4592, %v4592
  %v5801 = vmul.f32 %v4597, %v4597
  %v5802 = vmul.f32 %v4600, %v4600
  %v5803 = vmul.f32 %v4605, %v4605
  %v5804 = vmul.f32 %v4608, %v4608
  %v5805 = vmul.f32 %v4613, %v4613
  %v5806 = vmul.f32 %v4616, %v4616
  %v5807 = vmul.f32 %v4621, %v4621
  %v5808 = vmul.f32 %v4624, %v4624
  %v5809 = vmul.f32 %v4629, %v4629
  %v5810 = vmul.f32 %v4632, %v4632
  %v5811 = vmul.f32 %v4637, %v4637
  %v5812 = vmul.f32 %v4640, %v4640
  %v5813 = vmul.f32 %v4645, %v4645
  %v5814 = vmul.f32 %v4648, %v4648
  %v5815 = vmul.f32 %v4653, %v4653
  %v5816 = vmul.f32 %v4656, %v4656
  %v5817 = vmul.f32 %v4661, %v4661
  %v5818 = vmul.f32 %v4664, %v4664
  %v5819 = vmul.f32 %v4669, %v4669
  %v5820 = vmul.f32 %v4672, %v4672
  %v5821 = vmul.f32 %v4677, %v4677
  %v5822 = vmul.f32 %v4680, %v4680
  %v5823 = vmul.f32 %v4685, %v4685
  %v5824 = vmul.f32 %v4688, %v4688
  %v5825 = vmul.f32 %v4693, %v4693
  %v5826 = vmul.f32 %v4696, %v4696
  %v5827 = vmul.f32 %v4701, %v4701
  %v5828 = vmul.f32 %v4704, %v4704
  %v5829 = vmul.f32 %v4709, %v4709
  %v5830 = vmul.f32 %v4712, %v4712
  %v5831 = vmul.f32 %v4717, %v4717
  %v5832 = vmul.f32 %v4720, %v4720
  %v5833 = vmul.f32 %v4725, %v4725
  %v5834 = vmul.f32 %v4728, %v4728
  %v5835 = vadd.f32 %v5323, %v5324
  %v5836 = vadd.f32 %v5835, %v5325
  %v5837 = vadd.f32 %v5836, %v5326
  %v5838 = vadd.f32 %v5837, %v5327
  %v5839 = vadd.f32 %v5838, %v5328
  %v5840 = vadd.f32 %v5839, %v5329
  %v5841 = vadd.f32 %v5840, %v5330
  %v5842 = vadd.f32 %v5841, %v5331
  %v5843 = vadd.f32 %v5842, %v5332
  %v5844 = vadd.f32 %v5843, %v5333
  %v5845 = vadd.f32 %v5844, %v5334
  %v5846 = vadd.f32 %v5845, %v5335
  %v5847 = vadd.f32 %v5846, %v5336
  %v5848 = vadd.f32 %v5847, %v5337
  %v5849 = vadd.f32 %v5848, %v5338
  %v5850 = vadd.f32 %v5849, %v5339
  %v5851 = vadd.f32 %v5850, %v5340
  %v5852 = vadd.f32 %v5851, %v5341
  %v5853 = vadd.f32 %v5852, %v5342
  %v5854 = vadd.f32 %v5853, %v5343
  %v5855 = vadd.f32 %v5854, %v5344
  %v5856 = vadd.f32 %v5855, %v5345
  %v5857 = vadd.f32 %v5856, %v5346
  %v5858 = vadd.f32 %v5857, %v5347
  %v5859 = vadd.f32 %v5858, %v5348
  %v5860 = vadd.f32 %v5859, %v5349
  %v5861 = vadd.f32 %v5860, %v5350
  %v5862 = vadd.f32 %v5861, %v5351
  %v5863 = vadd.f32 %v5862, %v5352
  %v5864 = vadd.f32 %v5863, %v5353
  %v5865 = vadd.f32 %v5864, %v5354
  %v5866 = vrot.slane %v5865, 4
  %v5867 = vadd.f32 %v5865, %v5866
  %v5868 = vrot.slane %v5867, 2
  %v5869 = vadd.f32 %v5867, %v5868
  %v5870 = vrot.slane %v5869, 1
  %v5871 = vadd.f32 %v5869, %v5870
  %v5872 = vadd.f32 %v5355, %v5356
  %v5873 = vadd.f32 %v5872, %v5357
  %v5874 = vadd.f32 %v5873, %v5358
  %v5875 = vadd.f32 %v5874, %v5359
  %v5876 = vadd.f32 %v5875, %v5360
  %v5877 = vadd.f32 %v5876, %v5361
  %v5878 = vadd.f32 %v5877, %v5362
  %v5879 = vadd.f32 %v5878, %v5363
  %v5880 = vadd.f32 %v5879, %v5364
  %v5881 = vadd.f32 %v5880, %v5365
  %v5882 = vadd.f32 %v5881, %v5366
  %v5883 = vadd.f32 %v5882, %v5367
  %v5884 = vadd.f32 %v5883, %v5368
  %v5885 = vadd.f32 %v5884, %v5369
  %v5886 = vadd.f32 %v5885, %v5370
  %v5887 = vadd.f32 %v5886, %v5371
  %v5888 = vadd.f32 %v5887, %v5372
  %v5889 = vadd.f32 %v5888, %v5373
  %v5890 = vadd.f32 %v5889, %v5374
  %v5891 = vadd.f32 %v5890, %v5375
  %v5892 = vadd.f32 %v5891, %v5376
  %v5893 = vadd.f32 %v5892, %v5377
  %v5894 = vadd.f32 %v5893, %v5378
  %v5895 = vadd.f32 %v5894, %v5379
  %v5896 = vadd.f32 %v5895, %v5380
  %v5897 = vadd.f32 %v5896, %v5381
  %v5898 = vadd.f32 %v5897, %v5382
  %v5899 = vadd.f32 %v5898, %v5383
  %v5900 = vadd.f32 %v5899, %v5384
  %v5901 = vadd.f32 %v5900, %v5385
  %v5902 = vadd.f32 %v5901, %v5386
  %v5903 = vrot.slane %v5902, 4
  %v5904 = vadd.f32 %v5902, %v5903
  %v5905 = vrot.slane %v5904, 2
  %v5906 = vadd.f32 %v5904, %v5905
  %v5907 = vrot.slane %v5906, 1
  %v5908 = vadd.f32 %v5906, %v5907
  %v5909 = vadd.f32 %v5387, %v5388
  %v5910 = vadd.f32 %v5909, %v5389
  %v5911 = vadd.f32 %v5910, %v5390
  %v5912 = vadd.f32 %v5911, %v5391
  %v5913 = vadd.f32 %v5912, %v5392
  %v5914 = vadd.f32 %v5913, %v5393
  %v5915 = vadd.f32 %v5914, %v5394
  %v5916 = vadd.f32 %v5915, %v5395
  %v5917 = vadd.f32 %v5916, %v5396
  %v5918 = vadd.f32 %v5917, %v5397
  %v5919 = vadd.f32 %v5918, %v5398
  %v5920 = vadd.f32 %v5919, %v5399
  %v5921 = vadd.f32 %v5920, %v5400
  %v5922 = vadd.f32 %v5921, %v5401
  %v5923 = vadd.f32 %v5922, %v5402
  %v5924 = vadd.f32 %v5923, %v5403
  %v5925 = vadd.f32 %v5924, %v5404
  %v5926 = vadd.f32 %v5925, %v5405
  %v5927 = vadd.f32 %v5926, %v5406
  %v5928 = vadd.f32 %v5927, %v5407
  %v5929 = vadd.f32 %v5928, %v5408
  %v5930 = vadd.f32 %v5929, %v5409
  %v5931 = vadd.f32 %v5930, %v5410
  %v5932 = vadd.f32 %v5931, %v5411
  %v5933 = vadd.f32 %v5932, %v5412
  %v5934 = vadd.f32 %v5933, %v5413
  %v5935 = vadd.f32 %v5934, %v5414
  %v5936 = vadd.f32 %v5935, %v5415
  %v5937 = vadd.f32 %v5936, %v5416
  %v5938 = vadd.f32 %v5937, %v5417
  %v5939 = vadd.f32 %v5938, %v5418
  %v5940 = vrot.slane %v5939, 4
  %v5941 = vadd.f32 %v5939, %v5940
  %v5942 = vrot.slane %v5941, 2
  %v5943 = vadd.f32 %v5941, %v5942
  %v5944 = vrot.slane %v5943, 1
  %v5945 = vadd.f32 %v5943, %v5944
  %v5946 = vadd.f32 %v5419, %v5420
  %v5947 = vadd.f32 %v5946, %v5421
  %v5948 = vadd.f32 %v5947, %v5422
  %v5949 = vadd.f32 %v5948, %v5423
  %v5950 = vadd.f32 %v5949, %v5424
  %v5951 = vadd.f32 %v5950, %v5425
  %v5952 = vadd.f32 %v5951, %v5426
  %v5953 = vadd.f32 %v5952, %v5427
  %v5954 = vadd.f32 %v5953, %v5428
  %v5955 = vadd.f32 %v5954, %v5429
  %v5956 = vadd.f32 %v5955, %v5430
  %v5957 = vadd.f32 %v5956, %v5431
  %v5958 = vadd.f32 %v5957, %v5432
  %v5959 = vadd.f32 %v5958, %v5433
  %v5960 = vadd.f32 %v5959, %v5434
  %v5961 = vadd.f32 %v5960, %v5435
  %v5962 = vadd.f32 %v5961, %v5436
  %v5963 = vadd.f32 %v5962, %v5437
  %v5964 = vadd.f32 %v5963, %v5438
  %v5965 = vadd.f32 %v5964, %v5439
  %v5966 = vadd.f32 %v5965, %v5440
  %v5967 = vadd.f32 %v5966, %v5441
  %v5968 = vadd.f32 %v5967, %v5442
  %v5969 = vadd.f32 %v5968, %v5443
  %v5970 = vadd.f32 %v5969, %v5444
  %v5971 = vadd.f32 %v5970, %v5445
  %v5972 = vadd.f32 %v5971, %v5446
  %v5973 = vadd.f32 %v5972, %v5447
  %v5974 = vadd.f32 %v5973, %v5448
  %v5975 = vadd.f32 %v5974, %v5449
  %v5976 = vadd.f32 %v5975, %v5450
  %v5977 = vrot.slane %v5976, 4
  %v5978 = vadd.f32 %v5976, %v5977
  %v5979 = vrot.slane %v5978, 2
  %v5980 = vadd.f32 %v5978, %v5979
  %v5981 = vrot.slane %v5980, 1
  %v5982 = vadd.f32 %v5980, %v5981
  %v5983 = vadd.f32 %v5451, %v5452
  %v5984 = vadd.f32 %v5983, %v5453
  %v5985 = vadd.f32 %v5984, %v5454
  %v5986 = vadd.f32 %v5985, %v5455
  %v5987 = vadd.f32 %v5986, %v5456
  %v5988 = vadd.f32 %v5987, %v5457
  %v5989 = vadd.f32 %v5988, %v5458
  %v5990 = vadd.f32 %v5989, %v5459
  %v5991 = vadd.f32 %v5990, %v5460
  %v5992 = vadd.f32 %v5991, %v5461
  %v5993 = vadd.f32 %v5992, %v5462
  %v5994 = vadd.f32 %v5993, %v5463
  %v5995 = vadd.f32 %v5994, %v5464
  %v5996 = vadd.f32 %v5995, %v5465
  %v5997 = vadd.f32 %v5996, %v5466
  %v5998 = vadd.f32 %v5997, %v5467
  %v5999 = vadd.f32 %v5998, %v5468
  %v6000 = vadd.f32 %v5999, %v5469
  %v6001 = vadd.f32 %v6000, %v5470
  %v6002 = vadd.f32 %v6001, %v5471
  %v6003 = vadd.f32 %v6002, %v5472
  %v6004 = vadd.f32 %v6003, %v5473
  %v6005 = vadd.f32 %v6004, %v5474
  %v6006 = vadd.f32 %v6005, %v5475
  %v6007 = vadd.f32 %v6006, %v5476
  %v6008 = vadd.f32 %v6007, %v5477
  %v6009 = vadd.f32 %v6008, %v5478
  %v6010 = vadd.f32 %v6009, %v5479
  %v6011 = vadd.f32 %v6010, %v5480
  %v6012 = vadd.f32 %v6011, %v5481
  %v6013 = vadd.f32 %v6012, %v5482
  %v6014 = vrot.slane %v6013, 4
  %v6015 = vadd.f32 %v6013, %v6014
  %v6016 = vrot.slane %v6015, 2
  %v6017 = vadd.f32 %v6015, %v6016
  %v6018 = vrot.slane %v6017, 1
  %v6019 = vadd.f32 %v6017, %v6018
  %v6020 = vadd.f32 %v5483, %v5484
  %v6021 = vadd.f32 %v6020, %v5485
  %v6022 = vadd.f32 %v6021, %v5486
  %v6023 = vadd.f32 %v6022, %v5487
  %v6024 = vadd.f32 %v6023, %v5488
  %v6025 = vadd.f32 %v6024, %v5489
  %v6026 = vadd.f32 %v6025, %v5490
  %v6027 = vadd.f32 %v6026, %v5491
  %v6028 = vadd.f32 %v6027, %v5492
  %v6029 = vadd.f32 %v6028, %v5493
  %v6030 = vadd.f32 %v6029, %v5494
  %v6031 = vadd.f32 %v6030, %v5495
  %v6032 = vadd.f32 %v6031, %v5496
  %v6033 = vadd.f32 %v6032, %v5497
  %v6034 = vadd.f32 %v6033, %v5498
  %v6035 = vadd.f32 %v6034, %v5499
  %v6036 = vadd.f32 %v6035, %v5500
  %v6037 = vadd.f32 %v6036, %v5501
  %v6038 = vadd.f32 %v6037, %v5502
  %v6039 = vadd.f32 %v6038, %v5503
  %v6040 = vadd.f32 %v6039, %v5504
  %v6041 = vadd.f32 %v6040, %v5505
  %v6042 = vadd.f32 %v6041, %v5506
  %v6043 = vadd.f32 %v6042, %v5507
  %v6044 = vadd.f32 %v6043, %v5508
  %v6045 = vadd.f32 %v6044, %v5509
  %v6046 = vadd.f32 %v6045, %v5510
  %v6047 = vadd.f32 %v6046, %v5511
  %v6048 = vadd.f32 %v6047, %v5512
  %v6049 = vadd.f32 %v6048, %v5513
  %v6050 = vadd.f32 %v6049, %v5514
  %v6051 = vrot.slane %v6050, 4
  %v6052 = vadd.f32 %v6050, %v6051
  %v6053 = vrot.slane %v6052, 2
  %v6054 = vadd.f32 %v6052, %v6053
  %v6055 = vrot.slane %v6054, 1
  %v6056 = vadd.f32 %v6054, %v6055
  %v6057 = vadd.f32 %v5515, %v5516
  %v6058 = vadd.f32 %v6057, %v5517
  %v6059 = vadd.f32 %v6058, %v5518
  %v6060 = vadd.f32 %v6059, %v5519
  %v6061 = vadd.f32 %v6060, %v5520
  %v6062 = vadd.f32 %v6061, %v5521
  %v6063 = vadd.f32 %v6062, %v5522
  %v6064 = vadd.f32 %v6063, %v5523
  %v6065 = vadd.f32 %v6064, %v5524
  %v6066 = vadd.f32 %v6065, %v5525
  %v6067 = vadd.f32 %v6066, %v5526
  %v6068 = vadd.f32 %v6067, %v5527
  %v6069 = vadd.f32 %v6068, %v5528
  %v6070 = vadd.f32 %v6069, %v5529
  %v6071 = vadd.f32 %v6070, %v5530
  %v6072 = vadd.f32 %v6071, %v5531
  %v6073 = vadd.f32 %v6072, %v5532
  %v6074 = vadd.f32 %v6073, %v5533
  %v6075 = vadd.f32 %v6074, %v5534
  %v6076 = vadd.f32 %v6075, %v5535
  %v6077 = vadd.f32 %v6076, %v5536
  %v6078 = vadd.f32 %v6077, %v5537
  %v6079 = vadd.f32 %v6078, %v5538
  %v6080 = vadd.f32 %v6079, %v5539
  %v6081 = vadd.f32 %v6080, %v5540
  %v6082 = vadd.f32 %v6081, %v5541
  %v6083 = vadd.f32 %v6082, %v5542
  %v6084 = vadd.f32 %v6083, %v5543
  %v6085 = vadd.f32 %v6084, %v5544
  %v6086 = vadd.f32 %v6085, %v5545
  %v6087 = vadd.f32 %v6086, %v5546
  %v6088 = vrot.slane %v6087, 4
  %v6089 = vadd.f32 %v6087, %v6088
  %v6090 = vrot.slane %v6089, 2
  %v6091 = vadd.f32 %v6089, %v6090
  %v6092 = vrot.slane %v6091, 1
  %v6093 = vadd.f32 %v6091, %v6092
  %v6094 = vadd.f32 %v5547, %v5548
  %v6095 = vadd.f32 %v6094, %v5549
  %v6096 = vadd.f32 %v6095, %v5550
  %v6097 = vadd.f32 %v6096, %v5551
  %v6098 = vadd.f32 %v6097, %v5552
  %v6099 = vadd.f32 %v6098, %v5553
  %v6100 = vadd.f32 %v6099, %v5554
  %v6101 = vadd.f32 %v6100, %v5555
  %v6102 = vadd.f32 %v6101, %v5556
  %v6103 = vadd.f32 %v6102, %v5557
  %v6104 = vadd.f32 %v6103, %v5558
  %v6105 = vadd.f32 %v6104, %v5559
  %v6106 = vadd.f32 %v6105, %v5560
  %v6107 = vadd.f32 %v6106, %v5561
  %v6108 = vadd.f32 %v6107, %v5562
  %v6109 = vadd.f32 %v6108, %v5563
  %v6110 = vadd.f32 %v6109, %v5564
  %v6111 = vadd.f32 %v6110, %v5565
  %v6112 = vadd.f32 %v6111, %v5566
  %v6113 = vadd.f32 %v6112, %v5567
  %v6114 = vadd.f32 %v6113, %v5568
  %v6115 = vadd.f32 %v6114, %v5569
  %v6116 = vadd.f32 %v6115, %v5570
  %v6117 = vadd.f32 %v6116, %v5571
  %v6118 = vadd.f32 %v6117, %v5572
  %v6119 = vadd.f32 %v6118, %v5573
  %v6120 = vadd.f32 %v6119, %v5574
  %v6121 = vadd.f32 %v6120, %v5575
  %v6122 = vadd.f32 %v6121, %v5576
  %v6123 = vadd.f32 %v6122, %v5577
  %v6124 = vadd.f32 %v6123, %v5578
  %v6125 = vrot.slane %v6124, 4
  %v6126 = vadd.f32 %v6124, %v6125
  %v6127 = vrot.slane %v6126, 2
  %v6128 = vadd.f32 %v6126, %v6127
  %v6129 = vrot.slane %v6128, 1
  %v6130 = vadd.f32 %v6128, %v6129
  %v6131 = vadd.f32 %v5579, %v5580
  %v6132 = vadd.f32 %v6131, %v5581
  %v6133 = vadd.f32 %v6132, %v5582
  %v6134 = vadd.f32 %v6133, %v5583
  %v6135 = vadd.f32 %v6134, %v5584
  %v6136 = vadd.f32 %v6135, %v5585
  %v6137 = vadd.f32 %v6136, %v5586
  %v6138 = vadd.f32 %v6137, %v5587
  %v6139 = vadd.f32 %v6138, %v5588
  %v6140 = vadd.f32 %v6139, %v5589
  %v6141 = vadd.f32 %v6140, %v5590
  %v6142 = vadd.f32 %v6141, %v5591
  %v6143 = vadd.f32 %v6142, %v5592
  %v6144 = vadd.f32 %v6143, %v5593
  %v6145 = vadd.f32 %v6144, %v5594
  %v6146 = vadd.f32 %v6145, %v5595
  %v6147 = vadd.f32 %v6146, %v5596
  %v6148 = vadd.f32 %v6147, %v5597
  %v6149 = vadd.f32 %v6148, %v5598
  %v6150 = vadd.f32 %v6149, %v5599
  %v6151 = vadd.f32 %v6150, %v5600
  %v6152 = vadd.f32 %v6151, %v5601
  %v6153 = vadd.f32 %v6152, %v5602
  %v6154 = vadd.f32 %v6153, %v5603
  %v6155 = vadd.f32 %v6154, %v5604
  %v6156 = vadd.f32 %v6155, %v5605
  %v6157 = vadd.f32 %v6156, %v5606
  %v6158 = vadd.f32 %v6157, %v5607
  %v6159 = vadd.f32 %v6158, %v5608
  %v6160 = vadd.f32 %v6159, %v5609
  %v6161 = vadd.f32 %v6160, %v5610
  %v6162 = vrot.slane %v6161, 4
  %v6163 = vadd.f32 %v6161, %v6162
  %v6164 = vrot.slane %v6163, 2
  %v6165 = vadd.f32 %v6163, %v6164
  %v6166 = vrot.slane %v6165, 1
  %v6167 = vadd.f32 %v6165, %v6166
  %v6168 = vadd.f32 %v5611, %v5612
  %v6169 = vadd.f32 %v6168, %v5613
  %v6170 = vadd.f32 %v6169, %v5614
  %v6171 = vadd.f32 %v6170, %v5615
  %v6172 = vadd.f32 %v6171, %v5616
  %v6173 = vadd.f32 %v6172, %v5617
  %v6174 = vadd.f32 %v6173, %v5618
  %v6175 = vadd.f32 %v6174, %v5619
  %v6176 = vadd.f32 %v6175, %v5620
  %v6177 = vadd.f32 %v6176, %v5621
  %v6178 = vadd.f32 %v6177, %v5622
  %v6179 = vadd.f32 %v6178, %v5623
  %v6180 = vadd.f32 %v6179, %v5624
  %v6181 = vadd.f32 %v6180, %v5625
  %v6182 = vadd.f32 %v6181, %v5626
  %v6183 = vadd.f32 %v6182, %v5627
  %v6184 = vadd.f32 %v6183, %v5628
  %v6185 = vadd.f32 %v6184, %v5629
  %v6186 = vadd.f32 %v6185, %v5630
  %v6187 = vadd.f32 %v6186, %v5631
  %v6188 = vadd.f32 %v6187, %v5632
  %v6189 = vadd.f32 %v6188, %v5633
  %v6190 = vadd.f32 %v6189, %v5634
  %v6191 = vadd.f32 %v6190, %v5635
  %v6192 = vadd.f32 %v6191, %v5636
  %v6193 = vadd.f32 %v6192, %v5637
  %v6194 = vadd.f32 %v6193, %v5638
  %v6195 = vadd.f32 %v6194, %v5639
  %v6196 = vadd.f32 %v6195, %v5640
  %v6197 = vadd.f32 %v6196, %v5641
  %v6198 = vadd.f32 %v6197, %v5642
  %v6199 = vrot.slane %v6198, 4
  %v6200 = vadd.f32 %v6198, %v6199
  %v6201 = vrot.slane %v6200, 2
  %v6202 = vadd.f32 %v6200, %v6201
  %v6203 = vrot.slane %v6202, 1
  %v6204 = vadd.f32 %v6202, %v6203
  %v6205 = vadd.f32 %v5643, %v5644
  %v6206 = vadd.f32 %v6205, %v5645
  %v6207 = vadd.f32 %v6206, %v5646
  %v6208 = vadd.f32 %v6207, %v5647
  %v6209 = vadd.f32 %v6208, %v5648
  %v6210 = vadd.f32 %v6209, %v5649
  %v6211 = vadd.f32 %v6210, %v5650
  %v6212 = vadd.f32 %v6211, %v5651
  %v6213 = vadd.f32 %v6212, %v5652
  %v6214 = vadd.f32 %v6213, %v5653
  %v6215 = vadd.f32 %v6214, %v5654
  %v6216 = vadd.f32 %v6215, %v5655
  %v6217 = vadd.f32 %v6216, %v5656
  %v6218 = vadd.f32 %v6217, %v5657
  %v6219 = vadd.f32 %v6218, %v5658
  %v6220 = vadd.f32 %v6219, %v5659
  %v6221 = vadd.f32 %v6220, %v5660
  %v6222 = vadd.f32 %v6221, %v5661
  %v6223 = vadd.f32 %v6222, %v5662
  %v6224 = vadd.f32 %v6223, %v5663
  %v6225 = vadd.f32 %v6224, %v5664
  %v6226 = vadd.f32 %v6225, %v5665
  %v6227 = vadd.f32 %v6226, %v5666
  %v6228 = vadd.f32 %v6227, %v5667
  %v6229 = vadd.f32 %v6228, %v5668
  %v6230 = vadd.f32 %v6229, %v5669
  %v6231 = vadd.f32 %v6230, %v5670
  %v6232 = vadd.f32 %v6231, %v5671
  %v6233 = vadd.f32 %v6232, %v5672
  %v6234 = vadd.f32 %v6233, %v5673
  %v6235 = vadd.f32 %v6234, %v5674
  %v6236 = vrot.slane %v6235, 4
  %v6237 = vadd.f32 %v6235, %v6236
  %v6238 = vrot.slane %v6237, 2
  %v6239 = vadd.f32 %v6237, %v6238
  %v6240 = vrot.slane %v6239, 1
  %v6241 = vadd.f32 %v6239, %v6240
  %v6242 = vadd.f32 %v5675, %v5676
  %v6243 = vadd.f32 %v6242, %v5677
  %v6244 = vadd.f32 %v6243, %v5678
  %v6245 = vadd.f32 %v6244, %v5679
  %v6246 = vadd.f32 %v6245, %v5680
  %v6247 = vadd.f32 %v6246, %v5681
  %v6248 = vadd.f32 %v6247, %v5682
  %v6249 = vadd.f32 %v6248, %v5683
  %v6250 = vadd.f32 %v6249, %v5684
  %v6251 = vadd.f32 %v6250, %v5685
  %v6252 = vadd.f32 %v6251, %v5686
  %v6253 = vadd.f32 %v6252, %v5687
  %v6254 = vadd.f32 %v6253, %v5688
  %v6255 = vadd.f32 %v6254, %v5689
  %v6256 = vadd.f32 %v6255, %v5690
  %v6257 = vadd.f32 %v6256, %v5691
  %v6258 = vadd.f32 %v6257, %v5692
  %v6259 = vadd.f32 %v6258, %v5693
  %v6260 = vadd.f32 %v6259, %v5694
  %v6261 = vadd.f32 %v6260, %v5695
  %v6262 = vadd.f32 %v6261, %v5696
  %v6263 = vadd.f32 %v6262, %v5697
  %v6264 = vadd.f32 %v6263, %v5698
  %v6265 = vadd.f32 %v6264, %v5699
  %v6266 = vadd.f32 %v6265, %v5700
  %v6267 = vadd.f32 %v6266, %v5701
  %v6268 = vadd.f32 %v6267, %v5702
  %v6269 = vadd.f32 %v6268, %v5703
  %v6270 = vadd.f32 %v6269, %v5704
  %v6271 = vadd.f32 %v6270, %v5705
  %v6272 = vadd.f32 %v6271, %v5706
  %v6273 = vrot.slane %v6272, 4
  %v6274 = vadd.f32 %v6272, %v6273
  %v6275 = vrot.slane %v6274, 2
  %v6276 = vadd.f32 %v6274, %v6275
  %v6277 = vrot.slane %v6276, 1
  %v6278 = vadd.f32 %v6276, %v6277
  %v6279 = vadd.f32 %v5707, %v5708
  %v6280 = vadd.f32 %v6279, %v5709
  %v6281 = vadd.f32 %v6280, %v5710
  %v6282 = vadd.f32 %v6281, %v5711
  %v6283 = vadd.f32 %v6282, %v5712
  %v6284 = vadd.f32 %v6283, %v5713
  %v6285 = vadd.f32 %v6284, %v5714
  %v6286 = vadd.f32 %v6285, %v5715
  %v6287 = vadd.f32 %v6286, %v5716
  %v6288 = vadd.f32 %v6287, %v5717
  %v6289 = vadd.f32 %v6288, %v5718
  %v6290 = vadd.f32 %v6289, %v5719
  %v6291 = vadd.f32 %v6290, %v5720
  %v6292 = vadd.f32 %v6291, %v5721
  %v6293 = vadd.f32 %v6292, %v5722
  %v6294 = vadd.f32 %v6293, %v5723
  %v6295 = vadd.f32 %v6294, %v5724
  %v6296 = vadd.f32 %v6295, %v5725
  %v6297 = vadd.f32 %v6296, %v5726
  %v6298 = vadd.f32 %v6297, %v5727
  %v6299 = vadd.f32 %v6298, %v5728
  %v6300 = vadd.f32 %v6299, %v5729
  %v6301 = vadd.f32 %v6300, %v5730
  %v6302 = vadd.f32 %v6301, %v5731
  %v6303 = vadd.f32 %v6302, %v5732
  %v6304 = vadd.f32 %v6303, %v5733
  %v6305 = vadd.f32 %v6304, %v5734
  %v6306 = vadd.f32 %v6305, %v5735
  %v6307 = vadd.f32 %v6306, %v5736
  %v6308 = vadd.f32 %v6307, %v5737
  %v6309 = vadd.f32 %v6308, %v5738
  %v6310 = vrot.slane %v6309, 4
  %v6311 = vadd.f32 %v6309, %v6310
  %v6312 = vrot.slane %v6311, 2
  %v6313 = vadd.f32 %v6311, %v6312
  %v6314 = vrot.slane %v6313, 1
  %v6315 = vadd.f32 %v6313, %v6314
  %v6316 = vadd.f32 %v5739, %v5740
  %v6317 = vadd.f32 %v6316, %v5741
  %v6318 = vadd.f32 %v6317, %v5742
  %v6319 = vadd.f32 %v6318, %v5743
  %v6320 = vadd.f32 %v6319, %v5744
  %v6321 = vadd.f32 %v6320, %v5745
  %v6322 = vadd.f32 %v6321, %v5746
  %v6323 = vadd.f32 %v6322, %v5747
  %v6324 = vadd.f32 %v6323, %v5748
  %v6325 = vadd.f32 %v6324, %v5749
  %v6326 = vadd.f32 %v6325, %v5750
  %v6327 = vadd.f32 %v6326, %v5751
  %v6328 = vadd.f32 %v6327, %v5752
  %v6329 = vadd.f32 %v6328, %v5753
  %v6330 = vadd.f32 %v6329, %v5754
  %v6331 = vadd.f32 %v6330, %v5755
  %v6332 = vadd.f32 %v6331, %v5756
  %v6333 = vadd.f32 %v6332, %v5757
  %v6334 = vadd.f32 %v6333, %v5758
  %v6335 = vadd.f32 %v6334, %v5759
  %v6336 = vadd.f32 %v6335, %v5760
  %v6337 = vadd.f32 %v6336, %v5761
  %v6338 = vadd.f32 %v6337, %v5762
  %v6339 = vadd.f32 %v6338, %v5763
  %v6340 = vadd.f32 %v6339, %v5764
  %v6341 = vadd.f32 %v6340, %v5765
  %v6342 = vadd.f32 %v6341, %v5766
  %v6343 = vadd.f32 %v6342, %v5767
  %v6344 = vadd.f32 %v6343, %v5768
  %v6345 = vadd.f32 %v6344, %v5769
  %v6346 = vadd.f32 %v6345, %v5770
  %v6347 = vrot.slane %v6346, 4
  %v6348 = vadd.f32 %v6346, %v6347
  %v6349 = vrot.slane %v6348, 2
  %v6350 = vadd.f32 %v6348, %v6349
  %v6351 = vrot.slane %v6350, 1
  %v6352 = vadd.f32 %v6350, %v6351
  %v6353 = vadd.f32 %v5771, %v5772
  %v6354 = vadd.f32 %v6353, %v5773
  %v6355 = vadd.f32 %v6354, %v5774
  %v6356 = vadd.f32 %v6355, %v5775
  %v6357 = vadd.f32 %v6356, %v5776
  %v6358 = vadd.f32 %v6357, %v5777
  %v6359 = vadd.f32 %v6358, %v5778
  %v6360 = vadd.f32 %v6359, %v5779
  %v6361 = vadd.f32 %v6360, %v5780
  %v6362 = vadd.f32 %v6361, %v5781
  %v6363 = vadd.f32 %v6362, %v5782
  %v6364 = vadd.f32 %v6363, %v5783
  %v6365 = vadd.f32 %v6364, %v5784
  %v6366 = vadd.f32 %v6365, %v5785
  %v6367 = vadd.f32 %v6366, %v5786
  %v6368 = vadd.f32 %v6367, %v5787
  %v6369 = vadd.f32 %v6368, %v5788
  %v6370 = vadd.f32 %v6369, %v5789
  %v6371 = vadd.f32 %v6370, %v5790
  %v6372 = vadd.f32 %v6371, %v5791
  %v6373 = vadd.f32 %v6372, %v5792
  %v6374 = vadd.f32 %v6373, %v5793
  %v6375 = vadd.f32 %v6374, %v5794
  %v6376 = vadd.f32 %v6375, %v5795
  %v6377 = vadd.f32 %v6376, %v5796
  %v6378 = vadd.f32 %v6377, %v5797
  %v6379 = vadd.f32 %v6378, %v5798
  %v6380 = vadd.f32 %v6379, %v5799
  %v6381 = vadd.f32 %v6380, %v5800
  %v6382 = vadd.f32 %v6381, %v5801
  %v6383 = vadd.f32 %v6382, %v5802
  %v6384 = vrot.slane %v6383, 4
  %v6385 = vadd.f32 %v6383, %v6384
  %v6386 = vrot.slane %v6385, 2
  %v6387 = vadd.f32 %v6385, %v6386
  %v6388 = vrot.slane %v6387, 1
  %v6389 = vadd.f32 %v6387, %v6388
  %v6390 = vadd.f32 %v5803, %v5804
  %v6391 = vadd.f32 %v6390, %v5805
  %v6392 = vadd.f32 %v6391, %v5806
  %v6393 = vadd.f32 %v6392, %v5807
  %v6394 = vadd.f32 %v6393, %v5808
  %v6395 = vadd.f32 %v6394, %v5809
  %v6396 = vadd.f32 %v6395, %v5810
  %v6397 = vadd.f32 %v6396, %v5811
  %v6398 = vadd.f32 %v6397, %v5812
  %v6399 = vadd.f32 %v6398, %v5813
  %v6400 = vadd.f32 %v6399, %v5814
  %v6401 = vadd.f32 %v6400, %v5815
  %v6402 = vadd.f32 %v6401, %v5816
  %v6403 = vadd.f32 %v6402, %v5817
  %v6404 = vadd.f32 %v6403, %v5818
  %v6405 = vadd.f32 %v6404, %v5819
  %v6406 = vadd.f32 %v6405, %v5820
  %v6407 = vadd.f32 %v6406, %v5821
  %v6408 = vadd.f32 %v6407, %v5822
  %v6409 = vadd.f32 %v6408, %v5823
  %v6410 = vadd.f32 %v6409, %v5824
  %v6411 = vadd.f32 %v6410, %v5825
  %v6412 = vadd.f32 %v6411, %v5826
  %v6413 = vadd.f32 %v6412, %v5827
  %v6414 = vadd.f32 %v6413, %v5828
  %v6415 = vadd.f32 %v6414, %v5829
  %v6416 = vadd.f32 %v6415, %v5830
  %v6417 = vadd.f32 %v6416, %v5831
  %v6418 = vadd.f32 %v6417, %v5832
  %v6419 = vadd.f32 %v6418, %v5833
  %v6420 = vadd.f32 %v6419, %v5834
  %v6421 = vrot.slane %v6420, 4
  %v6422 = vadd.f32 %v6420, %v6421
  %v6423 = vrot.slane %v6422, 2
  %v6424 = vadd.f32 %v6422, %v6423
  %v6425 = vrot.slane %v6424, 1
  %v6426 = vadd.f32 %v6424, %v6425
  %v6427 = vld [vmem:[%s5] sm:$0xff]
  %v6428 = vld [vmem:[%s5 + $0x8] sm:$0xff]
  %v6429 = vld [vmem:[%s5 + $0x10] sm:$0xff]
  %v6430 = vld [vmem:[%s5 + $0x18] sm:$0xff]
  %v6431 = vld [vmem:[%s5 + $0x20] sm:$0xff]
  %v6432 = vld [vmem:[%s5 + $0x28] sm:$0xff]
  %v6433 = vld [vmem:[%s5 + $0x30] sm:$0xff]
  %v6434 = vld [vmem:[%s5 + $0x38] sm:$0xff]
  %v6435 = vld [vmem:[%s5 + $0x40] sm:$0xff]
  %v6436 = vld [vmem:[%s5 + $0x48] sm:$0xff]
  %v6437 = vld [vmem:[%s5 + $0x50] sm:$0xff]
  %v6438 = vld [vmem:[%s5 + $0x58] sm:$0xff]
  %v6439 = vld [vmem:[%s5 + $0x60] sm:$0xff]
  %v6440 = vld [vmem:[%s5 + $0x68] sm:$0xff]
  %v6441 = vld [vmem:[%s5 + $0x70] sm:$0xff]
  %v6442 = vld [vmem:[%s5 + $0x78] sm:$0xff]
  %vm6459 = vcmask 1041409
  %v6460 = vsel %vm6459, %v4804, %v4767
  %vm6461 = vcmask 1042434
  %v6462 = vsel %vm6461, %v4841, %v6460
  %vm6463 = vcmask 1043459
  %v6464 = vsel %vm6463, %v4878, %v6462
  %vm6465 = vcmask 1044484
  %v6466 = vsel %vm6465, %v4915, %v6464
  %vm6467 = vcmask 1045509
  %v6468 = vsel %vm6467, %v4952, %v6466
  %vm6469 = vcmask 1046534
  %v6470 = vsel %vm6469, %v4989, %v6468
  %vm6471 = vcmask 1047559
  %v6472 = vsel %vm6471, %v5026, %v6470
  %v6473 = vsel %vm6459, %v5100, %v5063
  %v6474 = vsel %vm6461, %v5137, %v6473
  %v6475 = vsel %vm6463, %v5174, %v6474
  %v6476 = vsel %vm6465, %v5211, %v6475
  %v6477 = vsel %vm6467, %v5248, %v6476
  %v6478 = vsel %vm6469, %v5285, %v6477
  %v6479 = vsel %vm6471, %v5322, %v6478
  %6482 = vmatprep.subr.mxu0 0.0
  %6483 = vmatpush1.msra.mxu0 %v6427
  %6484 = vmatprep.subr.mxu0 0.0
  %6485 = vmatpush1.msra.mxu0 %v6428
  %6486 = vmatprep.subr.mxu0 0.0
  %6487 = vmatpush1.msra.mxu0 %v6429
  %6488 = vmatprep.subr.mxu0 0.0
  %6489 = vmatpush1.msra.mxu0 %v6430
  %6490 = vmatprep.subr.mxu0 0.0
  %6491 = vmatpush1.msra.mxu0 %v6431
  %6492 = vmatprep.subr.mxu0 0.0
  %6493 = vmatpush1.msra.mxu0 %v6432
  %6494 = vmatprep.subr.mxu0 0.0
  %6495 = vmatpush1.msra.mxu0 %v6433
  %6496 = vmatprep.subr.mxu0 0.0
  %6497 = vmatpush1.msra.mxu0 %v6434
  %6498 = vmatprep.subr.mxu0 0.0
  %6499 = vmatpush1.msra.mxu0 %v6435
  %6500 = vmatprep.subr.mxu0 0.0
  %6501 = vmatpush1.msra.mxu0 %v6436
  %6502 = vmatprep.subr.mxu0 0.0
  %6503 = vmatpush1.msra.mxu0 %v6437
  %6504 = vmatprep.subr.mxu0 0.0
  %6505 = vmatpush1.msra.mxu0 %v6438
  %6506 = vmatprep.subr.mxu0 0.0
  %6507 = vmatpush1.msra.mxu0 %v6439
  %6508 = vmatprep.subr.mxu0 0.0
  %6509 = vmatpush1.msra.mxu0 %v6440
  %6510 = vmatprep.subr.mxu0 0.0
  %6511 = vmatpush1.msra.mxu0 %v6441
  %6512 = vmatprep.subr.mxu0 0.0
  %6513 = vmatpush1.msra.mxu0 %v6442
  %6514 = vmatprep.subr.mxu0 0.0
  %6515 = vmatpush1.msra.mxu0 0.0
  %6516 = vmatprep.subr.mxu0 0.0
  %6517 = vmatpush1.msra.mxu0 0.0
  %6518 = vmatprep.subr.mxu0 0.0
  %6519 = vmatpush1.msra.mxu0 0.0
  %6520 = vmatprep.subr.mxu0 0.0
  %6521 = vmatpush1.msra.mxu0 0.0
  %6522 = vmatprep.subr.mxu0 0.0
  %6523 = vmatpush1.msra.mxu0 0.0
  %6524 = vmatprep.subr.mxu0 0.0
  %6525 = vmatpush1.msra.mxu0 0.0
  %6526 = vmatprep.subr.mxu0 0.0
  %6527 = vmatpush1.msra.mxu0 0.0
  %6528 = vmatprep.subr.mxu0 0.0
  %6529 = vmatpush1.msra.mxu0 0.0
  %6530 = vmatprep.subr.mxu0 0.0
  %6531 = vmatpush1.msra.mxu0 0.0
  %6532 = vmatprep.subr.mxu0 0.0
  %6533 = vmatpush1.msra.mxu0 0.0
  %6534 = vmatprep.subr.mxu0 0.0
  %6535 = vmatpush1.msra.mxu0 0.0
  %6536 = vmatprep.subr.mxu0 0.0
  %6537 = vmatpush1.msra.mxu0 0.0
  %6538 = vmatprep.subr.mxu0 0.0
  %6539 = vmatpush1.msra.mxu0 0.0
  %6540 = vmatprep.subr.mxu0 0.0
  %6541 = vmatpush1.msra.mxu0 0.0
  %6542 = vmatprep.subr.mxu0 0.0
  %6543 = vmatpush1.msra.mxu0 0.0
  %6544 = vmatprep.subr.mxu0 0.0
  %6545 = vmatpush1.msra.mxu0 0.0
  %6546 = vmatprep.mubr.f32.mxu0 0.0
  %6547 = vmatmul.mubr.f32.gmra.mrb[0].mxu0 %v6472
  %v6548 = vpop.f32.mrb[0].mxu0
  %v6549 = vadd.f32 0.0, %v6548
  %v6550 = vpop.f32.mrb[0].mxu0
  %6551 = vmatprep.mubr.f32.mxu0 0.0
  %6552 = vmatmul.mubr.f32.gmra.mrb[0].mxu0 %v6479
  %v6553 = vpop.f32.mrb[0].mxu0
  %v6554 = vadd.f32 0.0, %v6553
  %v6555 = vpop.f32.mrb[0].mxu0
  %6556 = vdwg.mxu0
  %v6573 = vsel %vm6459, %v5908, %v5871
  %v6574 = vsel %vm6461, %v5945, %v6573
  %v6575 = vsel %vm6463, %v5982, %v6574
  %v6576 = vsel %vm6465, %v6019, %v6575
  %v6577 = vsel %vm6467, %v6056, %v6576
  %v6578 = vsel %vm6469, %v6093, %v6577
  %v6579 = vsel %vm6471, %v6130, %v6578
  %v6580 = vsel %vm6459, %v6204, %v6167
  %v6581 = vsel %vm6461, %v6241, %v6580
  %v6582 = vsel %vm6463, %v6278, %v6581
  %v6583 = vsel %vm6465, %v6315, %v6582
  %v6584 = vsel %vm6467, %v6352, %v6583
  %v6585 = vsel %vm6469, %v6389, %v6584
  %v6586 = vsel %vm6471, %v6426, %v6585
  %6589 = vmatprep.subr.mxu0 0.0
  %6590 = vmatpush1.msra.mxu0 %v6427
  %6591 = vmatprep.subr.mxu0 0.0
  %6592 = vmatpush1.msra.mxu0 %v6428
  %6593 = vmatprep.subr.mxu0 0.0
  %6594 = vmatpush1.msra.mxu0 %v6429
  %6595 = vmatprep.subr.mxu0 0.0
  %6596 = vmatpush1.msra.mxu0 %v6430
  %6597 = vmatprep.subr.mxu0 0.0
  %6598 = vmatpush1.msra.mxu0 %v6431
  %6599 = vmatprep.subr.mxu0 0.0
  %6600 = vmatpush1.msra.mxu0 %v6432
  %6601 = vmatprep.subr.mxu0 0.0
  %6602 = vmatpush1.msra.mxu0 %v6433
  %6603 = vmatprep.subr.mxu0 0.0
  %6604 = vmatpush1.msra.mxu0 %v6434
  %6605 = vmatprep.subr.mxu0 0.0
  %6606 = vmatpush1.msra.mxu0 %v6435
  %6607 = vmatprep.subr.mxu0 0.0
  %6608 = vmatpush1.msra.mxu0 %v6436
  %6609 = vmatprep.subr.mxu0 0.0
  %6610 = vmatpush1.msra.mxu0 %v6437
  %6611 = vmatprep.subr.mxu0 0.0
  %6612 = vmatpush1.msra.mxu0 %v6438
  %6613 = vmatprep.subr.mxu0 0.0
  %6614 = vmatpush1.msra.mxu0 %v6439
  %6615 = vmatprep.subr.mxu0 0.0
  %6616 = vmatpush1.msra.mxu0 %v6440
  %6617 = vmatprep.subr.mxu0 0.0
  %6618 = vmatpush1.msra.mxu0 %v6441
  %6619 = vmatprep.subr.mxu0 0.0
  %6620 = vmatpush1.msra.mxu0 %v6442
  %6621 = vmatprep.subr.mxu0 0.0
  %6622 = vmatpush1.msra.mxu0 0.0
  %6623 = vmatprep.subr.mxu0 0.0
  %6624 = vmatpush1.msra.mxu0 0.0
  %6625 = vmatprep.subr.mxu0 0.0
  %6626 = vmatpush1.msra.mxu0 0.0
  %6627 = vmatprep.subr.mxu0 0.0
  %6628 = vmatpush1.msra.mxu0 0.0
  %6629 = vmatprep.subr.mxu0 0.0
  %6630 = vmatpush1.msra.mxu0 0.0
  %6631 = vmatprep.subr.mxu0 0.0
  %6632 = vmatpush1.msra.mxu0 0.0
  %6633 = vmatprep.subr.mxu0 0.0
  %6634 = vmatpush1.msra.mxu0 0.0
  %6635 = vmatprep.subr.mxu0 0.0
  %6636 = vmatpush1.msra.mxu0 0.0
  %6637 = vmatprep.subr.mxu0 0.0
  %6638 = vmatpush1.msra.mxu0 0.0
  %6639 = vmatprep.subr.mxu0 0.0
  %6640 = vmatpush1.msra.mxu0 0.0
  %6641 = vmatprep.subr.mxu0 0.0
  %6642 = vmatpush1.msra.mxu0 0.0
  %6643 = vmatprep.subr.mxu0 0.0
  %6644 = vmatpush1.msra.mxu0 0.0
  %6645 = vmatprep.subr.mxu0 0.0
  %6646 = vmatpush1.msra.mxu0 0.0
  %6647 = vmatprep.subr.mxu0 0.0
  %6648 = vmatpush1.msra.mxu0 0.0
  %6649 = vmatprep.subr.mxu0 0.0
  %6650 = vmatpush1.msra.mxu0 0.0
  %6651 = vmatprep.subr.mxu0 0.0
  %6652 = vmatpush1.msra.mxu0 0.0
  %6653 = vmatprep.mubr.f32.mxu0 0.0
  %6654 = vmatmul.mubr.f32.gmra.mrb[0].mxu0 %v6579
  %v6655 = vpop.f32.mrb[0].mxu0
  %v6656 = vadd.f32 0.0, %v6655
  %v6657 = vpop.f32.mrb[0].mxu0
  %6658 = vmatprep.mubr.f32.mxu0 0.0
  %6659 = vmatmul.mubr.f32.gmra.mrb[0].mxu0 %v6586
  %v6660 = vpop.f32.mrb[0].mxu0
  %v6661 = vadd.f32 0.0, %v6660
  %v6662 = vpop.f32.mrb[0].mxu0
  %6663 = vdwg.mxu0
  %v6664 = vmul.f32 %v6549, %v6549
  %v6665 = vmul.f32 %v6554, %v6554
  %v6666 = vsub.f32 %v6656, %v6664
  %v6667 = vsub.f32 %v6661, %v6665
  %v6668 = vmax.f32 %v6666, 0.0
  %v6669 = vmax.f32 %v6667, 0.0
  %v6670 = vadd.f32 %v6668, 1e-05
  %v6671 = vadd.f32 %v6669, 1e-05
  %v6672 = vrsqrt.pop %v6670
  %v6673 = vrsqrt.pop %v6671
  %v6674 = vld [vmem:[%s3] sm:$0x1]
  %v6676 = vlaneseq
  %v6677 = vshrl.u32 %v6676, 7
  %v6678 = vsub.s32 0, %v6677
  %v6679 = vrot.slane %v6674, %v6678
  %v6681 = vmul.f32 %v6672, %v6679
  %v6682 = vmul.f32 %v6673, %v6679
  %v6683 = vld [vmem:[%s4] sm:$0x1]
  %v6684 = vmul.f32 %v6549, %v6681
  %v6685 = vmul.f32 %v6554, %v6682
  %v6687 = vlaneseq
  %v6688 = vshrl.u32 %v6687, 7
  %v6689 = vsub.s32 0, %v6688
  %v6690 = vrot.slane %v6683, %v6689
  %v6692 = vsub.f32 %v6690, %v6684
  %v6693 = vsub.f32 %v6690, %v6685
  %v6696 = vcombine.high %v6681, %v6681
  %v6698 = vunpack.c.l.s4 1966171168
  %v6699 = vunpack.c.0.s8 %v6698
  %v6700 = vlaneseq
  %v6701 = vshrl.u32 %v6700, 7
  %v6702 = vsub.s32 %v6699, %v6701
  %v6703 = vrot.slane %v6681, %v6702
  %v6705 = vunpack.c.l.s4 1966171168
  %v6706 = vunpack.c.0.s8 %v6705
  %v6707 = vlaneseq
  %v6708 = vshrl.u32 %v6707, 7
  %v6709 = vsub.s32 %v6706, %v6708
  %v6710 = vrot.slane %v6696, %v6709
  %v6711 = vcombine.high %v6703, %v6703
  %v6712 = vcombine.high %v6710, %v6710
  %v6714 = vunpack.c.l.s4 1966171168
  %v6715 = vunpack.c.0.s8 %v6714
  %v6716 = vlaneseq
  %v6717 = vshrl.u32 %v6716, 7
  %v6718 = vsub.s32 %v6715, %v6717
  %v6719 = vrot.slane %v6703, %v6718
  %v6721 = vunpack.c.l.s4 1966171168
  %v6722 = vunpack.c.0.s8 %v6721
  %v6723 = vlaneseq
  %v6724 = vshrl.u32 %v6723, 7
  %v6725 = vsub.s32 %v6722, %v6724
  %v6726 = vrot.slane %v6710, %v6725
  %v6728 = vunpack.c.l.s4 1966171168
  %v6729 = vunpack.c.0.s8 %v6728
  %v6730 = vlaneseq
  %v6731 = vshrl.u32 %v6730, 7
  %v6732 = vsub.s32 %v6729, %v6731
  %v6733 = vrot.slane %v6711, %v6732
  %v6735 = vunpack.c.l.s4 1966171168
  %v6736 = vunpack.c.0.s8 %v6735
  %v6737 = vlaneseq
  %v6738 = vshrl.u32 %v6737, 7
  %v6739 = vsub.s32 %v6736, %v6738
  %v6740 = vrot.slane %v6712, %v6739
  %v6741 = vcombine.high %v6719, %v6719
  %v6742 = vcombine.high %v6726, %v6726
  %v6743 = vcombine.high %v6733, %v6733
  %v6744 = vcombine.high %v6740, %v6740
  %v6745 = vcombine.high %v6682, %v6682
  %v6747 = vunpack.c.l.s4 1966171168
  %v6748 = vunpack.c.0.s8 %v6747
  %v6749 = vlaneseq
  %v6750 = vshrl.u32 %v6749, 7
  %v6751 = vsub.s32 %v6748, %v6750
  %v6752 = vrot.slane %v6682, %v6751
  %v6754 = vunpack.c.l.s4 1966171168
  %v6755 = vunpack.c.0.s8 %v6754
  %v6756 = vlaneseq
  %v6757 = vshrl.u32 %v6756, 7
  %v6758 = vsub.s32 %v6755, %v6757
  %v6759 = vrot.slane %v6745, %v6758
  %v6760 = vcombine.high %v6752, %v6752
  %v6761 = vcombine.high %v6759, %v6759
  %v6763 = vunpack.c.l.s4 1966171168
  %v6764 = vunpack.c.0.s8 %v6763
  %v6765 = vlaneseq
  %v6766 = vshrl.u32 %v6765, 7
  %v6767 = vsub.s32 %v6764, %v6766
  %v6768 = vrot.slane %v6752, %v6767
  %v6770 = vunpack.c.l.s4 1966171168
  %v6771 = vunpack.c.0.s8 %v6770
  %v6772 = vlaneseq
  %v6773 = vshrl.u32 %v6772, 7
  %v6774 = vsub.s32 %v6771, %v6773
  %v6775 = vrot.slane %v6759, %v6774
  %v6777 = vunpack.c.l.s4 1966171168
  %v6778 = vunpack.c.0.s8 %v6777
  %v6779 = vlaneseq
  %v6780 = vshrl.u32 %v6779, 7
  %v6781 = vsub.s32 %v6778, %v6780
  %v6782 = vrot.slane %v6760, %v6781
  %v6784 = vunpack.c.l.s4 1966171168
  %v6785 = vunpack.c.0.s8 %v6784
  %v6786 = vlaneseq
  %v6787 = vshrl.u32 %v6786, 7
  %v6788 = vsub.s32 %v6785, %v6787
  %v6789 = vrot.slane %v6761, %v6788
  %v6790 = vcombine.high %v6768, %v6768
  %v6791 = vcombine.high %v6775, %v6775
  %v6792 = vcombine.high %v6782, %v6782
  %v6793 = vcombine.high %v6789, %v6789
  %v6794 = vlaneseq
  %v6795 = vshrl.u32 %v6794, 7
  %v6796 = vsub.s32 0, %v6795
  %v6797 = vrot.slane %v6719, %v6796
  %v6798 = vlaneseq
  %v6799 = vshrl.u32 %v6798, 7
  %v6800 = vsub.s32 0, %v6799
  %v6801 = vrot.slane %v6733, %v6800
  %v6802 = vlaneseq
  %v6803 = vshrl.u32 %v6802, 7
  %v6804 = vsub.s32 0, %v6803
  %v6805 = vrot.slane %v6741, %v6804
  %v6806 = vlaneseq
  %v6807 = vshrl.u32 %v6806, 7
  %v6808 = vsub.s32 0, %v6807
  %v6809 = vrot.slane %v6743, %v6808
  %v6810 = vlaneseq
  %v6811 = vshrl.u32 %v6810, 7
  %v6812 = vsub.s32 0, %v6811
  %v6813 = vrot.slane %v6726, %v6812
  %v6814 = vlaneseq
  %v6815 = vshrl.u32 %v6814, 7
  %v6816 = vsub.s32 0, %v6815
  %v6817 = vrot.slane %v6740, %v6816
  %v6818 = vlaneseq
  %v6819 = vshrl.u32 %v6818, 7
  %v6820 = vsub.s32 0, %v6819
  %v6821 = vrot.slane %v6742, %v6820
  %v6822 = vlaneseq
  %v6823 = vshrl.u32 %v6822, 7
  %v6824 = vsub.s32 0, %v6823
  %v6825 = vrot.slane %v6744, %v6824
  %v6826 = vlaneseq
  %v6827 = vshrl.u32 %v6826, 7
  %v6828 = vsub.s32 0, %v6827
  %v6829 = vrot.slane %v6768, %v6828
  %v6830 = vlaneseq
  %v6831 = vshrl.u32 %v6830, 7
  %v6832 = vsub.s32 0, %v6831
  %v6833 = vrot.slane %v6782, %v6832
  %v6834 = vlaneseq
  %v6835 = vshrl.u32 %v6834, 7
  %v6836 = vsub.s32 0, %v6835
  %v6837 = vrot.slane %v6790, %v6836
  %v6838 = vlaneseq
  %v6839 = vshrl.u32 %v6838, 7
  %v6840 = vsub.s32 0, %v6839
  %v6841 = vrot.slane %v6792, %v6840
  %v6842 = vlaneseq
  %v6843 = vshrl.u32 %v6842, 7
  %v6844 = vsub.s32 0, %v6843
  %v6845 = vrot.slane %v6775, %v6844
  %v6846 = vlaneseq
  %v6847 = vshrl.u32 %v6846, 7
  %v6848 = vsub.s32 0, %v6847
  %v6849 = vrot.slane %v6789, %v6848
  %v6850 = vlaneseq
  %v6851 = vshrl.u32 %v6850, 7
  %v6852 = vsub.s32 0, %v6851
  %v6853 = vrot.slane %v6791, %v6852
  %v6854 = vlaneseq
  %v6855 = vshrl.u32 %v6854, 7
  %v6856 = vsub.s32 0, %v6855
  %v6857 = vrot.slane %v6793, %v6856
  %v6874 = vmul.f32 %v2685, %v6797
  %v6875 = vmul.f32 %v2688, %v6797
  %v6876 = vmul.f32 %v2693, %v6797
  %v6877 = vmul.f32 %v2696, %v6797
  %v6878 = vmul.f32 %v2701, %v6797
  %v6879 = vmul.f32 %v2704, %v6797
  %v6880 = vmul.f32 %v2709, %v6797
  %v6881 = vmul.f32 %v2712, %v6797
  %v6882 = vmul.f32 %v2717, %v6797
  %v6883 = vmul.f32 %v2720, %v6797
  %v6884 = vmul.f32 %v2725, %v6797
  %v6885 = vmul.f32 %v2728, %v6797
  %v6886 = vmul.f32 %v2733, %v6797
  %v6887 = vmul.f32 %v2736, %v6797
  %v6888 = vmul.f32 %v2741, %v6797
  %v6889 = vmul.f32 %v2744, %v6797
  %v6890 = vmul.f32 %v2749, %v6797
  %v6891 = vmul.f32 %v2752, %v6797
  %v6892 = vmul.f32 %v2757, %v6797
  %v6893 = vmul.f32 %v2760, %v6797
  %v6894 = vmul.f32 %v2765, %v6797
  %v6895 = vmul.f32 %v2768, %v6797
  %v6896 = vmul.f32 %v2773, %v6797
  %v6897 = vmul.f32 %v2776, %v6797
  %v6898 = vmul.f32 %v2781, %v6797
  %v6899 = vmul.f32 %v2784, %v6797
  %v6900 = vmul.f32 %v2789, %v6797
  %v6901 = vmul.f32 %v2792, %v6797
  %v6902 = vmul.f32 %v2797, %v6797
  %v6903 = vmul.f32 %v2800, %v6797
  %v6904 = vmul.f32 %v2805, %v6797
  %v6905 = vmul.f32 %v2808, %v6797
  %v6906 = vmul.f32 %v2813, %v6801
  %v6907 = vmul.f32 %v2816, %v6801
  %v6908 = vmul.f32 %v2821, %v6801
  %v6909 = vmul.f32 %v2824, %v6801
  %v6910 = vmul.f32 %v2829, %v6801
  %v6911 = vmul.f32 %v2832, %v6801
  %v6912 = vmul.f32 %v2837, %v6801
  %v6913 = vmul.f32 %v2840, %v6801
  %v6914 = vmul.f32 %v2845, %v6801
  %v6915 = vmul.f32 %v2848, %v6801
  %v6916 = vmul.f32 %v2853, %v6801
  %v6917 = vmul.f32 %v2856, %v6801
  %v6918 = vmul.f32 %v2861, %v6801
  %v6919 = vmul.f32 %v2864, %v6801
  %v6920 = vmul.f32 %v2869, %v6801
  %v6921 = vmul.f32 %v2872, %v6801
  %v6922 = vmul.f32 %v2877, %v6801
  %v6923 = vmul.f32 %v2880, %v6801
  %v6924 = vmul.f32 %v2885, %v6801
  %v6925 = vmul.f32 %v2888, %v6801
  %v6926 = vmul.f32 %v2893, %v6801
  %v6927 = vmul.f32 %v2896, %v6801
  %v6928 = vmul.f32 %v2901, %v6801
  %v6929 = vmul.f32 %v2904, %v6801
  %v6930 = vmul.f32 %v2909, %v6801
  %v6931 = vmul.f32 %v2912, %v6801
  %v6932 = vmul.f32 %v2917, %v6801
  %v6933 = vmul.f32 %v2920, %v6801
  %v6934 = vmul.f32 %v2925, %v6801
  %v6935 = vmul.f32 %v2928, %v6801
  %v6936 = vmul.f32 %v2933, %v6801
  %v6937 = vmul.f32 %v2936, %v6801
  %v6938 = vmul.f32 %v2941, %v6805
  %v6939 = vmul.f32 %v2944, %v6805
  %v6940 = vmul.f32 %v2949, %v6805
  %v6941 = vmul.f32 %v2952, %v6805
  %v6942 = vmul.f32 %v2957, %v6805
  %v6943 = vmul.f32 %v2960, %v6805
  %v6944 = vmul.f32 %v2965, %v6805
  %v6945 = vmul.f32 %v2968, %v6805
  %v6946 = vmul.f32 %v2973, %v6805
  %v6947 = vmul.f32 %v2976, %v6805
  %v6948 = vmul.f32 %v2981, %v6805
  %v6949 = vmul.f32 %v2984, %v6805
  %v6950 = vmul.f32 %v2989, %v6805
  %v6951 = vmul.f32 %v2992, %v6805
  %v6952 = vmul.f32 %v2997, %v6805
  %v6953 = vmul.f32 %v3000, %v6805
  %v6954 = vmul.f32 %v3005, %v6805
  %v6955 = vmul.f32 %v3008, %v6805
  %v6956 = vmul.f32 %v3013, %v6805
  %v6957 = vmul.f32 %v3016, %v6805
  %v6958 = vmul.f32 %v3021, %v6805
  %v6959 = vmul.f32 %v3024, %v6805
  %v6960 = vmul.f32 %v3029, %v6805
  %v6961 = vmul.f32 %v3032, %v6805
  %v6962 = vmul.f32 %v3037, %v6805
  %v6963 = vmul.f32 %v3040, %v6805
  %v6964 = vmul.f32 %v3045, %v6805
  %v6965 = vmul.f32 %v3048, %v6805
  %v6966 = vmul.f32 %v3053, %v6805
  %v6967 = vmul.f32 %v3056, %v6805
  %v6968 = vmul.f32 %v3061, %v6805
  %v6969 = vmul.f32 %v3064, %v6805
  %v6970 = vmul.f32 %v3069, %v6809
  %v6971 = vmul.f32 %v3072, %v6809
  %v6972 = vmul.f32 %v3077, %v6809
  %v6973 = vmul.f32 %v3080, %v6809
  %v6974 = vmul.f32 %v3085, %v6809
  %v6975 = vmul.f32 %v3088, %v6809
  %v6976 = vmul.f32 %v3093, %v6809
  %v6977 = vmul.f32 %v3096, %v6809
  %v6978 = vmul.f32 %v3101, %v6809
  %v6979 = vmul.f32 %v3104, %v6809
  %v6980 = vmul.f32 %v3109, %v6809
  %v6981 = vmul.f32 %v3112, %v6809
  %v6982 = vmul.f32 %v3117, %v6809
  %v6983 = vmul.f32 %v3120, %v6809
  %v6984 = vmul.f32 %v3125, %v6809
  %v6985 = vmul.f32 %v3128, %v6809
  %v6986 = vmul.f32 %v3133, %v6809
  %v6987 = vmul.f32 %v3136, %v6809
  %v6988 = vmul.f32 %v3141, %v6809
  %v6989 = vmul.f32 %v3144, %v6809
  %v6990 = vmul.f32 %v3149, %v6809
  %v6991 = vmul.f32 %v3152, %v6809
  %v6992 = vmul.f32 %v3157, %v6809
  %v6993 = vmul.f32 %v3160, %v6809
  %v6994 = vmul.f32 %v3165, %v6809
  %v6995 = vmul.f32 %v3168, %v6809
  %v6996 = vmul.f32 %v3173, %v6809
  %v6997 = vmul.f32 %v3176, %v6809
  %v6998 = vmul.f32 %v3181, %v6809
  %v6999 = vmul.f32 %v3184, %v6809
  %v7000 = vmul.f32 %v3189, %v6809
  %v7001 = vmul.f32 %v3192, %v6809
  %v7002 = vmul.f32 %v3197, %v6813
  %v7003 = vmul.f32 %v3200, %v6813
  %v7004 = vmul.f32 %v3205, %v6813
  %v7005 = vmul.f32 %v3208, %v6813
  %v7006 = vmul.f32 %v3213, %v6813
  %v7007 = vmul.f32 %v3216, %v6813
  %v7008 = vmul.f32 %v3221, %v6813
  %v7009 = vmul.f32 %v3224, %v6813
  %v7010 = vmul.f32 %v3229, %v6813
  %v7011 = vmul.f32 %v3232, %v6813
  %v7012 = vmul.f32 %v3237, %v6813
  %v7013 = vmul.f32 %v3240, %v6813
  %v7014 = vmul.f32 %v3245, %v6813
  %v7015 = vmul.f32 %v3248, %v6813
  %v7016 = vmul.f32 %v3253, %v6813
  %v7017 = vmul.f32 %v3256, %v6813
  %v7018 = vmul.f32 %v3261, %v6813
  %v7019 = vmul.f32 %v3264, %v6813
  %v7020 = vmul.f32 %v3269, %v6813
  %v7021 = vmul.f32 %v3272, %v6813
  %v7022 = vmul.f32 %v3277, %v6813
  %v7023 = vmul.f32 %v3280, %v6813
  %v7024 = vmul.f32 %v3285, %v6813
  %v7025 = vmul.f32 %v3288, %v6813
  %v7026 = vmul.f32 %v3293, %v6813
  %v7027 = vmul.f32 %v3296, %v6813
  %v7028 = vmul.f32 %v3301, %v6813
  %v7029 = vmul.f32 %v3304, %v6813
  %v7030 = vmul.f32 %v3309, %v6813
  %v7031 = vmul.f32 %v3312, %v6813
  %v7032 = vmul.f32 %v3317, %v6813
  %v7033 = vmul.f32 %v3320, %v6813
  %v7034 = vmul.f32 %v3325, %v6817
  %v7035 = vmul.f32 %v3328, %v6817
  %v7036 = vmul.f32 %v3333, %v6817
  %v7037 = vmul.f32 %v3336, %v6817
  %v7038 = vmul.f32 %v3341, %v6817
  %v7039 = vmul.f32 %v3344, %v6817
  %v7040 = vmul.f32 %v3349, %v6817
  %v7041 = vmul.f32 %v3352, %v6817
  %v7042 = vmul.f32 %v3357, %v6817
  %v7043 = vmul.f32 %v3360, %v6817
  %v7044 = vmul.f32 %v3365, %v6817
  %v7045 = vmul.f32 %v3368, %v6817
  %v7046 = vmul.f32 %v3373, %v6817
  %v7047 = vmul.f32 %v3376, %v6817
  %v7048 = vmul.f32 %v3381, %v6817
  %v7049 = vmul.f32 %v3384, %v6817
  %v7050 = vmul.f32 %v3389, %v6817
  %v7051 = vmul.f32 %v3392, %v6817
  %v7052 = vmul.f32 %v3397, %v6817
  %v7053 = vmul.f32 %v3400, %v6817
  %v7054 = vmul.f32 %v3405, %v6817
  %v7055 = vmul.f32 %v3408, %v6817
  %v7056 = vmul.f32 %v3413, %v6817
  %v7057 = vmul.f32 %v3416, %v6817
  %v7058 = vmul.f32 %v3421, %v6817
  %v7059 = vmul.f32 %v3424, %v6817
  %v7060 = vmul.f32 %v3429, %v6817
  %v7061 = vmul.f32 %v3432, %v6817
  %v7062 = vmul.f32 %v3437, %v6817
  %v7063 = vmul.f32 %v3440, %v6817
  %v7064 = vmul.f32 %v3445, %v6817
  %v7065 = vmul.f32 %v3448, %v6817
  %v7066 = vmul.f32 %v3453, %v6821
  %v7067 = vmul.f32 %v3456, %v6821
  %v7068 = vmul.f32 %v3461, %v6821
  %v7069 = vmul.f32 %v3464, %v6821
  %v7070 = vmul.f32 %v3469, %v6821
  %v7071 = vmul.f32 %v3472, %v6821
  %v7072 = vmul.f32 %v3477, %v6821
  %v7073 = vmul.f32 %v3480, %v6821
  %v7074 = vmul.f32 %v3485, %v6821
  %v7075 = vmul.f32 %v3488, %v6821
  %v7076 = vmul.f32 %v3493, %v6821
  %v7077 = vmul.f32 %v3496, %v6821
  %v7078 = vmul.f32 %v3501, %v6821
  %v7079 = vmul.f32 %v3504, %v6821
  %v7080 = vmul.f32 %v3509, %v6821
  %v7081 = vmul.f32 %v3512, %v6821
  %v7082 = vmul.f32 %v3517, %v6821
  %v7083 = vmul.f32 %v3520, %v6821
  %v7084 = vmul.f32 %v3525, %v6821
  %v7085 = vmul.f32 %v3528, %v6821
  %v7086 = vmul.f32 %v3533, %v6821
  %v7087 = vmul.f32 %v3536, %v6821
  %v7088 = vmul.f32 %v3541, %v6821
  %v7089 = vmul.f32 %v3544, %v6821
  %v7090 = vmul.f32 %v3549, %v6821
  %v7091 = vmul.f32 %v3552, %v6821
  %v7092 = vmul.f32 %v3557, %v6821
  %v7093 = vmul.f32 %v3560, %v6821
  %v7094 = vmul.f32 %v3565, %v6821
  %v7095 = vmul.f32 %v3568, %v6821
  %v7096 = vmul.f32 %v3573, %v6821
  %v7097 = vmul.f32 %v3576, %v6821
  %v7098 = vmul.f32 %v3581, %v6825
  %v7099 = vmul.f32 %v3584, %v6825
  %v7100 = vmul.f32 %v3589, %v6825
  %v7101 = vmul.f32 %v3592, %v6825
  %v7102 = vmul.f32 %v3597, %v6825
  %v7103 = vmul.f32 %v3600, %v6825
  %v7104 = vmul.f32 %v3605, %v6825
  %v7105 = vmul.f32 %v3608, %v6825
  %v7106 = vmul.f32 %v3613, %v6825
  %v7107 = vmul.f32 %v3616, %v6825
  %v7108 = vmul.f32 %v3621, %v6825
  %v7109 = vmul.f32 %v3624, %v6825
  %v7110 = vmul.f32 %v3629, %v6825
  %v7111 = vmul.f32 %v3632, %v6825
  %v7112 = vmul.f32 %v3637, %v6825
  %v7113 = vmul.f32 %v3640, %v6825
  %v7114 = vmul.f32 %v3645, %v6825
  %v7115 = vmul.f32 %v3648, %v6825
  %v7116 = vmul.f32 %v3653, %v6825
  %v7117 = vmul.f32 %v3656, %v6825
  %v7118 = vmul.f32 %v3661, %v6825
  %v7119 = vmul.f32 %v3664, %v6825
  %v7120 = vmul.f32 %v3669, %v6825
  %v7121 = vmul.f32 %v3672, %v6825
  %v7122 = vmul.f32 %v3677, %v6825
  %v7123 = vmul.f32 %v3680, %v6825
  %v7124 = vmul.f32 %v3685, %v6825
  %v7125 = vmul.f32 %v3688, %v6825
  %v7126 = vmul.f32 %v3693, %v6825
  %v7127 = vmul.f32 %v3696, %v6825
  %v7128 = vmul.f32 %v3701, %v6825
  %v7129 = vmul.f32 %v3704, %v6825
  %v7130 = vmul.f32 %v3709, %v6829
  %v7131 = vmul.f32 %v3712, %v6829
  %v7132 = vmul.f32 %v3717, %v6829
  %v7133 = vmul.f32 %v3720, %v6829
  %v7134 = vmul.f32 %v3725, %v6829
  %v7135 = vmul.f32 %v3728, %v6829
  %v7136 = vmul.f32 %v3733, %v6829
  %v7137 = vmul.f32 %v3736, %v6829
  %v7138 = vmul.f32 %v3741, %v6829
  %v7139 = vmul.f32 %v3744, %v6829
  %v7140 = vmul.f32 %v3749, %v6829
  %v7141 = vmul.f32 %v3752, %v6829
  %v7142 = vmul.f32 %v3757, %v6829
  %v7143 = vmul.f32 %v3760, %v6829
  %v7144 = vmul.f32 %v3765, %v6829
  %v7145 = vmul.f32 %v3768, %v6829
  %v7146 = vmul.f32 %v3773, %v6829
  %v7147 = vmul.f32 %v3776, %v6829
  %v7148 = vmul.f32 %v3781, %v6829
  %v7149 = vmul.f32 %v3784, %v6829
  %v7150 = vmul.f32 %v3789, %v6829
  %v7151 = vmul.f32 %v3792, %v6829
  %v7152 = vmul.f32 %v3797, %v6829
  %v7153 = vmul.f32 %v3800, %v6829
  %v7154 = vmul.f32 %v3805, %v6829
  %v7155 = vmul.f32 %v3808, %v6829
  %v7156 = vmul.f32 %v3813, %v6829
  %v7157 = vmul.f32 %v3816, %v6829
  %v7158 = vmul.f32 %v3821, %v6829
  %v7159 = vmul.f32 %v3824, %v6829
  %v7160 = vmul.f32 %v3829, %v6829
  %v7161 = vmul.f32 %v3832, %v6829
  %v7162 = vmul.f32 %v3837, %v6833
  %v7163 = vmul.f32 %v3840, %v6833
  %v7164 = vmul.f32 %v3845, %v6833
  %v7165 = vmul.f32 %v3848, %v6833
  %v7166 = vmul.f32 %v3853, %v6833
  %v7167 = vmul.f32 %v3856, %v6833
  %v7168 = vmul.f32 %v3861, %v6833
  %v7169 = vmul.f32 %v3864, %v6833
  %v7170 = vmul.f32 %v3869, %v6833
  %v7171 = vmul.f32 %v3872, %v6833
  %v7172 = vmul.f32 %v3877, %v6833
  %v7173 = vmul.f32 %v3880, %v6833
  %v7174 = vmul.f32 %v3885, %v6833
  %v7175 = vmul.f32 %v3888, %v6833
  %v7176 = vmul.f32 %v3893, %v6833
  %v7177 = vmul.f32 %v3896, %v6833
  %v7178 = vmul.f32 %v3901, %v6833
  %v7179 = vmul.f32 %v3904, %v6833
  %v7180 = vmul.f32 %v3909, %v6833
  %v7181 = vmul.f32 %v3912, %v6833
  %v7182 = vmul.f32 %v3917, %v6833
  %v7183 = vmul.f32 %v3920, %v6833
  %v7184 = vmul.f32 %v3925, %v6833
  %v7185 = vmul.f32 %v3928, %v6833
  %v7186 = vmul.f32 %v3933, %v6833
  %v7187 = vmul.f32 %v3936, %v6833
  %v7188 = vmul.f32 %v3941, %v6833
  %v7189 = vmul.f32 %v3944, %v6833
  %v7190 = vmul.f32 %v3949, %v6833
  %v7191 = vmul.f32 %v3952, %v6833
  %v7192 = vmul.f32 %v3957, %v6833
  %v7193 = vmul.f32 %v3960, %v6833
  %v7194 = vmul.f32 %v3965, %v6837
  %v7195 = vmul.f32 %v3968, %v6837
  %v7196 = vmul.f32 %v3973, %v6837
  %v7197 = vmul.f32 %v3976, %v6837
  %v7198 = vmul.f32 %v3981, %v6837
  %v7199 = vmul.f32 %v3984, %v6837
  %v7200 = vmul.f32 %v3989, %v6837
  %v7201 = vmul.f32 %v3992, %v6837
  %v7202 = vmul.f32 %v3997, %v6837
  %v7203 = vmul.f32 %v4000, %v6837
  %v7204 = vmul.f32 %v4005, %v6837
  %v7205 = vmul.f32 %v4008, %v6837
  %v7206 = vmul.f32 %v4013, %v6837
  %v7207 = vmul.f32 %v4016, %v6837
  %v7208 = vmul.f32 %v4021, %v6837
  %v7209 = vmul.f32 %v4024, %v6837
  %v7210 = vmul.f32 %v4029, %v6837
  %v7211 = vmul.f32 %v4032, %v6837
  %v7212 = vmul.f32 %v4037, %v6837
  %v7213 = vmul.f32 %v4040, %v6837
  %v7214 = vmul.f32 %v4045, %v6837
  %v7215 = vmul.f32 %v4048, %v6837
  %v7216 = vmul.f32 %v4053, %v6837
  %v7217 = vmul.f32 %v4056, %v6837
  %v7218 = vmul.f32 %v4061, %v6837
  %v7219 = vmul.f32 %v4064, %v6837
  %v7220 = vmul.f32 %v4069, %v6837
  %v7221 = vmul.f32 %v4072, %v6837
  %v7222 = vmul.f32 %v4077, %v6837
  %v7223 = vmul.f32 %v4080, %v6837
  %v7224 = vmul.f32 %v4085, %v6837
  %v7225 = vmul.f32 %v4088, %v6837
  %v7226 = vmul.f32 %v4093, %v6841
  %v7227 = vmul.f32 %v4096, %v6841
  %v7228 = vmul.f32 %v4101, %v6841
  %v7229 = vmul.f32 %v4104, %v6841
  %v7230 = vmul.f32 %v4109, %v6841
  %v7231 = vmul.f32 %v4112, %v6841
  %v7232 = vmul.f32 %v4117, %v6841
  %v7233 = vmul.f32 %v4120, %v6841
  %v7234 = vmul.f32 %v4125, %v6841
  %v7235 = vmul.f32 %v4128, %v6841
  %v7236 = vmul.f32 %v4133, %v6841
  %v7237 = vmul.f32 %v4136, %v6841
  %v7238 = vmul.f32 %v4141, %v6841
  %v7239 = vmul.f32 %v4144, %v6841
  %v7240 = vmul.f32 %v4149, %v6841
  %v7241 = vmul.f32 %v4152, %v6841
  %v7242 = vmul.f32 %v4157, %v6841
  %v7243 = vmul.f32 %v4160, %v6841
  %v7244 = vmul.f32 %v4165, %v6841
  %v7245 = vmul.f32 %v4168, %v6841
  %v7246 = vmul.f32 %v4173, %v6841
  %v7247 = vmul.f32 %v4176, %v6841
  %v7248 = vmul.f32 %v4181, %v6841
  %v7249 = vmul.f32 %v4184, %v6841
  %v7250 = vmul.f32 %v4189, %v6841
  %v7251 = vmul.f32 %v4192, %v6841
  %v7252 = vmul.f32 %v4197, %v6841
  %v7253 = vmul.f32 %v4200, %v6841
  %v7254 = vmul.f32 %v4205, %v6841
  %v7255 = vmul.f32 %v4208, %v6841
  %v7256 = vmul.f32 %v4213, %v6841
  %v7257 = vmul.f32 %v4216, %v6841
  %v7258 = vmul.f32 %v4221, %v6845
  %v7259 = vmul.f32 %v4224, %v6845
  %v7260 = vmul.f32 %v4229, %v6845
  %v7261 = vmul.f32 %v4232, %v6845
  %v7262 = vmul.f32 %v4237, %v6845
  %v7263 = vmul.f32 %v4240, %v6845
  %v7264 = vmul.f32 %v4245, %v6845
  %v7265 = vmul.f32 %v4248, %v6845
  %v7266 = vmul.f32 %v4253, %v6845
  %v7267 = vmul.f32 %v4256, %v6845
  %v7268 = vmul.f32 %v4261, %v6845
  %v7269 = vmul.f32 %v4264, %v6845
  %v7270 = vmul.f32 %v4269, %v6845
  %v7271 = vmul.f32 %v4272, %v6845
  %v7272 = vmul.f32 %v4277, %v6845
  %v7273 = vmul.f32 %v4280, %v6845
  %v7274 = vmul.f32 %v4285, %v6845
  %v7275 = vmul.f32 %v4288, %v6845
  %v7276 = vmul.f32 %v4293, %v6845
  %v7277 = vmul.f32 %v4296, %v6845
  %v7278 = vmul.f32 %v4301, %v6845
  %v7279 = vmul.f32 %v4304, %v6845
  %v7280 = vmul.f32 %v4309, %v6845
  %v7281 = vmul.f32 %v4312, %v6845
  %v7282 = vmul.f32 %v4317, %v6845
  %v7283 = vmul.f32 %v4320, %v6845
  %v7284 = vmul.f32 %v4325, %v6845
  %v7285 = vmul.f32 %v4328, %v6845
  %v7286 = vmul.f32 %v4333, %v6845
  %v7287 = vmul.f32 %v4336, %v6845
  %v7288 = vmul.f32 %v4341, %v6845
  %v7289 = vmul.f32 %v4344, %v6845
  %v7290 = vmul.f32 %v4349, %v6849
  %v7291 = vmul.f32 %v4352, %v6849
  %v7292 = vmul.f32 %v4357, %v6849
  %v7293 = vmul.f32 %v4360, %v6849
  %v7294 = vmul.f32 %v4365, %v6849
  %v7295 = vmul.f32 %v4368, %v6849
  %v7296 = vmul.f32 %v4373, %v6849
  %v7297 = vmul.f32 %v4376, %v6849
  %v7298 = vmul.f32 %v4381, %v6849
  %v7299 = vmul.f32 %v4384, %v6849
  %v7300 = vmul.f32 %v4389, %v6849
  %v7301 = vmul.f32 %v4392, %v6849
  %v7302 = vmul.f32 %v4397, %v6849
  %v7303 = vmul.f32 %v4400, %v6849
  %v7304 = vmul.f32 %v4405, %v6849
  %v7305 = vmul.f32 %v4408, %v6849
  %v7306 = vmul.f32 %v4413, %v6849
  %v7307 = vmul.f32 %v4416, %v6849
  %v7308 = vmul.f32 %v4421, %v6849
  %v7309 = vmul.f32 %v4424, %v6849
  %v7310 = vmul.f32 %v4429, %v6849
  %v7311 = vmul.f32 %v4432, %v6849
  %v7312 = vmul.f32 %v4437, %v6849
  %v7313 = vmul.f32 %v4440, %v6849
  %v7314 = vmul.f32 %v4445, %v6849
  %v7315 = vmul.f32 %v4448, %v6849
  %v7316 = vmul.f32 %v4453, %v6849
  %v7317 = vmul.f32 %v4456, %v6849
  %v7318 = vmul.f32 %v4461, %v6849
  %v7319 = vmul.f32 %v4464, %v6849
  %v7320 = vmul.f32 %v4469, %v6849
  %v7321 = vmul.f32 %v4472, %v6849
  %v7322 = vmul.f32 %v4477, %v6853
  %v7323 = vmul.f32 %v4480, %v6853
  %v7324 = vmul.f32 %v4485, %v6853
  %v7325 = vmul.f32 %v4488, %v6853
  %v7326 = vmul.f32 %v4493, %v6853
  %v7327 = vmul.f32 %v4496, %v6853
  %v7328 = vmul.f32 %v4501, %v6853
  %v7329 = vmul.f32 %v4504, %v6853
  %v7330 = vmul.f32 %v4509, %v6853
  %v7331 = vmul.f32 %v4512, %v6853
  %v7332 = vmul.f32 %v4517, %v6853
  %v7333 = vmul.f32 %v4520, %v6853
  %v7334 = vmul.f32 %v4525, %v6853
  %v7335 = vmul.f32 %v4528, %v6853
  %v7336 = vmul.f32 %v4533, %v6853
  %v7337 = vmul.f32 %v4536, %v6853
  %v7338 = vmul.f32 %v4541, %v6853
  %v7339 = vmul.f32 %v4544, %v6853
  %v7340 = vmul.f32 %v4549, %v6853
  %v7341 = vmul.f32 %v4552, %v6853
  %v7342 = vmul.f32 %v4557, %v6853
  %v7343 = vmul.f32 %v4560, %v6853
  %v7344 = vmul.f32 %v4565, %v6853
  %v7345 = vmul.f32 %v4568, %v6853
  %v7346 = vmul.f32 %v4573, %v6853
  %v7347 = vmul.f32 %v4576, %v6853
  %v7348 = vmul.f32 %v4581, %v6853
  %v7349 = vmul.f32 %v4584, %v6853
  %v7350 = vmul.f32 %v4589, %v6853
  %v7351 = vmul.f32 %v4592, %v6853
  %v7352 = vmul.f32 %v4597, %v6853
  %v7353 = vmul.f32 %v4600, %v6853
  %v7354 = vmul.f32 %v4605, %v6857
  %v7355 = vmul.f32 %v4608, %v6857
  %v7356 = vmul.f32 %v4613, %v6857
  %v7357 = vmul.f32 %v4616, %v6857
  %v7358 = vmul.f32 %v4621, %v6857
  %v7359 = vmul.f32 %v4624, %v6857
  %v7360 = vmul.f32 %v4629, %v6857
  %v7361 = vmul.f32 %v4632, %v6857
  %v7362 = vmul.f32 %v4637, %v6857
  %v7363 = vmul.f32 %v4640, %v6857
  %v7364 = vmul.f32 %v4645, %v6857
  %v7365 = vmul.f32 %v4648, %v6857
  %v7366 = vmul.f32 %v4653, %v6857
  %v7367 = vmul.f32 %v4656, %v6857
  %v7368 = vmul.f32 %v4661, %v6857
  %v7369 = vmul.f32 %v4664, %v6857
  %v7370 = vmul.f32 %v4669, %v6857
  %v7371 = vmul.f32 %v4672, %v6857
  %v7372 = vmul.f32 %v4677, %v6857
  %v7373 = vmul.f32 %v4680, %v6857
  %v7374 = vmul.f32 %v4685, %v6857
  %v7375 = vmul.f32 %v4688, %v6857
  %v7376 = vmul.f32 %v4693, %v6857
  %v7377 = vmul.f32 %v4696, %v6857
  %v7378 = vmul.f32 %v4701, %v6857
  %v7379 = vmul.f32 %v4704, %v6857
  %v7380 = vmul.f32 %v4709, %v6857
  %v7381 = vmul.f32 %v4712, %v6857
  %v7382 = vmul.f32 %v4717, %v6857
  %v7383 = vmul.f32 %v4720, %v6857
  %v7384 = vmul.f32 %v4725, %v6857
  %v7385 = vmul.f32 %v4728, %v6857
  %v7388 = vcombine.high %v6692, %v6692
  %v7390 = vunpack.c.l.s4 1966171168
  %v7391 = vunpack.c.0.s8 %v7390
  %v7392 = vlaneseq
  %v7393 = vshrl.u32 %v7392, 7
  %v7394 = vsub.s32 %v7391, %v7393
  %v7395 = vrot.slane %v6692, %v7394
  %v7397 = vunpack.c.l.s4 1966171168
  %v7398 = vunpack.c.0.s8 %v7397
  %v7399 = vlaneseq
  %v7400 = vshrl.u32 %v7399, 7
  %v7401 = vsub.s32 %v7398, %v7400
  %v7402 = vrot.slane %v7388, %v7401
  %v7403 = vcombine.high %v7395, %v7395
  %v7404 = vcombine.high %v7402, %v7402
  %v7406 = vunpack.c.l.s4 1966171168
  %v7407 = vunpack.c.0.s8 %v7406
  %v7408 = vlaneseq
  %v7409 = vshrl.u32 %v7408, 7
  %v7410 = vsub.s32 %v7407, %v7409
  %v7411 = vrot.slane %v7395, %v7410
  %v7413 = vunpack.c.l.s4 1966171168
  %v7414 = vunpack.c.0.s8 %v7413
  %v7415 = vlaneseq
  %v7416 = vshrl.u32 %v7415, 7
  %v7417 = vsub.s32 %v7414, %v7416
  %v7418 = vrot.slane %v7402, %v7417
  %v7420 = vunpack.c.l.s4 1966171168
  %v7421 = vunpack.c.0.s8 %v7420
  %v7422 = vlaneseq
  %v7423 = vshrl.u32 %v7422, 7
  %v7424 = vsub.s32 %v7421, %v7423
  %v7425 = vrot.slane %v7403, %v7424
  %v7427 = vunpack.c.l.s4 1966171168
  %v7428 = vunpack.c.0.s8 %v7427
  %v7429 = vlaneseq
  %v7430 = vshrl.u32 %v7429, 7
  %v7431 = vsub.s32 %v7428, %v7430
  %v7432 = vrot.slane %v7404, %v7431
  %v7433 = vcombine.high %v7411, %v7411
  %v7434 = vcombine.high %v7418, %v7418
  %v7435 = vcombine.high %v7425, %v7425
  %v7436 = vcombine.high %v7432, %v7432
  %v7437 = vcombine.high %v6693, %v6693
  %v7439 = vunpack.c.l.s4 1966171168
  %v7440 = vunpack.c.0.s8 %v7439
  %v7441 = vlaneseq
  %v7442 = vshrl.u32 %v7441, 7
  %v7443 = vsub.s32 %v7440, %v7442
  %v7444 = vrot.slane %v6693, %v7443
  %v7446 = vunpack.c.l.s4 1966171168
  %v7447 = vunpack.c.0.s8 %v7446
  %v7448 = vlaneseq
  %v7449 = vshrl.u32 %v7448, 7
  %v7450 = vsub.s32 %v7447, %v7449
  %v7451 = vrot.slane %v7437, %v7450
  %v7452 = vcombine.high %v7444, %v7444
  %v7453 = vcombine.high %v7451, %v7451
  %v7455 = vunpack.c.l.s4 1966171168
  %v7456 = vunpack.c.0.s8 %v7455
  %v7457 = vlaneseq
  %v7458 = vshrl.u32 %v7457, 7
  %v7459 = vsub.s32 %v7456, %v7458
  %v7460 = vrot.slane %v7444, %v7459
  %v7462 = vunpack.c.l.s4 1966171168
  %v7463 = vunpack.c.0.s8 %v7462
  %v7464 = vlaneseq
  %v7465 = vshrl.u32 %v7464, 7
  %v7466 = vsub.s32 %v7463, %v7465
  %v7467 = vrot.slane %v7451, %v7466
  %v7469 = vunpack.c.l.s4 1966171168
  %v7470 = vunpack.c.0.s8 %v7469
  %v7471 = vlaneseq
  %v7472 = vshrl.u32 %v7471, 7
  %v7473 = vsub.s32 %v7470, %v7472
  %v7474 = vrot.slane %v7452, %v7473
  %v7476 = vunpack.c.l.s4 1966171168
  %v7477 = vunpack.c.0.s8 %v7476
  %v7478 = vlaneseq
  %v7479 = vshrl.u32 %v7478, 7
  %v7480 = vsub.s32 %v7477, %v7479
  %v7481 = vrot.slane %v7453, %v7480
  %v7482 = vcombine.high %v7460, %v7460
  %v7483 = vcombine.high %v7467, %v7467
  %v7484 = vcombine.high %v7474, %v7474
  %v7485 = vcombine.high %v7481, %v7481
  %v7486 = vlaneseq
  %v7487 = vshrl.u32 %v7486, 7
  %v7488 = vsub.s32 0, %v7487
  %v7489 = vrot.slane %v7411, %v7488
  %v7490 = vlaneseq
  %v7491 = vshrl.u32 %v7490, 7
  %v7492 = vsub.s32 0, %v7491
  %v7493 = vrot.slane %v7425, %v7492
  %v7494 = vlaneseq
  %v7495 = vshrl.u32 %v7494, 7
  %v7496 = vsub.s32 0, %v7495
  %v7497 = vrot.slane %v7433, %v7496
  %v7498 = vlaneseq
  %v7499 = vshrl.u32 %v7498, 7
  %v7500 = vsub.s32 0, %v7499
  %v7501 = vrot.slane %v7435, %v7500
  %v7502 = vlaneseq
  %v7503 = vshrl.u32 %v7502, 7
  %v7504 = vsub.s32 0, %v7503
  %v7505 = vrot.slane %v7418, %v7504
  %v7506 = vlaneseq
  %v7507 = vshrl.u32 %v7506, 7
  %v7508 = vsub.s32 0, %v7507
  %v7509 = vrot.slane %v7432, %v7508
  %v7510 = vlaneseq
  %v7511 = vshrl.u32 %v7510, 7
  %v7512 = vsub.s32 0, %v7511
  %v7513 = vrot.slane %v7434, %v7512
  %v7514 = vlaneseq
  %v7515 = vshrl.u32 %v7514, 7
  %v7516 = vsub.s32 0, %v7515
  %v7517 = vrot.slane %v7436, %v7516
  %v7518 = vlaneseq
  %v7519 = vshrl.u32 %v7518, 7
  %v7520 = vsub.s32 0, %v7519
  %v7521 = vrot.slane %v7460, %v7520
  %v7522 = vlaneseq
  %v7523 = vshrl.u32 %v7522, 7
  %v7524 = vsub.s32 0, %v7523
  %v7525 = vrot.slane %v7474, %v7524
  %v7526 = vlaneseq
  %v7527 = vshrl.u32 %v7526, 7
  %v7528 = vsub.s32 0, %v7527
  %v7529 = vrot.slane %v7482, %v7528
  %v7530 = vlaneseq
  %v7531 = vshrl.u32 %v7530, 7
  %v7532 = vsub.s32 0, %v7531
  %v7533 = vrot.slane %v7484, %v7532
  %v7534 = vlaneseq
  %v7535 = vshrl.u32 %v7534, 7
  %v7536 = vsub.s32 0, %v7535
  %v7537 = vrot.slane %v7467, %v7536
  %v7538 = vlaneseq
  %v7539 = vshrl.u32 %v7538, 7
  %v7540 = vsub.s32 0, %v7539
  %v7541 = vrot.slane %v7481, %v7540
  %v7542 = vlaneseq
  %v7543 = vshrl.u32 %v7542, 7
  %v7544 = vsub.s32 0, %v7543
  %v7545 = vrot.slane %v7483, %v7544
  %v7546 = vlaneseq
  %v7547 = vshrl.u32 %v7546, 7
  %v7548 = vsub.s32 0, %v7547
  %v7549 = vrot.slane %v7485, %v7548
  %v7566 = vadd.f32 %v6874, %v7489
  %v7567 = vadd.f32 %v6875, %v7489
  %v7568 = vadd.f32 %v6876, %v7489
  %v7569 = vadd.f32 %v6877, %v7489
  %v7570 = vadd.f32 %v6878, %v7489
  %v7571 = vadd.f32 %v6879, %v7489
  %v7572 = vadd.f32 %v6880, %v7489
  %v7573 = vadd.f32 %v6881, %v7489
  %v7574 = vadd.f32 %v6882, %v7489
  %v7575 = vadd.f32 %v6883, %v7489
  %v7576 = vadd.f32 %v6884, %v7489
  %v7577 = vadd.f32 %v6885, %v7489
  %v7578 = vadd.f32 %v6886, %v7489
  %v7579 = vadd.f32 %v6887, %v7489
  %v7580 = vadd.f32 %v6888, %v7489
  %v7581 = vadd.f32 %v6889, %v7489
  %v7582 = vadd.f32 %v6890, %v7489
  %v7583 = vadd.f32 %v6891, %v7489
  %v7584 = vadd.f32 %v6892, %v7489
  %v7585 = vadd.f32 %v6893, %v7489
  %v7586 = vadd.f32 %v6894, %v7489
  %v7587 = vadd.f32 %v6895, %v7489
  %v7588 = vadd.f32 %v6896, %v7489
  %v7589 = vadd.f32 %v6897, %v7489
  %v7590 = vadd.f32 %v6898, %v7489
  %v7591 = vadd.f32 %v6899, %v7489
  %v7592 = vadd.f32 %v6900, %v7489
  %v7593 = vadd.f32 %v6901, %v7489
  %v7594 = vadd.f32 %v6902, %v7489
  %v7595 = vadd.f32 %v6903, %v7489
  %v7596 = vadd.f32 %v6904, %v7489
  %v7597 = vadd.f32 %v6905, %v7489
  %v7598 = vadd.f32 %v6906, %v7493
  %v7599 = vadd.f32 %v6907, %v7493
  %v7600 = vadd.f32 %v6908, %v7493
  %v7601 = vadd.f32 %v6909, %v7493
  %v7602 = vadd.f32 %v6910, %v7493
  %v7603 = vadd.f32 %v6911, %v7493
  %v7604 = vadd.f32 %v6912, %v7493
  %v7605 = vadd.f32 %v6913, %v7493
  %v7606 = vadd.f32 %v6914, %v7493
  %v7607 = vadd.f32 %v6915, %v7493
  %v7608 = vadd.f32 %v6916, %v7493
  %v7609 = vadd.f32 %v6917, %v7493
  %v7610 = vadd.f32 %v6918, %v7493
  %v7611 = vadd.f32 %v6919, %v7493
  %v7612 = vadd.f32 %v6920, %v7493
  %v7613 = vadd.f32 %v6921, %v7493
  %v7614 = vadd.f32 %v6922, %v7493
  %v7615 = vadd.f32 %v6923, %v7493
  %v7616 = vadd.f32 %v6924, %v7493
  %v7617 = vadd.f32 %v6925, %v7493
  %v7618 = vadd.f32 %v6926, %v7493
  %v7619 = vadd.f32 %v6927, %v7493
  %v7620 = vadd.f32 %v6928, %v7493
  %v7621 = vadd.f32 %v6929, %v7493
  %v7622 = vadd.f32 %v6930, %v7493
  %v7623 = vadd.f32 %v6931, %v7493
  %v7624 = vadd.f32 %v6932, %v7493
  %v7625 = vadd.f32 %v6933, %v7493
  %v7626 = vadd.f32 %v6934, %v7493
  %v7627 = vadd.f32 %v6935, %v7493
  %v7628 = vadd.f32 %v6936, %v7493
  %v7629 = vadd.f32 %v6937, %v7493
  %v7630 = vadd.f32 %v6938, %v7497
  %v7631 = vadd.f32 %v6939, %v7497
  %v7632 = vadd.f32 %v6940, %v7497
  %v7633 = vadd.f32 %v6941, %v7497
  %v7634 = vadd.f32 %v6942, %v7497
  %v7635 = vadd.f32 %v6943, %v7497
  %v7636 = vadd.f32 %v6944, %v7497
  %v7637 = vadd.f32 %v6945, %v7497
  %v7638 = vadd.f32 %v6946, %v7497
  %v7639 = vadd.f32 %v6947, %v7497
  %v7640 = vadd.f32 %v6948, %v7497
  %v7641 = vadd.f32 %v6949, %v7497
  %v7642 = vadd.f32 %v6950, %v7497
  %v7643 = vadd.f32 %v6951, %v7497
  %v7644 = vadd.f32 %v6952, %v7497
  %v7645 = vadd.f32 %v6953, %v7497
  %v7646 = vadd.f32 %v6954, %v7497
  %v7647 = vadd.f32 %v6955, %v7497
  %v7648 = vadd.f32 %v6956, %v7497
  %v7649 = vadd.f32 %v6957, %v7497
  %v7650 = vadd.f32 %v6958, %v7497
  %v7651 = vadd.f32 %v6959, %v7497
  %v7652 = vadd.f32 %v6960, %v7497
  %v7653 = vadd.f32 %v6961, %v7497
  %v7654 = vadd.f32 %v6962, %v7497
  %v7655 = vadd.f32 %v6963, %v7497
  %v7656 = vadd.f32 %v6964, %v7497
  %v7657 = vadd.f32 %v6965, %v7497
  %v7658 = vadd.f32 %v6966, %v7497
  %v7659 = vadd.f32 %v6967, %v7497
  %v7660 = vadd.f32 %v6968, %v7497
  %v7661 = vadd.f32 %v6969, %v7497
  %v7662 = vadd.f32 %v6970, %v7501
  %v7663 = vadd.f32 %v6971, %v7501
  %v7664 = vadd.f32 %v6972, %v7501
  %v7665 = vadd.f32 %v6973, %v7501
  %v7666 = vadd.f32 %v6974, %v7501
  %v7667 = vadd.f32 %v6975, %v7501
  %v7668 = vadd.f32 %v6976, %v7501
  %v7669 = vadd.f32 %v6977, %v7501
  %v7670 = vadd.f32 %v6978, %v7501
  %v7671 = vadd.f32 %v6979, %v7501
  %v7672 = vadd.f32 %v6980, %v7501
  %v7673 = vadd.f32 %v6981, %v7501
  %v7674 = vadd.f32 %v6982, %v7501
  %v7675 = vadd.f32 %v6983, %v7501
  %v7676 = vadd.f32 %v6984, %v7501
  %v7677 = vadd.f32 %v6985, %v7501
  %v7678 = vadd.f32 %v6986, %v7501
  %v7679 = vadd.f32 %v6987, %v7501
  %v7680 = vadd.f32 %v6988, %v7501
  %v7681 = vadd.f32 %v6989, %v7501
  %v7682 = vadd.f32 %v6990, %v7501
  %v7683 = vadd.f32 %v6991, %v7501
  %v7684 = vadd.f32 %v6992, %v7501
  %v7685 = vadd.f32 %v6993, %v7501
  %v7686 = vadd.f32 %v6994, %v7501
  %v7687 = vadd.f32 %v6995, %v7501
  %v7688 = vadd.f32 %v6996, %v7501
  %v7689 = vadd.f32 %v6997, %v7501
  %v7690 = vadd.f32 %v6998, %v7501
  %v7691 = vadd.f32 %v6999, %v7501
  %v7692 = vadd.f32 %v7000, %v7501
  %v7693 = vadd.f32 %v7001, %v7501
  %v7694 = vadd.f32 %v7002, %v7505
  %v7695 = vadd.f32 %v7003, %v7505
  %v7696 = vadd.f32 %v7004, %v7505
  %v7697 = vadd.f32 %v7005, %v7505
  %v7698 = vadd.f32 %v7006, %v7505
  %v7699 = vadd.f32 %v7007, %v7505
  %v7700 = vadd.f32 %v7008, %v7505
  %v7701 = vadd.f32 %v7009, %v7505
  %v7702 = vadd.f32 %v7010, %v7505
  %v7703 = vadd.f32 %v7011, %v7505
  %v7704 = vadd.f32 %v7012, %v7505
  %v7705 = vadd.f32 %v7013, %v7505
  %v7706 = vadd.f32 %v7014, %v7505
  %v7707 = vadd.f32 %v7015, %v7505
  %v7708 = vadd.f32 %v7016, %v7505
  %v7709 = vadd.f32 %v7017, %v7505
  %v7710 = vadd.f32 %v7018, %v7505
  %v7711 = vadd.f32 %v7019, %v7505
  %v7712 = vadd.f32 %v7020, %v7505
  %v7713 = vadd.f32 %v7021, %v7505
  %v7714 = vadd.f32 %v7022, %v7505
  %v7715 = vadd.f32 %v7023, %v7505
  %v7716 = vadd.f32 %v7024, %v7505
  %v7717 = vadd.f32 %v7025, %v7505
  %v7718 = vadd.f32 %v7026, %v7505
  %v7719 = vadd.f32 %v7027, %v7505
  %v7720 = vadd.f32 %v7028, %v7505
  %v7721 = vadd.f32 %v7029, %v7505
  %v7722 = vadd.f32 %v7030, %v7505
  %v7723 = vadd.f32 %v7031, %v7505
  %v7724 = vadd.f32 %v7032, %v7505
  %v7725 = vadd.f32 %v7033, %v7505
  %v7726 = vadd.f32 %v7034, %v7509
  %v7727 = vadd.f32 %v7035, %v7509
  %v7728 = vadd.f32 %v7036, %v7509
  %v7729 = vadd.f32 %v7037, %v7509
  %v7730 = vadd.f32 %v7038, %v7509
  %v7731 = vadd.f32 %v7039, %v7509
  %v7732 = vadd.f32 %v7040, %v7509
  %v7733 = vadd.f32 %v7041, %v7509
  %v7734 = vadd.f32 %v7042, %v7509
  %v7735 = vadd.f32 %v7043, %v7509
  %v7736 = vadd.f32 %v7044, %v7509
  %v7737 = vadd.f32 %v7045, %v7509
  %v7738 = vadd.f32 %v7046, %v7509
  %v7739 = vadd.f32 %v7047, %v7509
  %v7740 = vadd.f32 %v7048, %v7509
  %v7741 = vadd.f32 %v7049, %v7509
  %v7742 = vadd.f32 %v7050, %v7509
  %v7743 = vadd.f32 %v7051, %v7509
  %v7744 = vadd.f32 %v7052, %v7509
  %v7745 = vadd.f32 %v7053, %v7509
  %v7746 = vadd.f32 %v7054, %v7509
  %v7747 = vadd.f32 %v7055, %v7509
  %v7748 = vadd.f32 %v7056, %v7509
  %v7749 = vadd.f32 %v7057, %v7509
  %v7750 = vadd.f32 %v7058, %v7509
  %v7751 = vadd.f32 %v7059, %v7509
  %v7752 = vadd.f32 %v7060, %v7509
  %v7753 = vadd.f32 %v7061, %v7509
  %v7754 = vadd.f32 %v7062, %v7509
  %v7755 = vadd.f32 %v7063, %v7509
  %v7756 = vadd.f32 %v7064, %v7509
  %v7757 = vadd.f32 %v7065, %v7509
  %v7758 = vadd.f32 %v7066, %v7513
  %v7759 = vadd.f32 %v7067, %v7513
  %v7760 = vadd.f32 %v7068, %v7513
  %v7761 = vadd.f32 %v7069, %v7513
  %v7762 = vadd.f32 %v7070, %v7513
  %v7763 = vadd.f32 %v7071, %v7513
  %v7764 = vadd.f32 %v7072, %v7513
  %v7765 = vadd.f32 %v7073, %v7513
  %v7766 = vadd.f32 %v7074, %v7513
  %v7767 = vadd.f32 %v7075, %v7513
  %v7768 = vadd.f32 %v7076, %v7513
  %v7769 = vadd.f32 %v7077, %v7513
  %v7770 = vadd.f32 %v7078, %v7513
  %v7771 = vadd.f32 %v7079, %v7513
  %v7772 = vadd.f32 %v7080, %v7513
  %v7773 = vadd.f32 %v7081, %v7513
  %v7774 = vadd.f32 %v7082, %v7513
  %v7775 = vadd.f32 %v7083, %v7513
  %v7776 = vadd.f32 %v7084, %v7513
  %v7777 = vadd.f32 %v7085, %v7513
  %v7778 = vadd.f32 %v7086, %v7513
  %v7779 = vadd.f32 %v7087, %v7513
  %v7780 = vadd.f32 %v7088, %v7513
  %v7781 = vadd.f32 %v7089, %v7513
  %v7782 = vadd.f32 %v7090, %v7513
  %v7783 = vadd.f32 %v7091, %v7513
  %v7784 = vadd.f32 %v7092, %v7513
  %v7785 = vadd.f32 %v7093, %v7513
  %v7786 = vadd.f32 %v7094, %v7513
  %v7787 = vadd.f32 %v7095, %v7513
  %v7788 = vadd.f32 %v7096, %v7513
  %v7789 = vadd.f32 %v7097, %v7513
  %v7790 = vadd.f32 %v7098, %v7517
  %v7791 = vadd.f32 %v7099, %v7517
  %v7792 = vadd.f32 %v7100, %v7517
  %v7793 = vadd.f32 %v7101, %v7517
  %v7794 = vadd.f32 %v7102, %v7517
  %v7795 = vadd.f32 %v7103, %v7517
  %v7796 = vadd.f32 %v7104, %v7517
  %v7797 = vadd.f32 %v7105, %v7517
  %v7798 = vadd.f32 %v7106, %v7517
  %v7799 = vadd.f32 %v7107, %v7517
  %v7800 = vadd.f32 %v7108, %v7517
  %v7801 = vadd.f32 %v7109, %v7517
  %v7802 = vadd.f32 %v7110, %v7517
  %v7803 = vadd.f32 %v7111, %v7517
  %v7804 = vadd.f32 %v7112, %v7517
  %v7805 = vadd.f32 %v7113, %v7517
  %v7806 = vadd.f32 %v7114, %v7517
  %v7807 = vadd.f32 %v7115, %v7517
  %v7808 = vadd.f32 %v7116, %v7517
  %v7809 = vadd.f32 %v7117, %v7517
  %v7810 = vadd.f32 %v7118, %v7517
  %v7811 = vadd.f32 %v7119, %v7517
  %v7812 = vadd.f32 %v7120, %v7517
  %v7813 = vadd.f32 %v7121, %v7517
  %v7814 = vadd.f32 %v7122, %v7517
  %v7815 = vadd.f32 %v7123, %v7517
  %v7816 = vadd.f32 %v7124, %v7517
  %v7817 = vadd.f32 %v7125, %v7517
  %v7818 = vadd.f32 %v7126, %v7517
  %v7819 = vadd.f32 %v7127, %v7517
  %v7820 = vadd.f32 %v7128, %v7517
  %v7821 = vadd.f32 %v7129, %v7517
  %v7822 = vadd.f32 %v7130, %v7521
  %v7823 = vadd.f32 %v7131, %v7521
  %v7824 = vadd.f32 %v7132, %v7521
  %v7825 = vadd.f32 %v7133, %v7521
  %v7826 = vadd.f32 %v7134, %v7521
  %v7827 = vadd.f32 %v7135, %v7521
  %v7828 = vadd.f32 %v7136, %v7521
  %v7829 = vadd.f32 %v7137, %v7521
  %v7830 = vadd.f32 %v7138, %v7521
  %v7831 = vadd.f32 %v7139, %v7521
  %v7832 = vadd.f32 %v7140, %v7521
  %v7833 = vadd.f32 %v7141, %v7521
  %v7834 = vadd.f32 %v7142, %v7521
  %v7835 = vadd.f32 %v7143, %v7521
  %v7836 = vadd.f32 %v7144, %v7521
  %v7837 = vadd.f32 %v7145, %v7521
  %v7838 = vadd.f32 %v7146, %v7521
  %v7839 = vadd.f32 %v7147, %v7521
  %v7840 = vadd.f32 %v7148, %v7521
  %v7841 = vadd.f32 %v7149, %v7521
  %v7842 = vadd.f32 %v7150, %v7521
  %v7843 = vadd.f32 %v7151, %v7521
  %v7844 = vadd.f32 %v7152, %v7521
  %v7845 = vadd.f32 %v7153, %v7521
  %v7846 = vadd.f32 %v7154, %v7521
  %v7847 = vadd.f32 %v7155, %v7521
  %v7848 = vadd.f32 %v7156, %v7521
  %v7849 = vadd.f32 %v7157, %v7521
  %v7850 = vadd.f32 %v7158, %v7521
  %v7851 = vadd.f32 %v7159, %v7521
  %v7852 = vadd.f32 %v7160, %v7521
  %v7853 = vadd.f32 %v7161, %v7521
  %v7854 = vadd.f32 %v7162, %v7525
  %v7855 = vadd.f32 %v7163, %v7525
  %v7856 = vadd.f32 %v7164, %v7525
  %v7857 = vadd.f32 %v7165, %v7525
  %v7858 = vadd.f32 %v7166, %v7525
  %v7859 = vadd.f32 %v7167, %v7525
  %v7860 = vadd.f32 %v7168, %v7525
  %v7861 = vadd.f32 %v7169, %v7525
  %v7862 = vadd.f32 %v7170, %v7525
  %v7863 = vadd.f32 %v7171, %v7525
  %v7864 = vadd.f32 %v7172, %v7525
  %v7865 = vadd.f32 %v7173, %v7525
  %v7866 = vadd.f32 %v7174, %v7525
  %v7867 = vadd.f32 %v7175, %v7525
  %v7868 = vadd.f32 %v7176, %v7525
  %v7869 = vadd.f32 %v7177, %v7525
  %v7870 = vadd.f32 %v7178, %v7525
  %v7871 = vadd.f32 %v7179, %v7525
  %v7872 = vadd.f32 %v7180, %v7525
  %v7873 = vadd.f32 %v7181, %v7525
  %v7874 = vadd.f32 %v7182, %v7525
  %v7875 = vadd.f32 %v7183, %v7525
  %v7876 = vadd.f32 %v7184, %v7525
  %v7877 = vadd.f32 %v7185, %v7525
  %v7878 = vadd.f32 %v7186, %v7525
  %v7879 = vadd.f32 %v7187, %v7525
  %v7880 = vadd.f32 %v7188, %v7525
  %v7881 = vadd.f32 %v7189, %v7525
  %v7882 = vadd.f32 %v7190, %v7525
  %v7883 = vadd.f32 %v7191, %v7525
  %v7884 = vadd.f32 %v7192, %v7525
  %v7885 = vadd.f32 %v7193, %v7525
  %v7886 = vadd.f32 %v7194, %v7529
  %v7887 = vadd.f32 %v7195, %v7529
  %v7888 = vadd.f32 %v7196, %v7529
  %v7889 = vadd.f32 %v7197, %v7529
  %v7890 = vadd.f32 %v7198, %v7529
  %v7891 = vadd.f32 %v7199, %v7529
  %v7892 = vadd.f32 %v7200, %v7529
  %v7893 = vadd.f32 %v7201, %v7529
  %v7894 = vadd.f32 %v7202, %v7529
  %v7895 = vadd.f32 %v7203, %v7529
  %v7896 = vadd.f32 %v7204, %v7529
  %v7897 = vadd.f32 %v7205, %v7529
  %v7898 = vadd.f32 %v7206, %v7529
  %v7899 = vadd.f32 %v7207, %v7529
  %v7900 = vadd.f32 %v7208, %v7529
  %v7901 = vadd.f32 %v7209, %v7529
  %v7902 = vadd.f32 %v7210, %v7529
  %v7903 = vadd.f32 %v7211, %v7529
  %v7904 = vadd.f32 %v7212, %v7529
  %v7905 = vadd.f32 %v7213, %v7529
  %v7906 = vadd.f32 %v7214, %v7529
  %v7907 = vadd.f32 %v7215, %v7529
  %v7908 = vadd.f32 %v7216, %v7529
  %v7909 = vadd.f32 %v7217, %v7529
  %v7910 = vadd.f32 %v7218, %v7529
  %v7911 = vadd.f32 %v7219, %v7529
  %v7912 = vadd.f32 %v7220, %v7529
  %v7913 = vadd.f32 %v7221, %v7529
  %v7914 = vadd.f32 %v7222, %v7529
  %v7915 = vadd.f32 %v7223, %v7529
  %v7916 = vadd.f32 %v7224, %v7529
  %v7917 = vadd.f32 %v7225, %v7529
  %v7918 = vadd.f32 %v7226, %v7533
  %v7919 = vadd.f32 %v7227, %v7533
  %v7920 = vadd.f32 %v7228, %v7533
  %v7921 = vadd.f32 %v7229, %v7533
  %v7922 = vadd.f32 %v7230, %v7533
  %v7923 = vadd.f32 %v7231, %v7533
  %v7924 = vadd.f32 %v7232, %v7533
  %v7925 = vadd.f32 %v7233, %v7533
  %v7926 = vadd.f32 %v7234, %v7533
  %v7927 = vadd.f32 %v7235, %v7533
  %v7928 = vadd.f32 %v7236, %v7533
  %v7929 = vadd.f32 %v7237, %v7533
  %v7930 = vadd.f32 %v7238, %v7533
  %v7931 = vadd.f32 %v7239, %v7533
  %v7932 = vadd.f32 %v7240, %v7533
  %v7933 = vadd.f32 %v7241, %v7533
  %v7934 = vadd.f32 %v7242, %v7533
  %v7935 = vadd.f32 %v7243, %v7533
  %v7936 = vadd.f32 %v7244, %v7533
  %v7937 = vadd.f32 %v7245, %v7533
  %v7938 = vadd.f32 %v7246, %v7533
  %v7939 = vadd.f32 %v7247, %v7533
  %v7940 = vadd.f32 %v7248, %v7533
  %v7941 = vadd.f32 %v7249, %v7533
  %v7942 = vadd.f32 %v7250, %v7533
  %v7943 = vadd.f32 %v7251, %v7533
  %v7944 = vadd.f32 %v7252, %v7533
  %v7945 = vadd.f32 %v7253, %v7533
  %v7946 = vadd.f32 %v7254, %v7533
  %v7947 = vadd.f32 %v7255, %v7533
  %v7948 = vadd.f32 %v7256, %v7533
  %v7949 = vadd.f32 %v7257, %v7533
  %v7950 = vadd.f32 %v7258, %v7537
  %v7951 = vadd.f32 %v7259, %v7537
  %v7952 = vadd.f32 %v7260, %v7537
  %v7953 = vadd.f32 %v7261, %v7537
  %v7954 = vadd.f32 %v7262, %v7537
  %v7955 = vadd.f32 %v7263, %v7537
  %v7956 = vadd.f32 %v7264, %v7537
  %v7957 = vadd.f32 %v7265, %v7537
  %v7958 = vadd.f32 %v7266, %v7537
  %v7959 = vadd.f32 %v7267, %v7537
  %v7960 = vadd.f32 %v7268, %v7537
  %v7961 = vadd.f32 %v7269, %v7537
  %v7962 = vadd.f32 %v7270, %v7537
  %v7963 = vadd.f32 %v7271, %v7537
  %v7964 = vadd.f32 %v7272, %v7537
  %v7965 = vadd.f32 %v7273, %v7537
  %v7966 = vadd.f32 %v7274, %v7537
  %v7967 = vadd.f32 %v7275, %v7537
  %v7968 = vadd.f32 %v7276, %v7537
  %v7969 = vadd.f32 %v7277, %v7537
  %v7970 = vadd.f32 %v7278, %v7537
  %v7971 = vadd.f32 %v7279, %v7537
  %v7972 = vadd.f32 %v7280, %v7537
  %v7973 = vadd.f32 %v7281, %v7537
  %v7974 = vadd.f32 %v7282, %v7537
  %v7975 = vadd.f32 %v7283, %v7537
  %v7976 = vadd.f32 %v7284, %v7537
  %v7977 = vadd.f32 %v7285, %v7537
  %v7978 = vadd.f32 %v7286, %v7537
  %v7979 = vadd.f32 %v7287, %v7537
  %v7980 = vadd.f32 %v7288, %v7537
  %v7981 = vadd.f32 %v7289, %v7537
  %v7982 = vadd.f32 %v7290, %v7541
  %v7983 = vadd.f32 %v7291, %v7541
  %v7984 = vadd.f32 %v7292, %v7541
  %v7985 = vadd.f32 %v7293, %v7541
  %v7986 = vadd.f32 %v7294, %v7541
  %v7987 = vadd.f32 %v7295, %v7541
  %v7988 = vadd.f32 %v7296, %v7541
  %v7989 = vadd.f32 %v7297, %v7541
  %v7990 = vadd.f32 %v7298, %v7541
  %v7991 = vadd.f32 %v7299, %v7541
  %v7992 = vadd.f32 %v7300, %v7541
  %v7993 = vadd.f32 %v7301, %v7541
  %v7994 = vadd.f32 %v7302, %v7541
  %v7995 = vadd.f32 %v7303, %v7541
  %v7996 = vadd.f32 %v7304, %v7541
  %v7997 = vadd.f32 %v7305, %v7541
  %v7998 = vadd.f32 %v7306, %v7541
  %v7999 = vadd.f32 %v7307, %v7541
  %v8000 = vadd.f32 %v7308, %v7541
  %v8001 = vadd.f32 %v7309, %v7541
  %v8002 = vadd.f32 %v7310, %v7541
  %v8003 = vadd.f32 %v7311, %v7541
  %v8004 = vadd.f32 %v7312, %v7541
  %v8005 = vadd.f32 %v7313, %v7541
  %v8006 = vadd.f32 %v7314, %v7541
  %v8007 = vadd.f32 %v7315, %v7541
  %v8008 = vadd.f32 %v7316, %v7541
  %v8009 = vadd.f32 %v7317, %v7541
  %v8010 = vadd.f32 %v7318, %v7541
  %v8011 = vadd.f32 %v7319, %v7541
  %v8012 = vadd.f32 %v7320, %v7541
  %v8013 = vadd.f32 %v7321, %v7541
  %v8014 = vadd.f32 %v7322, %v7545
  %v8015 = vadd.f32 %v7323, %v7545
  %v8016 = vadd.f32 %v7324, %v7545
  %v8017 = vadd.f32 %v7325, %v7545
  %v8018 = vadd.f32 %v7326, %v7545
  %v8019 = vadd.f32 %v7327, %v7545
  %v8020 = vadd.f32 %v7328, %v7545
  %v8021 = vadd.f32 %v7329, %v7545
  %v8022 = vadd.f32 %v7330, %v7545
  %v8023 = vadd.f32 %v7331, %v7545
  %v8024 = vadd.f32 %v7332, %v7545
  %v8025 = vadd.f32 %v7333, %v7545
  %v8026 = vadd.f32 %v7334, %v7545
  %v8027 = vadd.f32 %v7335, %v7545
  %v8028 = vadd.f32 %v7336, %v7545
  %v8029 = vadd.f32 %v7337, %v7545
  %v8030 = vadd.f32 %v7338, %v7545
  %v8031 = vadd.f32 %v7339, %v7545
  %v8032 = vadd.f32 %v7340, %v7545
  %v8033 = vadd.f32 %v7341, %v7545
  %v8034 = vadd.f32 %v7342, %v7545
  %v8035 = vadd.f32 %v7343, %v7545
  %v8036 = vadd.f32 %v7344, %v7545
  %v8037 = vadd.f32 %v7345, %v7545
  %v8038 = vadd.f32 %v7346, %v7545
  %v8039 = vadd.f32 %v7347, %v7545
  %v8040 = vadd.f32 %v7348, %v7545
  %v8041 = vadd.f32 %v7349, %v7545
  %v8042 = vadd.f32 %v7350, %v7545
  %v8043 = vadd.f32 %v7351, %v7545
  %v8044 = vadd.f32 %v7352, %v7545
  %v8045 = vadd.f32 %v7353, %v7545
  %v8046 = vadd.f32 %v7354, %v7549
  %v8047 = vadd.f32 %v7355, %v7549
  %v8048 = vadd.f32 %v7356, %v7549
  %v8049 = vadd.f32 %v7357, %v7549
  %v8050 = vadd.f32 %v7358, %v7549
  %v8051 = vadd.f32 %v7359, %v7549
  %v8052 = vadd.f32 %v7360, %v7549
  %v8053 = vadd.f32 %v7361, %v7549
  %v8054 = vadd.f32 %v7362, %v7549
  %v8055 = vadd.f32 %v7363, %v7549
  %v8056 = vadd.f32 %v7364, %v7549
  %v8057 = vadd.f32 %v7365, %v7549
  %v8058 = vadd.f32 %v7366, %v7549
  %v8059 = vadd.f32 %v7367, %v7549
  %v8060 = vadd.f32 %v7368, %v7549
  %v8061 = vadd.f32 %v7369, %v7549
  %v8062 = vadd.f32 %v7370, %v7549
  %v8063 = vadd.f32 %v7371, %v7549
  %v8064 = vadd.f32 %v7372, %v7549
  %v8065 = vadd.f32 %v7373, %v7549
  %v8066 = vadd.f32 %v7374, %v7549
  %v8067 = vadd.f32 %v7375, %v7549
  %v8068 = vadd.f32 %v7376, %v7549
  %v8069 = vadd.f32 %v7377, %v7549
  %v8070 = vadd.f32 %v7378, %v7549
  %v8071 = vadd.f32 %v7379, %v7549
  %v8072 = vadd.f32 %v7380, %v7549
  %v8073 = vadd.f32 %v7381, %v7549
  %v8074 = vadd.f32 %v7382, %v7549
  %v8075 = vadd.f32 %v7383, %v7549
  %v8076 = vadd.f32 %v7384, %v7549
  %v8077 = vadd.f32 %v7385, %v7549
  %v8078 = vmax.f32 %v7566, 0.0
  %v8079 = vmax.f32 %v7567, 0.0
  %v8080 = vmax.f32 %v7568, 0.0
  %v8081 = vmax.f32 %v7569, 0.0
  %v8082 = vmax.f32 %v7570, 0.0
  %v8083 = vmax.f32 %v7571, 0.0
  %v8084 = vmax.f32 %v7572, 0.0
  %v8085 = vmax.f32 %v7573, 0.0
  %v8086 = vmax.f32 %v7574, 0.0
  %v8087 = vmax.f32 %v7575, 0.0
  %v8088 = vmax.f32 %v7576, 0.0
  %v8089 = vmax.f32 %v7577, 0.0
  %v8090 = vmax.f32 %v7578, 0.0
  %v8091 = vmax.f32 %v7579, 0.0
  %v8092 = vmax.f32 %v7580, 0.0
  %v8093 = vmax.f32 %v7581, 0.0
  %v8094 = vmax.f32 %v7582, 0.0
  %v8095 = vmax.f32 %v7583, 0.0
  %v8096 = vmax.f32 %v7584, 0.0
  %v8097 = vmax.f32 %v7585, 0.0
  %v8098 = vmax.f32 %v7586, 0.0
  %v8099 = vmax.f32 %v7587, 0.0
  %v8100 = vmax.f32 %v7588, 0.0
  %v8101 = vmax.f32 %v7589, 0.0
  %v8102 = vmax.f32 %v7590, 0.0
  %v8103 = vmax.f32 %v7591, 0.0
  %v8104 = vmax.f32 %v7592, 0.0
  %v8105 = vmax.f32 %v7593, 0.0
  %v8106 = vmax.f32 %v7594, 0.0
  %v8107 = vmax.f32 %v7595, 0.0
  %v8108 = vmax.f32 %v7596, 0.0
  %v8109 = vmax.f32 %v7597, 0.0
  %v8110 = vmax.f32 %v7598, 0.0
  %v8111 = vmax.f32 %v7599, 0.0
  %v8112 = vmax.f32 %v7600, 0.0
  %v8113 = vmax.f32 %v7601, 0.0
  %v8114 = vmax.f32 %v7602, 0.0
  %v8115 = vmax.f32 %v7603, 0.0
  %v8116 = vmax.f32 %v7604, 0.0
  %v8117 = vmax.f32 %v7605, 0.0
  %v8118 = vmax.f32 %v7606, 0.0
  %v8119 = vmax.f32 %v7607, 0.0
  %v8120 = vmax.f32 %v7608, 0.0
  %v8121 = vmax.f32 %v7609, 0.0
  %v8122 = vmax.f32 %v7610, 0.0
  %v8123 = vmax.f32 %v7611, 0.0
  %v8124 = vmax.f32 %v7612, 0.0
  %v8125 = vmax.f32 %v7613, 0.0
  %v8126 = vmax.f32 %v7614, 0.0
  %v8127 = vmax.f32 %v7615, 0.0
  %v8128 = vmax.f32 %v7616, 0.0
  %v8129 = vmax.f32 %v7617, 0.0
  %v8130 = vmax.f32 %v7618, 0.0
  %v8131 = vmax.f32 %v7619, 0.0
  %v8132 = vmax.f32 %v7620, 0.0
  %v8133 = vmax.f32 %v7621, 0.0
  %v8134 = vmax.f32 %v7622, 0.0
  %v8135 = vmax.f32 %v7623, 0.0
  %v8136 = vmax.f32 %v7624, 0.0
  %v8137 = vmax.f32 %v7625, 0.0
  %v8138 = vmax.f32 %v7626, 0.0
  %v8139 = vmax.f32 %v7627, 0.0
  %v8140 = vmax.f32 %v7628, 0.0
  %v8141 = vmax.f32 %v7629, 0.0
  %v8142 = vmax.f32 %v7630, 0.0
  %v8143 = vmax.f32 %v7631, 0.0
  %v8144 = vmax.f32 %v7632, 0.0
  %v8145 = vmax.f32 %v7633, 0.0
  %v8146 = vmax.f32 %v7634, 0.0
  %v8147 = vmax.f32 %v7635, 0.0
  %v8148 = vmax.f32 %v7636, 0.0
  %v8149 = vmax.f32 %v7637, 0.0
  %v8150 = vmax.f32 %v7638, 0.0
  %v8151 = vmax.f32 %v7639, 0.0
  %v8152 = vmax.f32 %v7640, 0.0
  %v8153 = vmax.f32 %v7641, 0.0
  %v8154 = vmax.f32 %v7642, 0.0
  %v8155 = vmax.f32 %v7643, 0.0
  %v8156 = vmax.f32 %v7644, 0.0
  %v8157 = vmax.f32 %v7645, 0.0
  %v8158 = vmax.f32 %v7646, 0.0
  %v8159 = vmax.f32 %v7647, 0.0
  %v8160 = vmax.f32 %v7648, 0.0
  %v8161 = vmax.f32 %v7649, 0.0
  %v8162 = vmax.f32 %v7650, 0.0
  %v8163 = vmax.f32 %v7651, 0.0
  %v8164 = vmax.f32 %v7652, 0.0
  %v8165 = vmax.f32 %v7653, 0.0
  %v8166 = vmax.f32 %v7654, 0.0
  %v8167 = vmax.f32 %v7655, 0.0
  %v8168 = vmax.f32 %v7656, 0.0
  %v8169 = vmax.f32 %v7657, 0.0
  %v8170 = vmax.f32 %v7658, 0.0
  %v8171 = vmax.f32 %v7659, 0.0
  %v8172 = vmax.f32 %v7660, 0.0
  %v8173 = vmax.f32 %v7661, 0.0
  %v8174 = vmax.f32 %v7662, 0.0
  %v8175 = vmax.f32 %v7663, 0.0
  %v8176 = vmax.f32 %v7664, 0.0
  %v8177 = vmax.f32 %v7665, 0.0
  %v8178 = vmax.f32 %v7666, 0.0
  %v8179 = vmax.f32 %v7667, 0.0
  %v8180 = vmax.f32 %v7668, 0.0
  %v8181 = vmax.f32 %v7669, 0.0
  %v8182 = vmax.f32 %v7670, 0.0
  %v8183 = vmax.f32 %v7671, 0.0
  %v8184 = vmax.f32 %v7672, 0.0
  %v8185 = vmax.f32 %v7673, 0.0
  %v8186 = vmax.f32 %v7674, 0.0
  %v8187 = vmax.f32 %v7675, 0.0
  %v8188 = vmax.f32 %v7676, 0.0
  %v8189 = vmax.f32 %v7677, 0.0
  %v8190 = vmax.f32 %v7678, 0.0
  %v8191 = vmax.f32 %v7679, 0.0
  %v8192 = vmax.f32 %v7680, 0.0
  %v8193 = vmax.f32 %v7681, 0.0
  %v8194 = vmax.f32 %v7682, 0.0
  %v8195 = vmax.f32 %v7683, 0.0
  %v8196 = vmax.f32 %v7684, 0.0
  %v8197 = vmax.f32 %v7685, 0.0
  %v8198 = vmax.f32 %v7686, 0.0
  %v8199 = vmax.f32 %v7687, 0.0
  %v8200 = vmax.f32 %v7688, 0.0
  %v8201 = vmax.f32 %v7689, 0.0
  %v8202 = vmax.f32 %v7690, 0.0
  %v8203 = vmax.f32 %v7691, 0.0
  %v8204 = vmax.f32 %v7692, 0.0
  %v8205 = vmax.f32 %v7693, 0.0
  %v8206 = vmax.f32 %v7694, 0.0
  %v8207 = vmax.f32 %v7695, 0.0
  %v8208 = vmax.f32 %v7696, 0.0
  %v8209 = vmax.f32 %v7697, 0.0
  %v8210 = vmax.f32 %v7698, 0.0
  %v8211 = vmax.f32 %v7699, 0.0
  %v8212 = vmax.f32 %v7700, 0.0
  %v8213 = vmax.f32 %v7701, 0.0
  %v8214 = vmax.f32 %v7702, 0.0
  %v8215 = vmax.f32 %v7703, 0.0
  %v8216 = vmax.f32 %v7704, 0.0
  %v8217 = vmax.f32 %v7705, 0.0
  %v8218 = vmax.f32 %v7706, 0.0
  %v8219 = vmax.f32 %v7707, 0.0
  %v8220 = vmax.f32 %v7708, 0.0
  %v8221 = vmax.f32 %v7709, 0.0
  %v8222 = vmax.f32 %v7710, 0.0
  %v8223 = vmax.f32 %v7711, 0.0
  %v8224 = vmax.f32 %v7712, 0.0
  %v8225 = vmax.f32 %v7713, 0.0
  %v8226 = vmax.f32 %v7714, 0.0
  %v8227 = vmax.f32 %v7715, 0.0
  %v8228 = vmax.f32 %v7716, 0.0
  %v8229 = vmax.f32 %v7717, 0.0
  %v8230 = vmax.f32 %v7718, 0.0
  %v8231 = vmax.f32 %v7719, 0.0
  %v8232 = vmax.f32 %v7720, 0.0
  %v8233 = vmax.f32 %v7721, 0.0
  %v8234 = vmax.f32 %v7722, 0.0
  %v8235 = vmax.f32 %v7723, 0.0
  %v8236 = vmax.f32 %v7724, 0.0
  %v8237 = vmax.f32 %v7725, 0.0
  %v8238 = vmax.f32 %v7726, 0.0
  %v8239 = vmax.f32 %v7727, 0.0
  %v8240 = vmax.f32 %v7728, 0.0
  %v8241 = vmax.f32 %v7729, 0.0
  %v8242 = vmax.f32 %v7730, 0.0
  %v8243 = vmax.f32 %v7731, 0.0
  %v8244 = vmax.f32 %v7732, 0.0
  %v8245 = vmax.f32 %v7733, 0.0
  %v8246 = vmax.f32 %v7734, 0.0
  %v8247 = vmax.f32 %v7735, 0.0
  %v8248 = vmax.f32 %v7736, 0.0
  %v8249 = vmax.f32 %v7737, 0.0
  %v8250 = vmax.f32 %v7738, 0.0
  %v8251 = vmax.f32 %v7739, 0.0
  %v8252 = vmax.f32 %v7740, 0.0
  %v8253 = vmax.f32 %v7741, 0.0
  %v8254 = vmax.f32 %v7742, 0.0
  %v8255 = vmax.f32 %v7743, 0.0
  %v8256 = vmax.f32 %v7744, 0.0
  %v8257 = vmax.f32 %v7745, 0.0
  %v8258 = vmax.f32 %v7746, 0.0
  %v8259 = vmax.f32 %v7747, 0.0
  %v8260 = vmax.f32 %v7748, 0.0
  %v8261 = vmax.f32 %v7749, 0.0
  %v8262 = vmax.f32 %v7750, 0.0
  %v8263 = vmax.f32 %v7751, 0.0
  %v8264 = vmax.f32 %v7752, 0.0
  %v8265 = vmax.f32 %v7753, 0.0
  %v8266 = vmax.f32 %v7754, 0.0
  %v8267 = vmax.f32 %v7755, 0.0
  %v8268 = vmax.f32 %v7756, 0.0
  %v8269 = vmax.f32 %v7757, 0.0
  %v8270 = vmax.f32 %v7758, 0.0
  %v8271 = vmax.f32 %v7759, 0.0
  %v8272 = vmax.f32 %v7760, 0.0
  %v8273 = vmax.f32 %v7761, 0.0
  %v8274 = vmax.f32 %v7762, 0.0
  %v8275 = vmax.f32 %v7763, 0.0
  %v8276 = vmax.f32 %v7764, 0.0
  %v8277 = vmax.f32 %v7765, 0.0
  %v8278 = vmax.f32 %v7766, 0.0
  %v8279 = vmax.f32 %v7767, 0.0
  %v8280 = vmax.f32 %v7768, 0.0
  %v8281 = vmax.f32 %v7769, 0.0
  %v8282 = vmax.f32 %v7770, 0.0
  %v8283 = vmax.f32 %v7771, 0.0
  %v8284 = vmax.f32 %v7772, 0.0
  %v8285 = vmax.f32 %v7773, 0.0
  %v8286 = vmax.f32 %v7774, 0.0
  %v8287 = vmax.f32 %v7775, 0.0
  %v8288 = vmax.f32 %v7776, 0.0
  %v8289 = vmax.f32 %v7777, 0.0
  %v8290 = vmax.f32 %v7778, 0.0
  %v8291 = vmax.f32 %v7779, 0.0
  %v8292 = vmax.f32 %v7780, 0.0
  %v8293 = vmax.f32 %v7781, 0.0
  %v8294 = vmax.f32 %v7782, 0.0
  %v8295 = vmax.f32 %v7783, 0.0
  %v8296 = vmax.f32 %v7784, 0.0
  %v8297 = vmax.f32 %v7785, 0.0
  %v8298 = vmax.f32 %v7786, 0.0
  %v8299 = vmax.f32 %v7787, 0.0
  %v8300 = vmax.f32 %v7788, 0.0
  %v8301 = vmax.f32 %v7789, 0.0
  %v8302 = vmax.f32 %v7790, 0.0
  %v8303 = vmax.f32 %v7791, 0.0
  %v8304 = vmax.f32 %v7792, 0.0
  %v8305 = vmax.f32 %v7793, 0.0
  %v8306 = vmax.f32 %v7794, 0.0
  %v8307 = vmax.f32 %v7795, 0.0
  %v8308 = vmax.f32 %v7796, 0.0
  %v8309 = vmax.f32 %v7797, 0.0
  %v8310 = vmax.f32 %v7798, 0.0
  %v8311 = vmax.f32 %v7799, 0.0
  %v8312 = vmax.f32 %v7800, 0.0
  %v8313 = vmax.f32 %v7801, 0.0
  %v8314 = vmax.f32 %v7802, 0.0
  %v8315 = vmax.f32 %v7803, 0.0
  %v8316 = vmax.f32 %v7804, 0.0
  %v8317 = vmax.f32 %v7805, 0.0
  %v8318 = vmax.f32 %v7806, 0.0
  %v8319 = vmax.f32 %v7807, 0.0
  %v8320 = vmax.f32 %v7808, 0.0
  %v8321 = vmax.f32 %v7809, 0.0
  %v8322 = vmax.f32 %v7810, 0.0
  %v8323 = vmax.f32 %v7811, 0.0
  %v8324 = vmax.f32 %v7812, 0.0
  %v8325 = vmax.f32 %v7813, 0.0
  %v8326 = vmax.f32 %v7814, 0.0
  %v8327 = vmax.f32 %v7815, 0.0
  %v8328 = vmax.f32 %v7816, 0.0
  %v8329 = vmax.f32 %v7817, 0.0
  %v8330 = vmax.f32 %v7818, 0.0
  %v8331 = vmax.f32 %v7819, 0.0
  %v8332 = vmax.f32 %v7820, 0.0
  %v8333 = vmax.f32 %v7821, 0.0
  %v8334 = vmax.f32 %v7822, 0.0
  %v8335 = vmax.f32 %v7823, 0.0
  %v8336 = vmax.f32 %v7824, 0.0
  %v8337 = vmax.f32 %v7825, 0.0
  %v8338 = vmax.f32 %v7826, 0.0
  %v8339 = vmax.f32 %v7827, 0.0
  %v8340 = vmax.f32 %v7828, 0.0
  %v8341 = vmax.f32 %v7829, 0.0
  %v8342 = vmax.f32 %v7830, 0.0
  %v8343 = vmax.f32 %v7831, 0.0
  %v8344 = vmax.f32 %v7832, 0.0
  %v8345 = vmax.f32 %v7833, 0.0
  %v8346 = vmax.f32 %v7834, 0.0
  %v8347 = vmax.f32 %v7835, 0.0
  %v8348 = vmax.f32 %v7836, 0.0
  %v8349 = vmax.f32 %v7837, 0.0
  %v8350 = vmax.f32 %v7838, 0.0
  %v8351 = vmax.f32 %v7839, 0.0
  %v8352 = vmax.f32 %v7840, 0.0
  %v8353 = vmax.f32 %v7841, 0.0
  %v8354 = vmax.f32 %v7842, 0.0
  %v8355 = vmax.f32 %v7843, 0.0
  %v8356 = vmax.f32 %v7844, 0.0
  %v8357 = vmax.f32 %v7845, 0.0
  %v8358 = vmax.f32 %v7846, 0.0
  %v8359 = vmax.f32 %v7847, 0.0
  %v8360 = vmax.f32 %v7848, 0.0
  %v8361 = vmax.f32 %v7849, 0.0
  %v8362 = vmax.f32 %v7850, 0.0
  %v8363 = vmax.f32 %v7851, 0.0
  %v8364 = vmax.f32 %v7852, 0.0
  %v8365 = vmax.f32 %v7853, 0.0
  %v8366 = vmax.f32 %v7854, 0.0
  %v8367 = vmax.f32 %v7855, 0.0
  %v8368 = vmax.f32 %v7856, 0.0
  %v8369 = vmax.f32 %v7857, 0.0
  %v8370 = vmax.f32 %v7858, 0.0
  %v8371 = vmax.f32 %v7859, 0.0
  %v8372 = vmax.f32 %v7860, 0.0
  %v8373 = vmax.f32 %v7861, 0.0
  %v8374 = vmax.f32 %v7862, 0.0
  %v8375 = vmax.f32 %v7863, 0.0
  %v8376 = vmax.f32 %v7864, 0.0
  %v8377 = vmax.f32 %v7865, 0.0
  %v8378 = vmax.f32 %v7866, 0.0
  %v8379 = vmax.f32 %v7867, 0.0
  %v8380 = vmax.f32 %v7868, 0.0
  %v8381 = vmax.f32 %v7869, 0.0
  %v8382 = vmax.f32 %v7870, 0.0
  %v8383 = vmax.f32 %v7871, 0.0
  %v8384 = vmax.f32 %v7872, 0.0
  %v8385 = vmax.f32 %v7873, 0.0
  %v8386 = vmax.f32 %v7874, 0.0
  %v8387 = vmax.f32 %v7875, 0.0
  %v8388 = vmax.f32 %v7876, 0.0
  %v8389 = vmax.f32 %v7877, 0.0
  %v8390 = vmax.f32 %v7878, 0.0
  %v8391 = vmax.f32 %v7879, 0.0
  %v8392 = vmax.f32 %v7880, 0.0
  %v8393 = vmax.f32 %v7881, 0.0
  %v8394 = vmax.f32 %v7882, 0.0
  %v8395 = vmax.f32 %v7883, 0.0
  %v8396 = vmax.f32 %v7884, 0.0
  %v8397 = vmax.f32 %v7885, 0.0
  %v8398 = vmax.f32 %v7886, 0.0
  %v8399 = vmax.f32 %v7887, 0.0
  %v8400 = vmax.f32 %v7888, 0.0
  %v8401 = vmax.f32 %v7889, 0.0
  %v8402 = vmax.f32 %v7890, 0.0
  %v8403 = vmax.f32 %v7891, 0.0
  %v8404 = vmax.f32 %v7892, 0.0
  %v8405 = vmax.f32 %v7893, 0.0
  %v8406 = vmax.f32 %v7894, 0.0
  %v8407 = vmax.f32 %v7895, 0.0
  %v8408 = vmax.f32 %v7896, 0.0
  %v8409 = vmax.f32 %v7897, 0.0
  %v8410 = vmax.f32 %v7898, 0.0
  %v8411 = vmax.f32 %v7899, 0.0
  %v8412 = vmax.f32 %v7900, 0.0
  %v8413 = vmax.f32 %v7901, 0.0
  %v8414 = vmax.f32 %v7902, 0.0
  %v8415 = vmax.f32 %v7903, 0.0
  %v8416 = vmax.f32 %v7904, 0.0
  %v8417 = vmax.f32 %v7905, 0.0
  %v8418 = vmax.f32 %v7906, 0.0
  %v8419 = vmax.f32 %v7907, 0.0
  %v8420 = vmax.f32 %v7908, 0.0
  %v8421 = vmax.f32 %v7909, 0.0
  %v8422 = vmax.f32 %v7910, 0.0
  %v8423 = vmax.f32 %v7911, 0.0
  %v8424 = vmax.f32 %v7912, 0.0
  %v8425 = vmax.f32 %v7913, 0.0
  %v8426 = vmax.f32 %v7914, 0.0
  %v8427 = vmax.f32 %v7915, 0.0
  %v8428 = vmax.f32 %v7916, 0.0
  %v8429 = vmax.f32 %v7917, 0.0
  %v8430 = vmax.f32 %v7918, 0.0
  %v8431 = vmax.f32 %v7919, 0.0
  %v8432 = vmax.f32 %v7920, 0.0
  %v8433 = vmax.f32 %v7921, 0.0
  %v8434 = vmax.f32 %v7922, 0.0
  %v8435 = vmax.f32 %v7923, 0.0
  %v8436 = vmax.f32 %v7924, 0.0
  %v8437 = vmax.f32 %v7925, 0.0
  %v8438 = vmax.f32 %v7926, 0.0
  %v8439 = vmax.f32 %v7927, 0.0
  %v8440 = vmax.f32 %v7928, 0.0
  %v8441 = vmax.f32 %v7929, 0.0
  %v8442 = vmax.f32 %v7930, 0.0
  %v8443 = vmax.f32 %v7931, 0.0
  %v8444 = vmax.f32 %v7932, 0.0
  %v8445 = vmax.f32 %v7933, 0.0
  %v8446 = vmax.f32 %v7934, 0.0
  %v8447 = vmax.f32 %v7935, 0.0
  %v8448 = vmax.f32 %v7936, 0.0
  %v8449 = vmax.f32 %v7937, 0.0
  %v8450 = vmax.f32 %v7938, 0.0
  %v8451 = vmax.f32 %v7939, 0.0
  %v8452 = vmax.f32 %v7940, 0.0
  %v8453 = vmax.f32 %v7941, 0.0
  %v8454 = vmax.f32 %v7942, 0.0
  %v8455 = vmax.f32 %v7943, 0.0
  %v8456 = vmax.f32 %v7944, 0.0
  %v8457 = vmax.f32 %v7945, 0.0
  %v8458 = vmax.f32 %v7946, 0.0
  %v8459 = vmax.f32 %v7947, 0.0
  %v8460 = vmax.f32 %v7948, 0.0
  %v8461 = vmax.f32 %v7949, 0.0
  %v8462 = vmax.f32 %v7950, 0.0
  %v8463 = vmax.f32 %v7951, 0.0
  %v8464 = vmax.f32 %v7952, 0.0
  %v8465 = vmax.f32 %v7953, 0.0
  %v8466 = vmax.f32 %v7954, 0.0
  %v8467 = vmax.f32 %v7955, 0.0
  %v8468 = vmax.f32 %v7956, 0.0
  %v8469 = vmax.f32 %v7957, 0.0
  %v8470 = vmax.f32 %v7958, 0.0
  %v8471 = vmax.f32 %v7959, 0.0
  %v8472 = vmax.f32 %v7960, 0.0
  %v8473 = vmax.f32 %v7961, 0.0
  %v8474 = vmax.f32 %v7962, 0.0
  %v8475 = vmax.f32 %v7963, 0.0
  %v8476 = vmax.f32 %v7964, 0.0
  %v8477 = vmax.f32 %v7965, 0.0
  %v8478 = vmax.f32 %v7966, 0.0
  %v8479 = vmax.f32 %v7967, 0.0
  %v8480 = vmax.f32 %v7968, 0.0
  %v8481 = vmax.f32 %v7969, 0.0
  %v8482 = vmax.f32 %v7970, 0.0
  %v8483 = vmax.f32 %v7971, 0.0
  %v8484 = vmax.f32 %v7972, 0.0
  %v8485 = vmax.f32 %v7973, 0.0
  %v8486 = vmax.f32 %v7974, 0.0
  %v8487 = vmax.f32 %v7975, 0.0
  %v8488 = vmax.f32 %v7976, 0.0
  %v8489 = vmax.f32 %v7977, 0.0
  %v8490 = vmax.f32 %v7978, 0.0
  %v8491 = vmax.f32 %v7979, 0.0
  %v8492 = vmax.f32 %v7980, 0.0
  %v8493 = vmax.f32 %v7981, 0.0
  %v8494 = vmax.f32 %v7982, 0.0
  %v8495 = vmax.f32 %v7983, 0.0
  %v8496 = vmax.f32 %v7984, 0.0
  %v8497 = vmax.f32 %v7985, 0.0
  %v8498 = vmax.f32 %v7986, 0.0
  %v8499 = vmax.f32 %v7987, 0.0
  %v8500 = vmax.f32 %v7988, 0.0
  %v8501 = vmax.f32 %v7989, 0.0
  %v8502 = vmax.f32 %v7990, 0.0
  %v8503 = vmax.f32 %v7991, 0.0
  %v8504 = vmax.f32 %v7992, 0.0
  %v8505 = vmax.f32 %v7993, 0.0
  %v8506 = vmax.f32 %v7994, 0.0
  %v8507 = vmax.f32 %v7995, 0.0
  %v8508 = vmax.f32 %v7996, 0.0
  %v8509 = vmax.f32 %v7997, 0.0
  %v8510 = vmax.f32 %v7998, 0.0
  %v8511 = vmax.f32 %v7999, 0.0
  %v8512 = vmax.f32 %v8000, 0.0
  %v8513 = vmax.f32 %v8001, 0.0
  %v8514 = vmax.f32 %v8002, 0.0
  %v8515 = vmax.f32 %v8003, 0.0
  %v8516 = vmax.f32 %v8004, 0.0
  %v8517 = vmax.f32 %v8005, 0.0
  %v8518 = vmax.f32 %v8006, 0.0
  %v8519 = vmax.f32 %v8007, 0.0
  %v8520 = vmax.f32 %v8008, 0.0
  %v8521 = vmax.f32 %v8009, 0.0
  %v8522 = vmax.f32 %v8010, 0.0
  %v8523 = vmax.f32 %v8011, 0.0
  %v8524 = vmax.f32 %v8012, 0.0
  %v8525 = vmax.f32 %v8013, 0.0
  %v8526 = vmax.f32 %v8014, 0.0
  %v8527 = vmax.f32 %v8015, 0.0
  %v8528 = vmax.f32 %v8016, 0.0
  %v8529 = vmax.f32 %v8017, 0.0
  %v8530 = vmax.f32 %v8018, 0.0
  %v8531 = vmax.f32 %v8019, 0.0
  %v8532 = vmax.f32 %v8020, 0.0
  %v8533 = vmax.f32 %v8021, 0.0
  %v8534 = vmax.f32 %v8022, 0.0
  %v8535 = vmax.f32 %v8023, 0.0
  %v8536 = vmax.f32 %v8024, 0.0
  %v8537 = vmax.f32 %v8025, 0.0
  %v8538 = vmax.f32 %v8026, 0.0
  %v8539 = vmax.f32 %v8027, 0.0
  %v8540 = vmax.f32 %v8028, 0.0
  %v8541 = vmax.f32 %v8029, 0.0
  %v8542 = vmax.f32 %v8030, 0.0
  %v8543 = vmax.f32 %v8031, 0.0
  %v8544 = vmax.f32 %v8032, 0.0
  %v8545 = vmax.f32 %v8033, 0.0
  %v8546 = vmax.f32 %v8034, 0.0
  %v8547 = vmax.f32 %v8035, 0.0
  %v8548 = vmax.f32 %v8036, 0.0
  %v8549 = vmax.f32 %v8037, 0.0
  %v8550 = vmax.f32 %v8038, 0.0
  %v8551 = vmax.f32 %v8039, 0.0
  %v8552 = vmax.f32 %v8040, 0.0
  %v8553 = vmax.f32 %v8041, 0.0
  %v8554 = vmax.f32 %v8042, 0.0
  %v8555 = vmax.f32 %v8043, 0.0
  %v8556 = vmax.f32 %v8044, 0.0
  %v8557 = vmax.f32 %v8045, 0.0
  %v8558 = vmax.f32 %v8046, 0.0
  %v8559 = vmax.f32 %v8047, 0.0
  %v8560 = vmax.f32 %v8048, 0.0
  %v8561 = vmax.f32 %v8049, 0.0
  %v8562 = vmax.f32 %v8050, 0.0
  %v8563 = vmax.f32 %v8051, 0.0
  %v8564 = vmax.f32 %v8052, 0.0
  %v8565 = vmax.f32 %v8053, 0.0
  %v8566 = vmax.f32 %v8054, 0.0
  %v8567 = vmax.f32 %v8055, 0.0
  %v8568 = vmax.f32 %v8056, 0.0
  %v8569 = vmax.f32 %v8057, 0.0
  %v8570 = vmax.f32 %v8058, 0.0
  %v8571 = vmax.f32 %v8059, 0.0
  %v8572 = vmax.f32 %v8060, 0.0
  %v8573 = vmax.f32 %v8061, 0.0
  %v8574 = vmax.f32 %v8062, 0.0
  %v8575 = vmax.f32 %v8063, 0.0
  %v8576 = vmax.f32 %v8064, 0.0
  %v8577 = vmax.f32 %v8065, 0.0
  %v8578 = vmax.f32 %v8066, 0.0
  %v8579 = vmax.f32 %v8067, 0.0
  %v8580 = vmax.f32 %v8068, 0.0
  %v8581 = vmax.f32 %v8069, 0.0
  %v8582 = vmax.f32 %v8070, 0.0
  %v8583 = vmax.f32 %v8071, 0.0
  %v8584 = vmax.f32 %v8072, 0.0
  %v8585 = vmax.f32 %v8073, 0.0
  %v8586 = vmax.f32 %v8074, 0.0
  %v8587 = vmax.f32 %v8075, 0.0
  %v8588 = vmax.f32 %v8076, 0.0
  %v8589 = vmax.f32 %v8077, 0.0
  %v8590 = vadd.f32 %v8078, %v8079
  %v8591 = vadd.f32 %v8590, %v8080
  %v8592 = vadd.f32 %v8591, %v8081
  %v8593 = vadd.f32 %v8592, %v8082
  %v8594 = vadd.f32 %v8593, %v8083
  %v8595 = vadd.f32 %v8594, %v8084
  %v8596 = vadd.f32 %v8595, %v8085
  %v8597 = vadd.f32 %v8596, %v8086
  %v8598 = vadd.f32 %v8597, %v8087
  %v8599 = vadd.f32 %v8598, %v8088
  %v8600 = vadd.f32 %v8599, %v8089
  %v8601 = vadd.f32 %v8600, %v8090
  %v8602 = vadd.f32 %v8601, %v8091
  %v8603 = vadd.f32 %v8602, %v8092
  %v8604 = vadd.f32 %v8603, %v8093
  %v8605 = vadd.f32 %v8604, %v8094
  %v8606 = vadd.f32 %v8605, %v8095
  %v8607 = vadd.f32 %v8606, %v8096
  %v8608 = vadd.f32 %v8607, %v8097
  %v8609 = vadd.f32 %v8608, %v8098
  %v8610 = vadd.f32 %v8609, %v8099
  %v8611 = vadd.f32 %v8610, %v8100
  %v8612 = vadd.f32 %v8611, %v8101
  %v8613 = vadd.f32 %v8612, %v8102
  %v8614 = vadd.f32 %v8613, %v8103
  %v8615 = vadd.f32 %v8614, %v8104
  %v8616 = vadd.f32 %v8615, %v8105
  %v8617 = vadd.f32 %v8616, %v8106
  %v8618 = vadd.f32 %v8617, %v8107
  %v8619 = vadd.f32 %v8618, %v8108
  %v8620 = vadd.f32 %v8619, %v8109
  %v8621 = vrot.slane %v8620, 4
  %v8622 = vadd.f32 %v8620, %v8621
  %v8623 = vrot.slane %v8622, 2
  %v8624 = vadd.f32 %v8622, %v8623
  %v8625 = vrot.slane %v8624, 1
  %v8626 = vadd.f32 %v8624, %v8625
  %v8627 = vadd.f32 %v8110, %v8111
  %v8628 = vadd.f32 %v8627, %v8112
  %v8629 = vadd.f32 %v8628, %v8113
  %v8630 = vadd.f32 %v8629, %v8114
  %v8631 = vadd.f32 %v8630, %v8115
  %v8632 = vadd.f32 %v8631, %v8116
  %v8633 = vadd.f32 %v8632, %v8117
  %v8634 = vadd.f32 %v8633, %v8118
  %v8635 = vadd.f32 %v8634, %v8119
  %v8636 = vadd.f32 %v8635, %v8120
  %v8637 = vadd.f32 %v8636, %v8121
  %v8638 = vadd.f32 %v8637, %v8122
  %v8639 = vadd.f32 %v8638, %v8123
  %v8640 = vadd.f32 %v8639, %v8124
  %v8641 = vadd.f32 %v8640, %v8125
  %v8642 = vadd.f32 %v8641, %v8126
  %v8643 = vadd.f32 %v8642, %v8127
  %v8644 = vadd.f32 %v8643, %v8128
  %v8645 = vadd.f32 %v8644, %v8129
  %v8646 = vadd.f32 %v8645, %v8130
  %v8647 = vadd.f32 %v8646, %v8131
  %v8648 = vadd.f32 %v8647, %v8132
  %v8649 = vadd.f32 %v8648, %v8133
  %v8650 = vadd.f32 %v8649, %v8134
  %v8651 = vadd.f32 %v8650, %v8135
  %v8652 = vadd.f32 %v8651, %v8136
  %v8653 = vadd.f32 %v8652, %v8137
  %v8654 = vadd.f32 %v8653, %v8138
  %v8655 = vadd.f32 %v8654, %v8139
  %v8656 = vadd.f32 %v8655, %v8140
  %v8657 = vadd.f32 %v8656, %v8141
  %v8658 = vrot.slane %v8657, 4
  %v8659 = vadd.f32 %v8657, %v8658
  %v8660 = vrot.slane %v8659, 2
  %v8661 = vadd.f32 %v8659, %v8660
  %v8662 = vrot.slane %v8661, 1
  %v8663 = vadd.f32 %v8661, %v8662
  %v8664 = vadd.f32 %v8142, %v8143
  %v8665 = vadd.f32 %v8664, %v8144
  %v8666 = vadd.f32 %v8665, %v8145
  %v8667 = vadd.f32 %v8666, %v8146
  %v8668 = vadd.f32 %v8667, %v8147
  %v8669 = vadd.f32 %v8668, %v8148
  %v8670 = vadd.f32 %v8669, %v8149
  %v8671 = vadd.f32 %v8670, %v8150
  %v8672 = vadd.f32 %v8671, %v8151
  %v8673 = vadd.f32 %v8672, %v8152
  %v8674 = vadd.f32 %v8673, %v8153
  %v8675 = vadd.f32 %v8674, %v8154
  %v8676 = vadd.f32 %v8675, %v8155
  %v8677 = vadd.f32 %v8676, %v8156
  %v8678 = vadd.f32 %v8677, %v8157
  %v8679 = vadd.f32 %v8678, %v8158
  %v8680 = vadd.f32 %v8679, %v8159
  %v8681 = vadd.f32 %v8680, %v8160
  %v8682 = vadd.f32 %v8681, %v8161
  %v8683 = vadd.f32 %v8682, %v8162
  %v8684 = vadd.f32 %v8683, %v8163
  %v8685 = vadd.f32 %v8684, %v8164
  %v8686 = vadd.f32 %v8685, %v8165
  %v8687 = vadd.f32 %v8686, %v8166
  %v8688 = vadd.f32 %v8687, %v8167
  %v8689 = vadd.f32 %v8688, %v8168
  %v8690 = vadd.f32 %v8689, %v8169
  %v8691 = vadd.f32 %v8690, %v8170
  %v8692 = vadd.f32 %v8691, %v8171
  %v8693 = vadd.f32 %v8692, %v8172
  %v8694 = vadd.f32 %v8693, %v8173
  %v8695 = vrot.slane %v8694, 4
  %v8696 = vadd.f32 %v8694, %v8695
  %v8697 = vrot.slane %v8696, 2
  %v8698 = vadd.f32 %v8696, %v8697
  %v8699 = vrot.slane %v8698, 1
  %v8700 = vadd.f32 %v8698, %v8699
  %v8701 = vadd.f32 %v8174, %v8175
  %v8702 = vadd.f32 %v8701, %v8176
  %v8703 = vadd.f32 %v8702, %v8177
  %v8704 = vadd.f32 %v8703, %v8178
  %v8705 = vadd.f32 %v8704, %v8179
  %v8706 = vadd.f32 %v8705, %v8180
  %v8707 = vadd.f32 %v8706, %v8181
  %v8708 = vadd.f32 %v8707, %v8182
  %v8709 = vadd.f32 %v8708, %v8183
  %v8710 = vadd.f32 %v8709, %v8184
  %v8711 = vadd.f32 %v8710, %v8185
  %v8712 = vadd.f32 %v8711, %v8186
  %v8713 = vadd.f32 %v8712, %v8187
  %v8714 = vadd.f32 %v8713, %v8188
  %v8715 = vadd.f32 %v8714, %v8189
  %v8716 = vadd.f32 %v8715, %v8190
  %v8717 = vadd.f32 %v8716, %v8191
  %v8718 = vadd.f32 %v8717, %v8192
  %v8719 = vadd.f32 %v8718, %v8193
  %v8720 = vadd.f32 %v8719, %v8194
  %v8721 = vadd.f32 %v8720, %v8195
  %v8722 = vadd.f32 %v8721, %v8196
  %v8723 = vadd.f32 %v8722, %v8197
  %v8724 = vadd.f32 %v8723, %v8198
  %v8725 = vadd.f32 %v8724, %v8199
  %v8726 = vadd.f32 %v8725, %v8200
  %v8727 = vadd.f32 %v8726, %v8201
  %v8728 = vadd.f32 %v8727, %v8202
  %v8729 = vadd.f32 %v8728, %v8203
  %v8730 = vadd.f32 %v8729, %v8204
  %v8731 = vadd.f32 %v8730, %v8205
  %v8732 = vrot.slane %v8731, 4
  %v8733 = vadd.f32 %v8731, %v8732
  %v8734 = vrot.slane %v8733, 2
  %v8735 = vadd.f32 %v8733, %v8734
  %v8736 = vrot.slane %v8735, 1
  %v8737 = vadd.f32 %v8735, %v8736
  %v8738 = vadd.f32 %v8206, %v8207
  %v8739 = vadd.f32 %v8738, %v8208
  %v8740 = vadd.f32 %v8739, %v8209
  %v8741 = vadd.f32 %v8740, %v8210
  %v8742 = vadd.f32 %v8741, %v8211
  %v8743 = vadd.f32 %v8742, %v8212
  %v8744 = vadd.f32 %v8743, %v8213
  %v8745 = vadd.f32 %v8744, %v8214
  %v8746 = vadd.f32 %v8745, %v8215
  %v8747 = vadd.f32 %v8746, %v8216
  %v8748 = vadd.f32 %v8747, %v8217
  %v8749 = vadd.f32 %v8748, %v8218
  %v8750 = vadd.f32 %v8749, %v8219
  %v8751 = vadd.f32 %v8750, %v8220
  %v8752 = vadd.f32 %v8751, %v8221
  %v8753 = vadd.f32 %v8752, %v8222
  %v8754 = vadd.f32 %v8753, %v8223
  %v8755 = vadd.f32 %v8754, %v8224
  %v8756 = vadd.f32 %v8755, %v8225
  %v8757 = vadd.f32 %v8756, %v8226
  %v8758 = vadd.f32 %v8757, %v8227
  %v8759 = vadd.f32 %v8758, %v8228
  %v8760 = vadd.f32 %v8759, %v8229
  %v8761 = vadd.f32 %v8760, %v8230
  %v8762 = vadd.f32 %v8761, %v8231
  %v8763 = vadd.f32 %v8762, %v8232
  %v8764 = vadd.f32 %v8763, %v8233
  %v8765 = vadd.f32 %v8764, %v8234
  %v8766 = vadd.f32 %v8765, %v8235
  %v8767 = vadd.f32 %v8766, %v8236
  %v8768 = vadd.f32 %v8767, %v8237
  %v8769 = vrot.slane %v8768, 4
  %v8770 = vadd.f32 %v8768, %v8769
  %v8771 = vrot.slane %v8770, 2
  %v8772 = vadd.f32 %v8770, %v8771
  %v8773 = vrot.slane %v8772, 1
  %v8774 = vadd.f32 %v8772, %v8773
  %v8775 = vadd.f32 %v8238, %v8239
  %v8776 = vadd.f32 %v8775, %v8240
  %v8777 = vadd.f32 %v8776, %v8241
  %v8778 = vadd.f32 %v8777, %v8242
  %v8779 = vadd.f32 %v8778, %v8243
  %v8780 = vadd.f32 %v8779, %v8244
  %v8781 = vadd.f32 %v8780, %v8245
  %v8782 = vadd.f32 %v8781, %v8246
  %v8783 = vadd.f32 %v8782, %v8247
  %v8784 = vadd.f32 %v8783, %v8248
  %v8785 = vadd.f32 %v8784, %v8249
  %v8786 = vadd.f32 %v8785, %v8250
  %v8787 = vadd.f32 %v8786, %v8251
  %v8788 = vadd.f32 %v8787, %v8252
  %v8789 = vadd.f32 %v8788, %v8253
  %v8790 = vadd.f32 %v8789, %v8254
  %v8791 = vadd.f32 %v8790, %v8255
  %v8792 = vadd.f32 %v8791, %v8256
  %v8793 = vadd.f32 %v8792, %v8257
  %v8794 = vadd.f32 %v8793, %v8258
  %v8795 = vadd.f32 %v8794, %v8259
  %v8796 = vadd.f32 %v8795, %v8260
  %v8797 = vadd.f32 %v8796, %v8261
  %v8798 = vadd.f32 %v8797, %v8262
  %v8799 = vadd.f32 %v8798, %v8263
  %v8800 = vadd.f32 %v8799, %v8264
  %v8801 = vadd.f32 %v8800, %v8265
  %v8802 = vadd.f32 %v8801, %v8266
  %v8803 = vadd.f32 %v8802, %v8267
  %v8804 = vadd.f32 %v8803, %v8268
  %v8805 = vadd.f32 %v8804, %v8269
  %v8806 = vrot.slane %v8805, 4
  %v8807 = vadd.f32 %v8805, %v8806
  %v8808 = vrot.slane %v8807, 2
  %v8809 = vadd.f32 %v8807, %v8808
  %v8810 = vrot.slane %v8809, 1
  %v8811 = vadd.f32 %v8809, %v8810
  %v8812 = vadd.f32 %v8270, %v8271
  %v8813 = vadd.f32 %v8812, %v8272
  %v8814 = vadd.f32 %v8813, %v8273
  %v8815 = vadd.f32 %v8814, %v8274
  %v8816 = vadd.f32 %v8815, %v8275
  %v8817 = vadd.f32 %v8816, %v8276
  %v8818 = vadd.f32 %v8817, %v8277
  %v8819 = vadd.f32 %v8818, %v8278
  %v8820 = vadd.f32 %v8819, %v8279
  %v8821 = vadd.f32 %v8820, %v8280
  %v8822 = vadd.f32 %v8821, %v8281
  %v8823 = vadd.f32 %v8822, %v8282
  %v8824 = vadd.f32 %v8823, %v8283
  %v8825 = vadd.f32 %v8824, %v8284
  %v8826 = vadd.f32 %v8825, %v8285
  %v8827 = vadd.f32 %v8826, %v8286
  %v8828 = vadd.f32 %v8827, %v8287
  %v8829 = vadd.f32 %v8828, %v8288
  %v8830 = vadd.f32 %v8829, %v8289
  %v8831 = vadd.f32 %v8830, %v8290
  %v8832 = vadd.f32 %v8831, %v8291
  %v8833 = vadd.f32 %v8832, %v8292
  %v8834 = vadd.f32 %v8833, %v8293
  %v8835 = vadd.f32 %v8834, %v8294
  %v8836 = vadd.f32 %v8835, %v8295
  %v8837 = vadd.f32 %v8836, %v8296
  %v8838 = vadd.f32 %v8837, %v8297
  %v8839 = vadd.f32 %v8838, %v8298
  %v8840 = vadd.f32 %v8839, %v8299
  %v8841 = vadd.f32 %v8840, %v8300
  %v8842 = vadd.f32 %v8841, %v8301
  %v8843 = vrot.slane %v8842, 4
  %v8844 = vadd.f32 %v8842, %v8843
  %v8845 = vrot.slane %v8844, 2
  %v8846 = vadd.f32 %v8844, %v8845
  %v8847 = vrot.slane %v8846, 1
  %v8848 = vadd.f32 %v8846, %v8847
  %v8849 = vadd.f32 %v8302, %v8303
  %v8850 = vadd.f32 %v8849, %v8304
  %v8851 = vadd.f32 %v8850, %v8305
  %v8852 = vadd.f32 %v8851, %v8306
  %v8853 = vadd.f32 %v8852, %v8307
  %v8854 = vadd.f32 %v8853, %v8308
  %v8855 = vadd.f32 %v8854, %v8309
  %v8856 = vadd.f32 %v8855, %v8310
  %v8857 = vadd.f32 %v8856, %v8311
  %v8858 = vadd.f32 %v8857, %v8312
  %v8859 = vadd.f32 %v8858, %v8313
  %v8860 = vadd.f32 %v8859, %v8314
  %v8861 = vadd.f32 %v8860, %v8315
  %v8862 = vadd.f32 %v8861, %v8316
  %v8863 = vadd.f32 %v8862, %v8317
  %v8864 = vadd.f32 %v8863, %v8318
  %v8865 = vadd.f32 %v8864, %v8319
  %v8866 = vadd.f32 %v8865, %v8320
  %v8867 = vadd.f32 %v8866, %v8321
  %v8868 = vadd.f32 %v8867, %v8322
  %v8869 = vadd.f32 %v8868, %v8323
  %v8870 = vadd.f32 %v8869, %v8324
  %v8871 = vadd.f32 %v8870, %v8325
  %v8872 = vadd.f32 %v8871, %v8326
  %v8873 = vadd.f32 %v8872, %v8327
  %v8874 = vadd.f32 %v8873, %v8328
  %v8875 = vadd.f32 %v8874, %v8329
  %v8876 = vadd.f32 %v8875, %v8330
  %v8877 = vadd.f32 %v8876, %v8331
  %v8878 = vadd.f32 %v8877, %v8332
  %v8879 = vadd.f32 %v8878, %v8333
  %v8880 = vrot.slane %v8879, 4
  %v8881 = vadd.f32 %v8879, %v8880
  %v8882 = vrot.slane %v8881, 2
  %v8883 = vadd.f32 %v8881, %v8882
  %v8884 = vrot.slane %v8883, 1
  %v8885 = vadd.f32 %v8883, %v8884
  %v8886 = vadd.f32 %v8334, %v8335
  %v8887 = vadd.f32 %v8886, %v8336
  %v8888 = vadd.f32 %v8887, %v8337
  %v8889 = vadd.f32 %v8888, %v8338
  %v8890 = vadd.f32 %v8889, %v8339
  %v8891 = vadd.f32 %v8890, %v8340
  %v8892 = vadd.f32 %v8891, %v8341
  %v8893 = vadd.f32 %v8892, %v8342
  %v8894 = vadd.f32 %v8893, %v8343
  %v8895 = vadd.f32 %v8894, %v8344
  %v8896 = vadd.f32 %v8895, %v8345
  %v8897 = vadd.f32 %v8896, %v8346
  %v8898 = vadd.f32 %v8897, %v8347
  %v8899 = vadd.f32 %v8898, %v8348
  %v8900 = vadd.f32 %v8899, %v8349
  %v8901 = vadd.f32 %v8900, %v8350
  %v8902 = vadd.f32 %v8901, %v8351
  %v8903 = vadd.f32 %v8902, %v8352
  %v8904 = vadd.f32 %v8903, %v8353
  %v8905 = vadd.f32 %v8904, %v8354
  %v8906 = vadd.f32 %v8905, %v8355
  %v8907 = vadd.f32 %v8906, %v8356
  %v8908 = vadd.f32 %v8907, %v8357
  %v8909 = vadd.f32 %v8908, %v8358
  %v8910 = vadd.f32 %v8909, %v8359
  %v8911 = vadd.f32 %v8910, %v8360
  %v8912 = vadd.f32 %v8911, %v8361
  %v8913 = vadd.f32 %v8912, %v8362
  %v8914 = vadd.f32 %v8913, %v8363
  %v8915 = vadd.f32 %v8914, %v8364
  %v8916 = vadd.f32 %v8915, %v8365
  %v8917 = vrot.slane %v8916, 4
  %v8918 = vadd.f32 %v8916, %v8917
  %v8919 = vrot.slane %v8918, 2
  %v8920 = vadd.f32 %v8918, %v8919
  %v8921 = vrot.slane %v8920, 1
  %v8922 = vadd.f32 %v8920, %v8921
  %v8923 = vadd.f32 %v8366, %v8367
  %v8924 = vadd.f32 %v8923, %v8368
  %v8925 = vadd.f32 %v8924, %v8369
  %v8926 = vadd.f32 %v8925, %v8370
  %v8927 = vadd.f32 %v8926, %v8371
  %v8928 = vadd.f32 %v8927, %v8372
  %v8929 = vadd.f32 %v8928, %v8373
  %v8930 = vadd.f32 %v8929, %v8374
  %v8931 = vadd.f32 %v8930, %v8375
  %v8932 = vadd.f32 %v8931, %v8376
  %v8933 = vadd.f32 %v8932, %v8377
  %v8934 = vadd.f32 %v8933, %v8378
  %v8935 = vadd.f32 %v8934, %v8379
  %v8936 = vadd.f32 %v8935, %v8380
  %v8937 = vadd.f32 %v8936, %v8381
  %v8938 = vadd.f32 %v8937, %v8382
  %v8939 = vadd.f32 %v8938, %v8383
  %v8940 = vadd.f32 %v8939, %v8384
  %v8941 = vadd.f32 %v8940, %v8385
  %v8942 = vadd.f32 %v8941, %v8386
  %v8943 = vadd.f32 %v8942, %v8387
  %v8944 = vadd.f32 %v8943, %v8388
  %v8945 = vadd.f32 %v8944, %v8389
  %v8946 = vadd.f32 %v8945, %v8390
  %v8947 = vadd.f32 %v8946, %v8391
  %v8948 = vadd.f32 %v8947, %v8392
  %v8949 = vadd.f32 %v8948, %v8393
  %v8950 = vadd.f32 %v8949, %v8394
  %v8951 = vadd.f32 %v8950, %v8395
  %v8952 = vadd.f32 %v8951, %v8396
  %v8953 = vadd.f32 %v8952, %v8397
  %v8954 = vrot.slane %v8953, 4
  %v8955 = vadd.f32 %v8953, %v8954
  %v8956 = vrot.slane %v8955, 2
  %v8957 = vadd.f32 %v8955, %v8956
  %v8958 = vrot.slane %v8957, 1
  %v8959 = vadd.f32 %v8957, %v8958
  %v8960 = vadd.f32 %v8398, %v8399
  %v8961 = vadd.f32 %v8960, %v8400
  %v8962 = vadd.f32 %v8961, %v8401
  %v8963 = vadd.f32 %v8962, %v8402
  %v8964 = vadd.f32 %v8963, %v8403
  %v8965 = vadd.f32 %v8964, %v8404
  %v8966 = vadd.f32 %v8965, %v8405
  %v8967 = vadd.f32 %v8966, %v8406
  %v8968 = vadd.f32 %v8967, %v8407
  %v8969 = vadd.f32 %v8968, %v8408
  %v8970 = vadd.f32 %v8969, %v8409
  %v8971 = vadd.f32 %v8970, %v8410
  %v8972 = vadd.f32 %v8971, %v8411
  %v8973 = vadd.f32 %v8972, %v8412
  %v8974 = vadd.f32 %v8973, %v8413
  %v8975 = vadd.f32 %v8974, %v8414
  %v8976 = vadd.f32 %v8975, %v8415
  %v8977 = vadd.f32 %v8976, %v8416
  %v8978 = vadd.f32 %v8977, %v8417
  %v8979 = vadd.f32 %v8978, %v8418
  %v8980 = vadd.f32 %v8979, %v8419
  %v8981 = vadd.f32 %v8980, %v8420
  %v8982 = vadd.f32 %v8981, %v8421
  %v8983 = vadd.f32 %v8982, %v8422
  %v8984 = vadd.f32 %v8983, %v8423
  %v8985 = vadd.f32 %v8984, %v8424
  %v8986 = vadd.f32 %v8985, %v8425
  %v8987 = vadd.f32 %v8986, %v8426
  %v8988 = vadd.f32 %v8987, %v8427
  %v8989 = vadd.f32 %v8988, %v8428
  %v8990 = vadd.f32 %v8989, %v8429
  %v8991 = vrot.slane %v8990, 4
  %v8992 = vadd.f32 %v8990, %v8991
  %v8993 = vrot.slane %v8992, 2
  %v8994 = vadd.f32 %v8992, %v8993
  %v8995 = vrot.slane %v8994, 1
  %v8996 = vadd.f32 %v8994, %v8995
  %v8997 = vadd.f32 %v8430, %v8431
  %v8998 = vadd.f32 %v8997, %v8432
  %v8999 = vadd.f32 %v8998, %v8433
  %v9000 = vadd.f32 %v8999, %v8434
  %v9001 = vadd.f32 %v9000, %v8435
  %v9002 = vadd.f32 %v9001, %v8436
  %v9003 = vadd.f32 %v9002, %v8437
  %v9004 = vadd.f32 %v9003, %v8438
  %v9005 = vadd.f32 %v9004, %v8439
  %v9006 = vadd.f32 %v9005, %v8440
  %v9007 = vadd.f32 %v9006, %v8441
  %v9008 = vadd.f32 %v9007, %v8442
  %v9009 = vadd.f32 %v9008, %v8443
  %v9010 = vadd.f32 %v9009, %v8444
  %v9011 = vadd.f32 %v9010, %v8445
  %v9012 = vadd.f32 %v9011, %v8446
  %v9013 = vadd.f32 %v9012, %v8447
  %v9014 = vadd.f32 %v9013, %v8448
  %v9015 = vadd.f32 %v9014, %v8449
  %v9016 = vadd.f32 %v9015, %v8450
  %v9017 = vadd.f32 %v9016, %v8451
  %v9018 = vadd.f32 %v9017, %v8452
  %v9019 = vadd.f32 %v9018, %v8453
  %v9020 = vadd.f32 %v9019, %v8454
  %v9021 = vadd.f32 %v9020, %v8455
  %v9022 = vadd.f32 %v9021, %v8456
  %v9023 = vadd.f32 %v9022, %v8457
  %v9024 = vadd.f32 %v9023, %v8458
  %v9025 = vadd.f32 %v9024, %v8459
  %v9026 = vadd.f32 %v9025, %v8460
  %v9027 = vadd.f32 %v9026, %v8461
  %v9028 = vrot.slane %v9027, 4
  %v9029 = vadd.f32 %v9027, %v9028
  %v9030 = vrot.slane %v9029, 2
  %v9031 = vadd.f32 %v9029, %v9030
  %v9032 = vrot.slane %v9031, 1
  %v9033 = vadd.f32 %v9031, %v9032
  %v9034 = vadd.f32 %v8462, %v8463
  %v9035 = vadd.f32 %v9034, %v8464
  %v9036 = vadd.f32 %v9035, %v8465
  %v9037 = vadd.f32 %v9036, %v8466
  %v9038 = vadd.f32 %v9037, %v8467
  %v9039 = vadd.f32 %v9038, %v8468
  %v9040 = vadd.f32 %v9039, %v8469
  %v9041 = vadd.f32 %v9040, %v8470
  %v9042 = vadd.f32 %v9041, %v8471
  %v9043 = vadd.f32 %v9042, %v8472
  %v9044 = vadd.f32 %v9043, %v8473
  %v9045 = vadd.f32 %v9044, %v8474
  %v9046 = vadd.f32 %v9045, %v8475
  %v9047 = vadd.f32 %v9046, %v8476
  %v9048 = vadd.f32 %v9047, %v8477
  %v9049 = vadd.f32 %v9048, %v8478
  %v9050 = vadd.f32 %v9049, %v8479
  %v9051 = vadd.f32 %v9050, %v8480
  %v9052 = vadd.f32 %v9051, %v8481
  %v9053 = vadd.f32 %v9052, %v8482
  %v9054 = vadd.f32 %v9053, %v8483
  %v9055 = vadd.f32 %v9054, %v8484
  %v9056 = vadd.f32 %v9055, %v8485
  %v9057 = vadd.f32 %v9056, %v8486
  %v9058 = vadd.f32 %v9057, %v8487
  %v9059 = vadd.f32 %v9058, %v8488
  %v9060 = vadd.f32 %v9059, %v8489
  %v9061 = vadd.f32 %v9060, %v8490
  %v9062 = vadd.f32 %v9061, %v8491
  %v9063 = vadd.f32 %v9062, %v8492
  %v9064 = vadd.f32 %v9063, %v8493
  %v9065 = vrot.slane %v9064, 4
  %v9066 = vadd.f32 %v9064, %v9065
  %v9067 = vrot.slane %v9066, 2
  %v9068 = vadd.f32 %v9066, %v9067
  %v9069 = vrot.slane %v9068, 1
  %v9070 = vadd.f32 %v9068, %v9069
  %v9071 = vadd.f32 %v8494, %v8495
  %v9072 = vadd.f32 %v9071, %v8496
  %v9073 = vadd.f32 %v9072, %v8497
  %v9074 = vadd.f32 %v9073, %v8498
  %v9075 = vadd.f32 %v9074, %v8499
  %v9076 = vadd.f32 %v9075, %v8500
  %v9077 = vadd.f32 %v9076, %v8501
  %v9078 = vadd.f32 %v9077, %v8502
  %v9079 = vadd.f32 %v9078, %v8503
  %v9080 = vadd.f32 %v9079, %v8504
  %v9081 = vadd.f32 %v9080, %v8505
  %v9082 = vadd.f32 %v9081, %v8506
  %v9083 = vadd.f32 %v9082, %v8507
  %v9084 = vadd.f32 %v9083, %v8508
  %v9085 = vadd.f32 %v9084, %v8509
  %v9086 = vadd.f32 %v9085, %v8510
  %v9087 = vadd.f32 %v9086, %v8511
  %v9088 = vadd.f32 %v9087, %v8512
  %v9089 = vadd.f32 %v9088, %v8513
  %v9090 = vadd.f32 %v9089, %v8514
  %v9091 = vadd.f32 %v9090, %v8515
  %v9092 = vadd.f32 %v9091, %v8516
  %v9093 = vadd.f32 %v9092, %v8517
  %v9094 = vadd.f32 %v9093, %v8518
  %v9095 = vadd.f32 %v9094, %v8519
  %v9096 = vadd.f32 %v9095, %v8520
  %v9097 = vadd.f32 %v9096, %v8521
  %v9098 = vadd.f32 %v9097, %v8522
  %v9099 = vadd.f32 %v9098, %v8523
  %v9100 = vadd.f32 %v9099, %v8524
  %v9101 = vadd.f32 %v9100, %v8525
  %v9102 = vrot.slane %v9101, 4
  %v9103 = vadd.f32 %v9101, %v9102
  %v9104 = vrot.slane %v9103, 2
  %v9105 = vadd.f32 %v9103, %v9104
  %v9106 = vrot.slane %v9105, 1
  %v9107 = vadd.f32 %v9105, %v9106
  %v9108 = vadd.f32 %v8526, %v8527
  %v9109 = vadd.f32 %v9108, %v8528
  %v9110 = vadd.f32 %v9109, %v8529
  %v9111 = vadd.f32 %v9110, %v8530
  %v9112 = vadd.f32 %v9111, %v8531
  %v9113 = vadd.f32 %v9112, %v8532
  %v9114 = vadd.f32 %v9113, %v8533
  %v9115 = vadd.f32 %v9114, %v8534
  %v9116 = vadd.f32 %v9115, %v8535
  %v9117 = vadd.f32 %v9116, %v8536
  %v9118 = vadd.f32 %v9117, %v8537
  %v9119 = vadd.f32 %v9118, %v8538
  %v9120 = vadd.f32 %v9119, %v8539
  %v9121 = vadd.f32 %v9120, %v8540
  %v9122 = vadd.f32 %v9121, %v8541
  %v9123 = vadd.f32 %v9122, %v8542
  %v9124 = vadd.f32 %v9123, %v8543
  %v9125 = vadd.f32 %v9124, %v8544
  %v9126 = vadd.f32 %v9125, %v8545
  %v9127 = vadd.f32 %v9126, %v8546
  %v9128 = vadd.f32 %v9127, %v8547
  %v9129 = vadd.f32 %v9128, %v8548
  %v9130 = vadd.f32 %v9129, %v8549
  %v9131 = vadd.f32 %v9130, %v8550
  %v9132 = vadd.f32 %v9131, %v8551
  %v9133 = vadd.f32 %v9132, %v8552
  %v9134 = vadd.f32 %v9133, %v8553
  %v9135 = vadd.f32 %v9134, %v8554
  %v9136 = vadd.f32 %v9135, %v8555
  %v9137 = vadd.f32 %v9136, %v8556
  %v9138 = vadd.f32 %v9137, %v8557
  %v9139 = vrot.slane %v9138, 4
  %v9140 = vadd.f32 %v9138, %v9139
  %v9141 = vrot.slane %v9140, 2
  %v9142 = vadd.f32 %v9140, %v9141
  %v9143 = vrot.slane %v9142, 1
  %v9144 = vadd.f32 %v9142, %v9143
  %v9145 = vadd.f32 %v8558, %v8559
  %v9146 = vadd.f32 %v9145, %v8560
  %v9147 = vadd.f32 %v9146, %v8561
  %v9148 = vadd.f32 %v9147, %v8562
  %v9149 = vadd.f32 %v9148, %v8563
  %v9150 = vadd.f32 %v9149, %v8564
  %v9151 = vadd.f32 %v9150, %v8565
  %v9152 = vadd.f32 %v9151, %v8566
  %v9153 = vadd.f32 %v9152, %v8567
  %v9154 = vadd.f32 %v9153, %v8568
  %v9155 = vadd.f32 %v9154, %v8569
  %v9156 = vadd.f32 %v9155, %v8570
  %v9157 = vadd.f32 %v9156, %v8571
  %v9158 = vadd.f32 %v9157, %v8572
  %v9159 = vadd.f32 %v9158, %v8573
  %v9160 = vadd.f32 %v9159, %v8574
  %v9161 = vadd.f32 %v9160, %v8575
  %v9162 = vadd.f32 %v9161, %v8576
  %v9163 = vadd.f32 %v9162, %v8577
  %v9164 = vadd.f32 %v9163, %v8578
  %v9165 = vadd.f32 %v9164, %v8579
  %v9166 = vadd.f32 %v9165, %v8580
  %v9167 = vadd.f32 %v9166, %v8581
  %v9168 = vadd.f32 %v9167, %v8582
  %v9169 = vadd.f32 %v9168, %v8583
  %v9170 = vadd.f32 %v9169, %v8584
  %v9171 = vadd.f32 %v9170, %v8585
  %v9172 = vadd.f32 %v9171, %v8586
  %v9173 = vadd.f32 %v9172, %v8587
  %v9174 = vadd.f32 %v9173, %v8588
  %v9175 = vadd.f32 %v9174, %v8589
  %v9176 = vrot.slane %v9175, 4
  %v9177 = vadd.f32 %v9175, %v9176
  %v9178 = vrot.slane %v9177, 2
  %v9179 = vadd.f32 %v9177, %v9178
  %v9180 = vrot.slane %v9179, 1
  %v9181 = vadd.f32 %v9179, %v9180
  %v9182 = vmul.f32 %v8626, 0.00390625
  %v9183 = vmul.f32 %v8663, 0.00390625
  %v9184 = vmul.f32 %v8700, 0.00390625
  %v9185 = vmul.f32 %v8737, 0.00390625
  %v9186 = vmul.f32 %v8774, 0.00390625
  %v9187 = vmul.f32 %v8811, 0.00390625
  %v9188 = vmul.f32 %v8848, 0.00390625
  %v9189 = vmul.f32 %v8885, 0.00390625
  %v9190 = vmul.f32 %v8922, 0.00390625
  %v9191 = vmul.f32 %v8959, 0.00390625
  %v9192 = vmul.f32 %v8996, 0.00390625
  %v9193 = vmul.f32 %v9033, 0.00390625
  %v9194 = vmul.f32 %v9070, 0.00390625
  %v9195 = vmul.f32 %v9107, 0.00390625
  %v9196 = vmul.f32 %v9144, 0.00390625
  %v9197 = vmul.f32 %v9181, 0.00390625
  %v9198 = vpack.c.bf16 %v9182, %v9182
  %v9199 = vpack.c.bf16 %v9183, %v9183
  %v9200 = vpack.c.bf16 %v9184, %v9184
  %v9201 = vpack.c.bf16 %v9185, %v9185
  %v9202 = vpack.c.bf16 %v9186, %v9186
  %v9203 = vpack.c.bf16 %v9187, %v9187
  %v9204 = vpack.c.bf16 %v9188, %v9188
  %v9205 = vpack.c.bf16 %v9189, %v9189
  %v9206 = vpack.c.bf16 %v9190, %v9190
  %v9207 = vpack.c.bf16 %v9191, %v9191
  %v9208 = vpack.c.bf16 %v9192, %v9192
  %v9209 = vpack.c.bf16 %v9193, %v9193
  %v9210 = vpack.c.bf16 %v9194, %v9194
  %v9211 = vpack.c.bf16 %v9195, %v9195
  %v9212 = vpack.c.bf16 %v9196, %v9196
  %v9213 = vpack.c.bf16 %v9197, %v9197
  %v9214 = vld [vmem:[%s6] sm:$0xff]
  %v9215 = vld [vmem:[%s6 + $0x8] sm:$0xff]
  %v9216 = vld [vmem:[%s6 + $0x10] sm:$0xff]
  %v9217 = vld [vmem:[%s6 + $0x18] sm:$0xff]
  %v9218 = vld [vmem:[%s6 + $0x20] sm:$0xff]
  %v9219 = vld [vmem:[%s6 + $0x28] sm:$0xff]
  %v9220 = vld [vmem:[%s6 + $0x30] sm:$0xff]
  %v9221 = vld [vmem:[%s6 + $0x38] sm:$0xff]
  %v9222 = vld [vmem:[%s6 + $0x40] sm:$0xff]
  %v9223 = vld [vmem:[%s6 + $0x48] sm:$0xff]
  %v9224 = vld [vmem:[%s6 + $0x50] sm:$0xff]
  %v9225 = vld [vmem:[%s6 + $0x58] sm:$0xff]
  %v9226 = vld [vmem:[%s6 + $0x60] sm:$0xff]
  %v9227 = vld [vmem:[%s6 + $0x68] sm:$0xff]
  %v9228 = vld [vmem:[%s6 + $0x70] sm:$0xff]
  %v9229 = vld [vmem:[%s6 + $0x78] sm:$0xff]
  %v9230 = vld [vmem:[%s6 + $0x80] sm:$0xff]
  %v9231 = vld [vmem:[%s6 + $0x88] sm:$0xff]
  %v9232 = vld [vmem:[%s6 + $0x90] sm:$0xff]
  %v9233 = vld [vmem:[%s6 + $0x98] sm:$0xff]
  %v9234 = vld [vmem:[%s6 + $0xa0] sm:$0xff]
  %v9235 = vld [vmem:[%s6 + $0xa8] sm:$0xff]
  %v9236 = vld [vmem:[%s6 + $0xb0] sm:$0xff]
  %v9237 = vld [vmem:[%s6 + $0xb8] sm:$0xff]
  %v9238 = vld [vmem:[%s6 + $0xc0] sm:$0xff]
  %v9239 = vld [vmem:[%s6 + $0xc8] sm:$0xff]
  %v9240 = vld [vmem:[%s6 + $0xd0] sm:$0xff]
  %v9241 = vld [vmem:[%s6 + $0xd8] sm:$0xff]
  %v9242 = vld [vmem:[%s6 + $0xe0] sm:$0xff]
  %v9243 = vld [vmem:[%s6 + $0xe8] sm:$0xff]
  %v9244 = vld [vmem:[%s6 + $0xf0] sm:$0xff]
  %v9245 = vld [vmem:[%s6 + $0xf8] sm:$0xff]
  %v9246 = vld [vmem:[%s6 + $0x100] sm:$0xff]
  %v9247 = vld [vmem:[%s6 + $0x108] sm:$0xff]
  %v9248 = vld [vmem:[%s6 + $0x110] sm:$0xff]
  %v9249 = vld [vmem:[%s6 + $0x118] sm:$0xff]
  %v9250 = vld [vmem:[%s6 + $0x120] sm:$0xff]
  %v9251 = vld [vmem:[%s6 + $0x128] sm:$0xff]
  %v9252 = vld [vmem:[%s6 + $0x130] sm:$0xff]
  %v9253 = vld [vmem:[%s6 + $0x138] sm:$0xff]
  %v9254 = vld [vmem:[%s6 + $0x140] sm:$0xff]
  %v9255 = vld [vmem:[%s6 + $0x148] sm:$0xff]
  %v9256 = vld [vmem:[%s6 + $0x150] sm:$0xff]
  %v9257 = vld [vmem:[%s6 + $0x158] sm:$0xff]
  %v9258 = vld [vmem:[%s6 + $0x160] sm:$0xff]
  %v9259 = vld [vmem:[%s6 + $0x168] sm:$0xff]
  %v9260 = vld [vmem:[%s6 + $0x170] sm:$0xff]
  %v9261 = vld [vmem:[%s6 + $0x178] sm:$0xff]
  %v9262 = vld [vmem:[%s6 + $0x180] sm:$0xff]
  %v9263 = vld [vmem:[%s6 + $0x188] sm:$0xff]
  %v9264 = vld [vmem:[%s6 + $0x190] sm:$0xff]
  %v9265 = vld [vmem:[%s6 + $0x198] sm:$0xff]
  %v9266 = vld [vmem:[%s6 + $0x1a0] sm:$0xff]
  %v9267 = vld [vmem:[%s6 + $0x1a8] sm:$0xff]
  %v9268 = vld [vmem:[%s6 + $0x1b0] sm:$0xff]
  %v9269 = vld [vmem:[%s6 + $0x1b8] sm:$0xff]
  %v9270 = vld [vmem:[%s6 + $0x1c0] sm:$0xff]
  %v9271 = vld [vmem:[%s6 + $0x1c8] sm:$0xff]
  %v9272 = vld [vmem:[%s6 + $0x1d0] sm:$0xff]
  %v9273 = vld [vmem:[%s6 + $0x1d8] sm:$0xff]
  %v9274 = vld [vmem:[%s6 + $0x1e0] sm:$0xff]
  %v9275 = vld [vmem:[%s6 + $0x1e8] sm:$0xff]
  %v9276 = vld [vmem:[%s6 + $0x1f0] sm:$0xff]
  %v9277 = vld [vmem:[%s6 + $0x1f8] sm:$0xff]
  %v9278 = vld [vmem:[%s7] sm:$0xff]
  %v9280 = vlaneseq
  %v9281 = vshrl.u32 %v9280, 7
  %v9282 = vsub.s32 0, %v9281
  %v9283 = vrot.slane %v9278, %v9282
  %v9284 = vlaneseq
  %v9285 = vshrl.u32 %v9284, 7
  %v9286 = vsub.s32 1, %v9285
  %v9287 = vrot.slane %v9278, %v9286
  %v9288 = vlaneseq
  %v9289 = vshrl.u32 %v9288, 7
  %v9290 = vsub.s32 2, %v9289
  %v9291 = vrot.slane %v9278, %v9290
  %v9292 = vlaneseq
  %v9293 = vshrl.u32 %v9292, 7
  %v9294 = vsub.s32 3, %v9293
  %v9295 = vrot.slane %v9278, %v9294
  %v9296 = vlaneseq
  %v9297 = vshrl.u32 %v9296, 7
  %v9298 = vsub.s32 4, %v9297
  %v9299 = vrot.slane %v9278, %v9298
  %v9300 = vlaneseq
  %v9301 = vshrl.u32 %v9300, 7
  %v9302 = vsub.s32 5, %v9301
  %v9303 = vrot.slane %v9278, %v9302
  %v9304 = vlaneseq
  %v9305 = vshrl.u32 %v9304, 7
  %v9306 = vsub.s32 6, %v9305
  %v9307 = vrot.slane %v9278, %v9306
  %v9308 = vlaneseq
  %v9309 = vshrl.u32 %v9308, 7
  %v9310 = vsub.s32 7, %v9309
  %v9311 = vrot.slane %v9278, %v9310
  %v9336 = vunpack.c.l.b16 %v9198
  %v9337 = vunpack.c.l.b16 %v9199
  %v9338 = vunpack.c.l.b16 %v9200
  %v9339 = vunpack.c.l.b16 %v9201
  %v9340 = vunpack.c.l.b16 %v9202
  %v9341 = vunpack.c.l.b16 %v9203
  %v9342 = vunpack.c.l.b16 %v9204
  %v9343 = vunpack.c.l.b16 %v9205
  %v9344 = vunpack.c.l.b16 %v9206
  %v9345 = vunpack.c.l.b16 %v9207
  %v9346 = vunpack.c.l.b16 %v9208
  %v9347 = vunpack.c.l.b16 %v9209
  %v9348 = vunpack.c.l.b16 %v9210
  %v9349 = vunpack.c.l.b16 %v9211
  %v9350 = vunpack.c.l.b16 %v9212
  %v9351 = vunpack.c.l.b16 %v9213
  %v9352 = vsel %vm6459, %v9337, %v9336
  %v9353 = vsel %vm6461, %v9338, %v9352
  %v9354 = vsel %vm6463, %v9339, %v9353
  %v9355 = vsel %vm6465, %v9340, %v9354
  %v9356 = vsel %vm6467, %v9341, %v9355
  %v9357 = vsel %vm6469, %v9342, %v9356
  %v9358 = vsel %vm6471, %v9343, %v9357
  %v9359 = vsel %vm6459, %v9345, %v9344
  %v9360 = vsel %vm6461, %v9346, %v9359
  %v9361 = vsel %vm6463, %v9347, %v9360
  %v9362 = vsel %vm6465, %v9348, %v9361
  %v9363 = vsel %vm6467, %v9349, %v9362
  %v9364 = vsel %vm6469, %v9350, %v9363
  %v9365 = vsel %vm6471, %v9351, %v9364
  %v9366 = vpack.c.b16 %v9365, %v9358
  %v9432 = vunpack.c.l.b16 %v9214
  %v9433 = vunpack.c.h.b16 %v9214
  %v9434 = vunpack.c.l.b16 %v9215
  %v9435 = vunpack.c.h.b16 %v9215
  %v9436 = vunpack.c.l.b16 %v9216
  %v9437 = vunpack.c.h.b16 %v9216
  %v9438 = vunpack.c.l.b16 %v9217
  %v9439 = vunpack.c.h.b16 %v9217
  %v9440 = vunpack.c.l.b16 %v9218
  %v9441 = vunpack.c.h.b16 %v9218
  %v9442 = vunpack.c.l.b16 %v9219
  %v9443 = vunpack.c.h.b16 %v9219
  %v9444 = vunpack.c.l.b16 %v9220
  %v9445 = vunpack.c.h.b16 %v9220
  %v9446 = vunpack.c.l.b16 %v9221
  %v9447 = vunpack.c.h.b16 %v9221
  %v9448 = vunpack.c.l.b16 %v9222
  %v9449 = vunpack.c.h.b16 %v9222
  %v9450 = vunpack.c.l.b16 %v9223
  %v9451 = vunpack.c.h.b16 %v9223
  %v9452 = vunpack.c.l.b16 %v9224
  %v9453 = vunpack.c.h.b16 %v9224
  %v9454 = vunpack.c.l.b16 %v9225
  %v9455 = vunpack.c.h.b16 %v9225
  %v9456 = vunpack.c.l.b16 %v9226
  %v9457 = vunpack.c.h.b16 %v9226
  %v9458 = vunpack.c.l.b16 %v9227
  %v9459 = vunpack.c.h.b16 %v9227
  %v9460 = vunpack.c.l.b16 %v9228
  %v9461 = vunpack.c.h.b16 %v9228
  %v9462 = vunpack.c.l.b16 %v9229
  %v9463 = vunpack.c.h.b16 %v9229
  %v9464 = vunpack.c.l.b16 %v9230
  %v9465 = vunpack.c.h.b16 %v9230
  %v9466 = vunpack.c.l.b16 %v9231
  %v9467 = vunpack.c.h.b16 %v9231
  %v9468 = vunpack.c.l.b16 %v9232
  %v9469 = vunpack.c.h.b16 %v9232
  %v9470 = vunpack.c.l.b16 %v9233
  %v9471 = vunpack.c.h.b16 %v9233
  %v9472 = vunpack.c.l.b16 %v9234
  %v9473 = vunpack.c.h.b16 %v9234
  %v9474 = vunpack.c.l.b16 %v9235
  %v9475 = vunpack.c.h.b16 %v9235
  %v9476 = vunpack.c.l.b16 %v9236
  %v9477 = vunpack.c.h.b16 %v9236
  %v9478 = vunpack.c.l.b16 %v9237
  %v9479 = vunpack.c.h.b16 %v9237
  %v9480 = vunpack.c.l.b16 %v9238
  %v9481 = vunpack.c.h.b16 %v9238
  %v9482 = vunpack.c.l.b16 %v9239
  %v9483 = vunpack.c.h.b16 %v9239
  %v9484 = vunpack.c.l.b16 %v9240
  %v9485 = vunpack.c.h.b16 %v9240
  %v9486 = vunpack.c.l.b16 %v9241
  %v9487 = vunpack.c.h.b16 %v9241
  %v9488 = vunpack.c.l.b16 %v9242
  %v9489 = vunpack.c.h.b16 %v9242
  %v9490 = vunpack.c.l.b16 %v9243
  %v9491 = vunpack.c.h.b16 %v9243
  %v9492 = vunpack.c.l.b16 %v9244
  %v9493 = vunpack.c.h.b16 %v9244
  %v9494 = vunpack.c.l.b16 %v9245
  %v9495 = vunpack.c.h.b16 %v9245
  %v9496 = vunpack.c.l.b16 %v9246
  %v9497 = vunpack.c.h.b16 %v9246
  %v9498 = vunpack.c.l.b16 %v9247
  %v9499 = vunpack.c.h.b16 %v9247
  %v9500 = vunpack.c.l.b16 %v9248
  %v9501 = vunpack.c.h.b16 %v9248
  %v9502 = vunpack.c.l.b16 %v9249
  %v9503 = vunpack.c.h.b16 %v9249
  %v9504 = vunpack.c.l.b16 %v9250
  %v9505 = vunpack.c.h.b16 %v9250
  %v9506 = vunpack.c.l.b16 %v9251
  %v9507 = vunpack.c.h.b16 %v9251
  %v9508 = vunpack.c.l.b16 %v9252
  %v9509 = vunpack.c.h.b16 %v9252
  %v9510 = vunpack.c.l.b16 %v9253
  %v9511 = vunpack.c.h.b16 %v9253
  %v9512 = vunpack.c.l.b16 %v9254
  %v9513 = vunpack.c.h.b16 %v9254
  %v9514 = vunpack.c.l.b16 %v9255
  %v9515 = vunpack.c.h.b16 %v9255
  %v9516 = vunpack.c.l.b16 %v9256
  %v9517 = vunpack.c.h.b16 %v9256
  %v9518 = vunpack.c.l.b16 %v9257
  %v9519 = vunpack.c.h.b16 %v9257
  %v9520 = vunpack.c.l.b16 %v9258
  %v9521 = vunpack.c.h.b16 %v9258
  %v9522 = vunpack.c.l.b16 %v9259
  %v9523 = vunpack.c.h.b16 %v9259
  %v9524 = vunpack.c.l.b16 %v9260
  %v9525 = vunpack.c.h.b16 %v9260
  %v9526 = vunpack.c.l.b16 %v9261
  %v9527 = vunpack.c.h.b16 %v9261
  %v9528 = vunpack.c.l.b16 %v9262
  %v9529 = vunpack.c.h.b16 %v9262
  %v9530 = vunpack.c.l.b16 %v9263
  %v9531 = vunpack.c.h.b16 %v9263
  %v9532 = vunpack.c.l.b16 %v9264
  %v9533 = vunpack.c.h.b16 %v9264
  %v9534 = vunpack.c.l.b16 %v9265
  %v9535 = vunpack.c.h.b16 %v9265
  %v9536 = vunpack.c.l.b16 %v9266
  %v9537 = vunpack.c.h.b16 %v9266
  %v9538 = vunpack.c.l.b16 %v9267
  %v9539 = vunpack.c.h.b16 %v9267
  %v9540 = vunpack.c.l.b16 %v9268
  %v9541 = vunpack.c.h.b16 %v9268
  %v9542 = vunpack.c.l.b16 %v9269
  %v9543 = vunpack.c.h.b16 %v9269
  %v9544 = vunpack.c.l.b16 %v9270
  %v9545 = vunpack.c.h.b16 %v9270
  %v9546 = vunpack.c.l.b16 %v9271
  %v9547 = vunpack.c.h.b16 %v9271
  %v9548 = vunpack.c.l.b16 %v9272
  %v9549 = vunpack.c.h.b16 %v9272
  %v9550 = vunpack.c.l.b16 %v9273
  %v9551 = vunpack.c.h.b16 %v9273
  %v9552 = vunpack.c.l.b16 %v9274
  %v9553 = vunpack.c.h.b16 %v9274
  %v9554 = vunpack.c.l.b16 %v9275
  %v9555 = vunpack.c.h.b16 %v9275
  %v9556 = vunpack.c.l.b16 %v9276
  %v9557 = vunpack.c.h.b16 %v9276
  %v9558 = vunpack.c.l.b16 %v9277
  %v9559 = vunpack.c.h.b16 %v9277
  %v9560 = vpack.c.b16 %v9440, %v9432
  %v9561 = vpack.c.b16 %v9441, %v9433
  %v9562 = vpack.c.b16 %v9442, %v9434
  %v9563 = vpack.c.b16 %v9443, %v9435
  %v9564 = vpack.c.b16 %v9444, %v9436
  %v9565 = vpack.c.b16 %v9445, %v9437
  %v9566 = vpack.c.b16 %v9446, %v9438
  %v9567 = vpack.c.b16 %v9447, %v9439
  %v9568 = vpack.c.b16 %v9456, %v9448
  %v9569 = vpack.c.b16 %v9457, %v9449
  %v9570 = vpack.c.b16 %v9458, %v9450
  %v9571 = vpack.c.b16 %v9459, %v9451
  %v9572 = vpack.c.b16 %v9460, %v9452
  %v9573 = vpack.c.b16 %v9461, %v9453
  %v9574 = vpack.c.b16 %v9462, %v9454
  %v9575 = vpack.c.b16 %v9463, %v9455
  %v9576 = vpack.c.b16 %v9472, %v9464
  %v9577 = vpack.c.b16 %v9473, %v9465
  %v9578 = vpack.c.b16 %v9474, %v9466
  %v9579 = vpack.c.b16 %v9475, %v9467
  %v9580 = vpack.c.b16 %v9476, %v9468
  %v9581 = vpack.c.b16 %v9477, %v9469
  %v9582 = vpack.c.b16 %v9478, %v9470
  %v9583 = vpack.c.b16 %v9479, %v9471
  %v9584 = vpack.c.b16 %v9488, %v9480
  %v9585 = vpack.c.b16 %v9489, %v9481
  %v9586 = vpack.c.b16 %v9490, %v9482
  %v9587 = vpack.c.b16 %v9491, %v9483
  %v9588 = vpack.c.b16 %v9492, %v9484
  %v9589 = vpack.c.b16 %v9493, %v9485
  %v9590 = vpack.c.b16 %v9494, %v9486
  %v9591 = vpack.c.b16 %v9495, %v9487
  %v9592 = vpack.c.b16 %v9504, %v9496
  %v9593 = vpack.c.b16 %v9505, %v9497
  %v9594 = vpack.c.b16 %v9506, %v9498
  %v9595 = vpack.c.b16 %v9507, %v9499
  %v9596 = vpack.c.b16 %v9508, %v9500
  %v9597 = vpack.c.b16 %v9509, %v9501
  %v9598 = vpack.c.b16 %v9510, %v9502
  %v9599 = vpack.c.b16 %v9511, %v9503
  %v9600 = vpack.c.b16 %v9520, %v9512
  %v9601 = vpack.c.b16 %v9521, %v9513
  %v9602 = vpack.c.b16 %v9522, %v9514
  %v9603 = vpack.c.b16 %v9523, %v9515
  %v9604 = vpack.c.b16 %v9524, %v9516
  %v9605 = vpack.c.b16 %v9525, %v9517
  %v9606 = vpack.c.b16 %v9526, %v9518
  %v9607 = vpack.c.b16 %v9527, %v9519
  %v9608 = vpack.c.b16 %v9536, %v9528
  %v9609 = vpack.c.b16 %v9537, %v9529
  %v9610 = vpack.c.b16 %v9538, %v9530
  %v9611 = vpack.c.b16 %v9539, %v9531
  %v9612 = vpack.c.b16 %v9540, %v9532
  %v9613 = vpack.c.b16 %v9541, %v9533
  %v9614 = vpack.c.b16 %v9542, %v9534
  %v9615 = vpack.c.b16 %v9543, %v9535
  %v9616 = vpack.c.b16 %v9552, %v9544
  %v9617 = vpack.c.b16 %v9553, %v9545
  %v9618 = vpack.c.b16 %v9554, %v9546
  %v9619 = vpack.c.b16 %v9555, %v9547
  %v9620 = vpack.c.b16 %v9556, %v9548
  %v9621 = vpack.c.b16 %v9557, %v9549
  %v9622 = vpack.c.b16 %v9558, %v9550
  %v9623 = vpack.c.b16 %v9559, %v9551
  %9688 = vmatprep.subr.bf16.mxu0 %v9561
  %9689 = vmatpush1.bf16.msra.mxu0 %v9560
  %9690 = vmatprep.subr.bf16.mxu0 %v9569
  %9691 = vmatpush1.bf16.msra.mxu0 %v9568
  %9692 = vmatprep.subr.bf16.mxu0 %v9577
  %9693 = vmatpush1.bf16.msra.mxu0 %v9576
  %9694 = vmatprep.subr.bf16.mxu0 %v9585
  %9695 = vmatpush1.bf16.msra.mxu0 %v9584
  %9696 = vmatprep.subr.bf16.mxu0 %v9593
  %9697 = vmatpush1.bf16.msra.mxu0 %v9592
  %9698 = vmatprep.subr.bf16.mxu0 %v9601
  %9699 = vmatpush1.bf16.msra.mxu0 %v9600
  %9700 = vmatprep.subr.bf16.mxu0 %v9609
  %9701 = vmatpush1.bf16.msra.mxu0 %v9608
  %9702 = vmatprep.subr.bf16.mxu0 %v9617
  %9703 = vmatpush1.bf16.msra.mxu0 %v9616
  %9704 = vmatprep.subr.bf16.mxu0 0
  %9705 = vmatpush1.bf16.msra.mxu0 0
  %9706 = vmatprep.subr.bf16.mxu0 0
  %9707 = vmatpush1.bf16.msra.mxu0 0
  %9708 = vmatprep.subr.bf16.mxu0 0
  %9709 = vmatpush1.bf16.msra.mxu0 0
  %9710 = vmatprep.subr.bf16.mxu0 0
  %9711 = vmatpush1.bf16.msra.mxu0 0
  %9712 = vmatprep.subr.bf16.mxu0 0
  %9713 = vmatpush1.bf16.msra.mxu0 0
  %9714 = vmatprep.subr.bf16.mxu0 0
  %9715 = vmatpush1.bf16.msra.mxu0 0
  %9716 = vmatprep.subr.bf16.mxu0 0
  %9717 = vmatpush1.bf16.msra.mxu0 0
  %9718 = vmatprep.subr.bf16.mxu0 0
  %9719 = vmatpush1.bf16.msra.mxu0 0
  %9720 = vmatprep.mubr.bf16.mxu0 0
  %9721 = vmatmul.mubr.bf16.gmra.mrb[0].mxu0 %v9366
  %v9722 = vpop.f32.mrb[0].mxu0
  %v9723 = vadd.f32 %v9283, %v9722
  %v9724 = vpop.f32.mrb[0].mxu0
  %v9725 = vadd.f32 %v9287, %v9724
  %v9726 = vpop.f32.mrb[0].mxu0
  %v9727 = vadd.f32 %v9283, %v9726
  %v9728 = vpop.f32.mrb[0].mxu0
  %v9729 = vadd.f32 %v9287, %v9728
  %9730 = vdwg.mxu0
  %9731 = vmatprep.subr.bf16.mxu0 %v9563
  %9732 = vmatpush1.bf16.msra.mxu0 %v9562
  %9733 = vmatprep.subr.bf16.mxu0 %v9571
  %9734 = vmatpush1.bf16.msra.mxu0 %v9570
  %9735 = vmatprep.subr.bf16.mxu0 %v9579
  %9736 = vmatpush1.bf16.msra.mxu0 %v9578
  %9737 = vmatprep.subr.bf16.mxu0 %v9587
  %9738 = vmatpush1.bf16.msra.mxu0 %v9586
  %9739 = vmatprep.subr.bf16.mxu0 %v9595
  %9740 = vmatpush1.bf16.msra.mxu0 %v9594
  %9741 = vmatprep.subr.bf16.mxu0 %v9603
  %9742 = vmatpush1.bf16.msra.mxu0 %v9602
  %9743 = vmatprep.subr.bf16.mxu0 %v9611
  %9744 = vmatpush1.bf16.msra.mxu0 %v9610
  %9745 = vmatprep.subr.bf16.mxu0 %v9619
  %9746 = vmatpush1.bf16.msra.mxu0 %v9618
  %9747 = vmatprep.subr.bf16.mxu0 0
  %9748 = vmatpush1.bf16.msra.mxu0 0
  %9749 = vmatprep.subr.bf16.mxu0 0
  %9750 = vmatpush1.bf16.msra.mxu0 0
  %9751 = vmatprep.subr.bf16.mxu0 0
  %9752 = vmatpush1.bf16.msra.mxu0 0
  %9753 = vmatprep.subr.bf16.mxu0 0
  %9754 = vmatpush1.bf16.msra.mxu0 0
  %9755 = vmatprep.subr.bf16.mxu0 0
  %9756 = vmatpush1.bf16.msra.mxu0 0
  %9757 = vmatprep.subr.bf16.mxu0 0
  %9758 = vmatpush1.bf16.msra.mxu0 0
  %9759 = vmatprep.subr.bf16.mxu0 0
  %9760 = vmatpush1.bf16.msra.mxu0 0
  %9761 = vmatprep.subr.bf16.mxu0 0
  %9762 = vmatpush1.bf16.msra.mxu0 0
  %9763 = vmatprep.mubr.bf16.mxu0 0
  %9764 = vmatmul.mubr.bf16.gmra.mrb[0].mxu0 %v9366
  %v9765 = vpop.f32.mrb[0].mxu0
  %v9766 = vadd.f32 %v9291, %v9765
  %v9767 = vpop.f32.mrb[0].mxu0
  %v9768 = vadd.f32 %v9295, %v9767
  %v9769 = vpop.f32.mrb[0].mxu0
  %v9770 = vadd.f32 %v9291, %v9769
  %v9771 = vpop.f32.mrb[0].mxu0
  %v9772 = vadd.f32 %v9295, %v9771
  %9773 = vdwg.mxu0
  %9774 = vmatprep.subr.bf16.mxu0 %v9565
  %9775 = vmatpush1.bf16.msra.mxu0 %v9564
  %9776 = vmatprep.subr.bf16.mxu0 %v9573
  %9777 = vmatpush1.bf16.msra.mxu0 %v9572
  %9778 = vmatprep.subr.bf16.mxu0 %v9581
  %9779 = vmatpush1.bf16.msra.mxu0 %v9580
  %9780 = vmatprep.subr.bf16.mxu0 %v9589
  %9781 = vmatpush1.bf16.msra.mxu0 %v9588
  %9782 = vmatprep.subr.bf16.mxu0 %v9597
  %9783 = vmatpush1.bf16.msra.mxu0 %v9596
  %9784 = vmatprep.subr.bf16.mxu0 %v9605
  %9785 = vmatpush1.bf16.msra.mxu0 %v9604
  %9786 = vmatprep.subr.bf16.mxu0 %v9613
  %9787 = vmatpush1.bf16.msra.mxu0 %v9612
  %9788 = vmatprep.subr.bf16.mxu0 %v9621
  %9789 = vmatpush1.bf16.msra.mxu0 %v9620
  %9790 = vmatprep.subr.bf16.mxu0 0
  %9791 = vmatpush1.bf16.msra.mxu0 0
  %9792 = vmatprep.subr.bf16.mxu0 0
  %9793 = vmatpush1.bf16.msra.mxu0 0
  %9794 = vmatprep.subr.bf16.mxu0 0
  %9795 = vmatpush1.bf16.msra.mxu0 0
  %9796 = vmatprep.subr.bf16.mxu0 0
  %9797 = vmatpush1.bf16.msra.mxu0 0
  %9798 = vmatprep.subr.bf16.mxu0 0
  %9799 = vmatpush1.bf16.msra.mxu0 0
  %9800 = vmatprep.subr.bf16.mxu0 0
  %9801 = vmatpush1.bf16.msra.mxu0 0
  %9802 = vmatprep.subr.bf16.mxu0 0
  %9803 = vmatpush1.bf16.msra.mxu0 0
  %9804 = vmatprep.subr.bf16.mxu0 0
  %9805 = vmatpush1.bf16.msra.mxu0 0
  %9806 = vmatprep.mubr.bf16.mxu0 0
  %9807 = vmatmul.mubr.bf16.gmra.mrb[0].mxu0 %v9366
  %v9808 = vpop.f32.mrb[0].mxu0
  %v9809 = vadd.f32 %v9299, %v9808
  %v9810 = vpop.f32.mrb[0].mxu0
  %v9811 = vadd.f32 %v9303, %v9810
  %v9812 = vpop.f32.mrb[0].mxu0
  %v9813 = vadd.f32 %v9299, %v9812
  %v9814 = vpop.f32.mrb[0].mxu0
  %v9815 = vadd.f32 %v9303, %v9814
  %9816 = vdwg.mxu0
  %9817 = vmatprep.subr.bf16.mxu0 %v9567
  %9818 = vmatpush1.bf16.msra.mxu0 %v9566
  %9819 = vmatprep.subr.bf16.mxu0 %v9575
  %9820 = vmatpush1.bf16.msra.mxu0 %v9574
  %9821 = vmatprep.subr.bf16.mxu0 %v9583
  %9822 = vmatpush1.bf16.msra.mxu0 %v9582
  %9823 = vmatprep.subr.bf16.mxu0 %v9591
  %9824 = vmatpush1.bf16.msra.mxu0 %v9590
  %9825 = vmatprep.subr.bf16.mxu0 %v9599
  %9826 = vmatpush1.bf16.msra.mxu0 %v9598
  %9827 = vmatprep.subr.bf16.mxu0 %v9607
  %9828 = vmatpush1.bf16.msra.mxu0 %v9606
  %9829 = vmatprep.subr.bf16.mxu0 %v9615
  %9830 = vmatpush1.bf16.msra.mxu0 %v9614
  %9831 = vmatprep.subr.bf16.mxu0 %v9623
  %9832 = vmatpush1.bf16.msra.mxu0 %v9622
  %9833 = vmatprep.subr.bf16.mxu0 0
  %9834 = vmatpush1.bf16.msra.mxu0 0
  %9835 = vmatprep.subr.bf16.mxu0 0
  %9836 = vmatpush1.bf16.msra.mxu0 0
  %9837 = vmatprep.subr.bf16.mxu0 0
  %9838 = vmatpush1.bf16.msra.mxu0 0
  %9839 = vmatprep.subr.bf16.mxu0 0
  %9840 = vmatpush1.bf16.msra.mxu0 0
  %9841 = vmatprep.subr.bf16.mxu0 0
  %9842 = vmatpush1.bf16.msra.mxu0 0
  %9843 = vmatprep.subr.bf16.mxu0 0
  %9844 = vmatpush1.bf16.msra.mxu0 0
  %9845 = vmatprep.subr.bf16.mxu0 0
  %9846 = vmatpush1.bf16.msra.mxu0 0
  %9847 = vmatprep.subr.bf16.mxu0 0
  %9848 = vmatpush1.bf16.msra.mxu0 0
  %9849 = vmatprep.mubr.bf16.mxu0 0
  %9850 = vmatmul.mubr.bf16.gmra.mrb[0].mxu0 %v9366
  %v9851 = vpop.f32.mrb[0].mxu0
  %v9852 = vadd.f32 %v9307, %v9851
  %v9853 = vpop.f32.mrb[0].mxu0
  %v9854 = vadd.f32 %v9311, %v9853
  %v9855 = vpop.f32.mrb[0].mxu0
  %v9856 = vadd.f32 %v9307, %v9855
  %v9857 = vpop.f32.mrb[0].mxu0
  %v9858 = vadd.f32 %v9311, %v9857
  %9859 = vdwg.mxu0
  %v9860 = vpack.c.bf16 %v9727, %v9723
  %v9861 = vpack.c.bf16 %v9729, %v9725
  %v9862 = vpack.c.bf16 %v9770, %v9766
  %v9863 = vpack.c.bf16 %v9772, %v9768
  %v9864 = vpack.c.bf16 %v9813, %v9809
  %v9865 = vpack.c.bf16 %v9815, %v9811
  %v9866 = vpack.c.bf16 %v9856, %v9852
  %v9867 = vpack.c.bf16 %v9858, %v9854
  %v9868 = vld [vmem:[%s8] sm:$0xff]
  %v9869 = vld [vmem:[%s8 + $0x8] sm:$0xff]
  %v9870 = vld [vmem:[%s8 + $0x10] sm:$0xff]
  %v9871 = vld [vmem:[%s8 + $0x18] sm:$0xff]
  %v9872 = vld [vmem:[%s8 + $0x20] sm:$0xff]
  %v9873 = vld [vmem:[%s8 + $0x28] sm:$0xff]
  %v9874 = vld [vmem:[%s8 + $0x30] sm:$0xff]
  %v9875 = vld [vmem:[%s8 + $0x38] sm:$0xff]
  %v9876 = vld [vmem:[%s8 + $0x40] sm:$0xff]
  %v9877 = vld [vmem:[%s8 + $0x48] sm:$0xff]
  %v9878 = vld [vmem:[%s8 + $0x50] sm:$0xff]
  %v9879 = vld [vmem:[%s8 + $0x58] sm:$0xff]
  %v9880 = vld [vmem:[%s8 + $0x60] sm:$0xff]
  %v9881 = vld [vmem:[%s8 + $0x68] sm:$0xff]
  %v9882 = vld [vmem:[%s8 + $0x70] sm:$0xff]
  %v9883 = vld [vmem:[%s8 + $0x78] sm:$0xff]
  %v9884 = vld [vmem:[%s8 + $0x80] sm:$0xff]
  %v9885 = vld [vmem:[%s8 + $0x88] sm:$0xff]
  %v9886 = vld [vmem:[%s8 + $0x90] sm:$0xff]
  %v9887 = vld [vmem:[%s8 + $0x98] sm:$0xff]
  %v9888 = vld [vmem:[%s8 + $0xa0] sm:$0xff]
  %v9889 = vld [vmem:[%s8 + $0xa8] sm:$0xff]
  %v9890 = vld [vmem:[%s8 + $0xb0] sm:$0xff]
  %v9891 = vld [vmem:[%s8 + $0xb8] sm:$0xff]
  %v9892 = vld [vmem:[%s8 + $0xc0] sm:$0xff]
  %v9893 = vld [vmem:[%s8 + $0xc8] sm:$0xff]
  %v9894 = vld [vmem:[%s8 + $0xd0] sm:$0xff]
  %v9895 = vld [vmem:[%s8 + $0xd8] sm:$0xff]
  %v9896 = vld [vmem:[%s8 + $0xe0] sm:$0xff]
  %v9897 = vld [vmem:[%s8 + $0xe8] sm:$0xff]
  %v9898 = vld [vmem:[%s8 + $0xf0] sm:$0xff]
  %v9899 = vld [vmem:[%s8 + $0xf8] sm:$0xff]
  %v9900 = vld [vmem:[%s8 + $0x100] sm:$0xff]
  %v9901 = vld [vmem:[%s8 + $0x108] sm:$0xff]
  %v9902 = vld [vmem:[%s8 + $0x110] sm:$0xff]
  %v9903 = vld [vmem:[%s8 + $0x118] sm:$0xff]
  %v9904 = vld [vmem:[%s8 + $0x120] sm:$0xff]
  %v9905 = vld [vmem:[%s8 + $0x128] sm:$0xff]
  %v9906 = vld [vmem:[%s8 + $0x130] sm:$0xff]
  %v9907 = vld [vmem:[%s8 + $0x138] sm:$0xff]
  %v9908 = vld [vmem:[%s8 + $0x140] sm:$0xff]
  %v9909 = vld [vmem:[%s8 + $0x148] sm:$0xff]
  %v9910 = vld [vmem:[%s8 + $0x150] sm:$0xff]
  %v9911 = vld [vmem:[%s8 + $0x158] sm:$0xff]
  %v9912 = vld [vmem:[%s8 + $0x160] sm:$0xff]
  %v9913 = vld [vmem:[%s8 + $0x168] sm:$0xff]
  %v9914 = vld [vmem:[%s8 + $0x170] sm:$0xff]
  %v9915 = vld [vmem:[%s8 + $0x178] sm:$0xff]
  %v9916 = vld [vmem:[%s8 + $0x180] sm:$0xff]
  %v9917 = vld [vmem:[%s8 + $0x188] sm:$0xff]
  %v9918 = vld [vmem:[%s8 + $0x190] sm:$0xff]
  %v9919 = vld [vmem:[%s8 + $0x198] sm:$0xff]
  %v9920 = vld [vmem:[%s8 + $0x1a0] sm:$0xff]
  %v9921 = vld [vmem:[%s8 + $0x1a8] sm:$0xff]
  %v9922 = vld [vmem:[%s8 + $0x1b0] sm:$0xff]
  %v9923 = vld [vmem:[%s8 + $0x1b8] sm:$0xff]
  %v9924 = vld [vmem:[%s8 + $0x1c0] sm:$0xff]
  %v9925 = vld [vmem:[%s8 + $0x1c8] sm:$0xff]
  %v9926 = vld [vmem:[%s8 + $0x1d0] sm:$0xff]
  %v9927 = vld [vmem:[%s8 + $0x1d8] sm:$0xff]
  %v9928 = vld [vmem:[%s8 + $0x1e0] sm:$0xff]
  %v9929 = vld [vmem:[%s8 + $0x1e8] sm:$0xff]
  %v9930 = vld [vmem:[%s8 + $0x1f0] sm:$0xff]
  %v9931 = vld [vmem:[%s8 + $0x1f8] sm:$0xff]
  %v9932 = vld [vmem:[%s8 + $0x200] sm:$0xff]
  %v9933 = vld [vmem:[%s8 + $0x208] sm:$0xff]
  %v9934 = vld [vmem:[%s8 + $0x210] sm:$0xff]
  %v9935 = vld [vmem:[%s8 + $0x218] sm:$0xff]
  %v9936 = vld [vmem:[%s8 + $0x220] sm:$0xff]
  %v9937 = vld [vmem:[%s8 + $0x228] sm:$0xff]
  %v9938 = vld [vmem:[%s8 + $0x230] sm:$0xff]
  %v9939 = vld [vmem:[%s8 + $0x238] sm:$0xff]
  %v9940 = vld [vmem:[%s8 + $0x240] sm:$0xff]
  %v9941 = vld [vmem:[%s8 + $0x248] sm:$0xff]
  %v9942 = vld [vmem:[%s8 + $0x250] sm:$0xff]
  %v9943 = vld [vmem:[%s8 + $0x258] sm:$0xff]
  %v9944 = vld [vmem:[%s8 + $0x260] sm:$0xff]
  %v9945 = vld [vmem:[%s8 + $0x268] sm:$0xff]
  %v9946 = vld [vmem:[%s8 + $0x270] sm:$0xff]
  %v9947 = vld [vmem:[%s8 + $0x278] sm:$0xff]
  %v9948 = vld [vmem:[%s8 + $0x280] sm:$0xff]
  %v9949 = vld [vmem:[%s8 + $0x288] sm:$0xff]
  %v9950 = vld [vmem:[%s8 + $0x290] sm:$0xff]
  %v9951 = vld [vmem:[%s8 + $0x298] sm:$0xff]
  %v9952 = vld [vmem:[%s8 + $0x2a0] sm:$0xff]
  %v9953 = vld [vmem:[%s8 + $0x2a8] sm:$0xff]
  %v9954 = vld [vmem:[%s8 + $0x2b0] sm:$0xff]
  %v9955 = vld [vmem:[%s8 + $0x2b8] sm:$0xff]
  %v9956 = vld [vmem:[%s8 + $0x2c0] sm:$0xff]
  %v9957 = vld [vmem:[%s8 + $0x2c8] sm:$0xff]
  %v9958 = vld [vmem:[%s8 + $0x2d0] sm:$0xff]
  %v9959 = vld [vmem:[%s8 + $0x2d8] sm:$0xff]
  %v9960 = vld [vmem:[%s8 + $0x2e0] sm:$0xff]
  %v9961 = vld [vmem:[%s8 + $0x2e8] sm:$0xff]
  %v9962 = vld [vmem:[%s8 + $0x2f0] sm:$0xff]
  %v9963 = vld [vmem:[%s8 + $0x2f8] sm:$0xff]
  %v9964 = vld [vmem:[%s8 + $0x300] sm:$0xff]
  %v9965 = vld [vmem:[%s8 + $0x308] sm:$0xff]
  %v9966 = vld [vmem:[%s8 + $0x310] sm:$0xff]
  %v9967 = vld [vmem:[%s8 + $0x318] sm:$0xff]
  %v9968 = vld [vmem:[%s8 + $0x320] sm:$0xff]
  %v9969 = vld [vmem:[%s8 + $0x328] sm:$0xff]
  %v9970 = vld [vmem:[%s8 + $0x330] sm:$0xff]
  %v9971 = vld [vmem:[%s8 + $0x338] sm:$0xff]
  %v9972 = vld [vmem:[%s8 + $0x340] sm:$0xff]
  %v9973 = vld [vmem:[%s8 + $0x348] sm:$0xff]
  %v9974 = vld [vmem:[%s8 + $0x350] sm:$0xff]
  %v9975 = vld [vmem:[%s8 + $0x358] sm:$0xff]
  %v9976 = vld [vmem:[%s8 + $0x360] sm:$0xff]
  %v9977 = vld [vmem:[%s8 + $0x368] sm:$0xff]
  %v9978 = vld [vmem:[%s8 + $0x370] sm:$0xff]
  %v9979 = vld [vmem:[%s8 + $0x378] sm:$0xff]
  %v9980 = vld [vmem:[%s8 + $0x380] sm:$0xff]
  %v9981 = vld [vmem:[%s8 + $0x388] sm:$0xff]
  %v9982 = vld [vmem:[%s8 + $0x390] sm:$0xff]
  %v9983 = vld [vmem:[%s8 + $0x398] sm:$0xff]
  %v9984 = vld [vmem:[%s8 + $0x3a0] sm:$0xff]
  %v9985 = vld [vmem:[%s8 + $0x3a8] sm:$0xff]
  %v9986 = vld [vmem:[%s8 + $0x3b0] sm:$0xff]
  %v9987 = vld [vmem:[%s8 + $0x3b8] sm:$0xff]
  %v9988 = vld [vmem:[%s8 + $0x3c0] sm:$0xff]
  %v9989 = vld [vmem:[%s8 + $0x3c8] sm:$0xff]
  %v9990 = vld [vmem:[%s8 + $0x3d0] sm:$0xff]
  %v9991 = vld [vmem:[%s8 + $0x3d8] sm:$0xff]
  %v9992 = vld [vmem:[%s8 + $0x3e0] sm:$0xff]
  %v9993 = vld [vmem:[%s8 + $0x3e8] sm:$0xff]
  %v9994 = vld [vmem:[%s8 + $0x3f0] sm:$0xff]
  %v9995 = vld [vmem:[%s8 + $0x3f8] sm:$0xff]
  %v9996 = vld [vmem:[%s8 + $0x400] sm:$0xff]
  %v9997 = vld [vmem:[%s8 + $0x408] sm:$0xff]
  %v9998 = vld [vmem:[%s8 + $0x410] sm:$0xff]
  %v9999 = vld [vmem:[%s8 + $0x418] sm:$0xff]
  %v10000 = vld [vmem:[%s8 + $0x420] sm:$0xff]
  %v10001 = vld [vmem:[%s8 + $0x428] sm:$0xff]
  %v10002 = vld [vmem:[%s8 + $0x430] sm:$0xff]
  %v10003 = vld [vmem:[%s8 + $0x438] sm:$0xff]
  %v10004 = vld [vmem:[%s8 + $0x440] sm:$0xff]
  %v10005 = vld [vmem:[%s8 + $0x448] sm:$0xff]
  %v10006 = vld [vmem:[%s8 + $0x450] sm:$0xff]
  %v10007 = vld [vmem:[%s8 + $0x458] sm:$0xff]
  %v10008 = vld [vmem:[%s8 + $0x460] sm:$0xff]
  %v10009 = vld [vmem:[%s8 + $0x468] sm:$0xff]
  %v10010 = vld [vmem:[%s8 + $0x470] sm:$0xff]
  %v10011 = vld [vmem:[%s8 + $0x478] sm:$0xff]
  %v10012 = vld [vmem:[%s8 + $0x480] sm:$0xff]
  %v10013 = vld [vmem:[%s8 + $0x488] sm:$0xff]
  %v10014 = vld [vmem:[%s8 + $0x490] sm:$0xff]
  %v10015 = vld [vmem:[%s8 + $0x498] sm:$0xff]
  %v10016 = vld [vmem:[%s8 + $0x4a0] sm:$0xff]
  %v10017 = vld [vmem:[%s8 + $0x4a8] sm:$0xff]
  %v10018 = vld [vmem:[%s8 + $0x4b0] sm:$0xff]
  %v10019 = vld [vmem:[%s8 + $0x4b8] sm:$0xff]
  %v10020 = vld [vmem:[%s8 + $0x4c0] sm:$0xff]
  %v10021 = vld [vmem:[%s8 + $0x4c8] sm:$0xff]
  %v10022 = vld [vmem:[%s8 + $0x4d0] sm:$0xff]
  %v10023 = vld [vmem:[%s8 + $0x4d8] sm:$0xff]
  %v10024 = vld [vmem:[%s8 + $0x4e0] sm:$0xff]
  %v10025 = vld [vmem:[%s8 + $0x4e8] sm:$0xff]
  %v10026 = vld [vmem:[%s8 + $0x4f0] sm:$0xff]
  %v10027 = vld [vmem:[%s8 + $0x4f8] sm:$0xff]
  %v10028 = vld [vmem:[%s8 + $0x500] sm:$0xff]
  %v10029 = vld [vmem:[%s8 + $0x508] sm:$0xff]
  %v10030 = vld [vmem:[%s8 + $0x510] sm:$0xff]
  %v10031 = vld [vmem:[%s8 + $0x518] sm:$0xff]
  %v10032 = vld [vmem:[%s8 + $0x520] sm:$0xff]
  %v10033 = vld [vmem:[%s8 + $0x528] sm:$0xff]
  %v10034 = vld [vmem:[%s8 + $0x530] sm:$0xff]
  %v10035 = vld [vmem:[%s8 + $0x538] sm:$0xff]
  %v10036 = vld [vmem:[%s8 + $0x540] sm:$0xff]
  %v10037 = vld [vmem:[%s8 + $0x548] sm:$0xff]
  %v10038 = vld [vmem:[%s8 + $0x550] sm:$0xff]
  %v10039 = vld [vmem:[%s8 + $0x558] sm:$0xff]
  %v10040 = vld [vmem:[%s8 + $0x560] sm:$0xff]
  %v10041 = vld [vmem:[%s8 + $0x568] sm:$0xff]
  %v10042 = vld [vmem:[%s8 + $0x570] sm:$0xff]
  %v10043 = vld [vmem:[%s8 + $0x578] sm:$0xff]
  %v10044 = vld [vmem:[%s8 + $0x580] sm:$0xff]
  %v10045 = vld [vmem:[%s8 + $0x588] sm:$0xff]
  %v10046 = vld [vmem:[%s8 + $0x590] sm:$0xff]
  %v10047 = vld [vmem:[%s8 + $0x598] sm:$0xff]
  %v10048 = vld [vmem:[%s8 + $0x5a0] sm:$0xff]
  %v10049 = vld [vmem:[%s8 + $0x5a8] sm:$0xff]
  %v10050 = vld [vmem:[%s8 + $0x5b0] sm:$0xff]
  %v10051 = vld [vmem:[%s8 + $0x5b8] sm:$0xff]
  %v10052 = vld [vmem:[%s8 + $0x5c0] sm:$0xff]
  %v10053 = vld [vmem:[%s8 + $0x5c8] sm:$0xff]
  %v10054 = vld [vmem:[%s8 + $0x5d0] sm:$0xff]
  %v10055 = vld [vmem:[%s8 + $0x5d8] sm:$0xff]
  %v10056 = vld [vmem:[%s8 + $0x5e0] sm:$0xff]
  %v10057 = vld [vmem:[%s8 + $0x5e8] sm:$0xff]
  %v10058 = vld [vmem:[%s8 + $0x5f0] sm:$0xff]
  %v10059 = vld [vmem:[%s8 + $0x5f8] sm:$0xff]
  %v10060 = vld [vmem:[%s8 + $0x600] sm:$0xff]
  %v10061 = vld [vmem:[%s8 + $0x608] sm:$0xff]
  %v10062 = vld [vmem:[%s8 + $0x610] sm:$0xff]
  %v10063 = vld [vmem:[%s8 + $0x618] sm:$0xff]
  %v10064 = vld [vmem:[%s8 + $0x620] sm:$0xff]
  %v10065 = vld [vmem:[%s8 + $0x628] sm:$0xff]
  %v10066 = vld [vmem:[%s8 + $0x630] sm:$0xff]
  %v10067 = vld [vmem:[%s8 + $0x638] sm:$0xff]
  %v10068 = vld [vmem:[%s8 + $0x640] sm:$0xff]
  %v10069 = vld [vmem:[%s8 + $0x648] sm:$0xff]
  %v10070 = vld [vmem:[%s8 + $0x650] sm:$0xff]
  %v10071 = vld [vmem:[%s8 + $0x658] sm:$0xff]
  %v10072 = vld [vmem:[%s8 + $0x660] sm:$0xff]
  %v10073 = vld [vmem:[%s8 + $0x668] sm:$0xff]
  %v10074 = vld [vmem:[%s8 + $0x670] sm:$0xff]
  %v10075 = vld [vmem:[%s8 + $0x678] sm:$0xff]
  %v10076 = vld [vmem:[%s8 + $0x680] sm:$0xff]
  %v10077 = vld [vmem:[%s8 + $0x688] sm:$0xff]
  %v10078 = vld [vmem:[%s8 + $0x690] sm:$0xff]
  %v10079 = vld [vmem:[%s8 + $0x698] sm:$0xff]
  %v10080 = vld [vmem:[%s8 + $0x6a0] sm:$0xff]
  %v10081 = vld [vmem:[%s8 + $0x6a8] sm:$0xff]
  %v10082 = vld [vmem:[%s8 + $0x6b0] sm:$0xff]
  %v10083 = vld [vmem:[%s8 + $0x6b8] sm:$0xff]
  %v10084 = vld [vmem:[%s8 + $0x6c0] sm:$0xff]
  %v10085 = vld [vmem:[%s8 + $0x6c8] sm:$0xff]
  %v10086 = vld [vmem:[%s8 + $0x6d0] sm:$0xff]
  %v10087 = vld [vmem:[%s8 + $0x6d8] sm:$0xff]
  %v10088 = vld [vmem:[%s8 + $0x6e0] sm:$0xff]
  %v10089 = vld [vmem:[%s8 + $0x6e8] sm:$0xff]
  %v10090 = vld [vmem:[%s8 + $0x6f0] sm:$0xff]
  %v10091 = vld [vmem:[%s8 + $0x6f8] sm:$0xff]
  %v10092 = vld [vmem:[%s8 + $0x700] sm:$0xff]
  %v10093 = vld [vmem:[%s8 + $0x708] sm:$0xff]
  %v10094 = vld [vmem:[%s8 + $0x710] sm:$0xff]
  %v10095 = vld [vmem:[%s8 + $0x718] sm:$0xff]
  %v10096 = vld [vmem:[%s8 + $0x720] sm:$0xff]
  %v10097 = vld [vmem:[%s8 + $0x728] sm:$0xff]
  %v10098 = vld [vmem:[%s8 + $0x730] sm:$0xff]
  %v10099 = vld [vmem:[%s8 + $0x738] sm:$0xff]
  %v10100 = vld [vmem:[%s8 + $0x740] sm:$0xff]
  %v10101 = vld [vmem:[%s8 + $0x748] sm:$0xff]
  %v10102 = vld [vmem:[%s8 + $0x750] sm:$0xff]
  %v10103 = vld [vmem:[%s8 + $0x758] sm:$0xff]
  %v10104 = vld [vmem:[%s8 + $0x760] sm:$0xff]
  %v10105 = vld [vmem:[%s8 + $0x768] sm:$0xff]
  %v10106 = vld [vmem:[%s8 + $0x770] sm:$0xff]
  %v10107 = vld [vmem:[%s8 + $0x778] sm:$0xff]
  %v10108 = vld [vmem:[%s8 + $0x780] sm:$0xff]
  %v10109 = vld [vmem:[%s8 + $0x788] sm:$0xff]
  %v10110 = vld [vmem:[%s8 + $0x790] sm:$0xff]
  %v10111 = vld [vmem:[%s8 + $0x798] sm:$0xff]
  %v10112 = vld [vmem:[%s8 + $0x7a0] sm:$0xff]
  %v10113 = vld [vmem:[%s8 + $0x7a8] sm:$0xff]
  %v10114 = vld [vmem:[%s8 + $0x7b0] sm:$0xff]
  %v10115 = vld [vmem:[%s8 + $0x7b8] sm:$0xff]
  %v10116 = vld [vmem:[%s8 + $0x7c0] sm:$0xff]
  %v10117 = vld [vmem:[%s8 + $0x7c8] sm:$0xff]
  %v10118 = vld [vmem:[%s8 + $0x7d0] sm:$0xff]
  %v10119 = vld [vmem:[%s8 + $0x7d8] sm:$0xff]
  %v10120 = vld [vmem:[%s8 + $0x7e0] sm:$0xff]
  %v10121 = vld [vmem:[%s8 + $0x7e8] sm:$0xff]
  %v10122 = vld [vmem:[%s8 + $0x7f0] sm:$0xff]
  %v10123 = vld [vmem:[%s8 + $0x7f8] sm:$0xff]
  %v10124 = vld [vmem:[%s9] sm:$0xf]
  %v10126 = vlaneseq
  %v10127 = vshrl.u32 %v10126, 7
  %v10128 = vsub.s32 0, %v10127
  %v10129 = vrot.slane %v10124, %v10128
  %v10130 = vlaneseq
  %v10131 = vshrl.u32 %v10130, 7
  %v10132 = vsub.s32 1, %v10131
  %v10133 = vrot.slane %v10124, %v10132
  %v10134 = vlaneseq
  %v10135 = vshrl.u32 %v10134, 7
  %v10136 = vsub.s32 2, %v10135
  %v10137 = vrot.slane %v10124, %v10136
  %v10138 = vlaneseq
  %v10139 = vshrl.u32 %v10138, 7
  %v10140 = vsub.s32 3, %v10139
  %v10141 = vrot.slane %v10124, %v10140
  %v10402 = vunpack.c.l.b16 %v9868
  %v10403 = vunpack.c.h.b16 %v9868
  %v10404 = vunpack.c.l.b16 %v9869
  %v10405 = vunpack.c.h.b16 %v9869
  %v10406 = vunpack.c.l.b16 %v9870
  %v10407 = vunpack.c.h.b16 %v9870
  %v10408 = vunpack.c.l.b16 %v9871
  %v10409 = vunpack.c.h.b16 %v9871
  %v10410 = vunpack.c.l.b16 %v9872
  %v10411 = vunpack.c.h.b16 %v9872
  %v10412 = vunpack.c.l.b16 %v9873
  %v10413 = vunpack.c.h.b16 %v9873
  %v10414 = vunpack.c.l.b16 %v9874
  %v10415 = vunpack.c.h.b16 %v9874
  %v10416 = vunpack.c.l.b16 %v9875
  %v10417 = vunpack.c.h.b16 %v9875
  %v10418 = vunpack.c.l.b16 %v9876
  %v10419 = vunpack.c.h.b16 %v9876
  %v10420 = vunpack.c.l.b16 %v9877
  %v10421 = vunpack.c.h.b16 %v9877
  %v10422 = vunpack.c.l.b16 %v9878
  %v10423 = vunpack.c.h.b16 %v9878
  %v10424 = vunpack.c.l.b16 %v9879
  %v10425 = vunpack.c.h.b16 %v9879
  %v10426 = vunpack.c.l.b16 %v9880
  %v10427 = vunpack.c.h.b16 %v9880
  %v10428 = vunpack.c.l.b16 %v9881
  %v10429 = vunpack.c.h.b16 %v9881
  %v10430 = vunpack.c.l.b16 %v9882
  %v10431 = vunpack.c.h.b16 %v9882
  %v10432 = vunpack.c.l.b16 %v9883
  %v10433 = vunpack.c.h.b16 %v9883
  %v10434 = vunpack.c.l.b16 %v9884
  %v10435 = vunpack.c.h.b16 %v9884
  %v10436 = vunpack.c.l.b16 %v9885
  %v10437 = vunpack.c.h.b16 %v9885
  %v10438 = vunpack.c.l.b16 %v9886
  %v10439 = vunpack.c.h.b16 %v9886
  %v10440 = vunpack.c.l.b16 %v9887
  %v10441 = vunpack.c.h.b16 %v9887
  %v10442 = vunpack.c.l.b16 %v9888
  %v10443 = vunpack.c.h.b16 %v9888
  %v10444 = vunpack.c.l.b16 %v9889
  %v10445 = vunpack.c.h.b16 %v9889
  %v10446 = vunpack.c.l.b16 %v9890
  %v10447 = vunpack.c.h.b16 %v9890
  %v10448 = vunpack.c.l.b16 %v9891
  %v10449 = vunpack.c.h.b16 %v9891
  %v10450 = vunpack.c.l.b16 %v9892
  %v10451 = vunpack.c.h.b16 %v9892
  %v10452 = vunpack.c.l.b16 %v9893
  %v10453 = vunpack.c.h.b16 %v9893
  %v10454 = vunpack.c.l.b16 %v9894
  %v10455 = vunpack.c.h.b16 %v9894
  %v10456 = vunpack.c.l.b16 %v9895
  %v10457 = vunpack.c.h.b16 %v9895
  %v10458 = vunpack.c.l.b16 %v9896
  %v10459 = vunpack.c.h.b16 %v9896
  %v10460 = vunpack.c.l.b16 %v9897
  %v10461 = vunpack.c.h.b16 %v9897
  %v10462 = vunpack.c.l.b16 %v9898
  %v10463 = vunpack.c.h.b16 %v9898
  %v10464 = vunpack.c.l.b16 %v9899
  %v10465 = vunpack.c.h.b16 %v9899
  %v10466 = vunpack.c.l.b16 %v9900
  %v10467 = vunpack.c.h.b16 %v9900
  %v10468 = vunpack.c.l.b16 %v9901
  %v10469 = vunpack.c.h.b16 %v9901
  %v10470 = vunpack.c.l.b16 %v9902
  %v10471 = vunpack.c.h.b16 %v9902
  %v10472 = vunpack.c.l.b16 %v9903
  %v10473 = vunpack.c.h.b16 %v9903
  %v10474 = vunpack.c.l.b16 %v9904
  %v10475 = vunpack.c.h.b16 %v9904
  %v10476 = vunpack.c.l.b16 %v9905
  %v10477 = vunpack.c.h.b16 %v9905
  %v10478 = vunpack.c.l.b16 %v9906
  %v10479 = vunpack.c.h.b16 %v9906
  %v10480 = vunpack.c.l.b16 %v9907
  %v10481 = vunpack.c.h.b16 %v9907
  %v10482 = vunpack.c.l.b16 %v9908
  %v10483 = vunpack.c.h.b16 %v9908
  %v10484 = vunpack.c.l.b16 %v9909
  %v10485 = vunpack.c.h.b16 %v9909
  %v10486 = vunpack.c.l.b16 %v9910
  %v10487 = vunpack.c.h.b16 %v9910
  %v10488 = vunpack.c.l.b16 %v9911
  %v10489 = vunpack.c.h.b16 %v9911
  %v10490 = vunpack.c.l.b16 %v9912
  %v10491 = vunpack.c.h.b16 %v9912
  %v10492 = vunpack.c.l.b16 %v9913
  %v10493 = vunpack.c.h.b16 %v9913
  %v10494 = vunpack.c.l.b16 %v9914
  %v10495 = vunpack.c.h.b16 %v9914
  %v10496 = vunpack.c.l.b16 %v9915
  %v10497 = vunpack.c.h.b16 %v9915
  %v10498 = vunpack.c.l.b16 %v9916
  %v10499 = vunpack.c.h.b16 %v9916
  %v10500 = vunpack.c.l.b16 %v9917
  %v10501 = vunpack.c.h.b16 %v9917
  %v10502 = vunpack.c.l.b16 %v9918
  %v10503 = vunpack.c.h.b16 %v9918
  %v10504 = vunpack.c.l.b16 %v9919
  %v10505 = vunpack.c.h.b16 %v9919
  %v10506 = vunpack.c.l.b16 %v9920
  %v10507 = vunpack.c.h.b16 %v9920
  %v10508 = vunpack.c.l.b16 %v9921
  %v10509 = vunpack.c.h.b16 %v9921
  %v10510 = vunpack.c.l.b16 %v9922
  %v10511 = vunpack.c.h.b16 %v9922
  %v10512 = vunpack.c.l.b16 %v9923
  %v10513 = vunpack.c.h.b16 %v9923
  %v10514 = vunpack.c.l.b16 %v9924
  %v10515 = vunpack.c.h.b16 %v9924
  %v10516 = vunpack.c.l.b16 %v9925
  %v10517 = vunpack.c.h.b16 %v9925
  %v10518 = vunpack.c.l.b16 %v9926
  %v10519 = vunpack.c.h.b16 %v9926
  %v10520 = vunpack.c.l.b16 %v9927
  %v10521 = vunpack.c.h.b16 %v9927
  %v10522 = vunpack.c.l.b16 %v9928
  %v10523 = vunpack.c.h.b16 %v9928
  %v10524 = vunpack.c.l.b16 %v9929
  %v10525 = vunpack.c.h.b16 %v9929
  %v10526 = vunpack.c.l.b16 %v9930
  %v10527 = vunpack.c.h.b16 %v9930
  %v10528 = vunpack.c.l.b16 %v9931
  %v10529 = vunpack.c.h.b16 %v9931
  %v10530 = vunpack.c.l.b16 %v9932
  %v10531 = vunpack.c.h.b16 %v9932
  %v10532 = vunpack.c.l.b16 %v9933
  %v10533 = vunpack.c.h.b16 %v9933
  %v10534 = vunpack.c.l.b16 %v9934
  %v10535 = vunpack.c.h.b16 %v9934
  %v10536 = vunpack.c.l.b16 %v9935
  %v10537 = vunpack.c.h.b16 %v9935
  %v10538 = vunpack.c.l.b16 %v9936
  %v10539 = vunpack.c.h.b16 %v9936
  %v10540 = vunpack.c.l.b16 %v9937
  %v10541 = vunpack.c.h.b16 %v9937
  %v10542 = vunpack.c.l.b16 %v9938
  %v10543 = vunpack.c.h.b16 %v9938
  %v10544 = vunpack.c.l.b16 %v9939
  %v10545 = vunpack.c.h.b16 %v9939
  %v10546 = vunpack.c.l.b16 %v9940
  %v10547 = vunpack.c.h.b16 %v9940
  %v10548 = vunpack.c.l.b16 %v9941
  %v10549 = vunpack.c.h.b16 %v9941
  %v10550 = vunpack.c.l.b16 %v9942
  %v10551 = vunpack.c.h.b16 %v9942
  %v10552 = vunpack.c.l.b16 %v9943
  %v10553 = vunpack.c.h.b16 %v9943
  %v10554 = vunpack.c.l.b16 %v9944
  %v10555 = vunpack.c.h.b16 %v9944
  %v10556 = vunpack.c.l.b16 %v9945
  %v10557 = vunpack.c.h.b16 %v9945
  %v10558 = vunpack.c.l.b16 %v9946
  %v10559 = vunpack.c.h.b16 %v9946
  %v10560 = vunpack.c.l.b16 %v9947
  %v10561 = vunpack.c.h.b16 %v9947
  %v10562 = vunpack.c.l.b16 %v9948
  %v10563 = vunpack.c.h.b16 %v9948
  %v10564 = vunpack.c.l.b16 %v9949
  %v10565 = vunpack.c.h.b16 %v9949
  %v10566 = vunpack.c.l.b16 %v9950
  %v10567 = vunpack.c.h.b16 %v9950
  %v10568 = vunpack.c.l.b16 %v9951
  %v10569 = vunpack.c.h.b16 %v9951
  %v10570 = vunpack.c.l.b16 %v9952
  %v10571 = vunpack.c.h.b16 %v9952
  %v10572 = vunpack.c.l.b16 %v9953
  %v10573 = vunpack.c.h.b16 %v9953
  %v10574 = vunpack.c.l.b16 %v9954
  %v10575 = vunpack.c.h.b16 %v9954
  %v10576 = vunpack.c.l.b16 %v9955
  %v10577 = vunpack.c.h.b16 %v9955
  %v10578 = vunpack.c.l.b16 %v9956
  %v10579 = vunpack.c.h.b16 %v9956
  %v10580 = vunpack.c.l.b16 %v9957
  %v10581 = vunpack.c.h.b16 %v9957
  %v10582 = vunpack.c.l.b16 %v9958
  %v10583 = vunpack.c.h.b16 %v9958
  %v10584 = vunpack.c.l.b16 %v9959
  %v10585 = vunpack.c.h.b16 %v9959
  %v10586 = vunpack.c.l.b16 %v9960
  %v10587 = vunpack.c.h.b16 %v9960
  %v10588 = vunpack.c.l.b16 %v9961
  %v10589 = vunpack.c.h.b16 %v9961
  %v10590 = vunpack.c.l.b16 %v9962
  %v10591 = vunpack.c.h.b16 %v9962
  %v10592 = vunpack.c.l.b16 %v9963
  %v10593 = vunpack.c.h.b16 %v9963
  %v10594 = vunpack.c.l.b16 %v9964
  %v10595 = vunpack.c.h.b16 %v9964
  %v10596 = vunpack.c.l.b16 %v9965
  %v10597 = vunpack.c.h.b16 %v9965
  %v10598 = vunpack.c.l.b16 %v9966
  %v10599 = vunpack.c.h.b16 %v9966
  %v10600 = vunpack.c.l.b16 %v9967
  %v10601 = vunpack.c.h.b16 %v9967
  %v10602 = vunpack.c.l.b16 %v9968
  %v10603 = vunpack.c.h.b16 %v9968
  %v10604 = vunpack.c.l.b16 %v9969
  %v10605 = vunpack.c.h.b16 %v9969
  %v10606 = vunpack.c.l.b16 %v9970
  %v10607 = vunpack.c.h.b16 %v9970
  %v10608 = vunpack.c.l.b16 %v9971
  %v10609 = vunpack.c.h.b16 %v9971
  %v10610 = vunpack.c.l.b16 %v9972
  %v10611 = vunpack.c.h.b16 %v9972
  %v10612 = vunpack.c.l.b16 %v9973
  %v10613 = vunpack.c.h.b16 %v9973
  %v10614 = vunpack.c.l.b16 %v9974
  %v10615 = vunpack.c.h.b16 %v9974
  %v10616 = vunpack.c.l.b16 %v9975
  %v10617 = vunpack.c.h.b16 %v9975
  %v10618 = vunpack.c.l.b16 %v9976
  %v10619 = vunpack.c.h.b16 %v9976
  %v10620 = vunpack.c.l.b16 %v9977
  %v10621 = vunpack.c.h.b16 %v9977
  %v10622 = vunpack.c.l.b16 %v9978
  %v10623 = vunpack.c.h.b16 %v9978
  %v10624 = vunpack.c.l.b16 %v9979
  %v10625 = vunpack.c.h.b16 %v9979
  %v10626 = vunpack.c.l.b16 %v9980
  %v10627 = vunpack.c.h.b16 %v9980
  %v10628 = vunpack.c.l.b16 %v9981
  %v10629 = vunpack.c.h.b16 %v9981
  %v10630 = vunpack.c.l.b16 %v9982
  %v10631 = vunpack.c.h.b16 %v9982
  %v10632 = vunpack.c.l.b16 %v9983
  %v10633 = vunpack.c.h.b16 %v9983
  %v10634 = vunpack.c.l.b16 %v9984
  %v10635 = vunpack.c.h.b16 %v9984
  %v10636 = vunpack.c.l.b16 %v9985
  %v10637 = vunpack.c.h.b16 %v9985
  %v10638 = vunpack.c.l.b16 %v9986
  %v10639 = vunpack.c.h.b16 %v9986
  %v10640 = vunpack.c.l.b16 %v9987
  %v10641 = vunpack.c.h.b16 %v9987
  %v10642 = vunpack.c.l.b16 %v9988
  %v10643 = vunpack.c.h.b16 %v9988
  %v10644 = vunpack.c.l.b16 %v9989
  %v10645 = vunpack.c.h.b16 %v9989
  %v10646 = vunpack.c.l.b16 %v9990
  %v10647 = vunpack.c.h.b16 %v9990
  %v10648 = vunpack.c.l.b16 %v9991
  %v10649 = vunpack.c.h.b16 %v9991
  %v10650 = vunpack.c.l.b16 %v9992
  %v10651 = vunpack.c.h.b16 %v9992
  %v10652 = vunpack.c.l.b16 %v9993
  %v10653 = vunpack.c.h.b16 %v9993
  %v10654 = vunpack.c.l.b16 %v9994
  %v10655 = vunpack.c.h.b16 %v9994
  %v10656 = vunpack.c.l.b16 %v9995
  %v10657 = vunpack.c.h.b16 %v9995
  %v10658 = vunpack.c.l.b16 %v9996
  %v10659 = vunpack.c.h.b16 %v9996
  %v10660 = vunpack.c.l.b16 %v9997
  %v10661 = vunpack.c.h.b16 %v9997
  %v10662 = vunpack.c.l.b16 %v9998
  %v10663 = vunpack.c.h.b16 %v9998
  %v10664 = vunpack.c.l.b16 %v9999
  %v10665 = vunpack.c.h.b16 %v9999
  %v10666 = vunpack.c.l.b16 %v10000
  %v10667 = vunpack.c.h.b16 %v10000
  %v10668 = vunpack.c.l.b16 %v10001
  %v10669 = vunpack.c.h.b16 %v10001
  %v10670 = vunpack.c.l.b16 %v10002
  %v10671 = vunpack.c.h.b16 %v10002
  %v10672 = vunpack.c.l.b16 %v10003
  %v10673 = vunpack.c.h.b16 %v10003
  %v10674 = vunpack.c.l.b16 %v10004
  %v10675 = vunpack.c.h.b16 %v10004
  %v10676 = vunpack.c.l.b16 %v10005
  %v10677 = vunpack.c.h.b16 %v10005
  %v10678 = vunpack.c.l.b16 %v10006
  %v10679 = vunpack.c.h.b16 %v10006
  %v10680 = vunpack.c.l.b16 %v10007
  %v10681 = vunpack.c.h.b16 %v10007
  %v10682 = vunpack.c.l.b16 %v10008
  %v10683 = vunpack.c.h.b16 %v10008
  %v10684 = vunpack.c.l.b16 %v10009
  %v10685 = vunpack.c.h.b16 %v10009
  %v10686 = vunpack.c.l.b16 %v10010
  %v10687 = vunpack.c.h.b16 %v10010
  %v10688 = vunpack.c.l.b16 %v10011
  %v10689 = vunpack.c.h.b16 %v10011
  %v10690 = vunpack.c.l.b16 %v10012
  %v10691 = vunpack.c.h.b16 %v10012
  %v10692 = vunpack.c.l.b16 %v10013
  %v10693 = vunpack.c.h.b16 %v10013
  %v10694 = vunpack.c.l.b16 %v10014
  %v10695 = vunpack.c.h.b16 %v10014
  %v10696 = vunpack.c.l.b16 %v10015
  %v10697 = vunpack.c.h.b16 %v10015
  %v10698 = vunpack.c.l.b16 %v10016
  %v10699 = vunpack.c.h.b16 %v10016
  %v10700 = vunpack.c.l.b16 %v10017
  %v10701 = vunpack.c.h.b16 %v10017
  %v10702 = vunpack.c.l.b16 %v10018
  %v10703 = vunpack.c.h.b16 %v10018
  %v10704 = vunpack.c.l.b16 %v10019
  %v10705 = vunpack.c.h.b16 %v10019
  %v10706 = vunpack.c.l.b16 %v10020
  %v10707 = vunpack.c.h.b16 %v10020
  %v10708 = vunpack.c.l.b16 %v10021
  %v10709 = vunpack.c.h.b16 %v10021
  %v10710 = vunpack.c.l.b16 %v10022
  %v10711 = vunpack.c.h.b16 %v10022
  %v10712 = vunpack.c.l.b16 %v10023
  %v10713 = vunpack.c.h.b16 %v10023
  %v10714 = vunpack.c.l.b16 %v10024
  %v10715 = vunpack.c.h.b16 %v10024
  %v10716 = vunpack.c.l.b16 %v10025
  %v10717 = vunpack.c.h.b16 %v10025
  %v10718 = vunpack.c.l.b16 %v10026
  %v10719 = vunpack.c.h.b16 %v10026
  %v10720 = vunpack.c.l.b16 %v10027
  %v10721 = vunpack.c.h.b16 %v10027
  %v10722 = vunpack.c.l.b16 %v10028
  %v10723 = vunpack.c.h.b16 %v10028
  %v10724 = vunpack.c.l.b16 %v10029
  %v10725 = vunpack.c.h.b16 %v10029
  %v10726 = vunpack.c.l.b16 %v10030
  %v10727 = vunpack.c.h.b16 %v10030
  %v10728 = vunpack.c.l.b16 %v10031
  %v10729 = vunpack.c.h.b16 %v10031
  %v10730 = vunpack.c.l.b16 %v10032
  %v10731 = vunpack.c.h.b16 %v10032
  %v10732 = vunpack.c.l.b16 %v10033
  %v10733 = vunpack.c.h.b16 %v10033
  %v10734 = vunpack.c.l.b16 %v10034
  %v10735 = vunpack.c.h.b16 %v10034
  %v10736 = vunpack.c.l.b16 %v10035
  %v10737 = vunpack.c.h.b16 %v10035
  %v10738 = vunpack.c.l.b16 %v10036
  %v10739 = vunpack.c.h.b16 %v10036
  %v10740 = vunpack.c.l.b16 %v10037
  %v10741 = vunpack.c.h.b16 %v10037
  %v10742 = vunpack.c.l.b16 %v10038
  %v10743 = vunpack.c.h.b16 %v10038
  %v10744 = vunpack.c.l.b16 %v10039
  %v10745 = vunpack.c.h.b16 %v10039
  %v10746 = vunpack.c.l.b16 %v10040
  %v10747 = vunpack.c.h.b16 %v10040
  %v10748 = vunpack.c.l.b16 %v10041
  %v10749 = vunpack.c.h.b16 %v10041
  %v10750 = vunpack.c.l.b16 %v10042
  %v10751 = vunpack.c.h.b16 %v10042
  %v10752 = vunpack.c.l.b16 %v10043
  %v10753 = vunpack.c.h.b16 %v10043
  %v10754 = vunpack.c.l.b16 %v10044
  %v10755 = vunpack.c.h.b16 %v10044
  %v10756 = vunpack.c.l.b16 %v10045
  %v10757 = vunpack.c.h.b16 %v10045
  %v10758 = vunpack.c.l.b16 %v10046
  %v10759 = vunpack.c.h.b16 %v10046
  %v10760 = vunpack.c.l.b16 %v10047
  %v10761 = vunpack.c.h.b16 %v10047
  %v10762 = vunpack.c.l.b16 %v10048
  %v10763 = vunpack.c.h.b16 %v10048
  %v10764 = vunpack.c.l.b16 %v10049
  %v10765 = vunpack.c.h.b16 %v10049
  %v10766 = vunpack.c.l.b16 %v10050
  %v10767 = vunpack.c.h.b16 %v10050
  %v10768 = vunpack.c.l.b16 %v10051
  %v10769 = vunpack.c.h.b16 %v10051
  %v10770 = vunpack.c.l.b16 %v10052
  %v10771 = vunpack.c.h.b16 %v10052
  %v10772 = vunpack.c.l.b16 %v10053
  %v10773 = vunpack.c.h.b16 %v10053
  %v10774 = vunpack.c.l.b16 %v10054
  %v10775 = vunpack.c.h.b16 %v10054
  %v10776 = vunpack.c.l.b16 %v10055
  %v10777 = vunpack.c.h.b16 %v10055
  %v10778 = vunpack.c.l.b16 %v10056
  %v10779 = vunpack.c.h.b16 %v10056
  %v10780 = vunpack.c.l.b16 %v10057
  %v10781 = vunpack.c.h.b16 %v10057
  %v10782 = vunpack.c.l.b16 %v10058
  %v10783 = vunpack.c.h.b16 %v10058
  %v10784 = vunpack.c.l.b16 %v10059
  %v10785 = vunpack.c.h.b16 %v10059
  %v10786 = vunpack.c.l.b16 %v10060
  %v10787 = vunpack.c.h.b16 %v10060
  %v10788 = vunpack.c.l.b16 %v10061
  %v10789 = vunpack.c.h.b16 %v10061
  %v10790 = vunpack.c.l.b16 %v10062
  %v10791 = vunpack.c.h.b16 %v10062
  %v10792 = vunpack.c.l.b16 %v10063
  %v10793 = vunpack.c.h.b16 %v10063
  %v10794 = vunpack.c.l.b16 %v10064
  %v10795 = vunpack.c.h.b16 %v10064
  %v10796 = vunpack.c.l.b16 %v10065
  %v10797 = vunpack.c.h.b16 %v10065
  %v10798 = vunpack.c.l.b16 %v10066
  %v10799 = vunpack.c.h.b16 %v10066
  %v10800 = vunpack.c.l.b16 %v10067
  %v10801 = vunpack.c.h.b16 %v10067
  %v10802 = vunpack.c.l.b16 %v10068
  %v10803 = vunpack.c.h.b16 %v10068
  %v10804 = vunpack.c.l.b16 %v10069
  %v10805 = vunpack.c.h.b16 %v10069
  %v10806 = vunpack.c.l.b16 %v10070
  %v10807 = vunpack.c.h.b16 %v10070
  %v10808 = vunpack.c.l.b16 %v10071
  %v10809 = vunpack.c.h.b16 %v10071
  %v10810 = vunpack.c.l.b16 %v10072
  %v10811 = vunpack.c.h.b16 %v10072
  %v10812 = vunpack.c.l.b16 %v10073
  %v10813 = vunpack.c.h.b16 %v10073
  %v10814 = vunpack.c.l.b16 %v10074
  %v10815 = vunpack.c.h.b16 %v10074
  %v10816 = vunpack.c.l.b16 %v10075
  %v10817 = vunpack.c.h.b16 %v10075
  %v10818 = vunpack.c.l.b16 %v10076
  %v10819 = vunpack.c.h.b16 %v10076
  %v10820 = vunpack.c.l.b16 %v10077
  %v10821 = vunpack.c.h.b16 %v10077
  %v10822 = vunpack.c.l.b16 %v10078
  %v10823 = vunpack.c.h.b16 %v10078
  %v10824 = vunpack.c.l.b16 %v10079
  %v10825 = vunpack.c.h.b16 %v10079
  %v10826 = vunpack.c.l.b16 %v10080
  %v10827 = vunpack.c.h.b16 %v10080
  %v10828 = vunpack.c.l.b16 %v10081
  %v10829 = vunpack.c.h.b16 %v10081
  %v10830 = vunpack.c.l.b16 %v10082
  %v10831 = vunpack.c.h.b16 %v10082
  %v10832 = vunpack.c.l.b16 %v10083
  %v10833 = vunpack.c.h.b16 %v10083
  %v10834 = vunpack.c.l.b16 %v10084
  %v10835 = vunpack.c.h.b16 %v10084
  %v10836 = vunpack.c.l.b16 %v10085
  %v10837 = vunpack.c.h.b16 %v10085
  %v10838 = vunpack.c.l.b16 %v10086
  %v10839 = vunpack.c.h.b16 %v10086
  %v10840 = vunpack.c.l.b16 %v10087
  %v10841 = vunpack.c.h.b16 %v10087
  %v10842 = vunpack.c.l.b16 %v10088
  %v10843 = vunpack.c.h.b16 %v10088
  %v10844 = vunpack.c.l.b16 %v10089
  %v10845 = vunpack.c.h.b16 %v10089
  %v10846 = vunpack.c.l.b16 %v10090
  %v10847 = vunpack.c.h.b16 %v10090
  %v10848 = vunpack.c.l.b16 %v10091
  %v10849 = vunpack.c.h.b16 %v10091
  %v10850 = vunpack.c.l.b16 %v10092
  %v10851 = vunpack.c.h.b16 %v10092
  %v10852 = vunpack.c.l.b16 %v10093
  %v10853 = vunpack.c.h.b16 %v10093
  %v10854 = vunpack.c.l.b16 %v10094
  %v10855 = vunpack.c.h.b16 %v10094
  %v10856 = vunpack.c.l.b16 %v10095
  %v10857 = vunpack.c.h.b16 %v10095
  %v10858 = vunpack.c.l.b16 %v10096
  %v10859 = vunpack.c.h.b16 %v10096
  %v10860 = vunpack.c.l.b16 %v10097
  %v10861 = vunpack.c.h.b16 %v10097
  %v10862 = vunpack.c.l.b16 %v10098
  %v10863 = vunpack.c.h.b16 %v10098
  %v10864 = vunpack.c.l.b16 %v10099
  %v10865 = vunpack.c.h.b16 %v10099
  %v10866 = vunpack.c.l.b16 %v10100
  %v10867 = vunpack.c.h.b16 %v10100
  %v10868 = vunpack.c.l.b16 %v10101
  %v10869 = vunpack.c.h.b16 %v10101
  %v10870 = vunpack.c.l.b16 %v10102
  %v10871 = vunpack.c.h.b16 %v10102
  %v10872 = vunpack.c.l.b16 %v10103
  %v10873 = vunpack.c.h.b16 %v10103
  %v10874 = vunpack.c.l.b16 %v10104
  %v10875 = vunpack.c.h.b16 %v10104
  %v10876 = vunpack.c.l.b16 %v10105
  %v10877 = vunpack.c.h.b16 %v10105
  %v10878 = vunpack.c.l.b16 %v10106
  %v10879 = vunpack.c.h.b16 %v10106
  %v10880 = vunpack.c.l.b16 %v10107
  %v10881 = vunpack.c.h.b16 %v10107
  %v10882 = vunpack.c.l.b16 %v10108
  %v10883 = vunpack.c.h.b16 %v10108
  %v10884 = vunpack.c.l.b16 %v10109
  %v10885 = vunpack.c.h.b16 %v10109
  %v10886 = vunpack.c.l.b16 %v10110
  %v10887 = vunpack.c.h.b16 %v10110
  %v10888 = vunpack.c.l.b16 %v10111
  %v10889 = vunpack.c.h.b16 %v10111
  %v10890 = vunpack.c.l.b16 %v10112
  %v10891 = vunpack.c.h.b16 %v10112
  %v10892 = vunpack.c.l.b16 %v10113
  %v10893 = vunpack.c.h.b16 %v10113
  %v10894 = vunpack.c.l.b16 %v10114
  %v10895 = vunpack.c.h.b16 %v10114
  %v10896 = vunpack.c.l.b16 %v10115
  %v10897 = vunpack.c.h.b16 %v10115
  %v10898 = vunpack.c.l.b16 %v10116
  %v10899 = vunpack.c.h.b16 %v10116
  %v10900 = vunpack.c.l.b16 %v10117
  %v10901 = vunpack.c.h.b16 %v10117
  %v10902 = vunpack.c.l.b16 %v10118
  %v10903 = vunpack.c.h.b16 %v10118
  %v10904 = vunpack.c.l.b16 %v10119
  %v10905 = vunpack.c.h.b16 %v10119
  %v10906 = vunpack.c.l.b16 %v10120
  %v10907 = vunpack.c.h.b16 %v10120
  %v10908 = vunpack.c.l.b16 %v10121
  %v10909 = vunpack.c.h.b16 %v10121
  %v10910 = vunpack.c.l.b16 %v10122
  %v10911 = vunpack.c.h.b16 %v10122
  %v10912 = vunpack.c.l.b16 %v10123
  %v10913 = vunpack.c.h.b16 %v10123
  %v10914 = vpack.c.b16 %v10406, %v10402
  %v10915 = vpack.c.b16 %v10407, %v10403
  %v10916 = vpack.c.b16 %v10408, %v10404
  %v10917 = vpack.c.b16 %v10409, %v10405
  %v10918 = vpack.c.b16 %v10414, %v10410
  %v10919 = vpack.c.b16 %v10415, %v10411
  %v10920 = vpack.c.b16 %v10416, %v10412
  %v10921 = vpack.c.b16 %v10417, %v10413
  %v10922 = vpack.c.b16 %v10422, %v10418
  %v10923 = vpack.c.b16 %v10423, %v10419
  %v10924 = vpack.c.b16 %v10424, %v10420
  %v10925 = vpack.c.b16 %v10425, %v10421
  %v10926 = vpack.c.b16 %v10430, %v10426
  %v10927 = vpack.c.b16 %v10431, %v10427
  %v10928 = vpack.c.b16 %v10432, %v10428
  %v10929 = vpack.c.b16 %v10433, %v10429
  %v10930 = vpack.c.b16 %v10438, %v10434
  %v10931 = vpack.c.b16 %v10439, %v10435
  %v10932 = vpack.c.b16 %v10440, %v10436
  %v10933 = vpack.c.b16 %v10441, %v10437
  %v10934 = vpack.c.b16 %v10446, %v10442
  %v10935 = vpack.c.b16 %v10447, %v10443
  %v10936 = vpack.c.b16 %v10448, %v10444
  %v10937 = vpack.c.b16 %v10449, %v10445
  %v10938 = vpack.c.b16 %v10454, %v10450
  %v10939 = vpack.c.b16 %v10455, %v10451
  %v10940 = vpack.c.b16 %v10456, %v10452
  %v10941 = vpack.c.b16 %v10457, %v10453
  %v10942 = vpack.c.b16 %v10462, %v10458
  %v10943 = vpack.c.b16 %v10463, %v10459
  %v10944 = vpack.c.b16 %v10464, %v10460
  %v10945 = vpack.c.b16 %v10465, %v10461
  %v10946 = vpack.c.b16 %v10470, %v10466
  %v10947 = vpack.c.b16 %v10471, %v10467
  %v10948 = vpack.c.b16 %v10472, %v10468
  %v10949 = vpack.c.b16 %v10473, %v10469
  %v10950 = vpack.c.b16 %v10478, %v10474
  %v10951 = vpack.c.b16 %v10479, %v10475
  %v10952 = vpack.c.b16 %v10480, %v10476
  %v10953 = vpack.c.b16 %v10481, %v10477
  %v10954 = vpack.c.b16 %v10486, %v10482
  %v10955 = vpack.c.b16 %v10487, %v10483
  %v10956 = vpack.c.b16 %v10488, %v10484
  %v10957 = vpack.c.b16 %v10489, %v10485
  %v10958 = vpack.c.b16 %v10494, %v10490
  %v10959 = vpack.c.b16 %v10495, %v10491
  %v10960 = vpack.c.b16 %v10496, %v10492
  %v10961 = vpack.c.b16 %v10497, %v10493
  %v10962 = vpack.c.b16 %v10502, %v10498
  %v10963 = vpack.c.b16 %v10503, %v10499
  %v10964 = vpack.c.b16 %v10504, %v10500
  %v10965 = vpack.c.b16 %v10505, %v10501
  %v10966 = vpack.c.b16 %v10510, %v10506
  %v10967 = vpack.c.b16 %v10511, %v10507
  %v10968 = vpack.c.b16 %v10512, %v10508
  %v10969 = vpack.c.b16 %v10513, %v10509
  %v10970 = vpack.c.b16 %v10518, %v10514
  %v10971 = vpack.c.b16 %v10519, %v10515
  %v10972 = vpack.c.b16 %v10520, %v10516
  %v10973 = vpack.c.b16 %v10521, %v10517
  %v10974 = vpack.c.b16 %v10526, %v10522
  %v10975 = vpack.c.b16 %v10527, %v10523
  %v10976 = vpack.c.b16 %v10528, %v10524
  %v10977 = vpack.c.b16 %v10529, %v10525
  %v10978 = vpack.c.b16 %v10534, %v10530
  %v10979 = vpack.c.b16 %v10535, %v10531
  %v10980 = vpack.c.b16 %v10536, %v10532
  %v10981 = vpack.c.b16 %v10537, %v10533
  %v10982 = vpack.c.b16 %v10542, %v10538
  %v10983 = vpack.c.b16 %v10543, %v10539
  %v10984 = vpack.c.b16 %v10544, %v10540
  %v10985 = vpack.c.b16 %v10545, %v10541
  %v10986 = vpack.c.b16 %v10550, %v10546
  %v10987 = vpack.c.b16 %v10551, %v10547
  %v10988 = vpack.c.b16 %v10552, %v10548
  %v10989 = vpack.c.b16 %v10553, %v10549
  %v10990 = vpack.c.b16 %v10558, %v10554
  %v10991 = vpack.c.b16 %v10559, %v10555
  %v10992 = vpack.c.b16 %v10560, %v10556
  %v10993 = vpack.c.b16 %v10561, %v10557
  %v10994 = vpack.c.b16 %v10566, %v10562
  %v10995 = vpack.c.b16 %v10567, %v10563
  %v10996 = vpack.c.b16 %v10568, %v10564
  %v10997 = vpack.c.b16 %v10569, %v10565
  %v10998 = vpack.c.b16 %v10574, %v10570
  %v10999 = vpack.c.b16 %v10575, %v10571
  %v11000 = vpack.c.b16 %v10576, %v10572
  %v11001 = vpack.c.b16 %v10577, %v10573
  %v11002 = vpack.c.b16 %v10582, %v10578
  %v11003 = vpack.c.b16 %v10583, %v10579
  %v11004 = vpack.c.b16 %v10584, %v10580
  %v11005 = vpack.c.b16 %v10585, %v10581
  %v11006 = vpack.c.b16 %v10590, %v10586
  %v11007 = vpack.c.b16 %v10591, %v10587
  %v11008 = vpack.c.b16 %v10592, %v10588
  %v11009 = vpack.c.b16 %v10593, %v10589
  %v11010 = vpack.c.b16 %v10598, %v10594
  %v11011 = vpack.c.b16 %v10599, %v10595
  %v11012 = vpack.c.b16 %v10600, %v10596
  %v11013 = vpack.c.b16 %v10601, %v10597
  %v11014 = vpack.c.b16 %v10606, %v10602
  %v11015 = vpack.c.b16 %v10607, %v10603
  %v11016 = vpack.c.b16 %v10608, %v10604
  %v11017 = vpack.c.b16 %v10609, %v10605
  %v11018 = vpack.c.b16 %v10614, %v10610
  %v11019 = vpack.c.b16 %v10615, %v10611
  %v11020 = vpack.c.b16 %v10616, %v10612
  %v11021 = vpack.c.b16 %v10617, %v10613
  %v11022 = vpack.c.b16 %v10622, %v10618
  %v11023 = vpack.c.b16 %v10623, %v10619
  %v11024 = vpack.c.b16 %v10624, %v10620
  %v11025 = vpack.c.b16 %v10625, %v10621
  %v11026 = vpack.c.b16 %v10630, %v10626
  %v11027 = vpack.c.b16 %v10631, %v10627
  %v11028 = vpack.c.b16 %v10632, %v10628
  %v11029 = vpack.c.b16 %v10633, %v10629
  %v11030 = vpack.c.b16 %v10638, %v10634
  %v11031 = vpack.c.b16 %v10639, %v10635
  %v11032 = vpack.c.b16 %v10640, %v10636
  %v11033 = vpack.c.b16 %v10641, %v10637
  %v11034 = vpack.c.b16 %v10646, %v10642
  %v11035 = vpack.c.b16 %v10647, %v10643
  %v11036 = vpack.c.b16 %v10648, %v10644
  %v11037 = vpack.c.b16 %v10649, %v10645
  %v11038 = vpack.c.b16 %v10654, %v10650
  %v11039 = vpack.c.b16 %v10655, %v10651
  %v11040 = vpack.c.b16 %v10656, %v10652
  %v11041 = vpack.c.b16 %v10657, %v10653
  %v11042 = vpack.c.b16 %v10662, %v10658
  %v11043 = vpack.c.b16 %v10663, %v10659
  %v11044 = vpack.c.b16 %v10664, %v10660
  %v11045 = vpack.c.b16 %v10665, %v10661
  %v11046 = vpack.c.b16 %v10670, %v10666
  %v11047 = vpack.c.b16 %v10671, %v10667
  %v11048 = vpack.c.b16 %v10672, %v10668
  %v11049 = vpack.c.b16 %v10673, %v10669
  %v11050 = vpack.c.b16 %v10678, %v10674
  %v11051 = vpack.c.b16 %v10679, %v10675
  %v11052 = vpack.c.b16 %v10680, %v10676
  %v11053 = vpack.c.b16 %v10681, %v10677
  %v11054 = vpack.c.b16 %v10686, %v10682
  %v11055 = vpack.c.b16 %v10687, %v10683
  %v11056 = vpack.c.b16 %v10688, %v10684
  %v11057 = vpack.c.b16 %v10689, %v10685
  %v11058 = vpack.c.b16 %v10694, %v10690
  %v11059 = vpack.c.b16 %v10695, %v10691
  %v11060 = vpack.c.b16 %v10696, %v10692
  %v11061 = vpack.c.b16 %v10697, %v10693
  %v11062 = vpack.c.b16 %v10702, %v10698
  %v11063 = vpack.c.b16 %v10703, %v10699
  %v11064 = vpack.c.b16 %v10704, %v10700
  %v11065 = vpack.c.b16 %v10705, %v10701
  %v11066 = vpack.c.b16 %v10710, %v10706
  %v11067 = vpack.c.b16 %v10711, %v10707
  %v11068 = vpack.c.b16 %v10712, %v10708
  %v11069 = vpack.c.b16 %v10713, %v10709
  %v11070 = vpack.c.b16 %v10718, %v10714
  %v11071 = vpack.c.b16 %v10719, %v10715
  %v11072 = vpack.c.b16 %v10720, %v10716
  %v11073 = vpack.c.b16 %v10721, %v10717
  %v11074 = vpack.c.b16 %v10726, %v10722
  %v11075 = vpack.c.b16 %v10727, %v10723
  %v11076 = vpack.c.b16 %v10728, %v10724
  %v11077 = vpack.c.b16 %v10729, %v10725
  %v11078 = vpack.c.b16 %v10734, %v10730
  %v11079 = vpack.c.b16 %v10735, %v10731
  %v11080 = vpack.c.b16 %v10736, %v10732
  %v11081 = vpack.c.b16 %v10737, %v10733
  %v11082 = vpack.c.b16 %v10742, %v10738
  %v11083 = vpack.c.b16 %v10743, %v10739
  %v11084 = vpack.c.b16 %v10744, %v10740
  %v11085 = vpack.c.b16 %v10745, %v10741
  %v11086 = vpack.c.b16 %v10750, %v10746
  %v11087 = vpack.c.b16 %v10751, %v10747
  %v11088 = vpack.c.b16 %v10752, %v10748
  %v11089 = vpack.c.b16 %v10753, %v10749
  %v11090 = vpack.c.b16 %v10758, %v10754
  %v11091 = vpack.c.b16 %v10759, %v10755
  %v11092 = vpack.c.b16 %v10760, %v10756
  %v11093 = vpack.c.b16 %v10761, %v10757
  %v11094 = vpack.c.b16 %v10766, %v10762
  %v11095 = vpack.c.b16 %v10767, %v10763
  %v11096 = vpack.c.b16 %v10768, %v10764
  %v11097 = vpack.c.b16 %v10769, %v10765
  %v11098 = vpack.c.b16 %v10774, %v10770
  %v11099 = vpack.c.b16 %v10775, %v10771
  %v11100 = vpack.c.b16 %v10776, %v10772
  %v11101 = vpack.c.b16 %v10777, %v10773
  %v11102 = vpack.c.b16 %v10782, %v10778
  %v11103 = vpack.c.b16 %v10783, %v10779
  %v11104 = vpack.c.b16 %v10784, %v10780
  %v11105 = vpack.c.b16 %v10785, %v10781
  %v11106 = vpack.c.b16 %v10790, %v10786
  %v11107 = vpack.c.b16 %v10791, %v10787
  %v11108 = vpack.c.b16 %v10792, %v10788
  %v11109 = vpack.c.b16 %v10793, %v10789
  %v11110 = vpack.c.b16 %v10798, %v10794
  %v11111 = vpack.c.b16 %v10799, %v10795
  %v11112 = vpack.c.b16 %v10800, %v10796
  %v11113 = vpack.c.b16 %v10801, %v10797
  %v11114 = vpack.c.b16 %v10806, %v10802
  %v11115 = vpack.c.b16 %v10807, %v10803
  %v11116 = vpack.c.b16 %v10808, %v10804
  %v11117 = vpack.c.b16 %v10809, %v10805
  %v11118 = vpack.c.b16 %v10814, %v10810
  %v11119 = vpack.c.b16 %v10815, %v10811
  %v11120 = vpack.c.b16 %v10816, %v10812
  %v11121 = vpack.c.b16 %v10817, %v10813
  %v11122 = vpack.c.b16 %v10822, %v10818
  %v11123 = vpack.c.b16 %v10823, %v10819
  %v11124 = vpack.c.b16 %v10824, %v10820
  %v11125 = vpack.c.b16 %v10825, %v10821
  %v11126 = vpack.c.b16 %v10830, %v10826
  %v11127 = vpack.c.b16 %v10831, %v10827
  %v11128 = vpack.c.b16 %v10832, %v10828
  %v11129 = vpack.c.b16 %v10833, %v10829
  %v11130 = vpack.c.b16 %v10838, %v10834
  %v11131 = vpack.c.b16 %v10839, %v10835
  %v11132 = vpack.c.b16 %v10840, %v10836
  %v11133 = vpack.c.b16 %v10841, %v10837
  %v11134 = vpack.c.b16 %v10846, %v10842
  %v11135 = vpack.c.b16 %v10847, %v10843
  %v11136 = vpack.c.b16 %v10848, %v10844
  %v11137 = vpack.c.b16 %v10849, %v10845
  %v11138 = vpack.c.b16 %v10854, %v10850
  %v11139 = vpack.c.b16 %v10855, %v10851
  %v11140 = vpack.c.b16 %v10856, %v10852
  %v11141 = vpack.c.b16 %v10857, %v10853
  %v11142 = vpack.c.b16 %v10862, %v10858
  %v11143 = vpack.c.b16 %v10863, %v10859
  %v11144 = vpack.c.b16 %v10864, %v10860
  %v11145 = vpack.c.b16 %v10865, %v10861
  %v11146 = vpack.c.b16 %v10870, %v10866
  %v11147 = vpack.c.b16 %v10871, %v10867
  %v11148 = vpack.c.b16 %v10872, %v10868
  %v11149 = vpack.c.b16 %v10873, %v10869
  %v11150 = vpack.c.b16 %v10878, %v10874
  %v11151 = vpack.c.b16 %v10879, %v10875
  %v11152 = vpack.c.b16 %v10880, %v10876
  %v11153 = vpack.c.b16 %v10881, %v10877
  %v11154 = vpack.c.b16 %v10886, %v10882
  %v11155 = vpack.c.b16 %v10887, %v10883
  %v11156 = vpack.c.b16 %v10888, %v10884
  %v11157 = vpack.c.b16 %v10889, %v10885
  %v11158 = vpack.c.b16 %v10894, %v10890
  %v11159 = vpack.c.b16 %v10895, %v10891
  %v11160 = vpack.c.b16 %v10896, %v10892
  %v11161 = vpack.c.b16 %v10897, %v10893
  %v11162 = vpack.c.b16 %v10902, %v10898
  %v11163 = vpack.c.b16 %v10903, %v10899
  %v11164 = vpack.c.b16 %v10904, %v10900
  %v11165 = vpack.c.b16 %v10905, %v10901
  %v11166 = vpack.c.b16 %v10910, %v10906
  %v11167 = vpack.c.b16 %v10911, %v10907
  %v11168 = vpack.c.b16 %v10912, %v10908
  %v11169 = vpack.c.b16 %v10913, %v10909
  %11426 = vmatprep.subr.bf16.mxu0 %v10915
  %11427 = vmatpush1.bf16.msra.mxu0 %v10914
  %11428 = vmatprep.subr.bf16.mxu0 %v10919
  %11429 = vmatpush1.bf16.msra.mxu0 %v10918
  %11430 = vmatprep.subr.bf16.mxu0 %v10923
  %11431 = vmatpush1.bf16.msra.mxu0 %v10922
  %11432 = vmatprep.subr.bf16.mxu0 %v10927
  %11433 = vmatpush1.bf16.msra.mxu0 %v10926
  %11434 = vmatprep.subr.bf16.mxu0 %v10931
  %11435 = vmatpush1.bf16.msra.mxu0 %v10930
  %11436 = vmatprep.subr.bf16.mxu0 %v10935
  %11437 = vmatpush1.bf16.msra.mxu0 %v10934
  %11438 = vmatprep.subr.bf16.mxu0 %v10939
  %11439 = vmatpush1.bf16.msra.mxu0 %v10938
  %11440 = vmatprep.subr.bf16.mxu0 %v10943
  %11441 = vmatpush1.bf16.msra.mxu0 %v10942
  %11442 = vmatprep.subr.bf16.mxu0 %v10947
  %11443 = vmatpush1.bf16.msra.mxu0 %v10946
  %11444 = vmatprep.subr.bf16.mxu0 %v10951
  %11445 = vmatpush1.bf16.msra.mxu0 %v10950
  %11446 = vmatprep.subr.bf16.mxu0 %v10955
  %11447 = vmatpush1.bf16.msra.mxu0 %v10954
  %11448 = vmatprep.subr.bf16.mxu0 %v10959
  %11449 = vmatpush1.bf16.msra.mxu0 %v10958
  %11450 = vmatprep.subr.bf16.mxu0 %v10963
  %11451 = vmatpush1.bf16.msra.mxu0 %v10962
  %11452 = vmatprep.subr.bf16.mxu0 %v10967
  %11453 = vmatpush1.bf16.msra.mxu0 %v10966
  %11454 = vmatprep.subr.bf16.mxu0 %v10971
  %11455 = vmatpush1.bf16.msra.mxu0 %v10970
  %11456 = vmatprep.subr.bf16.mxu0 %v10975
  %11457 = vmatpush1.bf16.msra.mxu0 %v10974
  %11458 = vmatprep.mubr.bf16.mxu0 %v9861
  %11459 = vmatmul.mubr.bf16.gmra.mrb[0].mxu0 %v9860
  %v11460 = vpop.f32.mrb[0].mxu0
  %v11461 = vadd.f32 %v10129, %v11460
  %v11462 = vpop.f32.mrb[0].mxu0
  %v11463 = vadd.f32 %v10133, %v11462
  %v11464 = vpop.f32.mrb[0].mxu0
  %v11465 = vadd.f32 %v10129, %v11464
  %v11466 = vpop.f32.mrb[0].mxu0
  %v11467 = vadd.f32 %v10133, %v11466
  %11468 = vdwg.mxu0
  %11469 = vmatprep.subr.bf16.mxu0 %v10979
  %11470 = vmatpush1.bf16.msra.mxu0 %v10978
  %11471 = vmatprep.subr.bf16.mxu0 %v10983
  %11472 = vmatpush1.bf16.msra.mxu0 %v10982
  %11473 = vmatprep.subr.bf16.mxu0 %v10987
  %11474 = vmatpush1.bf16.msra.mxu0 %v10986
  %11475 = vmatprep.subr.bf16.mxu0 %v10991
  %11476 = vmatpush1.bf16.msra.mxu0 %v10990
  %11477 = vmatprep.subr.bf16.mxu0 %v10995
  %11478 = vmatpush1.bf16.msra.mxu0 %v10994
  %11479 = vmatprep.subr.bf16.mxu0 %v10999
  %11480 = vmatpush1.bf16.msra.mxu0 %v10998
  %11481 = vmatprep.subr.bf16.mxu0 %v11003
  %11482 = vmatpush1.bf16.msra.mxu0 %v11002
  %11483 = vmatprep.subr.bf16.mxu0 %v11007
  %11484 = vmatpush1.bf16.msra.mxu0 %v11006
  %11485 = vmatprep.subr.bf16.mxu0 %v11011
  %11486 = vmatpush1.bf16.msra.mxu0 %v11010
  %11487 = vmatprep.subr.bf16.mxu0 %v11015
  %11488 = vmatpush1.bf16.msra.mxu0 %v11014
  %11489 = vmatprep.subr.bf16.mxu0 %v11019
  %11490 = vmatpush1.bf16.msra.mxu0 %v11018
  %11491 = vmatprep.subr.bf16.mxu0 %v11023
  %11492 = vmatpush1.bf16.msra.mxu0 %v11022
  %11493 = vmatprep.subr.bf16.mxu0 %v11027
  %11494 = vmatpush1.bf16.msra.mxu0 %v11026
  %11495 = vmatprep.subr.bf16.mxu0 %v11031
  %11496 = vmatpush1.bf16.msra.mxu0 %v11030
  %11497 = vmatprep.subr.bf16.mxu0 %v11035
  %11498 = vmatpush1.bf16.msra.mxu0 %v11034
  %11499 = vmatprep.subr.bf16.mxu0 %v11039
  %11500 = vmatpush1.bf16.msra.mxu0 %v11038
  %11501 = vmatprep.mubr.bf16.mxu0 %v9863
  %11502 = vmatmul.mubr.bf16.gmra.mrb[0].mxu0 %v9862
  %v11503 = vpop.f32.mrb[0].mxu0
  %v11504 = vadd.f32 %v11461, %v11503
  %v11505 = vpop.f32.mrb[0].mxu0
  %v11506 = vadd.f32 %v11463, %v11505
  %v11507 = vpop.f32.mrb[0].mxu0
  %v11508 = vadd.f32 %v11465, %v11507
  %v11509 = vpop.f32.mrb[0].mxu0
  %v11510 = vadd.f32 %v11467, %v11509
  %11511 = vdwg.mxu0
  %11512 = vmatprep.subr.bf16.mxu0 %v11043
  %11513 = vmatpush1.bf16.msra.mxu0 %v11042
  %11514 = vmatprep.subr.bf16.mxu0 %v11047
  %11515 = vmatpush1.bf16.msra.mxu0 %v11046
  %11516 = vmatprep.subr.bf16.mxu0 %v11051
  %11517 = vmatpush1.bf16.msra.mxu0 %v11050
  %11518 = vmatprep.subr.bf16.mxu0 %v11055
  %11519 = vmatpush1.bf16.msra.mxu0 %v11054
  %11520 = vmatprep.subr.bf16.mxu0 %v11059
  %11521 = vmatpush1.bf16.msra.mxu0 %v11058
  %11522 = vmatprep.subr.bf16.mxu0 %v11063
  %11523 = vmatpush1.bf16.msra.mxu0 %v11062
  %11524 = vmatprep.subr.bf16.mxu0 %v11067
  %11525 = vmatpush1.bf16.msra.mxu0 %v11066
  %11526 = vmatprep.subr.bf16.mxu0 %v11071
  %11527 = vmatpush1.bf16.msra.mxu0 %v11070
  %11528 = vmatprep.subr.bf16.mxu0 %v11075
  %11529 = vmatpush1.bf16.msra.mxu0 %v11074
  %11530 = vmatprep.subr.bf16.mxu0 %v11079
  %11531 = vmatpush1.bf16.msra.mxu0 %v11078
  %11532 = vmatprep.subr.bf16.mxu0 %v11083
  %11533 = vmatpush1.bf16.msra.mxu0 %v11082
  %11534 = vmatprep.subr.bf16.mxu0 %v11087
  %11535 = vmatpush1.bf16.msra.mxu0 %v11086
  %11536 = vmatprep.subr.bf16.mxu0 %v11091
  %11537 = vmatpush1.bf16.msra.mxu0 %v11090
  %11538 = vmatprep.subr.bf16.mxu0 %v11095
  %11539 = vmatpush1.bf16.msra.mxu0 %v11094
  %11540 = vmatprep.subr.bf16.mxu0 %v11099
  %11541 = vmatpush1.bf16.msra.mxu0 %v11098
  %11542 = vmatprep.subr.bf16.mxu0 %v11103
  %11543 = vmatpush1.bf16.msra.mxu0 %v11102
  %11544 = vmatprep.mubr.bf16.mxu0 %v9865
  %11545 = vmatmul.mubr.bf16.gmra.mrb[0].mxu0 %v9864
  %v11546 = vpop.f32.mrb[0].mxu0
  %v11547 = vadd.f32 %v11504, %v11546
  %v11548 = vpop.f32.mrb[0].mxu0
  %v11549 = vadd.f32 %v11506, %v11548
  %v11550 = vpop.f32.mrb[0].mxu0
  %v11551 = vadd.f32 %v11508, %v11550
  %v11552 = vpop.f32.mrb[0].mxu0
  %v11553 = vadd.f32 %v11510, %v11552
  %11554 = vdwg.mxu0
  %11555 = vmatprep.subr.bf16.mxu0 %v11107
  %11556 = vmatpush1.bf16.msra.mxu0 %v11106
  %11557 = vmatprep.subr.bf16.mxu0 %v11111
  %11558 = vmatpush1.bf16.msra.mxu0 %v11110
  %11559 = vmatprep.subr.bf16.mxu0 %v11115
  %11560 = vmatpush1.bf16.msra.mxu0 %v11114
  %11561 = vmatprep.subr.bf16.mxu0 %v11119
  %11562 = vmatpush1.bf16.msra.mxu0 %v11118
  %11563 = vmatprep.subr.bf16.mxu0 %v11123
  %11564 = vmatpush1.bf16.msra.mxu0 %v11122
  %11565 = vmatprep.subr.bf16.mxu0 %v11127
  %11566 = vmatpush1.bf16.msra.mxu0 %v11126
  %11567 = vmatprep.subr.bf16.mxu0 %v11131
  %11568 = vmatpush1.bf16.msra.mxu0 %v11130
  %11569 = vmatprep.subr.bf16.mxu0 %v11135
  %11570 = vmatpush1.bf16.msra.mxu0 %v11134
  %11571 = vmatprep.subr.bf16.mxu0 %v11139
  %11572 = vmatpush1.bf16.msra.mxu0 %v11138
  %11573 = vmatprep.subr.bf16.mxu0 %v11143
  %11574 = vmatpush1.bf16.msra.mxu0 %v11142
  %11575 = vmatprep.subr.bf16.mxu0 %v11147
  %11576 = vmatpush1.bf16.msra.mxu0 %v11146
  %11577 = vmatprep.subr.bf16.mxu0 %v11151
  %11578 = vmatpush1.bf16.msra.mxu0 %v11150
  %11579 = vmatprep.subr.bf16.mxu0 %v11155
  %11580 = vmatpush1.bf16.msra.mxu0 %v11154
  %11581 = vmatprep.subr.bf16.mxu0 %v11159
  %11582 = vmatpush1.bf16.msra.mxu0 %v11158
  %11583 = vmatprep.subr.bf16.mxu0 %v11163
  %11584 = vmatpush1.bf16.msra.mxu0 %v11162
  %11585 = vmatprep.subr.bf16.mxu0 %v11167
  %11586 = vmatpush1.bf16.msra.mxu0 %v11166
  %11587 = vmatprep.mubr.bf16.mxu0 %v9867
  %11588 = vmatmul.mubr.bf16.gmra.mrb[0].mxu0 %v9866
  %v11589 = vpop.f32.mrb[0].mxu0
  %v11590 = vadd.f32 %v11547, %v11589
  %v11591 = vpop.f32.mrb[0].mxu0
  %v11592 = vadd.f32 %v11549, %v11591
  %v11593 = vpop.f32.mrb[0].mxu0
  %v11594 = vadd.f32 %v11551, %v11593
  %v11595 = vpop.f32.mrb[0].mxu0
  %v11596 = vadd.f32 %v11553, %v11595
  %11597 = vdwg.mxu0
  %11598 = vmatprep.subr.bf16.mxu0 %v10917
  %11599 = vmatpush1.bf16.msra.mxu0 %v10916
  %11600 = vmatprep.subr.bf16.mxu0 %v10921
  %11601 = vmatpush1.bf16.msra.mxu0 %v10920
  %11602 = vmatprep.subr.bf16.mxu0 %v10925
  %11603 = vmatpush1.bf16.msra.mxu0 %v10924
  %11604 = vmatprep.subr.bf16.mxu0 %v10929
  %11605 = vmatpush1.bf16.msra.mxu0 %v10928
  %11606 = vmatprep.subr.bf16.mxu0 %v10933
  %11607 = vmatpush1.bf16.msra.mxu0 %v10932
  %11608 = vmatprep.subr.bf16.mxu0 %v10937
  %11609 = vmatpush1.bf16.msra.mxu0 %v10936
  %11610 = vmatprep.subr.bf16.mxu0 %v10941
  %11611 = vmatpush1.bf16.msra.mxu0 %v10940
  %11612 = vmatprep.subr.bf16.mxu0 %v10945
  %11613 = vmatpush1.bf16.msra.mxu0 %v10944
  %11614 = vmatprep.subr.bf16.mxu0 %v10949
  %11615 = vmatpush1.bf16.msra.mxu0 %v10948
  %11616 = vmatprep.subr.bf16.mxu0 %v10953
  %11617 = vmatpush1.bf16.msra.mxu0 %v10952
  %11618 = vmatprep.subr.bf16.mxu0 %v10957
  %11619 = vmatpush1.bf16.msra.mxu0 %v10956
  %11620 = vmatprep.subr.bf16.mxu0 %v10961
  %11621 = vmatpush1.bf16.msra.mxu0 %v10960
  %11622 = vmatprep.subr.bf16.mxu0 %v10965
  %11623 = vmatpush1.bf16.msra.mxu0 %v10964
  %11624 = vmatprep.subr.bf16.mxu0 %v10969
  %11625 = vmatpush1.bf16.msra.mxu0 %v10968
  %11626 = vmatprep.subr.bf16.mxu0 %v10973
  %11627 = vmatpush1.bf16.msra.mxu0 %v10972
  %11628 = vmatprep.subr.bf16.mxu0 %v10977
  %11629 = vmatpush1.bf16.msra.mxu0 %v10976
  %11630 = vmatprep.mubr.bf16.mxu0 %v9861
  %11631 = vmatmul.mubr.bf16.gmra.mrb[0].mxu0 %v9860
  %v11632 = vpop.f32.mrb[0].mxu0
  %v11633 = vadd.f32 %v10137, %v11632
  %v11634 = vpop.f32.mrb[0].mxu0
  %v11635 = vadd.f32 %v10141, %v11634
  %v11636 = vpop.f32.mrb[0].mxu0
  %v11637 = vadd.f32 %v10137, %v11636
  %v11638 = vpop.f32.mrb[0].mxu0
  %v11639 = vadd.f32 %v10141, %v11638
  %11640 = vdwg.mxu0
  %11641 = vmatprep.subr.bf16.mxu0 %v10981
  %11642 = vmatpush1.bf16.msra.mxu0 %v10980
  %11643 = vmatprep.subr.bf16.mxu0 %v10985
  %11644 = vmatpush1.bf16.msra.mxu0 %v10984
  %11645 = vmatprep.subr.bf16.mxu0 %v10989
  %11646 = vmatpush1.bf16.msra.mxu0 %v10988
  %11647 = vmatprep.subr.bf16.mxu0 %v10993
  %11648 = vmatpush1.bf16.msra.mxu0 %v10992
  %11649 = vmatprep.subr.bf16.mxu0 %v10997
  %11650 = vmatpush1.bf16.msra.mxu0 %v10996
  %11651 = vmatprep.subr.bf16.mxu0 %v11001
  %11652 = vmatpush1.bf16.msra.mxu0 %v11000
  %11653 = vmatprep.subr.bf16.mxu0 %v11005
  %11654 = vmatpush1.bf16.msra.mxu0 %v11004
  %11655 = vmatprep.subr.bf16.mxu0 %v11009
  %11656 = vmatpush1.bf16.msra.mxu0 %v11008
  %11657 = vmatprep.subr.bf16.mxu0 %v11013
  %11658 = vmatpush1.bf16.msra.mxu0 %v11012
  %11659 = vmatprep.subr.bf16.mxu0 %v11017
  %11660 = vmatpush1.bf16.msra.mxu0 %v11016
  %11661 = vmatprep.subr.bf16.mxu0 %v11021
  %11662 = vmatpush1.bf16.msra.mxu0 %v11020
  %11663 = vmatprep.subr.bf16.mxu0 %v11025
  %11664 = vmatpush1.bf16.msra.mxu0 %v11024
  %11665 = vmatprep.subr.bf16.mxu0 %v11029
  %11666 = vmatpush1.bf16.msra.mxu0 %v11028
  %11667 = vmatprep.subr.bf16.mxu0 %v11033
  %11668 = vmatpush1.bf16.msra.mxu0 %v11032
  %11669 = vmatprep.subr.bf16.mxu0 %v11037
  %11670 = vmatpush1.bf16.msra.mxu0 %v11036
  %11671 = vmatprep.subr.bf16.mxu0 %v11041
  %11672 = vmatpush1.bf16.msra.mxu0 %v11040
  %11673 = vmatprep.mubr.bf16.mxu0 %v9863
  %11674 = vmatmul.mubr.bf16.gmra.mrb[0].mxu0 %v9862
  %v11675 = vpop.f32.mrb[0].mxu0
  %v11676 = vadd.f32 %v11633, %v11675
  %v11677 = vpop.f32.mrb[0].mxu0
  %v11678 = vadd.f32 %v11635, %v11677
  %v11679 = vpop.f32.mrb[0].mxu0
  %v11680 = vadd.f32 %v11637, %v11679
  %v11681 = vpop.f32.mrb[0].mxu0
  %v11682 = vadd.f32 %v11639, %v11681
  %11683 = vdwg.mxu0
  %11684 = vmatprep.subr.bf16.mxu0 %v11045
  %11685 = vmatpush1.bf16.msra.mxu0 %v11044
  %11686 = vmatprep.subr.bf16.mxu0 %v11049
  %11687 = vmatpush1.bf16.msra.mxu0 %v11048
  %11688 = vmatprep.subr.bf16.mxu0 %v11053
  %11689 = vmatpush1.bf16.msra.mxu0 %v11052
  %11690 = vmatprep.subr.bf16.mxu0 %v11057
  %11691 = vmatpush1.bf16.msra.mxu0 %v11056
  %11692 = vmatprep.subr.bf16.mxu0 %v11061
  %11693 = vmatpush1.bf16.msra.mxu0 %v11060
  %11694 = vmatprep.subr.bf16.mxu0 %v11065
  %11695 = vmatpush1.bf16.msra.mxu0 %v11064
  %11696 = vmatprep.subr.bf16.mxu0 %v11069
  %11697 = vmatpush1.bf16.msra.mxu0 %v11068
  %11698 = vmatprep.subr.bf16.mxu0 %v11073
  %11699 = vmatpush1.bf16.msra.mxu0 %v11072
  %11700 = vmatprep.subr.bf16.mxu0 %v11077
  %11701 = vmatpush1.bf16.msra.mxu0 %v11076
  %11702 = vmatprep.subr.bf16.mxu0 %v11081
  %11703 = vmatpush1.bf16.msra.mxu0 %v11080
  %11704 = vmatprep.subr.bf16.mxu0 %v11085
  %11705 = vmatpush1.bf16.msra.mxu0 %v11084
  %11706 = vmatprep.subr.bf16.mxu0 %v11089
  %11707 = vmatpush1.bf16.msra.mxu0 %v11088
  %11708 = vmatprep.subr.bf16.mxu0 %v11093
  %11709 = vmatpush1.bf16.msra.mxu0 %v11092
  %11710 = vmatprep.subr.bf16.mxu0 %v11097
  %11711 = vmatpush1.bf16.msra.mxu0 %v11096
  %11712 = vmatprep.subr.bf16.mxu0 %v11101
  %11713 = vmatpush1.bf16.msra.mxu0 %v11100
  %11714 = vmatprep.subr.bf16.mxu0 %v11105
  %11715 = vmatpush1.bf16.msra.mxu0 %v11104
  %11716 = vmatprep.mubr.bf16.mxu0 %v9865
  %11717 = vmatmul.mubr.bf16.gmra.mrb[0].mxu0 %v9864
  %v11718 = vpop.f32.mrb[0].mxu0
  %v11719 = vadd.f32 %v11676, %v11718
  %v11720 = vpop.f32.mrb[0].mxu0
  %v11721 = vadd.f32 %v11678, %v11720
  %v11722 = vpop.f32.mrb[0].mxu0
  %v11723 = vadd.f32 %v11680, %v11722
  %v11724 = vpop.f32.mrb[0].mxu0
  %v11725 = vadd.f32 %v11682, %v11724
  %11726 = vdwg.mxu0
  %11727 = vmatprep.subr.bf16.mxu0 %v11109
  %11728 = vmatpush1.bf16.msra.mxu0 %v11108
  %11729 = vmatprep.subr.bf16.mxu0 %v11113
  %11730 = vmatpush1.bf16.msra.mxu0 %v11112
  %11731 = vmatprep.subr.bf16.mxu0 %v11117
  %11732 = vmatpush1.bf16.msra.mxu0 %v11116
  %11733 = vmatprep.subr.bf16.mxu0 %v11121
  %11734 = vmatpush1.bf16.msra.mxu0 %v11120
  %11735 = vmatprep.subr.bf16.mxu0 %v11125
  %11736 = vmatpush1.bf16.msra.mxu0 %v11124
  %11737 = vmatprep.subr.bf16.mxu0 %v11129
  %11738 = vmatpush1.bf16.msra.mxu0 %v11128
  %11739 = vmatprep.subr.bf16.mxu0 %v11133
  %11740 = vmatpush1.bf16.msra.mxu0 %v11132
  %11741 = vmatprep.subr.bf16.mxu0 %v11137
  %11742 = vmatpush1.bf16.msra.mxu0 %v11136
  %11743 = vmatprep.subr.bf16.mxu0 %v11141
  %11744 = vmatpush1.bf16.msra.mxu0 %v11140
  %11745 = vmatprep.subr.bf16.mxu0 %v11145
  %11746 = vmatpush1.bf16.msra.mxu0 %v11144
  %11747 = vmatprep.subr.bf16.mxu0 %v11149
  %11748 = vmatpush1.bf16.msra.mxu0 %v11148
  %11749 = vmatprep.subr.bf16.mxu0 %v11153
  %11750 = vmatpush1.bf16.msra.mxu0 %v11152
  %11751 = vmatprep.subr.bf16.mxu0 %v11157
  %11752 = vmatpush1.bf16.msra.mxu0 %v11156
  %11753 = vmatprep.subr.bf16.mxu0 %v11161
  %11754 = vmatpush1.bf16.msra.mxu0 %v11160
  %11755 = vmatprep.subr.bf16.mxu0 %v11165
  %11756 = vmatpush1.bf16.msra.mxu0 %v11164
  %11757 = vmatprep.subr.bf16.mxu0 %v11169
  %11758 = vmatpush1.bf16.msra.mxu0 %v11168
  %11759 = vmatprep.mubr.bf16.mxu0 %v9867
  %11760 = vmatmul.mubr.bf16.gmra.mrb[0].mxu0 %v9866
  %v11761 = vpop.f32.mrb[0].mxu0
  %v11762 = vadd.f32 %v11719, %v11761
  %v11763 = vpop.f32.mrb[0].mxu0
  %v11764 = vadd.f32 %v11721, %v11763
  %v11765 = vpop.f32.mrb[0].mxu0
  %v11766 = vadd.f32 %v11723, %v11765
  %v11767 = vpop.f32.mrb[0].mxu0
  %v11768 = vadd.f32 %v11725, %v11767
  %11769 = vdwg.mxu0
  %s11770 = smul.u32 0, 16
  %s11771 = sshra.s32 %s11770, 3
  %s11772 = sand.u32 %s11770, 7
  %s11773 = smul.u32 %s11771, 4
  %s11774 = smul.addr %s11773, 8
  %s11775 = scalar_lea.vmem [#allocation2], %s11774
  %11776 = vst [vmem:[%s11775] sm:$0xff] %v11590
  %11777 = vst [vmem:[%s11775 + $0x8] sm:$0xff] %v11592
  %11778 = vst [vmem:[%s11775 + $0x10] sm:$0xff] %v11762
  %11779 = vst [vmem:[%s11775 + $0x18] sm:$0xff] %v11764
  %11780 = vst [vmem:[%s11775 + $0x20] sm:$0xff] %v11594
  %11781 = vst [vmem:[%s11775 + $0x28] sm:$0xff] %v11596
  %11782 = vst [vmem:[%s11775 + $0x30] sm:$0xff] %v11766
  %11783 = vst [vmem:[%s11775 + $0x38] sm:$0xff] %v11768
  %p11784 = scmp.eq.s32.totalorder 0, 0
  // Predicated region
  $region74: #{forward.1} parent=0 // pred_check
    %p11785 = pneg %p11784
  $region75: #{forward.1} parent=0 // pred_check_branch
    %11787 = sbr.rel (%p11785) target = $region77
  $region76: #{forward.1} parent=0 // pred_region
    %v11788 = vld [vmem:[#allocation2] sm:$0xff]
    %v11789 = vld [vmem:[#allocation2 + $0x8] sm:$0xff]
    %v11790 = vld [vmem:[#allocation2 + $0x10] sm:$0xff]
    %v11791 = vld [vmem:[#allocation2 + $0x18] sm:$0xff]
    %v11792 = vld [vmem:[#allocation2 + $0x20] sm:$0xff]
    %v11793 = vld [vmem:[#allocation2 + $0x28] sm:$0xff]
    %v11794 = vld [vmem:[#allocation2 + $0x30] sm:$0xff]
    %v11795 = vld [vmem:[#allocation2 + $0x38] sm:$0xff]
    %v11796 = vpack.c.bf16 %v11792, %v11788
    %v11797 = vpack.c.bf16 %v11793, %v11789
    %v11798 = vpack.c.bf16 %v11794, %v11790
    %v11799 = vpack.c.bf16 %v11795, %v11791
    %v11800 = vld [vmem:[%s10] sm:$0xf]
    %v11801 = vld [vmem:[%s10 + $0x4] sm:$0xf]
    %v11802 = vld [vmem:[%s10 + $0x8] sm:$0xf]
    %v11803 = vld [vmem:[%s10 + $0xc] sm:$0xf]
    %v11804 = vld [vmem:[%s10 + $0x10] sm:$0xf]
    %v11805 = vld [vmem:[%s10 + $0x14] sm:$0xf]
    %v11806 = vld [vmem:[%s10 + $0x18] sm:$0xf]
    %v11807 = vld [vmem:[%s10 + $0x1c] sm:$0xf]
    %v11808 = vld [vmem:[%s10 + $0x20] sm:$0xf]
    %v11809 = vld [vmem:[%s10 + $0x24] sm:$0xf]
    %v11810 = vld [vmem:[%s10 + $0x28] sm:$0xf]
    %v11811 = vld [vmem:[%s10 + $0x2c] sm:$0xf]
    %v11812 = vld [vmem:[%s10 + $0x30] sm:$0xf]
    %v11813 = vld [vmem:[%s10 + $0x34] sm:$0xf]
    %v11814 = vld [vmem:[%s10 + $0x38] sm:$0xf]
    %v11815 = vld [vmem:[%s10 + $0x3c] sm:$0xf]
    %v11816 = vld [vmem:[%s10 + $0x40] sm:$0xf]
    %v11817 = vld [vmem:[%s10 + $0x44] sm:$0xf]
    %v11818 = vld [vmem:[%s10 + $0x48] sm:$0xf]
    %v11819 = vld [vmem:[%s10 + $0x4c] sm:$0xf]
    %v11820 = vld [vmem:[%s10 + $0x50] sm:$0xf]
    %v11821 = vld [vmem:[%s10 + $0x54] sm:$0xf]
    %v11822 = vld [vmem:[%s10 + $0x58] sm:$0xf]
    %v11823 = vld [vmem:[%s10 + $0x5c] sm:$0xf]
    %v11824 = vld [vmem:[%s10 + $0x60] sm:$0xf]
    %v11825 = vld [vmem:[%s10 + $0x64] sm:$0xf]
    %v11826 = vld [vmem:[%s10 + $0x68] sm:$0xf]
    %v11827 = vld [vmem:[%s10 + $0x6c] sm:$0xf]
    %v11828 = vld [vmem:[%s10 + $0x70] sm:$0xf]
    %v11829 = vld [vmem:[%s10 + $0x74] sm:$0xf]
    %v11830 = vld [vmem:[%s10 + $0x78] sm:$0xf]
    %v11831 = vld [vmem:[%s10 + $0x7c] sm:$0xf]
    %v11832 = vld [vmem:[%s10 + $0x80] sm:$0xf]
    %v11833 = vld [vmem:[%s10 + $0x84] sm:$0xf]
    %v11834 = vld [vmem:[%s10 + $0x88] sm:$0xf]
    %v11835 = vld [vmem:[%s10 + $0x8c] sm:$0xf]
    %v11836 = vld [vmem:[%s10 + $0x90] sm:$0xf]
    %v11837 = vld [vmem:[%s10 + $0x94] sm:$0xf]
    %v11838 = vld [vmem:[%s10 + $0x98] sm:$0xf]
    %v11839 = vld [vmem:[%s10 + $0x9c] sm:$0xf]
    %v11840 = vld [vmem:[%s10 + $0xa0] sm:$0xf]
    %v11841 = vld [vmem:[%s10 + $0xa4] sm:$0xf]
    %v11842 = vld [vmem:[%s10 + $0xa8] sm:$0xf]
    %v11843 = vld [vmem:[%s10 + $0xac] sm:$0xf]
    %v11844 = vld [vmem:[%s10 + $0xb0] sm:$0xf]
    %v11845 = vld [vmem:[%s10 + $0xb4] sm:$0xf]
    %v11846 = vld [vmem:[%s10 + $0xb8] sm:$0xf]
    %v11847 = vld [vmem:[%s10 + $0xbc] sm:$0xf]
    %v11848 = vld [vmem:[%s10 + $0xc0] sm:$0xf]
    %v11849 = vld [vmem:[%s10 + $0xc4] sm:$0xf]
    %v11850 = vld [vmem:[%s10 + $0xc8] sm:$0xf]
    %v11851 = vld [vmem:[%s10 + $0xcc] sm:$0xf]
    %v11852 = vld [vmem:[%s10 + $0xd0] sm:$0xf]
    %v11853 = vld [vmem:[%s10 + $0xd4] sm:$0xf]
    %v11854 = vld [vmem:[%s10 + $0xd8] sm:$0xf]
    %v11855 = vld [vmem:[%s10 + $0xdc] sm:$0xf]
    %v11856 = vld [vmem:[%s10 + $0xe0] sm:$0xf]
    %v11857 = vld [vmem:[%s10 + $0xe4] sm:$0xf]
    %v11858 = vld [vmem:[%s10 + $0xe8] sm:$0xf]
    %v11859 = vld [vmem:[%s10 + $0xec] sm:$0xf]
    %v11860 = vld [vmem:[%s10 + $0xf0] sm:$0xf]
    %v11861 = vld [vmem:[%s10 + $0xf4] sm:$0xf]
    %v11862 = vld [vmem:[%s10 + $0xf8] sm:$0xf]
    %v11863 = vld [vmem:[%s10 + $0xfc] sm:$0xf]
    %v11864 = vld [vmem:[%s11] sm:$0x1]
    %v11866 = vlaneseq
    %v11867 = vshrl.u32 %v11866, 7
    %v11868 = vsub.s32 0, %v11867
    %v11869 = vrot.slane %v11864, %v11868
    %v11935 = vunpack.c.l.b16 %v11800
    %v11936 = vunpack.c.l.b16 %v11801
    %v11937 = vunpack.c.l.b16 %v11802
    %v11938 = vunpack.c.l.b16 %v11803
    %v11939 = vunpack.c.l.b16 %v11804
    %v11940 = vunpack.c.l.b16 %v11805
    %v11941 = vunpack.c.l.b16 %v11806
    %v11942 = vunpack.c.l.b16 %v11807
    %v11943 = vunpack.c.l.b16 %v11808
    %v11944 = vunpack.c.l.b16 %v11809
    %v11945 = vunpack.c.l.b16 %v11810
    %v11946 = vunpack.c.l.b16 %v11811
    %v11947 = vunpack.c.l.b16 %v11812
    %v11948 = vunpack.c.l.b16 %v11813
    %v11949 = vunpack.c.l.b16 %v11814
    %v11950 = vunpack.c.l.b16 %v11815
    %v11951 = vunpack.c.l.b16 %v11816
    %v11952 = vunpack.c.l.b16 %v11817
    %v11953 = vunpack.c.l.b16 %v11818
    %v11954 = vunpack.c.l.b16 %v11819
    %v11955 = vunpack.c.l.b16 %v11820
    %v11956 = vunpack.c.l.b16 %v11821
    %v11957 = vunpack.c.l.b16 %v11822
    %v11958 = vunpack.c.l.b16 %v11823
    %v11959 = vunpack.c.l.b16 %v11824
    %v11960 = vunpack.c.l.b16 %v11825
    %v11961 = vunpack.c.l.b16 %v11826
    %v11962 = vunpack.c.l.b16 %v11827
    %v11963 = vunpack.c.l.b16 %v11828
    %v11964 = vunpack.c.l.b16 %v11829
    %v11965 = vunpack.c.l.b16 %v11830
    %v11966 = vunpack.c.l.b16 %v11831
    %v11967 = vunpack.c.l.b16 %v11832
    %v11968 = vunpack.c.l.b16 %v11833
    %v11969 = vunpack.c.l.b16 %v11834
    %v11970 = vunpack.c.l.b16 %v11835
    %v11971 = vunpack.c.l.b16 %v11836
    %v11972 = vunpack.c.l.b16 %v11837
    %v11973 = vunpack.c.l.b16 %v11838
    %v11974 = vunpack.c.l.b16 %v11839
    %v11975 = vunpack.c.l.b16 %v11840
    %v11976 = vunpack.c.l.b16 %v11841
    %v11977 = vunpack.c.l.b16 %v11842
    %v11978 = vunpack.c.l.b16 %v11843
    %v11979 = vunpack.c.l.b16 %v11844
    %v11980 = vunpack.c.l.b16 %v11845
    %v11981 = vunpack.c.l.b16 %v11846
    %v11982 = vunpack.c.l.b16 %v11847
    %v11983 = vunpack.c.l.b16 %v11848
    %v11984 = vunpack.c.l.b16 %v11849
    %v11985 = vunpack.c.l.b16 %v11850
    %v11986 = vunpack.c.l.b16 %v11851
    %v11987 = vunpack.c.l.b16 %v11852
    %v11988 = vunpack.c.l.b16 %v11853
    %v11989 = vunpack.c.l.b16 %v11854
    %v11990 = vunpack.c.l.b16 %v11855
    %v11991 = vunpack.c.l.b16 %v11856
    %v11992 = vunpack.c.l.b16 %v11857
    %v11993 = vunpack.c.l.b16 %v11858
    %v11994 = vunpack.c.l.b16 %v11859
    %v11995 = vunpack.c.l.b16 %v11860
    %v11996 = vunpack.c.l.b16 %v11861
    %v11997 = vunpack.c.l.b16 %v11862
    %v11998 = vunpack.c.l.b16 %v11863
    %v11999 = vpack.c.b16 %v11936, %v11935
    %v12000 = vpack.c.b16 %v11938, %v11937
    %v12001 = vpack.c.b16 %v11940, %v11939
    %v12002 = vpack.c.b16 %v11942, %v11941
    %v12003 = vpack.c.b16 %v11944, %v11943
    %v12004 = vpack.c.b16 %v11946, %v11945
    %v12005 = vpack.c.b16 %v11948, %v11947
    %v12006 = vpack.c.b16 %v11950, %v11949
    %v12007 = vpack.c.b16 %v11952, %v11951
    %v12008 = vpack.c.b16 %v11954, %v11953
    %v12009 = vpack.c.b16 %v11956, %v11955
    %v12010 = vpack.c.b16 %v11958, %v11957
    %v12011 = vpack.c.b16 %v11960, %v11959
    %v12012 = vpack.c.b16 %v11962, %v11961
    %v12013 = vpack.c.b16 %v11964, %v11963
    %v12014 = vpack.c.b16 %v11966, %v11965
    %v12015 = vpack.c.b16 %v11968, %v11967
    %v12016 = vpack.c.b16 %v11970, %v11969
    %v12017 = vpack.c.b16 %v11972, %v11971
    %v12018 = vpack.c.b16 %v11974, %v11973
    %v12019 = vpack.c.b16 %v11976, %v11975
    %v12020 = vpack.c.b16 %v11978, %v11977
    %v12021 = vpack.c.b16 %v11980, %v11979
    %v12022 = vpack.c.b16 %v11982, %v11981
    %v12023 = vpack.c.b16 %v11984, %v11983
    %v12024 = vpack.c.b16 %v11986, %v11985
    %v12025 = vpack.c.b16 %v11988, %v11987
    %v12026 = vpack.c.b16 %v11990, %v11989
    %v12027 = vpack.c.b16 %v11992, %v11991
    %v12028 = vpack.c.b16 %v11994, %v11993
    %v12029 = vpack.c.b16 %v11996, %v11995
    %v12030 = vpack.c.b16 %v11998, %v11997
    %12063 = vmatprep.subr.bf16.mxu0 0
    %12064 = vmatpush1.bf16.msra.mxu0 %v11999
    %12065 = vmatprep.subr.bf16.mxu0 0
    %12066 = vmatpush1.bf16.msra.mxu0 %v12000
    %12067 = vmatprep.subr.bf16.mxu0 0
    %12068 = vmatpush1.bf16.msra.mxu0 %v12001
    %12069 = vmatprep.subr.bf16.mxu0 0
    %12070 = vmatpush1.bf16.msra.mxu0 %v12002
    %12071 = vmatprep.subr.bf16.mxu0 0
    %12072 = vmatpush1.bf16.msra.mxu0 %v12003
    %12073 = vmatprep.subr.bf16.mxu0 0
    %12074 = vmatpush1.bf16.msra.mxu0 %v12004
    %12075 = vmatprep.subr.bf16.mxu0 0
    %12076 = vmatpush1.bf16.msra.mxu0 %v12005
    %12077 = vmatprep.subr.bf16.mxu0 0
    %12078 = vmatpush1.bf16.msra.mxu0 %v12006
    %12079 = vmatprep.subr.bf16.mxu0 0
    %12080 = vmatpush1.bf16.msra.mxu0 %v12007
    %12081 = vmatprep.subr.bf16.mxu0 0
    %12082 = vmatpush1.bf16.msra.mxu0 %v12008
    %12083 = vmatprep.subr.bf16.mxu0 0
    %12084 = vmatpush1.bf16.msra.mxu0 %v12009
    %12085 = vmatprep.subr.bf16.mxu0 0
    %12086 = vmatpush1.bf16.msra.mxu0 %v12010
    %12087 = vmatprep.subr.bf16.mxu0 0
    %12088 = vmatpush1.bf16.msra.mxu0 %v12011
    %12089 = vmatprep.subr.bf16.mxu0 0
    %12090 = vmatpush1.bf16.msra.mxu0 %v12012
    %12091 = vmatprep.subr.bf16.mxu0 0
    %12092 = vmatpush1.bf16.msra.mxu0 %v12013
    %12093 = vmatprep.subr.bf16.mxu0 0
    %12094 = vmatpush1.bf16.msra.mxu0 %v12014
    %12095 = vmatprep.mubr.bf16.mxu0 %v11797
    %12096 = vmatmul.mubr.bf16.gmra.mrb[0].mxu0 %v11796
    %v12097 = vpop.f32.mrb[0].mxu0
    %v12098 = vadd.f32 %v11869, %v12097
    %v12099 = vpop.f32.mrb[0].mxu0
    %v12100 = vpop.f32.mrb[0].mxu0
    %v12101 = vadd.f32 %v11869, %v12100
    %v12102 = vpop.f32.mrb[0].mxu0
    %12103 = vdwg.mxu0
    %12104 = vmatprep.subr.bf16.mxu0 0
    %12105 = vmatpush1.bf16.msra.mxu0 %v12015
    %12106 = vmatprep.subr.bf16.mxu0 0
    %12107 = vmatpush1.bf16.msra.mxu0 %v12016
    %12108 = vmatprep.subr.bf16.mxu0 0
    %12109 = vmatpush1.bf16.msra.mxu0 %v12017
    %12110 = vmatprep.subr.bf16.mxu0 0
    %12111 = vmatpush1.bf16.msra.mxu0 %v12018
    %12112 = vmatprep.subr.bf16.mxu0 0
    %12113 = vmatpush1.bf16.msra.mxu0 %v12019
    %12114 = vmatprep.subr.bf16.mxu0 0
    %12115 = vmatpush1.bf16.msra.mxu0 %v12020
    %12116 = vmatprep.subr.bf16.mxu0 0
    %12117 = vmatpush1.bf16.msra.mxu0 %v12021
    %12118 = vmatprep.subr.bf16.mxu0 0
    %12119 = vmatpush1.bf16.msra.mxu0 %v12022
    %12120 = vmatprep.subr.bf16.mxu0 0
    %12121 = vmatpush1.bf16.msra.mxu0 %v12023
    %12122 = vmatprep.subr.bf16.mxu0 0
    %12123 = vmatpush1.bf16.msra.mxu0 %v12024
    %12124 = vmatprep.subr.bf16.mxu0 0
    %12125 = vmatpush1.bf16.msra.mxu0 %v12025
    %12126 = vmatprep.subr.bf16.mxu0 0
    %12127 = vmatpush1.bf16.msra.mxu0 %v12026
    %12128 = vmatprep.subr.bf16.mxu0 0
    %12129 = vmatpush1.bf16.msra.mxu0 %v12027
    %12130 = vmatprep.subr.bf16.mxu0 0
    %12131 = vmatpush1.bf16.msra.mxu0 %v12028
    %12132 = vmatprep.subr.bf16.mxu0 0
    %12133 = vmatpush1.bf16.msra.mxu0 %v12029
    %12134 = vmatprep.subr.bf16.mxu0 0
    %12135 = vmatpush1.bf16.msra.mxu0 %v12030
    %12136 = vmatprep.mubr.bf16.mxu0 %v11799
    %12137 = vmatmul.mubr.bf16.gmra.mrb[0].mxu0 %v11798
    %v12138 = vpop.f32.mrb[0].mxu0
    %v12139 = vadd.f32 %v12098, %v12138
    %v12140 = vpop.f32.mrb[0].mxu0
    %v12141 = vpop.f32.mrb[0].mxu0
    %v12142 = vadd.f32 %v12101, %v12141
    %v12143 = vpop.f32.mrb[0].mxu0
    %12144 = vdwg.mxu0
    %v12145 = vtanh.pop %v12139
    %v12146 = vtanh.pop %v12142
    %v12147 = vld [vmem:[%s12] sm:$0xf]
    %v12148 = vld [vmem:[%s12 + $0x4] sm:$0xf]
    %v12149 = vld [vmem:[%s12 + $0x8] sm:$0xf]
    %v12150 = vld [vmem:[%s12 + $0xc] sm:$0xf]
    %v12151 = vld [vmem:[%s12 + $0x10] sm:$0xf]
    %v12152 = vld [vmem:[%s12 + $0x14] sm:$0xf]
    %v12153 = vld [vmem:[%s12 + $0x18] sm:$0xf]
    %v12154 = vld [vmem:[%s12 + $0x1c] sm:$0xf]
    %v12155 = vld [vmem:[%s12 + $0x20] sm:$0xf]
    %v12156 = vld [vmem:[%s12 + $0x24] sm:$0xf]
    %v12157 = vld [vmem:[%s12 + $0x28] sm:$0xf]
    %v12158 = vld [vmem:[%s12 + $0x2c] sm:$0xf]
    %v12159 = vld [vmem:[%s12 + $0x30] sm:$0xf]
    %v12160 = vld [vmem:[%s12 + $0x34] sm:$0xf]
    %v12161 = vld [vmem:[%s12 + $0x38] sm:$0xf]
    %v12162 = vld [vmem:[%s12 + $0x3c] sm:$0xf]
    %v12163 = vld [vmem:[%s12 + $0x40] sm:$0xf]
    %v12164 = vld [vmem:[%s12 + $0x44] sm:$0xf]
    %v12165 = vld [vmem:[%s12 + $0x48] sm:$0xf]
    %v12166 = vld [vmem:[%s12 + $0x4c] sm:$0xf]
    %v12167 = vld [vmem:[%s12 + $0x50] sm:$0xf]
    %v12168 = vld [vmem:[%s12 + $0x54] sm:$0xf]
    %v12169 = vld [vmem:[%s12 + $0x58] sm:$0xf]
    %v12170 = vld [vmem:[%s12 + $0x5c] sm:$0xf]
    %v12171 = vld [vmem:[%s12 + $0x60] sm:$0xf]
    %v12172 = vld [vmem:[%s12 + $0x64] sm:$0xf]
    %v12173 = vld [vmem:[%s12 + $0x68] sm:$0xf]
    %v12174 = vld [vmem:[%s12 + $0x6c] sm:$0xf]
    %v12175 = vld [vmem:[%s12 + $0x70] sm:$0xf]
    %v12176 = vld [vmem:[%s12 + $0x74] sm:$0xf]
    %v12177 = vld [vmem:[%s12 + $0x78] sm:$0xf]
    %v12178 = vld [vmem:[%s12 + $0x7c] sm:$0xf]
    %v12179 = vld [vmem:[%s12 + $0x80] sm:$0xf]
    %v12180 = vld [vmem:[%s12 + $0x84] sm:$0xf]
    %v12181 = vld [vmem:[%s12 + $0x88] sm:$0xf]
    %v12182 = vld [vmem:[%s12 + $0x8c] sm:$0xf]
    %v12183 = vld [vmem:[%s12 + $0x90] sm:$0xf]
    %v12184 = vld [vmem:[%s12 + $0x94] sm:$0xf]
    %v12185 = vld [vmem:[%s12 + $0x98] sm:$0xf]
    %v12186 = vld [vmem:[%s12 + $0x9c] sm:$0xf]
    %v12187 = vld [vmem:[%s12 + $0xa0] sm:$0xf]
    %v12188 = vld [vmem:[%s12 + $0xa4] sm:$0xf]
    %v12189 = vld [vmem:[%s12 + $0xa8] sm:$0xf]
    %v12190 = vld [vmem:[%s12 + $0xac] sm:$0xf]
    %v12191 = vld [vmem:[%s12 + $0xb0] sm:$0xf]
    %v12192 = vld [vmem:[%s12 + $0xb4] sm:$0xf]
    %v12193 = vld [vmem:[%s12 + $0xb8] sm:$0xf]
    %v12194 = vld [vmem:[%s12 + $0xbc] sm:$0xf]
    %v12195 = vld [vmem:[%s12 + $0xc0] sm:$0xf]
    %v12196 = vld [vmem:[%s12 + $0xc4] sm:$0xf]
    %v12197 = vld [vmem:[%s12 + $0xc8] sm:$0xf]
    %v12198 = vld [vmem:[%s12 + $0xcc] sm:$0xf]
    %v12199 = vld [vmem:[%s12 + $0xd0] sm:$0xf]
    %v12200 = vld [vmem:[%s12 + $0xd4] sm:$0xf]
    %v12201 = vld [vmem:[%s12 + $0xd8] sm:$0xf]
    %v12202 = vld [vmem:[%s12 + $0xdc] sm:$0xf]
    %v12203 = vld [vmem:[%s12 + $0xe0] sm:$0xf]
    %v12204 = vld [vmem:[%s12 + $0xe4] sm:$0xf]
    %v12205 = vld [vmem:[%s12 + $0xe8] sm:$0xf]
    %v12206 = vld [vmem:[%s12 + $0xec] sm:$0xf]
    %v12207 = vld [vmem:[%s12 + $0xf0] sm:$0xf]
    %v12208 = vld [vmem:[%s12 + $0xf4] sm:$0xf]
    %v12209 = vld [vmem:[%s12 + $0xf8] sm:$0xf]
    %v12210 = vld [vmem:[%s12 + $0xfc] sm:$0xf]
    %v12211 = vld [vmem:[%s13] sm:$0x1]
    %v12213 = vlaneseq
    %v12214 = vshrl.u32 %v12213, 7
    %v12215 = vsub.s32 0, %v12214
    %v12216 = vrot.slane %v12211, %v12215
    %v12282 = vunpack.c.l.b16 %v12147
    %v12283 = vunpack.c.l.b16 %v12148
    %v12284 = vunpack.c.l.b16 %v12149
    %v12285 = vunpack.c.l.b16 %v12150
    %v12286 = vunpack.c.l.b16 %v12151
    %v12287 = vunpack.c.l.b16 %v12152
    %v12288 = vunpack.c.l.b16 %v12153
    %v12289 = vunpack.c.l.b16 %v12154
    %v12290 = vunpack.c.l.b16 %v12155
    %v12291 = vunpack.c.l.b16 %v12156
    %v12292 = vunpack.c.l.b16 %v12157
    %v12293 = vunpack.c.l.b16 %v12158
    %v12294 = vunpack.c.l.b16 %v12159
    %v12295 = vunpack.c.l.b16 %v12160
    %v12296 = vunpack.c.l.b16 %v12161
    %v12297 = vunpack.c.l.b16 %v12162
    %v12298 = vunpack.c.l.b16 %v12163
    %v12299 = vunpack.c.l.b16 %v12164
    %v12300 = vunpack.c.l.b16 %v12165
    %v12301 = vunpack.c.l.b16 %v12166
    %v12302 = vunpack.c.l.b16 %v12167
    %v12303 = vunpack.c.l.b16 %v12168
    %v12304 = vunpack.c.l.b16 %v12169
    %v12305 = vunpack.c.l.b16 %v12170
    %v12306 = vunpack.c.l.b16 %v12171
    %v12307 = vunpack.c.l.b16 %v12172
    %v12308 = vunpack.c.l.b16 %v12173
    %v12309 = vunpack.c.l.b16 %v12174
    %v12310 = vunpack.c.l.b16 %v12175
    %v12311 = vunpack.c.l.b16 %v12176
    %v12312 = vunpack.c.l.b16 %v12177
    %v12313 = vunpack.c.l.b16 %v12178
    %v12314 = vunpack.c.l.b16 %v12179
    %v12315 = vunpack.c.l.b16 %v12180
    %v12316 = vunpack.c.l.b16 %v12181
    %v12317 = vunpack.c.l.b16 %v12182
    %v12318 = vunpack.c.l.b16 %v12183
    %v12319 = vunpack.c.l.b16 %v12184
    %v12320 = vunpack.c.l.b16 %v12185
    %v12321 = vunpack.c.l.b16 %v12186
    %v12322 = vunpack.c.l.b16 %v12187
    %v12323 = vunpack.c.l.b16 %v12188
    %v12324 = vunpack.c.l.b16 %v12189
    %v12325 = vunpack.c.l.b16 %v12190
    %v12326 = vunpack.c.l.b16 %v12191
    %v12327 = vunpack.c.l.b16 %v12192
    %v12328 = vunpack.c.l.b16 %v12193
    %v12329 = vunpack.c.l.b16 %v12194
    %v12330 = vunpack.c.l.b16 %v12195
    %v12331 = vunpack.c.l.b16 %v12196
    %v12332 = vunpack.c.l.b16 %v12197
    %v12333 = vunpack.c.l.b16 %v12198
    %v12334 = vunpack.c.l.b16 %v12199
    %v12335 = vunpack.c.l.b16 %v12200
    %v12336 = vunpack.c.l.b16 %v12201
    %v12337 = vunpack.c.l.b16 %v12202
    %v12338 = vunpack.c.l.b16 %v12203
    %v12339 = vunpack.c.l.b16 %v12204
    %v12340 = vunpack.c.l.b16 %v12205
    %v12341 = vunpack.c.l.b16 %v12206
    %v12342 = vunpack.c.l.b16 %v12207
    %v12343 = vunpack.c.l.b16 %v12208
    %v12344 = vunpack.c.l.b16 %v12209
    %v12345 = vunpack.c.l.b16 %v12210
    %v12346 = vpack.c.b16 %v12283, %v12282
    %v12347 = vpack.c.b16 %v12285, %v12284
    %v12348 = vpack.c.b16 %v12287, %v12286
    %v12349 = vpack.c.b16 %v12289, %v12288
    %v12350 = vpack.c.b16 %v12291, %v12290
    %v12351 = vpack.c.b16 %v12293, %v12292
    %v12352 = vpack.c.b16 %v12295, %v12294
    %v12353 = vpack.c.b16 %v12297, %v12296
    %v12354 = vpack.c.b16 %v12299, %v12298
    %v12355 = vpack.c.b16 %v12301, %v12300
    %v12356 = vpack.c.b16 %v12303, %v12302
    %v12357 = vpack.c.b16 %v12305, %v12304
    %v12358 = vpack.c.b16 %v12307, %v12306
    %v12359 = vpack.c.b16 %v12309, %v12308
    %v12360 = vpack.c.b16 %v12311, %v12310
    %v12361 = vpack.c.b16 %v12313, %v12312
    %v12362 = vpack.c.b16 %v12315, %v12314
    %v12363 = vpack.c.b16 %v12317, %v12316
    %v12364 = vpack.c.b16 %v12319, %v12318
    %v12365 = vpack.c.b16 %v12321, %v12320
    %v12366 = vpack.c.b16 %v12323, %v12322
    %v12367 = vpack.c.b16 %v12325, %v12324
    %v12368 = vpack.c.b16 %v12327, %v12326
    %v12369 = vpack.c.b16 %v12329, %v12328
    %v12370 = vpack.c.b16 %v12331, %v12330
    %v12371 = vpack.c.b16 %v12333, %v12332
    %v12372 = vpack.c.b16 %v12335, %v12334
    %v12373 = vpack.c.b16 %v12337, %v12336
    %v12374 = vpack.c.b16 %v12339, %v12338
    %v12375 = vpack.c.b16 %v12341, %v12340
    %v12376 = vpack.c.b16 %v12343, %v12342
    %v12377 = vpack.c.b16 %v12345, %v12344
    %12410 = vmatprep.subr.bf16.mxu0 0
    %12411 = vmatpush1.bf16.msra.mxu0 %v12346
    %12412 = vmatprep.subr.bf16.mxu0 0
    %12413 = vmatpush1.bf16.msra.mxu0 %v12347
    %12414 = vmatprep.subr.bf16.mxu0 0
    %12415 = vmatpush1.bf16.msra.mxu0 %v12348
    %12416 = vmatprep.subr.bf16.mxu0 0
    %12417 = vmatpush1.bf16.msra.mxu0 %v12349
    %12418 = vmatprep.subr.bf16.mxu0 0
    %12419 = vmatpush1.bf16.msra.mxu0 %v12350
    %12420 = vmatprep.subr.bf16.mxu0 0
    %12421 = vmatpush1.bf16.msra.mxu0 %v12351
    %12422 = vmatprep.subr.bf16.mxu0 0
    %12423 = vmatpush1.bf16.msra.mxu0 %v12352
    %12424 = vmatprep.subr.bf16.mxu0 0
    %12425 = vmatpush1.bf16.msra.mxu0 %v12353
    %12426 = vmatprep.subr.bf16.mxu0 0
    %12427 = vmatpush1.bf16.msra.mxu0 %v12354
    %12428 = vmatprep.subr.bf16.mxu0 0
    %12429 = vmatpush1.bf16.msra.mxu0 %v12355
    %12430 = vmatprep.subr.bf16.mxu0 0
    %12431 = vmatpush1.bf16.msra.mxu0 %v12356
    %12432 = vmatprep.subr.bf16.mxu0 0
    %12433 = vmatpush1.bf16.msra.mxu0 %v12357
    %12434 = vmatprep.subr.bf16.mxu0 0
    %12435 = vmatpush1.bf16.msra.mxu0 %v12358
    %12436 = vmatprep.subr.bf16.mxu0 0
    %12437 = vmatpush1.bf16.msra.mxu0 %v12359
    %12438 = vmatprep.subr.bf16.mxu0 0
    %12439 = vmatpush1.bf16.msra.mxu0 %v12360
    %12440 = vmatprep.subr.bf16.mxu0 0
    %12441 = vmatpush1.bf16.msra.mxu0 %v12361
    %12442 = vmatprep.mubr.bf16.mxu0 %v11797
    %12443 = vmatmul.mubr.bf16.gmra.mrb[0].mxu0 %v11796
    %v12444 = vpop.f32.mrb[0].mxu0
    %v12445 = vadd.f32 %v12216, %v12444
    %v12446 = vpop.f32.mrb[0].mxu0
    %v12447 = vpop.f32.mrb[0].mxu0
    %v12448 = vadd.f32 %v12216, %v12447
    %v12449 = vpop.f32.mrb[0].mxu0
    %12450 = vdwg.mxu0
    %12451 = vmatprep.subr.bf16.mxu0 0
    %12452 = vmatpush1.bf16.msra.mxu0 %v12362
    %12453 = vmatprep.subr.bf16.mxu0 0
    %12454 = vmatpush1.bf16.msra.mxu0 %v12363
    %12455 = vmatprep.subr.bf16.mxu0 0
    %12456 = vmatpush1.bf16.msra.mxu0 %v12364
    %12457 = vmatprep.subr.bf16.mxu0 0
    %12458 = vmatpush1.bf16.msra.mxu0 %v12365
    %12459 = vmatprep.subr.bf16.mxu0 0
    %12460 = vmatpush1.bf16.msra.mxu0 %v12366
    %12461 = vmatprep.subr.bf16.mxu0 0
    %12462 = vmatpush1.bf16.msra.mxu0 %v12367
    %12463 = vmatprep.subr.bf16.mxu0 0
    %12464 = vmatpush1.bf16.msra.mxu0 %v12368
    %12465 = vmatprep.subr.bf16.mxu0 0
    %12466 = vmatpush1.bf16.msra.mxu0 %v12369
    %12467 = vmatprep.subr.bf16.mxu0 0
    %12468 = vmatpush1.bf16.msra.mxu0 %v12370
    %12469 = vmatprep.subr.bf16.mxu0 0
    %12470 = vmatpush1.bf16.msra.mxu0 %v12371
    %12471 = vmatprep.subr.bf16.mxu0 0
    %12472 = vmatpush1.bf16.msra.mxu0 %v12372
    %12473 = vmatprep.subr.bf16.mxu0 0
    %12474 = vmatpush1.bf16.msra.mxu0 %v12373
    %12475 = vmatprep.subr.bf16.mxu0 0
    %12476 = vmatpush1.bf16.msra.mxu0 %v12374
    %12477 = vmatprep.subr.bf16.mxu0 0
    %12478 = vmatpush1.bf16.msra.mxu0 %v12375
    %12479 = vmatprep.subr.bf16.mxu0 0
    %12480 = vmatpush1.bf16.msra.mxu0 %v12376
    %12481 = vmatprep.subr.bf16.mxu0 0
    %12482 = vmatpush1.bf16.msra.mxu0 %v12377
    %12483 = vmatprep.mubr.bf16.mxu0 %v11799
    %12484 = vmatmul.mubr.bf16.gmra.mrb[0].mxu0 %v11798
    %v12485 = vpop.f32.mrb[0].mxu0
    %v12486 = vadd.f32 %v12445, %v12485
    %v12487 = vpop.f32.mrb[0].mxu0
    %v12488 = vpop.f32.mrb[0].mxu0
    %v12489 = vadd.f32 %v12448, %v12488
    %v12490 = vpop.f32.mrb[0].mxu0
    %12491 = vdwg.mxu0
    %v12492 = vsub.f32 0.0, %v12486
    %v12493 = vsub.f32 0.0, %v12489
    %v12494 = vmul.f32 %v12492, 1.442695
    %v12495 = vpow.pop %v12494
    %v12496 = vmul.f32 %v12493, 1.442695
    %v12497 = vpow.pop %v12496
    %v12498 = vadd.f32 %v12495, 1.0
    %v12499 = vadd.f32 %v12497, 1.0
    %v12500 = vrcp.pop %v12498
    %v12501 = vmul.f32 1.0, %v12500
    %v12502 = vrcp.pop %v12499
    %v12503 = vmul.f32 1.0, %v12502
    %v12504 = vmul.f32 %v12145, %v12501
    %v12505 = vmul.f32 %v12146, %v12503
    %v12506 = vld [vmem:[%s14] sm:$0x1]
    %v12508 = vlaneseq
    %v12509 = vshrl.u32 %v12508, 7
    %v12510 = vsub.s32 0, %v12509
    %v12511 = vrot.slane %v12506, %v12510
    %v12513 = vmul.f32 %v12504, %v12511
    %v12514 = vmul.f32 %v12505, %v12511
    %12515 = vadd.xlane.f32.xlu0 %v12513
    %v12516 = vpop.xlane.xlu0 %12515
    %12517 = vadd.xlane.f32.xlu0 %v12514
    %v12518 = vpop.xlane.xlu0 %12517
    %v12519 = vld [vmem:[#allocation3] sm:$0x1]
    %v12521 = vlaneseq
    %v12522 = vshrl.u32 %v12521, 7
    %v12523 = vsub.s32 0, %v12522
    %v12524 = vrot.slane %v12519, %v12523
    %v12526 = vadd.f32 %v12516, %v12524
    %v12527 = vadd.f32 %v12518, %v12524
    %vm12528 = vcmask 7168
    %v12529 = vsel %vm12528, %v12526, -inf
    %v12530 = vrot.slane %v12529, 4
    %v12531 = vmax.f32 %v12529, %v12530
    %v12532 = vrot.slane %v12531, 2
    %v12533 = vmax.f32 %v12531, %v12532
    %v12534 = vrot.slane %v12533, 1
    %v12535 = vmax.f32 %v12533, %v12534
    %v12536 = vsub.f32 %v12526, %v12535
    %v12537 = vmul.f32 %v12536, 1.442695
    %v12538 = vpow.pop %v12537
    %v12539 = vsel %vm12528, %v12538, 0.0
    %v12540 = vrot.slane %v12539, 4
    %v12541 = vadd.f32 %v12539, %v12540
    %v12542 = vrot.slane %v12541, 2
    %v12543 = vadd.f32 %v12541, %v12542
    %v12544 = vrot.slane %v12543, 1
    %v12545 = vadd.f32 %v12543, %v12544
    %v12546 = vrcp.pop %v12545
    %v12547 = vmul.f32 %v12538, %v12546
    %v12548 = vsel %vm12528, %v12527, -inf
    %v12549 = vrot.slane %v12548, 4
    %v12550 = vmax.f32 %v12548, %v12549
    %v12551 = vrot.slane %v12550, 2
    %v12552 = vmax.f32 %v12550, %v12551
    %v12553 = vrot.slane %v12552, 1
    %v12554 = vmax.f32 %v12552, %v12553
    %v12555 = vsub.f32 %v12527, %v12554
    %v12556 = vmul.f32 %v12555, 1.442695
    %v12557 = vpow.pop %v12556
    %v12558 = vsel %vm12528, %v12557, 0.0
    %v12559 = vrot.slane %v12558, 4
    %v12560 = vadd.f32 %v12558, %v12559
    %v12561 = vrot.slane %v12560, 2
    %v12562 = vadd.f32 %v12560, %v12561
    %v12563 = vrot.slane %v12562, 1
    %v12564 = vadd.f32 %v12562, %v12563
    %v12565 = vrcp.pop %v12564
    %v12566 = vmul.f32 %v12557, %v12565
    %12568 = vset.pattern.permute.xlu0 0
    %12569 = vperm.xlu0 %12568, %v12547
    %v12570 = vpop.permute.xlu0 %12569
    %v12572 = vmul.f32 %v12570, %v11788
    %v12573 = vmul.f32 %v12570, %v11789
    %v12574 = vmul.f32 %v12570, %v11790
    %v12575 = vmul.f32 %v12570, %v11791
    %v12576 = vrot.slane %v12572, 4
    %v12577 = vadd.f32 %v12572, %v12576
    %v12578 = vrot.slane %v12577, 2
    %v12579 = vadd.f32 %v12577, %v12578
    %v12580 = vrot.slane %v12579, 1
    %v12581 = vadd.f32 %v12579, %v12580
    %v12582 = vrot.slane %v12573, 4
    %v12583 = vadd.f32 %v12573, %v12582
    %v12584 = vrot.slane %v12583, 2
    %v12585 = vadd.f32 %v12583, %v12584
    %v12586 = vrot.slane %v12585, 1
    %v12587 = vadd.f32 %v12585, %v12586
    %v12588 = vrot.slane %v12574, 4
    %v12589 = vadd.f32 %v12574, %v12588
    %v12590 = vrot.slane %v12589, 2
    %v12591 = vadd.f32 %v12589, %v12590
    %v12592 = vrot.slane %v12591, 1
    %v12593 = vadd.f32 %v12591, %v12592
    %v12594 = vrot.slane %v12575, 4
    %v12595 = vadd.f32 %v12575, %v12594
    %v12596 = vrot.slane %v12595, 2
    %v12597 = vadd.f32 %v12595, %v12596
    %v12598 = vrot.slane %v12597, 1
    %v12599 = vadd.f32 %v12597, %v12598
    %12601 = vset.pattern.permute.xlu0 0
    %12602 = vperm.xlu0 %12601, %v12566
    %v12603 = vpop.permute.xlu0 %12602
    %v12605 = vmul.f32 %v12603, %v11792
    %v12606 = vmul.f32 %v12603, %v11793
    %v12607 = vmul.f32 %v12603, %v11794
    %v12608 = vmul.f32 %v12603, %v11795
    %v12609 = vrot.slane %v12605, 4
    %v12610 = vadd.f32 %v12605, %v12609
    %v12611 = vrot.slane %v12610, 2
    %v12612 = vadd.f32 %v12610, %v12611
    %v12613 = vrot.slane %v12612, 1
    %v12614 = vadd.f32 %v12612, %v12613
    %v12615 = vrot.slane %v12606, 4
    %v12616 = vadd.f32 %v12606, %v12615
    %v12617 = vrot.slane %v12616, 2
    %v12618 = vadd.f32 %v12616, %v12617
    %v12619 = vrot.slane %v12618, 1
    %v12620 = vadd.f32 %v12618, %v12619
    %v12621 = vrot.slane %v12607, 4
    %v12622 = vadd.f32 %v12607, %v12621
    %v12623 = vrot.slane %v12622, 2
    %v12624 = vadd.f32 %v12622, %v12623
    %v12625 = vrot.slane %v12624, 1
    %v12626 = vadd.f32 %v12624, %v12625
    %v12627 = vrot.slane %v12608, 4
    %v12628 = vadd.f32 %v12608, %v12627
    %v12629 = vrot.slane %v12628, 2
    %v12630 = vadd.f32 %v12628, %v12629
    %v12631 = vrot.slane %v12630, 1
    %v12632 = vadd.f32 %v12630, %v12631
    %vm12633 = vcmask 1040384
    %v12634 = vsel %vm12633, %v12581, %v12614
    %v12635 = vsel %vm12633, %v12587, %v12620
    %v12636 = vsel %vm12633, %v12593, %v12626
    %v12637 = vsel %vm12633, %v12599, %v12632
    %v12638 = vld [vmem:[%s16] sm:$0xf]
    %v12640 = vlaneseq
    %v12641 = vshrl.u32 %v12640, 7
    %v12642 = vsub.s32 0, %v12641
    %v12643 = vrot.slane %v12638, %v12642
    %v12644 = vlaneseq
    %v12645 = vshrl.u32 %v12644, 7
    %v12646 = vsub.s32 1, %v12645
    %v12647 = vrot.slane %v12638, %v12646
    %v12648 = vlaneseq
    %v12649 = vshrl.u32 %v12648, 7
    %v12650 = vsub.s32 2, %v12649
    %v12651 = vrot.slane %v12638, %v12650
    %v12652 = vlaneseq
    %v12653 = vshrl.u32 %v12652, 7
    %v12654 = vsub.s32 3, %v12653
    %v12655 = vrot.slane %v12638, %v12654
    %v12660 = vmul.f32 %v12634, %v12643
    %v12661 = vmul.f32 %v12635, %v12647
    %v12662 = vmul.f32 %v12636, %v12651
    %v12663 = vmul.f32 %v12637, %v12655
    %vm12664 = vcmask 1041408
    %v12665 = vsel %vm12664, %v12660, 0.0
    %v12666 = vsel %vm12664, %v12661, 0.0
    %v12667 = vadd.f32 %v12665, %v12666
    %v12668 = vsel %vm12664, %v12662, 0.0
    %v12669 = vadd.f32 %v12667, %v12668
    %v12670 = vsel %vm12664, %v12663, 0.0
    %v12671 = vadd.f32 %v12669, %v12670
    %12672 = vadd.xlane.f32.xlu0 %v12671
    %v12673 = vpop.xlane.xlu0 %12672
    %v12674 = vld [vmem:[#allocation4] sm:$0x1]
    %v12676 = vlaneseq
    %v12677 = vshrl.u32 %v12676, 7
    %v12678 = vsub.s32 0, %v12677
    %v12679 = vrot.slane %v12674, %v12678
    %v12681 = vadd.f32 %v12673, %v12679
    %v12682 = vsub.f32 0.0, %v12681
    %v12683 = vmul.f32 %v12682, 1.442695
    %v12684 = vpow.pop %v12683
    %v12685 = vadd.f32 %v12684, 1.0
    %v12686 = vrcp.pop %v12685
    %v12687 = vmul.f32 1.0, %v12686
    %vm12688 = vcmp.ge.f32.partialorder %v12687, 0.5
    %v12689 = vsel %vm12688, 1, 0
    %v12690 = vcvt.s32.f32 %v12689
    %12692 = vset.pattern.permute.xlu0 0
    %12693 = vperm.xlu0 %12692, %v12687
    %v12694 = vpop.permute.xlu0 %12693
    %12696 = vst [vmem:[%s18] sm:$0x3] %v12694
    %12698 = vset.pattern.permute.xlu0 0
    %12699 = vperm.xlu0 %12698, %v12690
    %v12700 = vpop.permute.xlu0 %12699
    %12702 = vst [vmem:[%s19] sm:$0x3] %v12700
  $region77: #{forward.1} parent=0 // pred_fallthru
    _
  // Predicated region
  $region78: #{forward.1} parent=0 // pred_check
    _
  $region79: #{forward.1} parent=0 // pred_check_branch
    %12704 = sbr.rel (0) target = $region81
  $region80: #{forward.1} parent=0 // pred_region
    _
  $region81: #{forward.1} parent=0 // pred_fallthru
    _
  // Predicated region
  $region82: #{forward.1} parent=0 // pred_check
    _
  $region83: #{forward.1} parent=0 // pred_check_branch
    %12706 = sbr.rel (0) target = $region85
  $region84: #{forward.1} parent=0 // pred_region
    _
  $region85: #{forward.1} parent=0 // pred_fallthru
    _
  // Predicated region
  $region86: #{forward.1} parent=0 // pred_check
    _
  $region87: #{forward.1} parent=0 // pred_check_branch
    %12708 = sbr.rel (0) target = $region89
  $region88: #{forward.1} parent=0 // pred_region
    _
  $region89: #{forward.1} parent=0 // pred_fallthru
    _
  // Predicated region
  $region90: #{forward.1} parent=0 // pred_check
    _
  $region91: #{forward.1} parent=0 // pred_check_branch
    %12710 = sbr.rel (0) target = $region93
  $region92: #{forward.1} parent=0 // pred_region
    _
  $region93: #{forward.1} parent=0 // pred_fallthru
    _

</llo_original>
